<compile_context>
chip_gen: v5e
topology: v5e:2x2
jax: 0.10.0
libtpu: 0.0.40
codegen_flags: <defaults>
</compile_context>

<pallas_src>
import functools
import numpy as np

import jax
import jax.numpy as jnp
from jax.experimental import pallas as pl
from jax.experimental.pallas import tpu as pltpu


def _round_up(x, m):
    return (x + m - 1) // m * m


@functools.lru_cache(maxsize=1)
def _vmem_limit_bytes():
    """Per-generation VMEM limit: ~80% of physical (51 MB on v7x, 107 MB on
    the 128 MiB parts), leaving compiler headroom."""
    cap = 128 * 1024 * 1024
    try:
        cap = int(pltpu.get_tpu_info().vmem_capacity_bytes)
    except Exception:
        pass
    return min(int(cap * 0.8), 110 * 1024 * 1024)


# ----------------------------------------------------------------------------
# Fused per-(image, row-tile) head kernel
# ----------------------------------------------------------------------------
def _head_level_kernel(x_ref, msk_ref, anc_ref,
                       w_refc, b_refc, w_cr, b_cr,
                       w_hcls, b_hcls, w_hreg, b_hreg, w_href, b_href,
                       o_ref,
                       xc_x, xc_a, xc_b,
                       *, TH, W, A, C_cls, means, stds, wh_ratio_clip):
    """One row tile of one image of one FPN level, fully fused.

    Spatial layout: everything is flattened as (row*Wp + col), Wp = W + 2
    (1 left + 1 right zero-pad column).  3x3 convs are 3 MXU matmuls with
    K = 3*Csrc (kx folded onto K via dx-folded scratch).  The tile carries a
    3-row halo on each side so the three chained convs stay exact; the row /
    column validity mask re-creates the conv zero padding between stages.

      x_ref   ((TH+7)*Wp, Cin)       zero-padded input window (compute dtype)
      msk_ref ((TH+4)*Wp, 1)   f32   1.0 where (image row valid) & (col < W)
      anc_ref (TH*Wp, ANC_P)   f32   comp-major anchors [x|y|w|h|ang|cos|sin]*A
      w_*     (3, 3*Csrc, Cout)      ky-major weights, (kx, cin) folded onto K
      b_*     (1, Cout)        f32
      o_ref   (TH*Wp, OUT_P)   f32   [cls | bbox | ref_bbox(cm) | ranchor(cm) | 0]
      xc_*    dx-folded VMEM scratch in the compute dtype
    """
    Wp = W + 2
    Cin = xc_x.shape[-1] // 3
    Cf = xc_a.shape[-1] // 3
    R_x = xc_x.shape[0]

    def conv3(xc, w_ref, b_ref, relu, out_rows, offset):
        """3x3 conv as 3 matmuls with K = 3*Csrc; output rows start `offset`
        source rows into the fold buffer."""
        rows = out_rows * Wp
        cout = w_ref.shape[-1]
        acc = jnp.zeros((rows, cout), jnp.float32)
        for ky in range(3):
            lhs = xc[pl.ds((offset + ky) * Wp, rows), :]
            acc = acc + jnp.dot(lhs, w_ref[ky],
                                preferred_element_type=jnp.float32)
        acc = acc + b_ref[...]
        if relu:
            acc = jnp.maximum(acc, 0.0)
        return acc

    def fold(dst, y, c, mask):
        """Re-pad conv output y with a zero border (row/col validity mask) and
        build dst[q, dx*c:(dx+1)*c] = padded(y)[q + dx].  No full-buffer zero
        fill: only the two border elements that are read but never overwritten
        are zeroed explicitly; jnp.where keeps the masking NaN-safe."""
        rows = y.shape[0]
        ym = jnp.where(mask > 0.0, y, 0.0).astype(dst.dtype)
        z = jnp.zeros((1, c), dst.dtype)
        dst[pl.ds(Wp, 1), 0:c] = z                        # top-left pad (dx=0)
        dst[pl.ds(rows + Wp - 1, 1), 2 * c:3 * c] = z     # bottom-right (dx=2)
        for dx in range(3):
            dst[pl.ds(Wp + 1 - dx, rows), dx * c:(dx + 1) * c] = ym

    # dx-fold the already zero-padded input window straight from the input
    # block (no f32 staging copy, no cast: scratch is in the compute dtype).
    # TODO(synk): for small-Cin configs on v5e, fold ky into K as well
    # (one K=9*Cin matmul per conv) to fill the 128-deep MXU.
    for dx in range(3):
        xc_x[pl.ds(0, R_x), dx * Cin:(dx + 1) * Cin] = x_ref[pl.ds(dx, R_x), :]

    mask_all = msk_ref[...]                               # ((TH+4)*Wp, 1)

    # ref branch.  NOTE: in the reference forward every stacked conv of a
    # branch reads the SAME input, so only the last conv of each stack can
    # affect the output; the wrapper therefore only passes that last conv.
    y_ref = conv3(xc_x, w_refc, b_refc, True, TH + 4, 0)  # image rows tile-2..+2
    fold(xc_a, y_ref, Cf, mask_all)

    # retina_ref head (comp-major lanes) + fused delta2rbox decode
    refbox = conv3(xc_a, w_href, b_href, False, TH, 2)    # (TH*Wp, 5*A)
    anc = anc_ref[...]
    max_ratio = abs(float(np.log(wh_ratio_clip)))
    comp = lambda v, c: v[:, c * A:(c + 1) * A]
    ddx = comp(refbox, 0) * stds[0] + means[0]
    ddy = comp(refbox, 1) * stds[1] + means[1]
    ddw = jnp.clip(comp(refbox, 2) * stds[2] + means[2], -max_ratio, max_ratio)
    ddh = jnp.clip(comp(refbox, 3) * stds[3] + means[3], -max_ratio, max_ratio)
    dda = comp(refbox, 4) * stds[4] + means[4]
    ax, ay = comp(anc, 0), comp(anc, 1)
    aw, ah = comp(anc, 2), comp(anc, 3)
    aang = comp(anc, 4)
    cosa, sina = comp(anc, 5), comp(anc, 6)               # host-precomputed
    gx = ddx * aw * cosa - ddy * ah * sina + ax
    gy = ddx * aw * sina + ddy * ah * cosa + ay
    gw = aw * jnp.exp(ddw)
    gh = ah * jnp.exp(ddh)
    ga = dda + aang          # s2anet delta2rbox convention (no re-normalise)
    ranchor = jnp.concatenate([gx, gy, gw, gh, ga], axis=-1)    # (TH*Wp, 5*A)

    # cls + reg stacked convs fused into one 2*Cf-wide matmul (shared LHS).
    y_cr = conv3(xc_a, w_cr, b_cr, True, TH + 2, 1)             # (.., 2*Cf)
    mask_mid = msk_ref[pl.ds(Wp, (TH + 2) * Wp), :]

    fold(xc_b, y_cr[:, :Cf], Cf, mask_mid)
    cls_y = conv3(xc_b, w_hcls, b_hcls, False, TH, 1)           # (TH*Wp, A*C)

    fold(xc_b, y_cr[:, Cf:], Cf, mask_mid)
    reg_y = conv3(xc_b, w_hreg, b_hreg, False, TH, 1)           # (TH*Wp, 5*A)

    # single lane-dense store of all four heads; wrapper slices channel ranges
    pieces = [cls_y, reg_y, refbox, ranchor]
    pad = o_ref.shape[-1] - (A * C_cls + 15 * A)
    if pad > 0:
        pieces.append(jnp.zeros((TH * Wp, pad), jnp.float32))
    o_ref[...] = jnp.concatenate(pieces, axis=-1).astype(o_ref.dtype)


# ----------------------------------------------------------------------------
# Wrapper around pallas_call (per level, jitted so boundary glue fuses)
# ----------------------------------------------------------------------------
@functools.partial(
    jax.jit,
    static_argnames=("num_anchors", "cls_out_channels", "means", "stds",
                     "wh_ratio_clip", "row_tile"))
def _forward_level(x_nchw, masks, anchors_cm, params, *,
                   num_anchors, cls_out_channels, means, stds, wh_ratio_clip,
                   row_tile):
    (w_refc, b_refc, w_cr, b_cr, w_hcls, b_hcls, w_hreg, b_hreg,
     w_href, b_href) = params
    N, Cin, H, W = x_nchw.shape
    A = num_anchors
    Ccls = cls_out_channels
    TH = row_tile
    nT = H // TH
    Wp = W + 2
    Cf = w_refc.shape[-1]
    ANC_P = anchors_cm.shape[-1]
    OUT_P = _round_up(A * Ccls + 15 * A, 128)
    cdt = w_refc.dtype

    # NCHW -> channels-last, zero-padded (3-row halo + 1 col each side), then
    # pre-materialised per-row-tile windows (one XLA copy; enables the 2-D
    # parallel grid with bounded VMEM residency per step).
    xpad = jnp.pad(jnp.transpose(x_nchw, (0, 2, 3, 1)),
                   ((0, 0), (3, 4), (1, 1), (0, 0))).astype(cdt)
    xt = jnp.stack([xpad[:, t * TH:t * TH + TH + 7] for t in range(nT)], axis=1)
    xt = xt.reshape(N, nT, (TH + 7) * Wp, Cin)

    kern = functools.partial(_head_level_kernel, TH=TH, W=W, A=A, C_cls=Ccls,
                             means=means, stds=stds,
                             wh_ratio_clip=wh_ratio_clip)

    def const_spec(shape):
        # TODO(synk): pipeline_mode=pl.Buffered(1) on these grid-invariant
        # blocks would reclaim their double buffers on v7x's 64 MiB VMEM.
        return pl.BlockSpec(shape, lambda n, t: (0,) * len(shape))

    in_specs = [
        pl.BlockSpec((None, None, (TH + 7) * Wp, Cin),
                     lambda n, t: (n, t, 0, 0)),
        pl.BlockSpec((None, (TH + 4) * Wp, 1), lambda n, t: (t, 0, 0)),
        pl.BlockSpec((TH * Wp, ANC_P), lambda n, t: (t, 0)),
    ]
    for w, b in ((w_refc, b_refc), (w_cr, b_cr), (w_hcls, b_hcls),
                 (w_hreg, b_hreg), (w_href, b_href)):
        in_specs.append(const_spec(w.shape))
        in_specs.append(const_spec(b.shape))

    # TODO(synk): optionally emit the cls / bbox logit lanes in bf16 to halve
    # output DMA bytes (refine_anchor coordinates should stay f32).
    out_shape = jax.ShapeDtypeStruct((N, H * Wp, OUT_P), jnp.float32)
    out_specs = pl.BlockSpec((None, TH * Wp, OUT_P), lambda n, t: (n, t, 0))

    scratch_shapes = [
        pltpu.VMEM(((TH + 6) * Wp, 3 * Cin), cdt),   # dx-folded input
        pltpu.VMEM(((TH + 6) * Wp, 3 * Cf), cdt),    # dx-folded ref_feat
        pltpu.VMEM(((TH + 4) * Wp, 3 * Cf), cdt),    # dx-folded cls/reg feat
    ]

    out = pl.pallas_call(
        kern,
        out_shape=out_shape,
        grid=(N, nT),
        in_specs=in_specs,
        out_specs=out_specs,
        scratch_shapes=scratch_shapes,
        compiler_params=pltpu.CompilerParams(
            dimension_semantics=("parallel", "parallel"),
            vmem_limit_bytes=_vmem_limit_bytes()),
    )(xt, masks, anchors_cm,
      w_refc, b_refc, w_cr, b_cr, w_hcls, b_hcls, w_hreg, b_hreg,
      w_href, b_href)

    o = out.reshape(N, H, Wp, OUT_P)[:, :, :W, :]
    CA = A * Ccls
    c1, c2, c3 = CA, CA + 5 * A, CA + 10 * A

    def comp_to_anchor_major(t):            # lane c*A + a  ->  lane a*5 + c
        return (t.reshape(N, H, W, 5, A).transpose(0, 1, 2, 4, 3)
                 .reshape(N, H, W, 5 * A))

    cls_score = jnp.transpose(o[..., :CA], (0, 3, 1, 2))
    bbox_pred = jnp.transpose(o[..., c1:c2], (0, 3, 1, 2))
    ref_bbox_pred = jnp.transpose(comp_to_anchor_major(o[..., c2:c3]),
                                  (0, 3, 1, 2))
    refine_anchor = comp_to_anchor_major(o[..., c3:c3 + 5 * A])
    return ref_bbox_pred, refine_anchor, cls_score, bbox_pred


# ----------------------------------------------------------------------------
# Anchor generation glue (numpy) — mirrors mmdet AnchorGenerator + rect2rbox
# ----------------------------------------------------------------------------
def _gen_base_anchors(base_size, scales, ratios):
    w = h = float(base_size)
    x_ctr = 0.5 * (w - 1)
    y_ctr = 0.5 * (h - 1)
    h_ratios = np.sqrt(np.asarray(ratios, np.float64))
    w_ratios = 1.0 / h_ratios
    ws = (w * w_ratios[:, None] * np.asarray(scales)[None, :]).reshape(-1)
    hs = (h * h_ratios[:, None] * np.asarray(scales)[None, :]).reshape(-1)
    base = np.stack([x_ctr - 0.5 * (ws - 1), y_ctr - 0.5 * (hs - 1),
                     x_ctr + 0.5 * (ws - 1), y_ctr + 0.5 * (hs - 1)], axis=-1)
    return np.round(base)


def _grid_anchors(base_anchors, featmap_size, stride):
    H, W = featmap_size
    shift_x = np.arange(W, dtype=np.float64) * stride
    shift_y = np.arange(H, dtype=np.float64) * stride
    xx = np.tile(shift_x, H)
    yy = np.repeat(shift_y, W)
    shifts = np.stack([xx, yy, xx, yy], axis=-1)             # (H*W, 4)
    allc = base_anchors[None, :, :] + shifts[:, None, :]     # (H*W, A, 4)
    return allc.reshape(-1, 4)


def _rect2rbox(rects):
    x_ctr = (rects[:, 0] + rects[:, 2]) / 2.0
    y_ctr = (rects[:, 1] + rects[:, 3]) / 2.0
    e1 = np.abs(rects[:, 2] - rects[:, 0])
    e2 = np.abs(rects[:, 3] - rects[:, 1])
    swap = e1 < e2
    w = np.where(swap, e2, e1)
    h = np.where(swap, e1, e2)
    ang = np.where(swap, np.pi / 2.0, 0.0)
    return np.stack([x_ctr, y_ctr, w, h, ang], axis=-1).astype(np.float32)


# ----------------------------------------------------------------------------
# Head (forward pass only — losses / NMS-based get_bboxes are training /
# post-processing paths, not part of forward())
# ----------------------------------------------------------------------------
class RBoxCasRetinaHeadPallas:
    def __init__(self, num_classes, in_channels, stacked_convs=4,
                 feat_channels=256, octave_base_scale=4, scales_per_octave=3,
                 anchor_ratios=(0.5, 1.0, 2.0),
                 anchor_strides=(4, 8, 16, 32, 64),
                 target_means=(0.0,) * 5, target_stds=(1.0,) * 5,
                 use_sigmoid_cls=True, compute_dtype=jnp.bfloat16,
                 row_tile=16, key=None):
        # The reference forward applies conv i>0 (feat_channels in) directly
        # to x / ref_feat (in_channels), so in_channels must equal
        # feat_channels for the reference itself to run.
        assert in_channels == feat_channels
        assert stacked_convs >= 1
        self.in_channels = in_channels
        self.num_classes = num_classes
        self.stacked_convs = stacked_convs
        self.feat_channels = feat_channels
        self.anchor_ratios = list(anchor_ratios)
        self.anchor_strides = list(anchor_strides)
        self.anchor_base_sizes = list(anchor_strides)
        self.target_means = tuple(float(m) for m in target_means)
        self.target_stds = tuple(float(s) for s in target_stds)
        self.compute_dtype = compute_dtype
        self.row_tile = max(8, int(row_tile))
        octave_scales = np.array(
            [2 ** (i / scales_per_octave) for i in range(scales_per_octave)])
        self.anchor_scales = octave_scales * octave_base_scale
        self.cls_out_channels = (num_classes - 1 if use_sigmoid_cls
                                 else num_classes)
        self.num_anchors = len(self.anchor_ratios) * len(self.anchor_scales)
        self.anc_pad = _round_up(7 * self.num_anchors, 128)
        self._const_cache = {}

        # parameters (deterministic init: normal std=0.01, like init_weights)
        key = jax.random.PRNGKey(0) if key is None else key
        keys = iter(jax.random.split(key, 3 * stacked_convs + 3))

        def make_conv(k, cin, cout, bias_val=0.0):
            # canonical layout: w (ky, kx, cin, cout), b (cout,)
            w = 0.01 * jax.random.normal(k, (3, 3, cin, cout), jnp.float32)
            b = jnp.full((cout,), bias_val, jnp.float32)
            return w, b

        chn = lambda i: in_channels if i == 0 else feat_channels
        self.cls_convs = [make_conv(next(keys), chn(i), feat_channels)
                          for i in range(stacked_convs)]
        self.reg_convs = [make_conv(next(keys), chn(i), feat_channels)
                          for i in range(stacked_convs)]
        self.ref_convs = [make_conv(next(keys), chn(i), feat_channels)
                          for i in range(stacked_convs)]
        bias_cls = float(-np.log((1.0 - 0.01) / 0.01))
        self.retina_cls = make_conv(next(keys), feat_channels,
                                    self.num_anchors * self.cls_out_channels,
                                    bias_val=bias_cls)
        self.retina_reg = make_conv(next(keys), feat_channels,
                                    self.num_anchors * 5)
        self.retina_ref = make_conv(next(keys), feat_channels,
                                    self.num_anchors * 5)

        # kernel-ready packed params: only the LAST stacked conv of each
        # branch matters (see _head_level_kernel); the cls/reg stacked convs
        # are fused channel-wise; retina_ref channels are permuted comp-major
        # so the in-kernel decode can slice contiguous lanes.
        A = self.num_anchors
        perm_cm = np.arange(A * 5).reshape(A, 5).T.reshape(-1)
        w_cr = jnp.concatenate([self.cls_convs[-1][0], self.reg_convs[-1][0]],
                               axis=-1)
        b_cr = jnp.concatenate([self.cls_convs[-1][1], self.reg_convs[-1][1]])
        packed = []
        packed += self._pack(*self.ref_convs[-1])
        packed += self._pack(w_cr, b_cr)
        packed += self._pack(*self.retina_cls)
        packed += self._pack(*self.retina_reg)
        packed += self._pack(*self.retina_ref, perm=perm_cm)
        self._packed_params = tuple(packed)

    def _pack(self, w, b, perm=None):
        if perm is not None:
            w = w[..., perm]
            b = b[perm]
        cin = w.shape[2]
        wk = w.reshape(3, 3 * cin, w.shape[-1]).astype(self.compute_dtype)
        bk = b.reshape(1, -1).astype(jnp.float32)
        return [wk, bk]

    def _row_tile_for(self, H):
        if H <= self.row_tile:
            return H
        th = None
        for cand in range(8, self.row_tile + 1, 8):   # multiple of 8 divisor
            if H % cand == 0:
                th = cand
        return th if th is not None else H

    def _level_constants(self, level, H, W, TH):
        cache_key = (level, H, W, TH)
        if cache_key not in self._const_cache:
            A = self.num_anchors
            Wp = W + 2
            nT = H // TH
            base = _gen_base_anchors(self.anchor_base_sizes[level],
                                     self.anchor_scales, self.anchor_ratios)
            rects = _grid_anchors(base, (H, W), self.anchor_strides[level])
            rb = _rect2rbox(rects)                              # (H*W*A, 5)
            anc7 = np.concatenate(
                [rb, np.cos(rb[:, 4:5]), np.sin(rb[:, 4:5])], axis=1)
            anc7 = anc7.reshape(H, W, A, 7).transpose(0, 1, 3, 2)
            anc7 = anc7.reshape(H, W, 7 * A)
            anc_p = np.zeros((H, Wp, self.anc_pad), np.float32)
            anc_p[:, :W, :7 * A] = anc7
            anc_p = anc_p.reshape(H * Wp, self.anc_pad)

            msk = np.zeros((nT, TH + 4, Wp, 1), np.float32)
            for t in range(nT):
                for r in range(TH + 4):
                    gr = t * TH - 2 + r
                    if 0 <= gr < H:
                        msk[t, r, :W, 0] = 1.0
            msk = msk.reshape(nT, (TH + 4) * Wp, 1)
            self._const_cache[cache_key] = (jnp.asarray(msk),
                                            jnp.asarray(anc_p))
        return self._const_cache[cache_key]

    def forward_single(self, x_nchw, stride):
        level = self.anchor_strides.index(stride)
        H, W = int(x_nchw.shape[-2]), int(x_nchw.shape[-1])
        TH = self._row_tile_for(H)
        masks, anchors_cm = self._level_constants(level, H, W, TH)
        return _forward_level(
            x_nchw, masks, anchors_cm, self._packed_params,
            num_anchors=self.num_anchors,
            cls_out_channels=self.cls_out_channels,
            means=self.target_means, stds=self.target_stds,
            wh_ratio_clip=1e-6,       # matches the reference bbox_decode call
            row_tile=TH)

    def forward(self, feats):
        results = [self.forward_single(f, s)
                   for f, s in zip(feats, self.anchor_strides)]
        # multi_apply semantics: tuple of per-output lists (one per level)
        return tuple(map(list, zip(*results)))


# ----------------------------------------------------------------------------
# Pure-JAX reference of the literal PyTorch forward (for validation only)
# ----------------------------------------------------------------------------
def _reference_forward_single(head, x_nchw, stride):
    x = x_nchw.astype(jnp.float32)

    def conv(inp, wb, relu):
        w, b = wb
        y = jax.lax.conv_general_dilated(
            inp, w, window_strides=(1, 1), padding=((1, 1), (1, 1)),
            dimension_numbers=("NCHW", "HWIO", "NCHW"))
        y = y + b[None, :, None, None]
        return jnp.maximum(y, 0.0) if relu else y

    ref_feat = conv(x, head.ref_convs[-1], True)
    cls_feat = conv(ref_feat, head.cls_convs[-1], True)
    reg_feat = conv(ref_feat, head.reg_convs[-1], True)
    cls_score = conv(cls_feat, head.retina_cls, False)
    bbox_pred = conv(reg_feat, head.retina_reg, False)
    ref_bbox_pred = conv(ref_feat, head.retina_ref, False)

    level = head.anchor_strides.index(stride)
    H, W = x.shape[-2:]
    base = _gen_base_anchors(head.anchor_base_sizes[level],
                             head.anchor_scales, head.anchor_ratios)
    rects = _grid_anchors(base, (H, W), head.anchor_strides[level])
    anchors = jnp.asarray(_rect2rbox(rects))

    N, C5 = ref_bbox_pred.shape[:2]
    deltas = jnp.transpose(ref_bbox_pred, (0, 2, 3, 1)).reshape(N, -1, 5)
    d = deltas * jnp.asarray(head.target_stds) + jnp.asarray(head.target_means)
    max_ratio = abs(float(np.log(1e-6)))
    dx, dy = d[..., 0], d[..., 1]
    dw = jnp.clip(d[..., 2], -max_ratio, max_ratio)
    dh = jnp.clip(d[..., 3], -max_ratio, max_ratio)
    da = d[..., 4]
    ax, ay, aw, ah, aang = [anchors[:, i] for i in range(5)]
    gx = dx * aw * jnp.cos(aang) - dy * ah * jnp.sin(aang) + ax
    gy = dx * aw * jnp.sin(aang) + dy * ah * jnp.cos(aang) + ay
    gw = aw * jnp.exp(dw)
    gh = ah * jnp.exp(dh)
    ga = da + aang
    refine_anchor = jnp.stack([gx, gy, gw, gh, ga], axis=-1).reshape(
        N, H, W, C5)
    return ref_bbox_pred, refine_anchor, cls_score, bbox_pred


# ----------------------------------------------------------------------------
if __name__ == "__main__":
    key = jax.random.PRNGKey(0)
    k_feat0, k_feat1, k_params = jax.random.split(key, 3)

    N = 2
    C = 32                                     # in_channels == feat_channels
    strides = (8, 16)
    feats = [jax.random.normal(k_feat0, (N, C, 16, 16), jnp.float32),
             jax.random.normal(k_feat1, (N, C, 8, 8), jnp.float32)]

    # primary head: bf16 at the HBM/MXU boundary, f32 accumulation / outputs.
    # row_tile=8 exercises the (image, row-tile) grid on the 16x16 level.
    head = RBoxCasRetinaHeadPallas(
        num_classes=3, in_channels=C, stacked_convs=4, feat_channels=C,
        octave_base_scale=4, scales_per_octave=3,
        anchor_ratios=(0.5, 1.0, 2.0), anchor_strides=strides,
        compute_dtype=jnp.bfloat16, row_tile=8, key=k_params)

    outs = head.forward(feats)
    jax.tree_util.tree_map(lambda a: a.block_until_ready(), outs)
    ref_bbox_preds, refine_anchors, cls_scores, bbox_preds = outs

    A = head.num_anchors
    Ccls = head.cls_out_channels
    expected = [((N, 5 * A, 16, 16), (N, 16, 16, 5 * A),
                 (N, A * Ccls, 16, 16), (N, 5 * A, 16, 16)),
                ((N, 5 * A, 8, 8), (N, 8, 8, 5 * A),
                 (N, A * Ccls, 8, 8), (N, 5 * A, 8, 8))]
    for lvl in range(len(strides)):
        got = (ref_bbox_preds[lvl], refine_anchors[lvl],
               cls_scores[lvl], bbox_preds[lvl])
        for t, shp in zip(got, expected[lvl]):
            assert t.shape == shp, (t.shape, shp)
            assert bool(jnp.all(jnp.isfinite(t)))

    # numerical check of the f32 kernel path (tiled + untiled levels) against
    # a pure-JAX reference of the literal PyTorch forward
    head32 = RBoxCasRetinaHeadPallas(
        num_classes=3, in_channels=C, stacked_convs=4, feat_channels=C,
        octave_base_scale=4, scales_per_octave=3,
        anchor_ratios=(0.5, 1.0, 2.0), anchor_strides=strides,
        compute_dtype=jnp.float32, row_tile=8, key=k_params)
    for f, s in zip(feats, strides):
        got = head32.forward_single(f, s)
        want = _reference_forward_single(head32, f, s)
        for g, w in zip(got, want):
            np.testing.assert_allclose(np.asarray(g), np.asarray(w),
                                       rtol=1e-2, atol=1e-2)

    # loose-tolerance check of the bf16 kernel path against the f32 reference
    for f, s in zip(feats, strides):
        got = head.forward_single(f, s)
        want = _reference_forward_single(head32, f, s)
        for g, w in zip(got, want):
            np.testing.assert_allclose(np.asarray(g, np.float32),
                                       np.asarray(w), rtol=1e-1, atol=1.0)

    print("KERNEL_OK")
</pallas_src>

<mosaic_0001>
module attributes {stable_mosaic.version = 11 : i64} {
  func.func @_head_level_kernel(%arg0: i32, %arg1: i32, %arg2: memref<1x1x270x32xbf16, #tpu.memory_space<vmem>>, %arg3: memref<1x216x1xf32, #tpu.memory_space<vmem>>, %arg4: memref<144x128xf32, #tpu.memory_space<vmem>>, %arg5: memref<3x96x32xbf16, #tpu.memory_space<vmem>>, %arg6: memref<1x32xf32, #tpu.memory_space<vmem>>, %arg7: memref<3x96x64xbf16, #tpu.memory_space<vmem>>, %arg8: memref<1x64xf32, #tpu.memory_space<vmem>>, %arg9: memref<3x96x18xbf16, #tpu.memory_space<vmem>>, %arg10: memref<1x18xf32, #tpu.memory_space<vmem>>, %arg11: memref<3x96x45xbf16, #tpu.memory_space<vmem>>, %arg12: memref<1x45xf32, #tpu.memory_space<vmem>>, %arg13: memref<3x96x45xbf16, #tpu.memory_space<vmem>>, %arg14: memref<1x45xf32, #tpu.memory_space<vmem>>, %arg15: memref<1x144x256xf32, #tpu.memory_space<vmem>>, %arg16: memref<252x96xbf16, #tpu.memory_space<vmem>>, %arg17: memref<252x96xbf16, #tpu.memory_space<vmem>>, %arg18: memref<216x96xbf16, #tpu.memory_space<vmem>>) attributes {dimension_semantics = [#tpu.dimension_semantics<parallel>, #tpu.dimension_semantics<parallel>], iteration_bounds = array<i64: 2, 2>, scalar_prefetch = 0 : i64, scratch_operands = 3 : i64, tpu.core_type = #tpu.core_type<tc>, window_params = [{transform_indices = @transform_0, window_bounds = array<i64: 1, 1, 270, 32>}, {transform_indices = @transform_1, window_bounds = array<i64: 1, 216, 1>}, {transform_indices = @transform_2, window_bounds = array<i64: 144, 128>}, {pipeline_mode = #tpu.pipeline_mode<synchronous>, transform_indices = @transform_3, window_bounds = array<i64: 3, 96, 32>}, {pipeline_mode = #tpu.pipeline_mode<synchronous>, transform_indices = @transform_4, window_bounds = array<i64: 1, 32>}, {pipeline_mode = #tpu.pipeline_mode<synchronous>, transform_indices = @transform_5, window_bounds = array<i64: 3, 96, 64>}, {pipeline_mode = #tpu.pipeline_mode<synchronous>, transform_indices = @transform_6, window_bounds = array<i64: 1, 64>}, {pipeline_mode = #tpu.pipeline_mode<synchronous>, transform_indices = @transform_7, window_bounds = array<i64: 3, 96, 18>}, {pipeline_mode = #tpu.pipeline_mode<synchronous>, transform_indices = @transform_8, window_bounds = array<i64: 1, 18>}, {pipeline_mode = #tpu.pipeline_mode<synchronous>, transform_indices = @transform_9, window_bounds = array<i64: 3, 96, 45>}, {pipeline_mode = #tpu.pipeline_mode<synchronous>, transform_indices = @transform_10, window_bounds = array<i64: 1, 45>}, {pipeline_mode = #tpu.pipeline_mode<synchronous>, transform_indices = @transform_11, window_bounds = array<i64: 3, 96, 45>}, {pipeline_mode = #tpu.pipeline_mode<synchronous>, transform_indices = @transform_12, window_bounds = array<i64: 1, 45>}, {transform_indices = @transform_13, window_bounds = array<i64: 1, 144, 256>}]} {
    %c0 = arith.constant 0 : index
    %c0_0 = arith.constant 0 : index
    %c0_1 = arith.constant 0 : index
    %c0_2 = arith.constant 0 : index
    %0 = vector.load %arg2[%c0, %c0_0, %c0_1, %c0_2] : memref<1x1x270x32xbf16, #tpu.memory_space<vmem>>, vector<1x1x252x32xbf16>
    %1 = vector.shape_cast %0 : vector<1x1x252x32xbf16> to vector<252x32xbf16>
    %c0_3 = arith.constant 0 : index
    %c0_4 = arith.constant 0 : index
    %2 = vector.load %arg16[%c0_3, %c0_4] : memref<252x96xbf16, #tpu.memory_space<vmem>>, vector<252x32xbf16>
    tpu.vector_store %arg16[%c0_3, %c0_4], %1 {strides = array<i32>} : memref<252x96xbf16, #tpu.memory_space<vmem>>, vector<252x32xbf16>,
    %c0_5 = arith.constant 0 : index
    %c0_6 = arith.constant 0 : index
    %c1 = arith.constant 1 : index
    %c0_7 = arith.constant 0 : index
    %3 = vector.load %arg2[%c0_5, %c0_6, %c1, %c0_7] : memref<1x1x270x32xbf16, #tpu.memory_space<vmem>>, vector<1x1x252x32xbf16>
    %4 = vector.shape_cast %3 : vector<1x1x252x32xbf16> to vector<252x32xbf16>
    %c0_8 = arith.constant 0 : index
    %c32 = arith.constant 32 : index
    %5 = vector.load %arg16[%c0_8, %c32] : memref<252x96xbf16, #tpu.memory_space<vmem>>, vector<252x32xbf16>
    tpu.vector_store %arg16[%c0_8, %c32], %4 {strides = array<i32>} : memref<252x96xbf16, #tpu.memory_space<vmem>>, vector<252x32xbf16>,
    %c0_9 = arith.constant 0 : index
    %c0_10 = arith.constant 0 : index
    %c2 = arith.constant 2 : index
    %c0_11 = arith.constant 0 : index
    %6 = vector.load %arg2[%c0_9, %c0_10, %c2, %c0_11] : memref<1x1x270x32xbf16, #tpu.memory_space<vmem>>, vector<1x1x252x32xbf16>
    %7 = vector.shape_cast %6 : vector<1x1x252x32xbf16> to vector<252x32xbf16>
    %c0_12 = arith.constant 0 : index
    %c64 = arith.constant 64 : index
    %8 = vector.load %arg16[%c0_12, %c64] : memref<252x96xbf16, #tpu.memory_space<vmem>>, vector<252x32xbf16>
    tpu.vector_store %arg16[%c0_12, %c64], %7 {strides = array<i32>} : memref<252x96xbf16, #tpu.memory_space<vmem>>, vector<252x32xbf16>,
    %c0_13 = arith.constant 0 : index
    %c0_14 = arith.constant 0 : index
    %c0_15 = arith.constant 0 : index
    %9 = vector.load %arg3[%c0_13, %c0_14, %c0_15] : memref<1x216x1xf32, #tpu.memory_space<vmem>>, vector<1x216x1xf32>
    %10 = vector.shape_cast %9 : vector<1x216x1xf32> to vector<216x1xf32>
    %cst = arith.constant 0.000000e+00 : f32
    %11 = vector.broadcast %cst : f32 to vector<216x32xf32>
    %c0_16 = arith.constant 0 : index
    %c0_17 = arith.constant 0 : index
    %12 = vector.load %arg16[%c0_16, %c0_17] : memref<252x96xbf16, #tpu.memory_space<vmem>>, vector<216x96xbf16>
    %c0_18 = arith.constant 0 : index
    %c0_19 = arith.constant 0 : index
    %c0_20 = arith.constant 0 : index
    %13 = vector.load %arg5[%c0_18, %c0_19, %c0_20] : memref<3x96x32xbf16, #tpu.memory_space<vmem>>, vector<1x96x32xbf16>
    %14 = vector.shape_cast %13 : vector<1x96x32xbf16> to vector<96x32xbf16>
    %cst_21 = arith.constant dense<0.000000e+00> : vector<216x32xf32>
    %15 = tpu.matmul %12, %14, %cst_21 {dimension_numbers = #tpu.dot_dimension_numbers<[1], [0], [0], [1], [0, 0, 1, 1], [], []>} : vector<216x96xbf16>, vector<96x32xbf16>, vector<216x32xf32> -> vector<216x32xf32>
    %16 = arith.addf %11, %15 : vector<216x32xf32>
    %c18 = arith.constant 18 : index
    %c0_22 = arith.constant 0 : index
    %17 = vector.load %arg16[%c18, %c0_22] : memref<252x96xbf16, #tpu.memory_space<vmem>>, vector<216x96xbf16>
    %c1_23 = arith.constant 1 : index
    %c0_24 = arith.constant 0 : index
    %c0_25 = arith.constant 0 : index
    %18 = vector.load %arg5[%c1_23, %c0_24, %c0_25] : memref<3x96x32xbf16, #tpu.memory_space<vmem>>, vector<1x96x32xbf16>
    %19 = vector.shape_cast %18 : vector<1x96x32xbf16> to vector<96x32xbf16>
    %cst_26 = arith.constant dense<0.000000e+00> : vector<216x32xf32>
    %20 = tpu.matmul %17, %19, %cst_26 {dimension_numbers = #tpu.dot_dimension_numbers<[1], [0], [0], [1], [0, 0, 1, 1], [], []>} : vector<216x96xbf16>, vector<96x32xbf16>, vector<216x32xf32> -> vector<216x32xf32>
    %21 = arith.addf %16, %20 : vector<216x32xf32>
    %c36 = arith.constant 36 : index
    %c0_27 = arith.constant 0 : index
    %22 = vector.load %arg16[%c36, %c0_27] : memref<252x96xbf16, #tpu.memory_space<vmem>>, vector<216x96xbf16>
    %c2_28 = arith.constant 2 : index
    %c0_29 = arith.constant 0 : index
    %c0_30 = arith.constant 0 : index
    %23 = vector.load %arg5[%c2_28, %c0_29, %c0_30] : memref<3x96x32xbf16, #tpu.memory_space<vmem>>, vector<1x96x32xbf16>
    %24 = vector.shape_cast %23 : vector<1x96x32xbf16> to vector<96x32xbf16>
    %cst_31 = arith.constant dense<0.000000e+00> : vector<216x32xf32>
    %25 = tpu.matmul %22, %24, %cst_31 {dimension_numbers = #tpu.dot_dimension_numbers<[1], [0], [0], [1], [0, 0, 1, 1], [], []>} : vector<216x96xbf16>, vector<96x32xbf16>, vector<216x32xf32> -> vector<216x32xf32>
    %26 = arith.addf %21, %25 : vector<216x32xf32>
    %c0_32 = arith.constant 0 : index
    %c0_33 = arith.constant 0 : index
    %27 = vector.load %arg6[%c0_32, %c0_33] : memref<1x32xf32, #tpu.memory_space<vmem>>, vector<1x32xf32>
    %28 = vector.broadcast %27 : vector<1x32xf32> to vector<216x32xf32>
    %29 = arith.addf %26, %28 : vector<216x32xf32>
    %cst_34 = arith.constant 0.000000e+00 : f32
    %30 = vector.broadcast %cst_34 : f32 to vector<216x32xf32>
    %31 = arith.maximumf %29, %30 : vector<216x32xf32>
    %cst_35 = arith.constant 0.000000e+00 : f32
    %32 = vector.broadcast %cst_35 : f32 to vector<216x1xf32>
    %33 = arith.cmpf ogt, %10, %32 : vector<216x1xf32>
    %cst_36 = arith.constant 0.000000e+00 : f32
    %34 = vector.shape_cast %33 : vector<216x1xi1> to vector<216x1xi1>
    %35 = vector.broadcast %34 : vector<216x1xi1> to vector<216x32xi1>
    %36 = vector.broadcast %cst_36 : f32 to vector<216x32xf32>
    %37 = arith.select %35, %31, %36 : vector<216x32xi1>, vector<216x32xf32>
    %38 = arith.truncf %37 : vector<216x32xf32> to vector<216x32xbf16>
    %cst_37 = arith.constant 0.000000e+00 : bf16
    %39 = vector.broadcast %cst_37 : bf16 to vector<1x32xbf16>
    %c18_38 = arith.constant 18 : index
    %c0_39 = arith.constant 0 : index
    %40 = vector.load %arg17[%c18_38, %c0_39] : memref<252x96xbf16, #tpu.memory_space<vmem>>, vector<1x32xbf16>
    tpu.vector_store %arg17[%c18_38, %c0_39], %39 {strides = array<i32>} : memref<252x96xbf16, #tpu.memory_space<vmem>>, vector<1x32xbf16>,
    %c233 = arith.constant 233 : index
    %c64_40 = arith.constant 64 : index
    %41 = vector.load %arg17[%c233, %c64_40] : memref<252x96xbf16, #tpu.memory_space<vmem>>, vector<1x32xbf16>
    tpu.vector_store %arg17[%c233, %c64_40], %39 {strides = array<i32>} : memref<252x96xbf16, #tpu.memory_space<vmem>>, vector<1x32xbf16>,
    %c19 = arith.constant 19 : index
    %c0_41 = arith.constant 0 : index
    %42 = vector.load %arg17[%c19, %c0_41] : memref<252x96xbf16, #tpu.memory_space<vmem>>, vector<216x32xbf16>
    tpu.vector_store %arg17[%c19, %c0_41], %38 {strides = array<i32>} : memref<252x96xbf16, #tpu.memory_space<vmem>>, vector<216x32xbf16>,
    %c18_42 = arith.constant 18 : index
    %c32_43 = arith.constant 32 : index
    %43 = vector.load %arg17[%c18_42, %c32_43] : memref<252x96xbf16, #tpu.memory_space<vmem>>, vector<216x32xbf16>
    tpu.vector_store %arg17[%c18_42, %c32_43], %38 {strides = array<i32>} : memref<252x96xbf16, #tpu.memory_space<vmem>>, vector<216x32xbf16>,
    %c17 = arith.constant 17 : index
    %c64_44 = arith.constant 64 : index
    %44 = vector.load %arg17[%c17, %c64_44] : memref<252x96xbf16, #tpu.memory_space<vmem>>, vector<216x32xbf16>
    tpu.vector_store %arg17[%c17, %c64_44], %38 {strides = array<i32>} : memref<252x96xbf16, #tpu.memory_space<vmem>>, vector<216x32xbf16>,
    %cst_45 = arith.constant 0.000000e+00 : f32
    %45 = vector.broadcast %cst_45 : f32 to vector<144x45xf32>
    %c36_46 = arith.constant 36 : index
    %c0_47 = arith.constant 0 : index
    %46 = vector.load %arg17[%c36_46, %c0_47] : memref<252x96xbf16, #tpu.memory_space<vmem>>, vector<144x96xbf16>
    %c0_48 = arith.constant 0 : index
    %c0_49 = arith.constant 0 : index
    %c0_50 = arith.constant 0 : index
    %47 = vector.load %arg13[%c0_48, %c0_49, %c0_50] : memref<3x96x45xbf16, #tpu.memory_space<vmem>>, vector<1x96x45xbf16>
    %48 = vector.shape_cast %47 : vector<1x96x45xbf16> to vector<96x45xbf16>
    %cst_51 = arith.constant dense<0.000000e+00> : vector<144x45xf32>
    %49 = tpu.matmul %46, %48, %cst_51 {dimension_numbers = #tpu.dot_dimension_numbers<[1], [0], [0], [1], [0, 0, 1, 1], [], []>} : vector<144x96xbf16>, vector<96x45xbf16>, vector<144x45xf32> -> vector<144x45xf32>
    %50 = arith.addf %45, %49 : vector<144x45xf32>
    %c54 = arith.constant 54 : index
    %c0_52 = arith.constant 0 : index
    %51 = vector.load %arg17[%c54, %c0_52] : memref<252x96xbf16, #tpu.memory_space<vmem>>, vector<144x96xbf16>
    %c1_53 = arith.constant 1 : index
    %c0_54 = arith.constant 0 : index
    %c0_55 = arith.constant 0 : index
    %52 = vector.load %arg13[%c1_53, %c0_54, %c0_55] : memref<3x96x45xbf16, #tpu.memory_space<vmem>>, vector<1x96x45xbf16>
    %53 = vector.shape_cast %52 : vector<1x96x45xbf16> to vector<96x45xbf16>
    %cst_56 = arith.constant dense<0.000000e+00> : vector<144x45xf32>
    %54 = tpu.matmul %51, %53, %cst_56 {dimension_numbers = #tpu.dot_dimension_numbers<[1], [0], [0], [1], [0, 0, 1, 1], [], []>} : vector<144x96xbf16>, vector<96x45xbf16>, vector<144x45xf32> -> vector<144x45xf32>
    %55 = arith.addf %50, %54 : vector<144x45xf32>
    %c72 = arith.constant 72 : index
    %c0_57 = arith.constant 0 : index
    %56 = vector.load %arg17[%c72, %c0_57] : memref<252x96xbf16, #tpu.memory_space<vmem>>, vector<144x96xbf16>
    %c2_58 = arith.constant 2 : index
    %c0_59 = arith.constant 0 : index
    %c0_60 = arith.constant 0 : index
    %57 = vector.load %arg13[%c2_58, %c0_59, %c0_60] : memref<3x96x45xbf16, #tpu.memory_space<vmem>>, vector<1x96x45xbf16>
    %58 = vector.shape_cast %57 : vector<1x96x45xbf16> to vector<96x45xbf16>
    %cst_61 = arith.constant dense<0.000000e+00> : vector<144x45xf32>
    %59 = tpu.matmul %56, %58, %cst_61 {dimension_numbers = #tpu.dot_dimension_numbers<[1], [0], [0], [1], [0, 0, 1, 1], [], []>} : vector<144x96xbf16>, vector<96x45xbf16>, vector<144x45xf32> -> vector<144x45xf32>
    %60 = arith.addf %55, %59 : vector<144x45xf32>
    %c0_62 = arith.constant 0 : index
    %c0_63 = arith.constant 0 : index
    %61 = vector.load %arg14[%c0_62, %c0_63] : memref<1x45xf32, #tpu.memory_space<vmem>>, vector<1x45xf32>
    %62 = vector.broadcast %61 : vector<1x45xf32> to vector<144x45xf32>
    %63 = arith.addf %60, %62 : vector<144x45xf32>
    %c0_64 = arith.constant 0 : index
    %c0_65 = arith.constant 0 : index
    %64 = vector.load %arg4[%c0_64, %c0_65] : memref<144x128xf32, #tpu.memory_space<vmem>>, vector<144x128xf32>
    %65 = vector.extract_strided_slice %63 {offsets = [0, 0], sizes = [144, 9], strides = [1, 1]} : vector<144x45xf32> to vector<144x9xf32>
    %cst_66 = arith.constant 1.000000e+00 : f32
    %66 = vector.broadcast %cst_66 : f32 to vector<144x9xf32>
    %67 = arith.mulf %65, %66 : vector<144x9xf32>
    %cst_67 = arith.constant 0.000000e+00 : f32
    %68 = vector.broadcast %cst_67 : f32 to vector<144x9xf32>
    %69 = arith.addf %67, %68 : vector<144x9xf32>
    %70 = vector.extract_strided_slice %63 {offsets = [0, 9], sizes = [144, 9], strides = [1, 1]} : vector<144x45xf32> to vector<144x9xf32>
    %cst_68 = arith.constant 1.000000e+00 : f32
    %71 = vector.broadcast %cst_68 : f32 to vector<144x9xf32>
    %72 = arith.mulf %70, %71 : vector<144x9xf32>
    %cst_69 = arith.constant 0.000000e+00 : f32
    %73 = vector.broadcast %cst_69 : f32 to vector<144x9xf32>
    %74 = arith.addf %72, %73 : vector<144x9xf32>
    %75 = vector.extract_strided_slice %63 {offsets = [0, 18], sizes = [144, 9], strides = [1, 1]} : vector<144x45xf32> to vector<144x9xf32>
    %cst_70 = arith.constant 1.000000e+00 : f32
    %76 = vector.broadcast %cst_70 : f32 to vector<144x9xf32>
    %77 = arith.mulf %75, %76 : vector<144x9xf32>
    %cst_71 = arith.constant 0.000000e+00 : f32
    %78 = vector.broadcast %cst_71 : f32 to vector<144x9xf32>
    %79 = arith.addf %77, %78 : vector<144x9xf32>
    %cst_72 = arith.constant -13.8155107 : f32
    %cst_73 = arith.constant 13.8155107 : f32
    %80 = vector.broadcast %cst_72 : f32 to vector<144x9xf32>
    %81 = arith.maximumf %80, %79 : vector<144x9xf32>
    %82 = vector.broadcast %cst_73 : f32 to vector<144x9xf32>
    %83 = arith.minimumf %82, %81 : vector<144x9xf32>
    %84 = vector.extract_strided_slice %63 {offsets = [0, 27], sizes = [144, 9], strides = [1, 1]} : vector<144x45xf32> to vector<144x9xf32>
    %cst_74 = arith.constant 1.000000e+00 : f32
    %85 = vector.broadcast %cst_74 : f32 to vector<144x9xf32>
    %86 = arith.mulf %84, %85 : vector<144x9xf32>
    %cst_75 = arith.constant 0.000000e+00 : f32
    %87 = vector.broadcast %cst_75 : f32 to vector<144x9xf32>
    %88 = arith.addf %86, %87 : vector<144x9xf32>
    %cst_76 = arith.constant -13.8155107 : f32
    %cst_77 = arith.constant 13.8155107 : f32
    %89 = vector.broadcast %cst_76 : f32 to vector<144x9xf32>
    %90 = arith.maximumf %89, %88 : vector<144x9xf32>
    %91 = vector.broadcast %cst_77 : f32 to vector<144x9xf32>
    %92 = arith.minimumf %91, %90 : vector<144x9xf32>
    %93 = vector.extract_strided_slice %63 {offsets = [0, 36], sizes = [144, 9], strides = [1, 1]} : vector<144x45xf32> to vector<144x9xf32>
    %cst_78 = arith.constant 1.000000e+00 : f32
    %94 = vector.broadcast %cst_78 : f32 to vector<144x9xf32>
    %95 = arith.mulf %93, %94 : vector<144x9xf32>
    %cst_79 = arith.constant 0.000000e+00 : f32
    %96 = vector.broadcast %cst_79 : f32 to vector<144x9xf32>
    %97 = arith.addf %95, %96 : vector<144x9xf32>
    %98 = vector.extract_strided_slice %64 {offsets = [0, 0], sizes = [144, 9], strides = [1, 1]} : vector<144x128xf32> to vector<144x9xf32>
    %99 = vector.extract_strided_slice %64 {offsets = [0, 9], sizes = [144, 9], strides = [1, 1]} : vector<144x128xf32> to vector<144x9xf32>
    %100 = vector.extract_strided_slice %64 {offsets = [0, 18], sizes = [144, 9], strides = [1, 1]} : vector<144x128xf32> to vector<144x9xf32>
    %101 = vector.extract_strided_slice %64 {offsets = [0, 27], sizes = [144, 9], strides = [1, 1]} : vector<144x128xf32> to vector<144x9xf32>
    %102 = vector.extract_strided_slice %64 {offsets = [0, 36], sizes = [144, 9], strides = [1, 1]} : vector<144x128xf32> to vector<144x9xf32>
    %103 = vector.extract_strided_slice %64 {offsets = [0, 45], sizes = [144, 9], strides = [1, 1]} : vector<144x128xf32> to vector<144x9xf32>
    %104 = vector.extract_strided_slice %64 {offsets = [0, 54], sizes = [144, 9], strides = [1, 1]} : vector<144x128xf32> to vector<144x9xf32>
    %105 = arith.mulf %69, %100 : vector<144x9xf32>
    %106 = arith.mulf %105, %103 : vector<144x9xf32>
    %107 = arith.mulf %74, %101 : vector<144x9xf32>
    %108 = arith.mulf %107, %104 : vector<144x9xf32>
    %109 = arith.subf %106, %108 : vector<144x9xf32>
    %110 = arith.addf %109, %98 : vector<144x9xf32>
    %111 = arith.mulf %69, %100 : vector<144x9xf32>
    %112 = arith.mulf %111, %104 : vector<144x9xf32>
    %113 = arith.mulf %74, %101 : vector<144x9xf32>
    %114 = arith.mulf %113, %103 : vector<144x9xf32>
    %115 = arith.addf %112, %114 : vector<144x9xf32>
    %116 = arith.addf %115, %99 : vector<144x9xf32>
    %117 = math.exp %83 : vector<144x9xf32>
    %118 = arith.mulf %100, %117 : vector<144x9xf32>
    %119 = math.exp %92 : vector<144x9xf32>
    %120 = arith.mulf %101, %119 : vector<144x9xf32>
    %121 = arith.addf %97, %102 : vector<144x9xf32>
    %122 = tpu.concatenate %110, %116, %118, %120, %121 in 1 : vector<144x9xf32>, vector<144x9xf32>, vector<144x9xf32>, vector<144x9xf32>, vector<144x9xf32> -> vector<144x45xf32>
    %cst_80 = arith.constant 0.000000e+00 : f32
    %123 = vector.broadcast %cst_80 : f32 to vector<180x64xf32>
    %c18_81 = arith.constant 18 : index
    %c0_82 = arith.constant 0 : index
    %124 = vector.load %arg17[%c18_81, %c0_82] : memref<252x96xbf16, #tpu.memory_space<vmem>>, vector<180x96xbf16>
    %c0_83 = arith.constant 0 : index
    %c0_84 = arith.constant 0 : index
    %c0_85 = arith.constant 0 : index
    %125 = vector.load %arg7[%c0_83, %c0_84, %c0_85] : memref<3x96x64xbf16, #tpu.memory_space<vmem>>, vector<1x96x64xbf16>
    %126 = vector.shape_cast %125 : vector<1x96x64xbf16> to vector<96x64xbf16>
    %cst_86 = arith.constant dense<0.000000e+00> : vector<180x64xf32>
    %127 = tpu.matmul %124, %126, %cst_86 {dimension_numbers = #tpu.dot_dimension_numbers<[1], [0], [0], [1], [0, 0, 1, 1], [], []>} : vector<180x96xbf16>, vector<96x64xbf16>, vector<180x64xf32> -> vector<180x64xf32>
    %128 = arith.addf %123, %127 : vector<180x64xf32>
    %c36_87 = arith.constant 36 : index
    %c0_88 = arith.constant 0 : index
    %129 = vector.load %arg17[%c36_87, %c0_88] : memref<252x96xbf16, #tpu.memory_space<vmem>>, vector<180x96xbf16>
    %c1_89 = arith.constant 1 : index
    %c0_90 = arith.constant 0 : index
    %c0_91 = arith.constant 0 : index
    %130 = vector.load %arg7[%c1_89, %c0_90, %c0_91] : memref<3x96x64xbf16, #tpu.memory_space<vmem>>, vector<1x96x64xbf16>
    %131 = vector.shape_cast %130 : vector<1x96x64xbf16> to vector<96x64xbf16>
    %cst_92 = arith.constant dense<0.000000e+00> : vector<180x64xf32>
    %132 = tpu.matmul %129, %131, %cst_92 {dimension_numbers = #tpu.dot_dimension_numbers<[1], [0], [0], [1], [0, 0, 1, 1], [], []>} : vector<180x96xbf16>, vector<96x64xbf16>, vector<180x64xf32> -> vector<180x64xf32>
    %133 = arith.addf %128, %132 : vector<180x64xf32>
    %c54_93 = arith.constant 54 : index
    %c0_94 = arith.constant 0 : index
    %134 = vector.load %arg17[%c54_93, %c0_94] : memref<252x96xbf16, #tpu.memory_space<vmem>>, vector<180x96xbf16>
    %c2_95 = arith.constant 2 : index
    %c0_96 = arith.constant 0 : index
    %c0_97 = arith.constant 0 : index
    %135 = vector.load %arg7[%c2_95, %c0_96, %c0_97] : memref<3x96x64xbf16, #tpu.memory_space<vmem>>, vector<1x96x64xbf16>
    %136 = vector.shape_cast %135 : vector<1x96x64xbf16> to vector<96x64xbf16>
    %cst_98 = arith.constant dense<0.000000e+00> : vector<180x64xf32>
    %137 = tpu.matmul %134, %136, %cst_98 {dimension_numbers = #tpu.dot_dimension_numbers<[1], [0], [0], [1], [0, 0, 1, 1], [], []>} : vector<180x96xbf16>, vector<96x64xbf16>, vector<180x64xf32> -> vector<180x64xf32>
    %138 = arith.addf %133, %137 : vector<180x64xf32>
    %c0_99 = arith.constant 0 : index
    %c0_100 = arith.constant 0 : index
    %139 = vector.load %arg8[%c0_99, %c0_100] : memref<1x64xf32, #tpu.memory_space<vmem>>, vector<1x64xf32>
    %140 = vector.broadcast %139 : vector<1x64xf32> to vector<180x64xf32>
    %141 = arith.addf %138, %140 : vector<180x64xf32>
    %cst_101 = arith.constant 0.000000e+00 : f32
    %142 = vector.broadcast %cst_101 : f32 to vector<180x64xf32>
    %143 = arith.maximumf %141, %142 : vector<180x64xf32>
    %c0_102 = arith.constant 0 : index
    %c18_103 = arith.constant 18 : index
    %c0_104 = arith.constant 0 : index
    %144 = vector.load %arg3[%c0_102, %c18_103, %c0_104] : memref<1x216x1xf32, #tpu.memory_space<vmem>>, vector<1x180x1xf32>
    %145 = vector.shape_cast %144 : vector<1x180x1xf32> to vector<180x1xf32>
    %146 = vector.extract_strided_slice %143 {offsets = [0, 0], sizes = [180, 32], strides = [1, 1]} : vector<180x64xf32> to vector<180x32xf32>
    %cst_105 = arith.constant 0.000000e+00 : f32
    %147 = vector.broadcast %cst_105 : f32 to vector<180x1xf32>
    %148 = arith.cmpf ogt, %145, %147 : vector<180x1xf32>
    %cst_106 = arith.constant 0.000000e+00 : f32
    %149 = vector.shape_cast %148 : vector<180x1xi1> to vector<180x1xi1>
    %150 = vector.broadcast %149 : vector<180x1xi1> to vector<180x32xi1>
    %151 = vector.broadcast %cst_106 : f32 to vector<180x32xf32>
    %152 = arith.select %150, %146, %151 : vector<180x32xi1>, vector<180x32xf32>
    %153 = arith.truncf %152 : vector<180x32xf32> to vector<180x32xbf16>
    %cst_107 = arith.constant 0.000000e+00 : bf16
    %154 = vector.broadcast %cst_107 : bf16 to vector<1x32xbf16>
    %c18_108 = arith.constant 18 : index
    %c0_109 = arith.constant 0 : index
    %155 = vector.load %arg18[%c18_108, %c0_109] : memref<216x96xbf16, #tpu.memory_space<vmem>>, vector<1x32xbf16>
    tpu.vector_store %arg18[%c18_108, %c0_109], %154 {strides = array<i32>} : memref<216x96xbf16, #tpu.memory_space<vmem>>, vector<1x32xbf16>,
    %c197 = arith.constant 197 : index
    %c64_110 = arith.constant 64 : index
    %156 = vector.load %arg18[%c197, %c64_110] : memref<216x96xbf16, #tpu.memory_space<vmem>>, vector<1x32xbf16>
    tpu.vector_store %arg18[%c197, %c64_110], %154 {strides = array<i32>} : memref<216x96xbf16, #tpu.memory_space<vmem>>, vector<1x32xbf16>,
    %c19_111 = arith.constant 19 : index
    %c0_112 = arith.constant 0 : index
    %157 = vector.load %arg18[%c19_111, %c0_112] : memref<216x96xbf16, #tpu.memory_space<vmem>>, vector<180x32xbf16>
    tpu.vector_store %arg18[%c19_111, %c0_112], %153 {strides = array<i32>} : memref<216x96xbf16, #tpu.memory_space<vmem>>, vector<180x32xbf16>,
    %c18_113 = arith.constant 18 : index
    %c32_114 = arith.constant 32 : index
    %158 = vector.load %arg18[%c18_113, %c32_114] : memref<216x96xbf16, #tpu.memory_space<vmem>>, vector<180x32xbf16>
    tpu.vector_store %arg18[%c18_113, %c32_114], %153 {strides = array<i32>} : memref<216x96xbf16, #tpu.memory_space<vmem>>, vector<180x32xbf16>,
    %c17_115 = arith.constant 17 : index
    %c64_116 = arith.constant 64 : index
    %159 = vector.load %arg18[%c17_115, %c64_116] : memref<216x96xbf16, #tpu.memory_space<vmem>>, vector<180x32xbf16>
    tpu.vector_store %arg18[%c17_115, %c64_116], %153 {strides = array<i32>} : memref<216x96xbf16, #tpu.memory_space<vmem>>, vector<180x32xbf16>,
    %cst_117 = arith.constant 0.000000e+00 : f32
    %160 = vector.broadcast %cst_117 : f32 to vector<144x18xf32>
    %c18_118 = arith.constant 18 : index
    %c0_119 = arith.constant 0 : index
    %161 = vector.load %arg18[%c18_118, %c0_119] : memref<216x96xbf16, #tpu.memory_space<vmem>>, vector<144x96xbf16>
    %c0_120 = arith.constant 0 : index
    %c0_121 = arith.constant 0 : index
    %c0_122 = arith.constant 0 : index
    %162 = vector.load %arg9[%c0_120, %c0_121, %c0_122] : memref<3x96x18xbf16, #tpu.memory_space<vmem>>, vector<1x96x18xbf16>
    %163 = vector.shape_cast %162 : vector<1x96x18xbf16> to vector<96x18xbf16>
    %cst_123 = arith.constant dense<0.000000e+00> : vector<144x18xf32>
    %164 = tpu.matmul %161, %163, %cst_123 {dimension_numbers = #tpu.dot_dimension_numbers<[1], [0], [0], [1], [0, 0, 1, 1], [], []>} : vector<144x96xbf16>, vector<96x18xbf16>, vector<144x18xf32> -> vector<144x18xf32>
    %165 = arith.addf %160, %164 : vector<144x18xf32>
    %c36_124 = arith.constant 36 : index
    %c0_125 = arith.constant 0 : index
    %166 = vector.load %arg18[%c36_124, %c0_125] : memref<216x96xbf16, #tpu.memory_space<vmem>>, vector<144x96xbf16>
    %c1_126 = arith.constant 1 : index
    %c0_127 = arith.constant 0 : index
    %c0_128 = arith.constant 0 : index
    %167 = vector.load %arg9[%c1_126, %c0_127, %c0_128] : memref<3x96x18xbf16, #tpu.memory_space<vmem>>, vector<1x96x18xbf16>
    %168 = vector.shape_cast %167 : vector<1x96x18xbf16> to vector<96x18xbf16>
    %cst_129 = arith.constant dense<0.000000e+00> : vector<144x18xf32>
    %169 = tpu.matmul %166, %168, %cst_129 {dimension_numbers = #tpu.dot_dimension_numbers<[1], [0], [0], [1], [0, 0, 1, 1], [], []>} : vector<144x96xbf16>, vector<96x18xbf16>, vector<144x18xf32> -> vector<144x18xf32>
    %170 = arith.addf %165, %169 : vector<144x18xf32>
    %c54_130 = arith.constant 54 : index
    %c0_131 = arith.constant 0 : index
    %171 = vector.load %arg18[%c54_130, %c0_131] : memref<216x96xbf16, #tpu.memory_space<vmem>>, vector<144x96xbf16>
    %c2_132 = arith.constant 2 : index
    %c0_133 = arith.constant 0 : index
    %c0_134 = arith.constant 0 : index
    %172 = vector.load %arg9[%c2_132, %c0_133, %c0_134] : memref<3x96x18xbf16, #tpu.memory_space<vmem>>, vector<1x96x18xbf16>
    %173 = vector.shape_cast %172 : vector<1x96x18xbf16> to vector<96x18xbf16>
    %cst_135 = arith.constant dense<0.000000e+00> : vector<144x18xf32>
    %174 = tpu.matmul %171, %173, %cst_135 {dimension_numbers = #tpu.dot_dimension_numbers<[1], [0], [0], [1], [0, 0, 1, 1], [], []>} : vector<144x96xbf16>, vector<96x18xbf16>, vector<144x18xf32> -> vector<144x18xf32>
    %175 = arith.addf %170, %174 : vector<144x18xf32>
    %c0_136 = arith.constant 0 : index
    %c0_137 = arith.constant 0 : index
    %176 = vector.load %arg10[%c0_136, %c0_137] : memref<1x18xf32, #tpu.memory_space<vmem>>, vector<1x18xf32>
    %177 = vector.broadcast %176 : vector<1x18xf32> to vector<144x18xf32>
    %178 = arith.addf %175, %177 : vector<144x18xf32>
    %179 = vector.extract_strided_slice %143 {offsets = [0, 32], sizes = [180, 32], strides = [1, 1]} : vector<180x64xf32> to vector<180x32xf32>
    %cst_138 = arith.constant 0.000000e+00 : f32
    %180 = vector.broadcast %cst_138 : f32 to vector<180x1xf32>
    %181 = arith.cmpf ogt, %145, %180 : vector<180x1xf32>
    %cst_139 = arith.constant 0.000000e+00 : f32
    %182 = vector.shape_cast %181 : vector<180x1xi1> to vector<180x1xi1>
    %183 = vector.broadcast %182 : vector<180x1xi1> to vector<180x32xi1>
    %184 = vector.broadcast %cst_139 : f32 to vector<180x32xf32>
    %185 = arith.select %183, %179, %184 : vector<180x32xi1>, vector<180x32xf32>
    %186 = arith.truncf %185 : vector<180x32xf32> to vector<180x32xbf16>
    %cst_140 = arith.constant 0.000000e+00 : bf16
    %187 = vector.broadcast %cst_140 : bf16 to vector<1x32xbf16>
    %c18_141 = arith.constant 18 : index
    %c0_142 = arith.constant 0 : index
    %188 = vector.load %arg18[%c18_141, %c0_142] : memref<216x96xbf16, #tpu.memory_space<vmem>>, vector<1x32xbf16>
    tpu.vector_store %arg18[%c18_141, %c0_142], %187 {strides = array<i32>} : memref<216x96xbf16, #tpu.memory_space<vmem>>, vector<1x32xbf16>,
    %c197_143 = arith.constant 197 : index
    %c64_144 = arith.constant 64 : index
    %189 = vector.load %arg18[%c197_143, %c64_144] : memref<216x96xbf16, #tpu.memory_space<vmem>>, vector<1x32xbf16>
    tpu.vector_store %arg18[%c197_143, %c64_144], %187 {strides = array<i32>} : memref<216x96xbf16, #tpu.memory_space<vmem>>, vector<1x32xbf16>,
    %c19_145 = arith.constant 19 : index
    %c0_146 = arith.constant 0 : index
    %190 = vector.load %arg18[%c19_145, %c0_146] : memref<216x96xbf16, #tpu.memory_space<vmem>>, vector<180x32xbf16>
    tpu.vector_store %arg18[%c19_145, %c0_146], %186 {strides = array<i32>} : memref<216x96xbf16, #tpu.memory_space<vmem>>, vector<180x32xbf16>,
    %c18_147 = arith.constant 18 : index
    %c32_148 = arith.constant 32 : index
    %191 = vector.load %arg18[%c18_147, %c32_148] : memref<216x96xbf16, #tpu.memory_space<vmem>>, vector<180x32xbf16>
    tpu.vector_store %arg18[%c18_147, %c32_148], %186 {strides = array<i32>} : memref<216x96xbf16, #tpu.memory_space<vmem>>, vector<180x32xbf16>,
    %c17_149 = arith.constant 17 : index
    %c64_150 = arith.constant 64 : index
    %192 = vector.load %arg18[%c17_149, %c64_150] : memref<216x96xbf16, #tpu.memory_space<vmem>>, vector<180x32xbf16>
    tpu.vector_store %arg18[%c17_149, %c64_150], %186 {strides = array<i32>} : memref<216x96xbf16, #tpu.memory_space<vmem>>, vector<180x32xbf16>,
    %cst_151 = arith.constant 0.000000e+00 : f32
    %193 = vector.broadcast %cst_151 : f32 to vector<144x45xf32>
    %c18_152 = arith.constant 18 : index
    %c0_153 = arith.constant 0 : index
    %194 = vector.load %arg18[%c18_152, %c0_153] : memref<216x96xbf16, #tpu.memory_space<vmem>>, vector<144x96xbf16>
    %c0_154 = arith.constant 0 : index
    %c0_155 = arith.constant 0 : index
    %c0_156 = arith.constant 0 : index
    %195 = vector.load %arg11[%c0_154, %c0_155, %c0_156] : memref<3x96x45xbf16, #tpu.memory_space<vmem>>, vector<1x96x45xbf16>
    %196 = vector.shape_cast %195 : vector<1x96x45xbf16> to vector<96x45xbf16>
    %cst_157 = arith.constant dense<0.000000e+00> : vector<144x45xf32>
    %197 = tpu.matmul %194, %196, %cst_157 {dimension_numbers = #tpu.dot_dimension_numbers<[1], [0], [0], [1], [0, 0, 1, 1], [], []>} : vector<144x96xbf16>, vector<96x45xbf16>, vector<144x45xf32> -> vector<144x45xf32>
    %198 = arith.addf %193, %197 : vector<144x45xf32>
    %c36_158 = arith.constant 36 : index
    %c0_159 = arith.constant 0 : index
    %199 = vector.load %arg18[%c36_158, %c0_159] : memref<216x96xbf16, #tpu.memory_space<vmem>>, vector<144x96xbf16>
    %c1_160 = arith.constant 1 : index
    %c0_161 = arith.constant 0 : index
    %c0_162 = arith.constant 0 : index
    %200 = vector.load %arg11[%c1_160, %c0_161, %c0_162] : memref<3x96x45xbf16, #tpu.memory_space<vmem>>, vector<1x96x45xbf16>
    %201 = vector.shape_cast %200 : vector<1x96x45xbf16> to vector<96x45xbf16>
    %cst_163 = arith.constant dense<0.000000e+00> : vector<144x45xf32>
    %202 = tpu.matmul %199, %201, %cst_163 {dimension_numbers = #tpu.dot_dimension_numbers<[1], [0], [0], [1], [0, 0, 1, 1], [], []>} : vector<144x96xbf16>, vector<96x45xbf16>, vector<144x45xf32> -> vector<144x45xf32>
    %203 = arith.addf %198, %202 : vector<144x45xf32>
    %c54_164 = arith.constant 54 : index
    %c0_165 = arith.constant 0 : index
    %204 = vector.load %arg18[%c54_164, %c0_165] : memref<216x96xbf16, #tpu.memory_space<vmem>>, vector<144x96xbf16>
    %c2_166 = arith.constant 2 : index
    %c0_167 = arith.constant 0 : index
    %c0_168 = arith.constant 0 : index
    %205 = vector.load %arg11[%c2_166, %c0_167, %c0_168] : memref<3x96x45xbf16, #tpu.memory_space<vmem>>, vector<1x96x45xbf16>
    %206 = vector.shape_cast %205 : vector<1x96x45xbf16> to vector<96x45xbf16>
    %cst_169 = arith.constant dense<0.000000e+00> : vector<144x45xf32>
    %207 = tpu.matmul %204, %206, %cst_169 {dimension_numbers = #tpu.dot_dimension_numbers<[1], [0], [0], [1], [0, 0, 1, 1], [], []>} : vector<144x96xbf16>, vector<96x45xbf16>, vector<144x45xf32> -> vector<144x45xf32>
    %208 = arith.addf %203, %207 : vector<144x45xf32>
    %c0_170 = arith.constant 0 : index
    %c0_171 = arith.constant 0 : index
    %209 = vector.load %arg12[%c0_170, %c0_171] : memref<1x45xf32, #tpu.memory_space<vmem>>, vector<1x45xf32>
    %210 = vector.broadcast %209 : vector<1x45xf32> to vector<144x45xf32>
    %211 = arith.addf %208, %210 : vector<144x45xf32>
    %cst_172 = arith.constant 0.000000e+00 : f32
    %212 = vector.broadcast %cst_172 : f32 to vector<144x103xf32>
    %213 = tpu.concatenate %178, %211, %63, %122, %212 in 1 : vector<144x18xf32>, vector<144x45xf32>, vector<144x45xf32>, vector<144x45xf32>, vector<144x103xf32> -> vector<144x256xf32>
    %c0_173 = arith.constant 0 : index
    %c0_174 = arith.constant 0 : index
    %c0_175 = arith.constant 0 : index
    %214 = vector.load %arg15[%c0_173, %c0_174, %c0_175] : memref<1x144x256xf32, #tpu.memory_space<vmem>>, vector<1x144x256xf32>
    %215 = vector.shape_cast %214 : vector<1x144x256xf32> to vector<144x256xf32>
    %216 = vector.shape_cast %213 : vector<144x256xf32> to vector<1x144x256xf32>
    tpu.vector_store %arg15[%c0_173, %c0_174, %c0_175], %216 {strides = array<i32>} : memref<1x144x256xf32, #tpu.memory_space<vmem>>, vector<1x144x256xf32>,
    return
  }
  func.func @transform_0(%arg0: i32, %arg1: i32) -> (i32, i32, i32, i32) {
    %c0_i32 = arith.constant 0 : i32
    %c0_i32_0 = arith.constant 0 : i32
    %c0_i32_1 = arith.constant 0 : i32
    return %arg0, %arg1, %c0_i32, %c0_i32_0 : i32, i32, i32, i32
  }
  func.func @transform_1(%arg0: i32, %arg1: i32) -> (i32, i32, i32) {
    %c0_i32 = arith.constant 0 : i32
    %c0_i32_0 = arith.constant 0 : i32
    %c0_i32_1 = arith.constant 0 : i32
    return %arg1, %c0_i32, %c0_i32_0 : i32, i32, i32
  }
  func.func @transform_2(%arg0: i32, %arg1: i32) -> (i32, i32) {
    %c0_i32 = arith.constant 0 : i32
    %c0_i32_0 = arith.constant 0 : i32
    return %arg1, %c0_i32 : i32, i32
  }
  func.func @transform_3(%arg0: i32, %arg1: i32) -> (i32, i32, i32) {
    %c0_i32 = arith.constant 0 : i32
    %c0_i32_0 = arith.constant 0 : i32
    %c0_i32_1 = arith.constant 0 : i32
    %c0_i32_2 = arith.constant 0 : i32
    return %c0_i32, %c0_i32_0, %c0_i32_1 : i32, i32, i32
  }
  func.func @transform_4(%arg0: i32, %arg1: i32) -> (i32, i32) {
    %c0_i32 = arith.constant 0 : i32
    %c0_i32_0 = arith.constant 0 : i32
    %c0_i32_1 = arith.constant 0 : i32
    return %c0_i32, %c0_i32_0 : i32, i32
  }
  func.func @transform_5(%arg0: i32, %arg1: i32) -> (i32, i32, i32) {
    %c0_i32 = arith.constant 0 : i32
    %c0_i32_0 = arith.constant 0 : i32
    %c0_i32_1 = arith.constant 0 : i32
    %c0_i32_2 = arith.constant 0 : i32
    return %c0_i32, %c0_i32_0, %c0_i32_1 : i32, i32, i32
  }
  func.func @transform_6(%arg0: i32, %arg1: i32) -> (i32, i32) {
    %c0_i32 = arith.constant 0 : i32
    %c0_i32_0 = arith.constant 0 : i32
    %c0_i32_1 = arith.constant 0 : i32
    return %c0_i32, %c0_i32_0 : i32, i32
  }
  func.func @transform_7(%arg0: i32, %arg1: i32) -> (i32, i32, i32) {
    %c0_i32 = arith.constant 0 : i32
    %c0_i32_0 = arith.constant 0 : i32
    %c0_i32_1 = arith.constant 0 : i32
    %c0_i32_2 = arith.constant 0 : i32
    return %c0_i32, %c0_i32_0, %c0_i32_1 : i32, i32, i32
  }
  func.func @transform_8(%arg0: i32, %arg1: i32) -> (i32, i32) {
    %c0_i32 = arith.constant 0 : i32
    %c0_i32_0 = arith.constant 0 : i32
    %c0_i32_1 = arith.constant 0 : i32
    return %c0_i32, %c0_i32_0 : i32, i32
  }
  func.func @transform_9(%arg0: i32, %arg1: i32) -> (i32, i32, i32) {
    %c0_i32 = arith.constant 0 : i32
    %c0_i32_0 = arith.constant 0 : i32
    %c0_i32_1 = arith.constant 0 : i32
    %c0_i32_2 = arith.constant 0 : i32
    return %c0_i32, %c0_i32_0, %c0_i32_1 : i32, i32, i32
  }
  func.func @transform_10(%arg0: i32, %arg1: i32) -> (i32, i32) {
    %c0_i32 = arith.constant 0 : i32
    %c0_i32_0 = arith.constant 0 : i32
    %c0_i32_1 = arith.constant 0 : i32
    return %c0_i32, %c0_i32_0 : i32, i32
  }
  func.func @transform_11(%arg0: i32, %arg1: i32) -> (i32, i32, i32) {
    %c0_i32 = arith.constant 0 : i32
    %c0_i32_0 = arith.constant 0 : i32
    %c0_i32_1 = arith.constant 0 : i32
    %c0_i32_2 = arith.constant 0 : i32
    return %c0_i32, %c0_i32_0, %c0_i32_1 : i32, i32, i32
  }
  func.func @transform_12(%arg0: i32, %arg1: i32) -> (i32, i32) {
    %c0_i32 = arith.constant 0 : i32
    %c0_i32_0 = arith.constant 0 : i32
    %c0_i32_1 = arith.constant 0 : i32
    return %c0_i32, %c0_i32_0 : i32, i32
  }
  func.func @transform_13(%arg0: i32, %arg1: i32) -> (i32, i32, i32) {
    %c0_i32 = arith.constant 0 : i32
    %c0_i32_0 = arith.constant 0 : i32
    return %arg0, %arg1, %c0_i32 : i32, i32, i32
  }
}

</mosaic_0001>

<llo_original>
// kernel: _forward_level.1
$region0: #{_forward_level.1}
  #allocation0 [shape = 'u32[]', space=smem, size = 0x4, offset = 0x4, fixed_abs, tag = 'smem constant byte address 0x4 - core index']
  #allocation1 [shape = 'u32[72,128]{1,0:T(1,128)}', space=vmem, size = 0x9000, scoped, tag = 'internal scratch']
  #allocation2 [shape = 'bf16[252,96]{1,0:T(8,128)(2,1)}', space=vmem, size = 0x10000, scoped, tag = 'scratch operand']
  #allocation3 [shape = 'bf16[252,96]{1,0:T(8,128)(2,1)}', space=vmem, size = 0x10000, scoped, tag = 'scratch operand']
  #allocation4 [shape = 'bf16[216,96]{1,0:T(8,128)(2,1)}', space=vmem, size = 0xd800, scoped, tag = 'scratch operand']
  %s0 = inlined_call_operand.vmem [shape: bf16[2,2,270,32], index: 0, kind: input, shape index: {}]
  %s1 = inlined_call_operand.vmem [shape: f32[2,216,1], index: 1, kind: input, shape index: {}]
  %s2 = inlined_call_operand.vmem [shape: f32[288,128], index: 2, kind: input, shape index: {}]
  %s3 = inlined_call_operand.vmem [shape: bf16[3,96,32], index: 3, kind: input, shape index: {}]
  %s4 = inlined_call_operand.vmem [shape: f32[1,32], index: 4, kind: input, shape index: {}]
  %s5 = inlined_call_operand.vmem [shape: bf16[3,96,64], index: 5, kind: input, shape index: {}]
  %s6 = inlined_call_operand.vmem [shape: f32[1,64], index: 6, kind: input, shape index: {}]
  %s7 = inlined_call_operand.vmem [shape: bf16[3,96,18], index: 7, kind: input, shape index: {}]
  %s8 = inlined_call_operand.vmem [shape: f32[1,18], index: 8, kind: input, shape index: {}]
  %s9 = inlined_call_operand.vmem [shape: bf16[3,96,45], index: 9, kind: input, shape index: {}]
  %s10 = inlined_call_operand.vmem [shape: f32[1,45], index: 10, kind: input, shape index: {}]
  %s11 = inlined_call_operand.vmem [shape: bf16[3,96,45], index: 11, kind: input, shape index: {}]
  %s12 = inlined_call_operand.vmem [shape: f32[1,45], index: 12, kind: input, shape index: {}]
  %s13 = inlined_call_operand.vmem [shape: f32[2,288,256], index: 13, kind: output, shape index: {}]
  %s14 = sld [smem:[#allocation0]]
  $region85: #{_forward_level.1} parent=0
    _
  %s16 = ssub.s32 1, %s14
  %s17 = scalar_select 0, %s16, %s14
  loop: start=0, step=1, limit=6
  $region2: #{_forward_level.1} parent=0 // loop_pre_header
    _
  $region3: #{_forward_level.1} parent=0 // loop_header
    %s19 = sphi 0, %s23
    %p20 = scmp.ge.s32.totalorder %s19, 6
    %s26 = sphi 0, %s38
    %s27 = sphi 0, %s34
    %s28 = sphi 0, %s26
    %s29 = sphi 0, %s27
    %s30 = sphi 0, %s28
    %s31 = sphi 0, %s29
    %s43 = sphi 0, %s45
    %s46 = sphi 0, %s43
    %s47 = sphi 0, %s46
    %s63 = sphi 0, %s47
    %s69 = sphi 0, %s71
    %s72 = sphi 0, %s69
    %s73 = sphi 0, %s72
    %s89 = sphi 0, %s73
    %s95 = sphi 0, %s97
    %s98 = sphi 0, %s95
    %s99 = sphi 0, %s98
    %s115 = sphi 0, %s99
    %s119 = sphi 0, %s119
    %s121 = sphi 0, %s119
    %s122 = sphi 0, %s121
    %s136 = sphi 0, %s122
    %s140 = sphi 0, %s140
    %s142 = sphi 0, %s140
    %s143 = sphi 0, %s142
    %s157 = sphi 0, %s143
    %s161 = sphi 0, %s161
    %s163 = sphi 0, %s161
    %s164 = sphi 0, %s163
    %s178 = sphi 0, %s164
    %s182 = sphi 0, %s182
    %s184 = sphi 0, %s182
    %s185 = sphi 0, %s184
    %s199 = sphi 0, %s185
    %s203 = sphi 0, %s203
    %s205 = sphi 0, %s203
    %s206 = sphi 0, %s205
    %s220 = sphi 0, %s206
    %s224 = sphi 0, %s224
    %s226 = sphi 0, %s224
    %s227 = sphi 0, %s226
    %s241 = sphi 0, %s227
    %s245 = sphi 0, %s245
    %s247 = sphi 0, %s245
    %s248 = sphi 0, %s247
    %s262 = sphi 0, %s248
    %s266 = sphi 0, %s266
    %s268 = sphi 0, %s266
    %s269 = sphi 0, %s268
    %s283 = sphi 0, %s269
    %s287 = sphi 0, %s287
    %s289 = sphi 0, %s287
    %s290 = sphi 0, %s289
    %s304 = sphi 0, %s290
    %s308 = sphi 0, %s308
    %s310 = sphi 0, %s308
    %s311 = sphi 0, %s310
    %s325 = sphi 0, %s311
    %s333 = sphi 0, %s335
    %s336 = sphi 0, %s333
    %s337 = sphi 0, %s336
    %s353 = sphi 0, %s337
  $region4: #{_forward_level.1} parent=0 // loop_header_branch
    %22 = sbr.rel (%p20) target = $region8
  $region5: #{_forward_level.1} parent=0 // loop_body
    %s24 = ssub.s32 %s19, 1
    %s25 = ssub.s32 %s19, 2
    %s32 = sadd.s32 1, %s27
    %p33 = scmp.ge.s32.totalorder %s32, 2
    %s34 = scalar_select %p33, 0, %s32
    %s35 = sadd.s32 1, %s26
    %s36 = scalar_select %p33, %s35, %s26
    %p37 = scmp.ge.s32.totalorder %s36, 2
    %s38 = scalar_select %p37, 0, %s36
    %s39 = ssub.s32 %s26, %s38
    %s40 = ssub.s32 %s27, %s34
    %s41 = sor.u32 %s39, %s40
    %p42 = scmp.eq.s32.totalorder %s41, 0
    %s44 = sadd.s32 %s43, 1
    %s45 = scalar_select %p42, %s43, %s44
    %p48 = pneg %p42
    %p49 = scmp.eq.s32.totalorder %s19, 3
    %p50 = por %p48, %p49
    %p51 = scmp.ne.s32.totalorder %s43, %s46
    %p52 = scmp.eq.s32.totalorder %s19, 0
    %p53 = por %p51, %p52
    %p54 = scmp.ne.s32.totalorder %s43, %s46
    %p55 = scmp.eq.s32.totalorder %s24, 3
    %p56 = por %p54, %p55
    %p57 = scmp.ne.s32.totalorder %s46, %s47
    %p58 = scmp.eq.s32.totalorder %s24, 0
    %p59 = por %p57, %p58
    %p60 = scmp.ne.s32.totalorder %s46, %s47
    %p61 = scmp.eq.s32.totalorder %s25, 3
    %p62 = por %p60, %p61
    %p64 = scmp.ne.s32.totalorder %s47, %s63
    %p65 = scmp.eq.s32.totalorder %s25, 0
    %p66 = por %p64, %p65
    %s67 = ssub.s32 %s27, %s34
    %p68 = scmp.eq.s32.totalorder %s67, 0
    %s70 = sadd.s32 %s69, 1
    %s71 = scalar_select %p68, %s69, %s70
    %p74 = pneg %p68
    %p75 = scmp.eq.s32.totalorder %s19, 3
    %p76 = por %p74, %p75
    %p77 = scmp.ne.s32.totalorder %s69, %s72
    %p78 = scmp.eq.s32.totalorder %s19, 0
    %p79 = por %p77, %p78
    %p80 = scmp.ne.s32.totalorder %s69, %s72
    %p81 = scmp.eq.s32.totalorder %s24, 3
    %p82 = por %p80, %p81
    %p83 = scmp.ne.s32.totalorder %s72, %s73
    %p84 = scmp.eq.s32.totalorder %s24, 0
    %p85 = por %p83, %p84
    %p86 = scmp.ne.s32.totalorder %s72, %s73
    %p87 = scmp.eq.s32.totalorder %s25, 3
    %p88 = por %p86, %p87
    %p90 = scmp.ne.s32.totalorder %s73, %s89
    %p91 = scmp.eq.s32.totalorder %s25, 0
    %p92 = por %p90, %p91
    %s93 = ssub.s32 %s27, %s34
    %p94 = scmp.eq.s32.totalorder %s93, 0
    %s96 = sadd.s32 %s95, 1
    %s97 = scalar_select %p94, %s95, %s96
    %p100 = pneg %p94
    %p101 = scmp.eq.s32.totalorder %s19, 3
    %p102 = por %p100, %p101
    %p103 = scmp.ne.s32.totalorder %s95, %s98
    %p104 = scmp.eq.s32.totalorder %s19, 0
    %p105 = por %p103, %p104
    %p106 = scmp.ne.s32.totalorder %s95, %s98
    %p107 = scmp.eq.s32.totalorder %s24, 3
    %p108 = por %p106, %p107
    %p109 = scmp.ne.s32.totalorder %s98, %s99
    %p110 = scmp.eq.s32.totalorder %s24, 0
    %p111 = por %p109, %p110
    %p112 = scmp.ne.s32.totalorder %s98, %s99
    %p113 = scmp.eq.s32.totalorder %s25, 3
    %p114 = por %p112, %p113
    %p116 = scmp.ne.s32.totalorder %s99, %s115
    %p117 = scmp.eq.s32.totalorder %s25, 0
    %p118 = por %p116, %p117
    %s120 = sadd.s32 %s119, 1
    %p123 = scmp.eq.s32.totalorder %s19, 3
    %p124 = scmp.ne.s32.totalorder %s119, %s121
    %p125 = scmp.eq.s32.totalorder %s19, 0
    %p126 = por %p124, %p125
    %p127 = scmp.ne.s32.totalorder %s119, %s121
    %p128 = scmp.eq.s32.totalorder %s24, 3
    %p129 = por %p127, %p128
    %p130 = scmp.ne.s32.totalorder %s121, %s122
    %p131 = scmp.eq.s32.totalorder %s24, 0
    %p132 = por %p130, %p131
    %p133 = scmp.ne.s32.totalorder %s121, %s122
    %p134 = scmp.eq.s32.totalorder %s25, 3
    %p135 = por %p133, %p134
    %p137 = scmp.ne.s32.totalorder %s122, %s136
    %p138 = scmp.eq.s32.totalorder %s25, 0
    %p139 = por %p137, %p138
    %s141 = sadd.s32 %s140, 1
    %p144 = scmp.eq.s32.totalorder %s19, 3
    %p145 = scmp.ne.s32.totalorder %s140, %s142
    %p146 = scmp.eq.s32.totalorder %s19, 0
    %p147 = por %p145, %p146
    %p148 = scmp.ne.s32.totalorder %s140, %s142
    %p149 = scmp.eq.s32.totalorder %s24, 3
    %p150 = por %p148, %p149
    %p151 = scmp.ne.s32.totalorder %s142, %s143
    %p152 = scmp.eq.s32.totalorder %s24, 0
    %p153 = por %p151, %p152
    %p154 = scmp.ne.s32.totalorder %s142, %s143
    %p155 = scmp.eq.s32.totalorder %s25, 3
    %p156 = por %p154, %p155
    %p158 = scmp.ne.s32.totalorder %s143, %s157
    %p159 = scmp.eq.s32.totalorder %s25, 0
    %p160 = por %p158, %p159
    %s162 = sadd.s32 %s161, 1
    %p165 = scmp.eq.s32.totalorder %s19, 3
    %p166 = scmp.ne.s32.totalorder %s161, %s163
    %p167 = scmp.eq.s32.totalorder %s19, 0
    %p168 = por %p166, %p167
    %p169 = scmp.ne.s32.totalorder %s161, %s163
    %p170 = scmp.eq.s32.totalorder %s24, 3
    %p171 = por %p169, %p170
    %p172 = scmp.ne.s32.totalorder %s163, %s164
    %p173 = scmp.eq.s32.totalorder %s24, 0
    %p174 = por %p172, %p173
    %p175 = scmp.ne.s32.totalorder %s163, %s164
    %p176 = scmp.eq.s32.totalorder %s25, 3
    %p177 = por %p175, %p176
    %p179 = scmp.ne.s32.totalorder %s164, %s178
    %p180 = scmp.eq.s32.totalorder %s25, 0
    %p181 = por %p179, %p180
    %s183 = sadd.s32 %s182, 1
    %p186 = scmp.eq.s32.totalorder %s19, 3
    %p187 = scmp.ne.s32.totalorder %s182, %s184
    %p188 = scmp.eq.s32.totalorder %s19, 0
    %p189 = por %p187, %p188
    %p190 = scmp.ne.s32.totalorder %s182, %s184
    %p191 = scmp.eq.s32.totalorder %s24, 3
    %p192 = por %p190, %p191
    %p193 = scmp.ne.s32.totalorder %s184, %s185
    %p194 = scmp.eq.s32.totalorder %s24, 0
    %p195 = por %p193, %p194
    %p196 = scmp.ne.s32.totalorder %s184, %s185
    %p197 = scmp.eq.s32.totalorder %s25, 3
    %p198 = por %p196, %p197
    %p200 = scmp.ne.s32.totalorder %s185, %s199
    %p201 = scmp.eq.s32.totalorder %s25, 0
    %p202 = por %p200, %p201
    %s204 = sadd.s32 %s203, 1
    %p207 = scmp.eq.s32.totalorder %s19, 3
    %p208 = scmp.ne.s32.totalorder %s203, %s205
    %p209 = scmp.eq.s32.totalorder %s19, 0
    %p210 = por %p208, %p209
    %p211 = scmp.ne.s32.totalorder %s203, %s205
    %p212 = scmp.eq.s32.totalorder %s24, 3
    %p213 = por %p211, %p212
    %p214 = scmp.ne.s32.totalorder %s205, %s206
    %p215 = scmp.eq.s32.totalorder %s24, 0
    %p216 = por %p214, %p215
    %p217 = scmp.ne.s32.totalorder %s205, %s206
    %p218 = scmp.eq.s32.totalorder %s25, 3
    %p219 = por %p217, %p218
    %p221 = scmp.ne.s32.totalorder %s206, %s220
    %p222 = scmp.eq.s32.totalorder %s25, 0
    %p223 = por %p221, %p222
    %s225 = sadd.s32 %s224, 1
    %p228 = scmp.eq.s32.totalorder %s19, 3
    %p229 = scmp.ne.s32.totalorder %s224, %s226
    %p230 = scmp.eq.s32.totalorder %s19, 0
    %p231 = por %p229, %p230
    %p232 = scmp.ne.s32.totalorder %s224, %s226
    %p233 = scmp.eq.s32.totalorder %s24, 3
    %p234 = por %p232, %p233
    %p235 = scmp.ne.s32.totalorder %s226, %s227
    %p236 = scmp.eq.s32.totalorder %s24, 0
    %p237 = por %p235, %p236
    %p238 = scmp.ne.s32.totalorder %s226, %s227
    %p239 = scmp.eq.s32.totalorder %s25, 3
    %p240 = por %p238, %p239
    %p242 = scmp.ne.s32.totalorder %s227, %s241
    %p243 = scmp.eq.s32.totalorder %s25, 0
    %p244 = por %p242, %p243
    %s246 = sadd.s32 %s245, 1
    %p249 = scmp.eq.s32.totalorder %s19, 3
    %p250 = scmp.ne.s32.totalorder %s245, %s247
    %p251 = scmp.eq.s32.totalorder %s19, 0
    %p252 = por %p250, %p251
    %p253 = scmp.ne.s32.totalorder %s245, %s247
    %p254 = scmp.eq.s32.totalorder %s24, 3
    %p255 = por %p253, %p254
    %p256 = scmp.ne.s32.totalorder %s247, %s248
    %p257 = scmp.eq.s32.totalorder %s24, 0
    %p258 = por %p256, %p257
    %p259 = scmp.ne.s32.totalorder %s247, %s248
    %p260 = scmp.eq.s32.totalorder %s25, 3
    %p261 = por %p259, %p260
    %p263 = scmp.ne.s32.totalorder %s248, %s262
    %p264 = scmp.eq.s32.totalorder %s25, 0
    %p265 = por %p263, %p264
    %s267 = sadd.s32 %s266, 1
    %p270 = scmp.eq.s32.totalorder %s19, 3
    %p271 = scmp.ne.s32.totalorder %s266, %s268
    %p272 = scmp.eq.s32.totalorder %s19, 0
    %p273 = por %p271, %p272
    %p274 = scmp.ne.s32.totalorder %s266, %s268
    %p275 = scmp.eq.s32.totalorder %s24, 3
    %p276 = por %p274, %p275
    %p277 = scmp.ne.s32.totalorder %s268, %s269
    %p278 = scmp.eq.s32.totalorder %s24, 0
    %p279 = por %p277, %p278
    %p280 = scmp.ne.s32.totalorder %s268, %s269
    %p281 = scmp.eq.s32.totalorder %s25, 3
    %p282 = por %p280, %p281
    %p284 = scmp.ne.s32.totalorder %s269, %s283
    %p285 = scmp.eq.s32.totalorder %s25, 0
    %p286 = por %p284, %p285
    %s288 = sadd.s32 %s287, 1
    %p291 = scmp.eq.s32.totalorder %s19, 3
    %p292 = scmp.ne.s32.totalorder %s287, %s289
    %p293 = scmp.eq.s32.totalorder %s19, 0
    %p294 = por %p292, %p293
    %p295 = scmp.ne.s32.totalorder %s287, %s289
    %p296 = scmp.eq.s32.totalorder %s24, 3
    %p297 = por %p295, %p296
    %p298 = scmp.ne.s32.totalorder %s289, %s290
    %p299 = scmp.eq.s32.totalorder %s24, 0
    %p300 = por %p298, %p299
    %p301 = scmp.ne.s32.totalorder %s289, %s290
    %p302 = scmp.eq.s32.totalorder %s25, 3
    %p303 = por %p301, %p302
    %p305 = scmp.ne.s32.totalorder %s290, %s304
    %p306 = scmp.eq.s32.totalorder %s25, 0
    %p307 = por %p305, %p306
    %s309 = sadd.s32 %s308, 1
    %p312 = scmp.eq.s32.totalorder %s19, 3
    %p313 = scmp.ne.s32.totalorder %s308, %s310
    %p314 = scmp.eq.s32.totalorder %s19, 0
    %p315 = por %p313, %p314
    %p316 = scmp.ne.s32.totalorder %s308, %s310
    %p317 = scmp.eq.s32.totalorder %s24, 3
    %p318 = por %p316, %p317
    %p319 = scmp.ne.s32.totalorder %s310, %s311
    %p320 = scmp.eq.s32.totalorder %s24, 0
    %p321 = por %p319, %p320
    %p322 = scmp.ne.s32.totalorder %s310, %s311
    %p323 = scmp.eq.s32.totalorder %s25, 3
    %p324 = por %p322, %p323
    %p326 = scmp.ne.s32.totalorder %s311, %s325
    %p327 = scmp.eq.s32.totalorder %s25, 0
    %p328 = por %p326, %p327
    %s329 = ssub.s32 %s26, %s38
    %s330 = ssub.s32 %s27, %s34
    %s331 = sor.u32 %s329, %s330
    %p332 = scmp.eq.s32.totalorder %s331, 0
    %s334 = sadd.s32 %s333, 1
    %s335 = scalar_select %p332, %s333, %s334
    %p338 = pneg %p332
    %p339 = scmp.eq.s32.totalorder %s19, 3
    %p340 = por %p338, %p339
    %p341 = scmp.ne.s32.totalorder %s333, %s336
    %p342 = scmp.eq.s32.totalorder %s19, 0
    %p343 = por %p341, %p342
    %p344 = scmp.ne.s32.totalorder %s333, %s336
    %p345 = scmp.eq.s32.totalorder %s24, 3
    %p346 = por %p344, %p345
    %p347 = scmp.ne.s32.totalorder %s336, %s337
    %p348 = scmp.eq.s32.totalorder %s24, 0
    %p349 = por %p347, %p348
    %p350 = scmp.ne.s32.totalorder %s336, %s337
    %p351 = scmp.eq.s32.totalorder %s25, 3
    %p352 = por %p350, %p351
    %p354 = scmp.ne.s32.totalorder %s337, %s353
    %p355 = scmp.eq.s32.totalorder %s25, 0
    %p356 = por %p354, %p355
    %p357 = scmp.le.s32.totalorder 1, %s19
    %p358 = scmp.lt.s32.totalorder %s19, 5
    %p359 = pnand %p357, %p358
    %p360 = pneg %p359
    // Predicated region
    $region9: #{_forward_level.1} parent=5 // pred_check
      _
    $region10: #{_forward_level.1} parent=5 // pred_check_branch
      %362 = sbr.rel (%p359) target = $region12
    $region11: #{_forward_level.1} parent=5 // pred_region
      %s363 = ssub.s32 %s19, 1
      // Predicated region
      $region13: #{_forward_level.1} parent=11 // pred_check
        %p364 = pneg %p132
      $region14: #{_forward_level.1} parent=11 // pred_check_branch
        %366 = sbr.rel (%p364) target = $region16
      $region15: #{_forward_level.1} parent=11 // pred_region
        _
      $region16: #{_forward_level.1} parent=11 // pred_fallthru
        _
      // Predicated region
      $region17: #{_forward_level.1} parent=11 // pred_check
        %p367 = pneg %p153
      $region18: #{_forward_level.1} parent=11 // pred_check_branch
        %369 = sbr.rel (%p367) target = $region20
      $region19: #{_forward_level.1} parent=11 // pred_region
        _
      $region20: #{_forward_level.1} parent=11 // pred_fallthru
        _
      // Predicated region
      $region21: #{_forward_level.1} parent=11 // pred_check
        %p370 = pneg %p174
      $region22: #{_forward_level.1} parent=11 // pred_check_branch
        %372 = sbr.rel (%p370) target = $region24
      $region23: #{_forward_level.1} parent=11 // pred_region
        _
      $region24: #{_forward_level.1} parent=11 // pred_fallthru
        _
      // Predicated region
      $region25: #{_forward_level.1} parent=11 // pred_check
        %p373 = pneg %p195
      $region26: #{_forward_level.1} parent=11 // pred_check_branch
        %375 = sbr.rel (%p373) target = $region28
      $region27: #{_forward_level.1} parent=11 // pred_region
        _
      $region28: #{_forward_level.1} parent=11 // pred_fallthru
        _
      // Predicated region
      $region29: #{_forward_level.1} parent=11 // pred_check
        %p376 = pneg %p216
      $region30: #{_forward_level.1} parent=11 // pred_check_branch
        %378 = sbr.rel (%p376) target = $region32
      $region31: #{_forward_level.1} parent=11 // pred_region
        _
      $region32: #{_forward_level.1} parent=11 // pred_fallthru
        _
      // Predicated region
      $region33: #{_forward_level.1} parent=11 // pred_check
        %p379 = pneg %p237
      $region34: #{_forward_level.1} parent=11 // pred_check_branch
        %381 = sbr.rel (%p379) target = $region36
      $region35: #{_forward_level.1} parent=11 // pred_region
        _
      $region36: #{_forward_level.1} parent=11 // pred_fallthru
        _
      // Predicated region
      $region37: #{_forward_level.1} parent=11 // pred_check
        %p382 = pneg %p258
      $region38: #{_forward_level.1} parent=11 // pred_check_branch
        %384 = sbr.rel (%p382) target = $region40
      $region39: #{_forward_level.1} parent=11 // pred_region
        _
      $region40: #{_forward_level.1} parent=11 // pred_fallthru
        _
      // Predicated region
      $region41: #{_forward_level.1} parent=11 // pred_check
        %p385 = pneg %p279
      $region42: #{_forward_level.1} parent=11 // pred_check_branch
        %387 = sbr.rel (%p385) target = $region44
      $region43: #{_forward_level.1} parent=11 // pred_region
        _
      $region44: #{_forward_level.1} parent=11 // pred_fallthru
        _
      // Predicated region
      $region45: #{_forward_level.1} parent=11 // pred_check
        %p388 = pneg %p300
      $region46: #{_forward_level.1} parent=11 // pred_check_branch
        %390 = sbr.rel (%p388) target = $region48
      $region47: #{_forward_level.1} parent=11 // pred_region
        _
      $region48: #{_forward_level.1} parent=11 // pred_fallthru
        _
      // Predicated region
      $region49: #{_forward_level.1} parent=11 // pred_check
        %p391 = pneg %p321
      $region50: #{_forward_level.1} parent=11 // pred_check_branch
        %393 = sbr.rel (%p391) target = $region52
      $region51: #{_forward_level.1} parent=11 // pred_region
        _
      $region52: #{_forward_level.1} parent=11 // pred_fallthru
        _
    $region12: #{_forward_level.1} parent=5 // pred_fallthru
      _
    %p394 = scmp.lt.s32.totalorder %s19, 4
    // Predicated region
    $region53: #{_forward_level.1} parent=5 // pred_check
      %p395 = pneg %p394
    $region54: #{_forward_level.1} parent=5 // pred_check_branch
      %397 = sbr.rel (%p395) target = $region56
    $region55: #{_forward_level.1} parent=5 // pred_region
      // Predicated region
      $region57: #{_forward_level.1} parent=55 // pred_check
        %p398 = pneg %p53
      $region58: #{_forward_level.1} parent=55 // pred_check_branch
        %400 = sbr.rel (%p398) target = $region60
      $region59: #{_forward_level.1} parent=55 // pred_region
        %p401 = scmp.lt.s32.totalorder %s26, 1
        %s402 = scalar_select %p401, %s26, 1
        %p403 = scmp.lt.s32.totalorder %s27, 1
        %s404 = scalar_select %p403, %s27, 1
        %s405 = smul.addr %s404, 34
        %s406 = smul.addr %s402, 68
        %s407 = sadd.s32 %s405, %s406
        %s408 = smul.addr %s407, 4
        %s409 = scalar_lea.vmem %s0, %s408
      $region60: #{_forward_level.1} parent=55 // pred_fallthru
        _
      // Predicated region
      $region61: #{_forward_level.1} parent=55 // pred_check
        %p410 = pneg %p79
      $region62: #{_forward_level.1} parent=55 // pred_check_branch
        %412 = sbr.rel (%p410) target = $region64
      $region63: #{_forward_level.1} parent=55 // pred_region
        %p413 = scmp.lt.s32.totalorder %s27, 1
        %s414 = scalar_select %p413, %s27, 1
        %s415 = smul.addr %s414, 27
        %s416 = smul.addr %s415, 8
        %s417 = scalar_lea.vmem %s1, %s416
      $region64: #{_forward_level.1} parent=55 // pred_fallthru
        _
      // Predicated region
      $region65: #{_forward_level.1} parent=55 // pred_check
        %p418 = pneg %p105
      $region66: #{_forward_level.1} parent=55 // pred_check_branch
        %420 = sbr.rel (%p418) target = $region68
      $region67: #{_forward_level.1} parent=55 // pred_region
        %s421 = smul.u32 18, %s27
        %p422 = scmp.lt.s32.totalorder %s421, 35
        %s423 = scalar_select %p422, %s421, 35
        %s424 = smul.addr %s423, 8
        %s425 = scalar_lea.vmem %s2, %s424
        %s426 = smul.u32 18, %s27
      $region68: #{_forward_level.1} parent=55 // pred_fallthru
        _
    $region56: #{_forward_level.1} parent=5 // pred_fallthru
      _
    %p427 = scmp.le.s32.totalorder 1, %s19
    %p428 = scmp.lt.s32.totalorder %s19, 5
    %p429 = pnand %p427, %p428
    %p430 = pneg %p429
    // Predicated region
    $region69: #{_forward_level.1} parent=5 // pred_check
      _
    $region70: #{_forward_level.1} parent=5 // pred_check_branch
      %432 = sbr.rel (%p429) target = $region72
    $region71: #{_forward_level.1} parent=5 // pred_region
      %s433 = ssub.s32 %s19, 1
      %p434 = scmp.lt.s32.totalorder %s28, 1
      %s435 = scalar_select %p434, %s28, 1
      %p436 = scmp.lt.s32.totalorder %s29, 1
      %s437 = scalar_select %p436, %s29, 1
      %s438 = smul.addr %s437, 34
      %s439 = smul.addr %s435, 68
      %s440 = sadd.s32 %s438, %s439
      %s441 = smul.addr %s440, 4
      %s442 = scalar_lea.vmem %s0, %s441
      %p443 = pneg %p59
      %p444 = pneg %p56
      %p445 = scmp.lt.s32.totalorder %s29, 1
      %s446 = scalar_select %p445, %s29, 1
      %s447 = smul.addr %s446, 27
      %s448 = smul.addr %s447, 8
      %s449 = scalar_lea.vmem %s1, %s448
      %p450 = pneg %p85
      %p451 = pneg %p82
      %s452 = smul.u32 18, %s29
      %p453 = scmp.lt.s32.totalorder %s452, 35
      %s454 = scalar_select %p453, %s452, 35
      %s455 = smul.addr %s454, 8
      %s456 = scalar_lea.vmem %s2, %s455
      %p457 = pneg %p111
      %p458 = pneg %p108
      %p459 = pneg %p132
      %p460 = pneg %p129
      %p461 = pneg %p153
      %p462 = pneg %p150
      %p463 = pneg %p174
      %p464 = pneg %p171
      %p465 = pneg %p195
      %p466 = pneg %p192
      %p467 = pneg %p216
      %p468 = pneg %p213
      %p469 = pneg %p237
      %p470 = pneg %p234
      %p471 = pneg %p258
      %p472 = pneg %p255
      %p473 = pneg %p279
      %p474 = pneg %p276
      %p475 = pneg %p300
      %p476 = pneg %p297
      %p477 = pneg %p321
      %p478 = pneg %p318
      %p479 = pneg %p349
      %p480 = pneg %p346
      %s481 = smul.u32 18, %s29
      %p482 = scmp.lt.s32.totalorder %s28, 1
      %s483 = scalar_select %p482, %s28, 1
      %p484 = scmp.lt.s32.totalorder %s481, 35
      %s485 = scalar_select %p484, %s481, 35
      %s486 = smul.addr %s485, 2
      %s487 = smul.addr %s483, 72
      %s488 = sadd.s32 %s486, %s487
      %s489 = smul.addr %s488, 8
      %s490 = scalar_lea.vmem %s13, %s489
      %p491 = scmp.lt.s32.totalorder %s28, 1
      %s492 = scalar_select %p491, %s28, 1
      %p493 = scmp.lt.s32.totalorder %s29, 1
      %s494 = scalar_select %p493, %s29, 1
      %s495 = smul.addr %s494, 34
      %s496 = smul.addr %s492, 68
      %s497 = sadd.s32 %s495, %s496
      %s498 = smul.addr %s497, 4
      %s499 = scalar_lea.vmem %s0, %s498
      %p500 = scmp.lt.s32.totalorder %s29, 1
      %s501 = scalar_select %p500, %s29, 1
      %s502 = smul.addr %s501, 27
      %s503 = smul.addr %s502, 8
      %s504 = scalar_lea.vmem %s1, %s503
      %s505 = smul.u32 18, %s29
      %p506 = scmp.lt.s32.totalorder %s505, 35
      %s507 = scalar_select %p506, %s505, 35
      %s508 = smul.addr %s507, 8
      %s509 = scalar_lea.vmem %s2, %s508
      %s510 = smul.u32 18, %s29
      %s511 = smul.u32 18, %s29
      %p512 = scmp.lt.s32.totalorder %s28, 1
      %s513 = scalar_select %p512, %s28, 1
      %p514 = scmp.lt.s32.totalorder %s511, 35
      %s515 = scalar_select %p514, %s511, 35
      %s516 = smul.addr %s515, 2
      %s517 = smul.addr %s513, 72
      %s518 = sadd.s32 %s516, %s517
      %s519 = smul.addr %s518, 8
      %s520 = scalar_lea.vmem %s13, %s519
      %s521 = smul.u32 18, %s29
      %v523 = vld [vmem:[%s499] sm:$0xf]
      %v524 = vld [vmem:[%s499 + $0x4] sm:$0xf]
      %v525 = vld [vmem:[%s499 + $0x8] sm:$0xf]
      %v526 = vld [vmem:[%s499 + $0xc] sm:$0xf]
      %v527 = vld [vmem:[%s499 + $0x10] sm:$0xf]
      %v528 = vld [vmem:[%s499 + $0x14] sm:$0xf]
      %v529 = vld [vmem:[%s499 + $0x18] sm:$0xf]
      %v530 = vld [vmem:[%s499 + $0x1c] sm:$0xf]
      %v531 = vld [vmem:[%s499 + $0x20] sm:$0xf]
      %v532 = vld [vmem:[%s499 + $0x24] sm:$0xf]
      %v533 = vld [vmem:[%s499 + $0x28] sm:$0xf]
      %v534 = vld [vmem:[%s499 + $0x2c] sm:$0xf]
      %v535 = vld [vmem:[%s499 + $0x30] sm:$0xf]
      %v536 = vld [vmem:[%s499 + $0x34] sm:$0xf]
      %v537 = vld [vmem:[%s499 + $0x38] sm:$0xf]
      %v538 = vld [vmem:[%s499 + $0x3c] sm:$0xf]
      %v539 = vld [vmem:[%s499 + $0x40] sm:$0xf]
      %v540 = vld [vmem:[%s499 + $0x44] sm:$0xf]
      %v541 = vld [vmem:[%s499 + $0x48] sm:$0xf]
      %v542 = vld [vmem:[%s499 + $0x4c] sm:$0xf]
      %v543 = vld [vmem:[%s499 + $0x50] sm:$0xf]
      %v544 = vld [vmem:[%s499 + $0x54] sm:$0xf]
      %v545 = vld [vmem:[%s499 + $0x58] sm:$0xf]
      %v546 = vld [vmem:[%s499 + $0x5c] sm:$0xf]
      %v547 = vld [vmem:[%s499 + $0x60] sm:$0xf]
      %v548 = vld [vmem:[%s499 + $0x64] sm:$0xf]
      %v549 = vld [vmem:[%s499 + $0x68] sm:$0xf]
      %v550 = vld [vmem:[%s499 + $0x6c] sm:$0xf]
      %v551 = vld [vmem:[%s499 + $0x70] sm:$0xf]
      %v552 = vld [vmem:[%s499 + $0x74] sm:$0xf]
      %v553 = vld [vmem:[%s499 + $0x78] sm:$0xf]
      %v554 = vld [vmem:[%s499 + $0x7c] sm:$0x3]
      %vm555 = vcmask 257024
      %556 = vst.msk [vmem:[#allocation2] sm:$0xf] %vm555, %v523
      %557 = vst.msk [vmem:[#allocation2 + $0x4] sm:$0xf] %vm555, %v524
      %558 = vst.msk [vmem:[#allocation2 + $0x8] sm:$0xf] %vm555, %v525
      %559 = vst.msk [vmem:[#allocation2 + $0xc] sm:$0xf] %vm555, %v526
      %560 = vst.msk [vmem:[#allocation2 + $0x10] sm:$0xf] %vm555, %v527
      %561 = vst.msk [vmem:[#allocation2 + $0x14] sm:$0xf] %vm555, %v528
      %562 = vst.msk [vmem:[#allocation2 + $0x18] sm:$0xf] %vm555, %v529
      %563 = vst.msk [vmem:[#allocation2 + $0x1c] sm:$0xf] %vm555, %v530
      %564 = vst.msk [vmem:[#allocation2 + $0x20] sm:$0xf] %vm555, %v531
      %565 = vst.msk [vmem:[#allocation2 + $0x24] sm:$0xf] %vm555, %v532
      %566 = vst.msk [vmem:[#allocation2 + $0x28] sm:$0xf] %vm555, %v533
      %567 = vst.msk [vmem:[#allocation2 + $0x2c] sm:$0xf] %vm555, %v534
      %568 = vst.msk [vmem:[#allocation2 + $0x30] sm:$0xf] %vm555, %v535
      %569 = vst.msk [vmem:[#allocation2 + $0x34] sm:$0xf] %vm555, %v536
      %570 = vst.msk [vmem:[#allocation2 + $0x38] sm:$0xf] %vm555, %v537
      %571 = vst.msk [vmem:[#allocation2 + $0x3c] sm:$0xf] %vm555, %v538
      %572 = vst.msk [vmem:[#allocation2 + $0x40] sm:$0xf] %vm555, %v539
      %573 = vst.msk [vmem:[#allocation2 + $0x44] sm:$0xf] %vm555, %v540
      %574 = vst.msk [vmem:[#allocation2 + $0x48] sm:$0xf] %vm555, %v541
      %575 = vst.msk [vmem:[#allocation2 + $0x4c] sm:$0xf] %vm555, %v542
      %576 = vst.msk [vmem:[#allocation2 + $0x50] sm:$0xf] %vm555, %v543
      %577 = vst.msk [vmem:[#allocation2 + $0x54] sm:$0xf] %vm555, %v544
      %578 = vst.msk [vmem:[#allocation2 + $0x58] sm:$0xf] %vm555, %v545
      %579 = vst.msk [vmem:[#allocation2 + $0x5c] sm:$0xf] %vm555, %v546
      %580 = vst.msk [vmem:[#allocation2 + $0x60] sm:$0xf] %vm555, %v547
      %581 = vst.msk [vmem:[#allocation2 + $0x64] sm:$0xf] %vm555, %v548
      %582 = vst.msk [vmem:[#allocation2 + $0x68] sm:$0xf] %vm555, %v549
      %583 = vst.msk [vmem:[#allocation2 + $0x6c] sm:$0xf] %vm555, %v550
      %584 = vst.msk [vmem:[#allocation2 + $0x70] sm:$0xf] %vm555, %v551
      %585 = vst.msk [vmem:[#allocation2 + $0x74] sm:$0xf] %vm555, %v552
      %586 = vst.msk [vmem:[#allocation2 + $0x78] sm:$0xf] %vm555, %v553
      %vm587 = vcmask 254976
      %588 = vst.msk [vmem:[#allocation2 + $0x7c] sm:$0x3] %vm587, %v554
      %v589 = vld [vmem:[%s499] sm:$0xf]
      %v590 = vld [vmem:[%s499 + $0x4] sm:$0xf]
      %v591 = vld [vmem:[%s499 + $0x8] sm:$0xf]
      %v592 = vld [vmem:[%s499 + $0xc] sm:$0xf]
      %v593 = vld [vmem:[%s499 + $0x10] sm:$0xf]
      %v594 = vld [vmem:[%s499 + $0x14] sm:$0xf]
      %v595 = vld [vmem:[%s499 + $0x18] sm:$0xf]
      %v596 = vld [vmem:[%s499 + $0x1c] sm:$0xf]
      %v597 = vld [vmem:[%s499 + $0x20] sm:$0xf]
      %v598 = vld [vmem:[%s499 + $0x24] sm:$0xf]
      %v599 = vld [vmem:[%s499 + $0x28] sm:$0xf]
      %v600 = vld [vmem:[%s499 + $0x2c] sm:$0xf]
      %v601 = vld [vmem:[%s499 + $0x30] sm:$0xf]
      %v602 = vld [vmem:[%s499 + $0x34] sm:$0xf]
      %v603 = vld [vmem:[%s499 + $0x38] sm:$0xf]
      %v604 = vld [vmem:[%s499 + $0x3c] sm:$0xf]
      %v605 = vld [vmem:[%s499 + $0x40] sm:$0xf]
      %v606 = vld [vmem:[%s499 + $0x44] sm:$0xf]
      %v607 = vld [vmem:[%s499 + $0x48] sm:$0xf]
      %v608 = vld [vmem:[%s499 + $0x4c] sm:$0xf]
      %v609 = vld [vmem:[%s499 + $0x50] sm:$0xf]
      %v610 = vld [vmem:[%s499 + $0x54] sm:$0xf]
      %v611 = vld [vmem:[%s499 + $0x58] sm:$0xf]
      %v612 = vld [vmem:[%s499 + $0x5c] sm:$0xf]
      %v613 = vld [vmem:[%s499 + $0x60] sm:$0xf]
      %v614 = vld [vmem:[%s499 + $0x64] sm:$0xf]
      %v615 = vld [vmem:[%s499 + $0x68] sm:$0xf]
      %v616 = vld [vmem:[%s499 + $0x6c] sm:$0xf]
      %v617 = vld [vmem:[%s499 + $0x70] sm:$0xf]
      %v618 = vld [vmem:[%s499 + $0x74] sm:$0xf]
      %v619 = vld [vmem:[%s499 + $0x78] sm:$0xf]
      %v620 = vld [vmem:[%s499 + $0x7c] sm:$0x7]
      %vm621 = vsmask.f32 3328
      %vm622 = vsmask.f32 7440
      %vm623 = vmor %vm621, %vm622
      %v625 = vshrl.u32 %v589, 16
      %v627 = vrot.slane %v625, 4
      %v628 = vshll.u32 %v589, 16
      %v630 = vrot.slane %v628, 5
      %v631 = vor.u32 %v627, %v630
      %v632 = vrot.slane %v631, 4
      %v634 = vshll.u32 %v590, 16
      %v636 = vrot.slane %v634, 5
      %v637 = vsel %vm623, %v632, %v636
      %v638 = vshrl.u32 %v590, 16
      %v640 = vrot.slane %v638, 4
      %v641 = vor.u32 %v640, %v636
      %v642 = vrot.slane %v641, 4
      %v644 = vshll.u32 %v591, 16
      %v646 = vrot.slane %v644, 5
      %v647 = vsel %vm623, %v642, %v646
      %v648 = vshrl.u32 %v591, 16
      %v650 = vrot.slane %v648, 4
      %v651 = vor.u32 %v650, %v646
      %v652 = vrot.slane %v651, 4
      %v654 = vshll.u32 %v592, 16
      %v656 = vrot.slane %v654, 5
      %v657 = vsel %vm623, %v652, %v656
      %v658 = vshrl.u32 %v592, 16
      %v660 = vrot.slane %v658, 4
      %v661 = vor.u32 %v660, %v656
      %v662 = vrot.slane %v661, 4
      %v664 = vshll.u32 %v593, 16
      %v666 = vrot.slane %v664, 5
      %v667 = vsel %vm623, %v662, %v666
      %v668 = vshrl.u32 %v593, 16
      %v670 = vrot.slane %v668, 4
      %v671 = vor.u32 %v670, %v666
      %v672 = vrot.slane %v671, 4
      %v674 = vshll.u32 %v594, 16
      %v676 = vrot.slane %v674, 5
      %v677 = vsel %vm623, %v672, %v676
      %v678 = vshrl.u32 %v594, 16
      %v680 = vrot.slane %v678, 4
      %v681 = vor.u32 %v680, %v676
      %v682 = vrot.slane %v681, 4
      %v684 = vshll.u32 %v595, 16
      %v686 = vrot.slane %v684, 5
      %v687 = vsel %vm623, %v682, %v686
      %v688 = vshrl.u32 %v595, 16
      %v690 = vrot.slane %v688, 4
      %v691 = vor.u32 %v690, %v686
      %v692 = vrot.slane %v691, 4
      %v694 = vshll.u32 %v596, 16
      %v696 = vrot.slane %v694, 5
      %v697 = vsel %vm623, %v692, %v696
      %v698 = vshrl.u32 %v596, 16
      %v700 = vrot.slane %v698, 4
      %v701 = vor.u32 %v700, %v696
      %v702 = vrot.slane %v701, 4
      %v704 = vshll.u32 %v597, 16
      %v706 = vrot.slane %v704, 5
      %v707 = vsel %vm623, %v702, %v706
      %v708 = vshrl.u32 %v597, 16
      %v710 = vrot.slane %v708, 4
      %v711 = vor.u32 %v710, %v706
      %v712 = vrot.slane %v711, 4
      %v714 = vshll.u32 %v598, 16
      %v716 = vrot.slane %v714, 5
      %v717 = vsel %vm623, %v712, %v716
      %v718 = vshrl.u32 %v598, 16
      %v720 = vrot.slane %v718, 4
      %v721 = vor.u32 %v720, %v716
      %v722 = vrot.slane %v721, 4
      %v724 = vshll.u32 %v599, 16
      %v726 = vrot.slane %v724, 5
      %v727 = vsel %vm623, %v722, %v726
      %v728 = vshrl.u32 %v599, 16
      %v730 = vrot.slane %v728, 4
      %v731 = vor.u32 %v730, %v726
      %v732 = vrot.slane %v731, 4
      %v734 = vshll.u32 %v600, 16
      %v736 = vrot.slane %v734, 5
      %v737 = vsel %vm623, %v732, %v736
      %v738 = vshrl.u32 %v600, 16
      %v740 = vrot.slane %v738, 4
      %v741 = vor.u32 %v740, %v736
      %v742 = vrot.slane %v741, 4
      %v744 = vshll.u32 %v601, 16
      %v746 = vrot.slane %v744, 5
      %v747 = vsel %vm623, %v742, %v746
      %v748 = vshrl.u32 %v601, 16
      %v750 = vrot.slane %v748, 4
      %v751 = vor.u32 %v750, %v746
      %v752 = vrot.slane %v751, 4
      %v754 = vshll.u32 %v602, 16
      %v756 = vrot.slane %v754, 5
      %v757 = vsel %vm623, %v752, %v756
      %v758 = vshrl.u32 %v602, 16
      %v760 = vrot.slane %v758, 4
      %v761 = vor.u32 %v760, %v756
      %v762 = vrot.slane %v761, 4
      %v764 = vshll.u32 %v603, 16
      %v766 = vrot.slane %v764, 5
      %v767 = vsel %vm623, %v762, %v766
      %v768 = vshrl.u32 %v603, 16
      %v770 = vrot.slane %v768, 4
      %v771 = vor.u32 %v770, %v766
      %v772 = vrot.slane %v771, 4
      %v774 = vshll.u32 %v604, 16
      %v776 = vrot.slane %v774, 5
      %v777 = vsel %vm623, %v772, %v776
      %v778 = vshrl.u32 %v604, 16
      %v780 = vrot.slane %v778, 4
      %v781 = vor.u32 %v780, %v776
      %v782 = vrot.slane %v781, 4
      %v784 = vshll.u32 %v605, 16
      %v786 = vrot.slane %v784, 5
      %v787 = vsel %vm623, %v782, %v786
      %v788 = vshrl.u32 %v605, 16
      %v790 = vrot.slane %v788, 4
      %v791 = vor.u32 %v790, %v786
      %v792 = vrot.slane %v791, 4
      %v794 = vshll.u32 %v606, 16
      %v796 = vrot.slane %v794, 5
      %v797 = vsel %vm623, %v792, %v796
      %v798 = vshrl.u32 %v606, 16
      %v800 = vrot.slane %v798, 4
      %v801 = vor.u32 %v800, %v796
      %v802 = vrot.slane %v801, 4
      %v804 = vshll.u32 %v607, 16
      %v806 = vrot.slane %v804, 5
      %v807 = vsel %vm623, %v802, %v806
      %v808 = vshrl.u32 %v607, 16
      %v810 = vrot.slane %v808, 4
      %v811 = vor.u32 %v810, %v806
      %v812 = vrot.slane %v811, 4
      %v814 = vshll.u32 %v608, 16
      %v816 = vrot.slane %v814, 5
      %v817 = vsel %vm623, %v812, %v816
      %v818 = vshrl.u32 %v608, 16
      %v820 = vrot.slane %v818, 4
      %v821 = vor.u32 %v820, %v816
      %v822 = vrot.slane %v821, 4
      %v824 = vshll.u32 %v609, 16
      %v826 = vrot.slane %v824, 5
      %v827 = vsel %vm623, %v822, %v826
      %v828 = vshrl.u32 %v609, 16
      %v830 = vrot.slane %v828, 4
      %v831 = vor.u32 %v830, %v826
      %v832 = vrot.slane %v831, 4
      %v834 = vshll.u32 %v610, 16
      %v836 = vrot.slane %v834, 5
      %v837 = vsel %vm623, %v832, %v836
      %v838 = vshrl.u32 %v610, 16
      %v840 = vrot.slane %v838, 4
      %v841 = vor.u32 %v840, %v836
      %v842 = vrot.slane %v841, 4
      %v844 = vshll.u32 %v611, 16
      %v846 = vrot.slane %v844, 5
      %v847 = vsel %vm623, %v842, %v846
      %v848 = vshrl.u32 %v611, 16
      %v850 = vrot.slane %v848, 4
      %v851 = vor.u32 %v850, %v846
      %v852 = vrot.slane %v851, 4
      %v854 = vshll.u32 %v612, 16
      %v856 = vrot.slane %v854, 5
      %v857 = vsel %vm623, %v852, %v856
      %v858 = vshrl.u32 %v612, 16
      %v860 = vrot.slane %v858, 4
      %v861 = vor.u32 %v860, %v856
      %v862 = vrot.slane %v861, 4
      %v864 = vshll.u32 %v613, 16
      %v866 = vrot.slane %v864, 5
      %v867 = vsel %vm623, %v862, %v866
      %v868 = vshrl.u32 %v613, 16
      %v870 = vrot.slane %v868, 4
      %v871 = vor.u32 %v870, %v866
      %v872 = vrot.slane %v871, 4
      %v874 = vshll.u32 %v614, 16
      %v876 = vrot.slane %v874, 5
      %v877 = vsel %vm623, %v872, %v876
      %v878 = vshrl.u32 %v614, 16
      %v880 = vrot.slane %v878, 4
      %v881 = vor.u32 %v880, %v876
      %v882 = vrot.slane %v881, 4
      %v884 = vshll.u32 %v615, 16
      %v886 = vrot.slane %v884, 5
      %v887 = vsel %vm623, %v882, %v886
      %v888 = vshrl.u32 %v615, 16
      %v890 = vrot.slane %v888, 4
      %v891 = vor.u32 %v890, %v886
      %v892 = vrot.slane %v891, 4
      %v894 = vshll.u32 %v616, 16
      %v896 = vrot.slane %v894, 5
      %v897 = vsel %vm623, %v892, %v896
      %v898 = vshrl.u32 %v616, 16
      %v900 = vrot.slane %v898, 4
      %v901 = vor.u32 %v900, %v896
      %v902 = vrot.slane %v901, 4
      %v904 = vshll.u32 %v617, 16
      %v906 = vrot.slane %v904, 5
      %v907 = vsel %vm623, %v902, %v906
      %v908 = vshrl.u32 %v617, 16
      %v910 = vrot.slane %v908, 4
      %v911 = vor.u32 %v910, %v906
      %v912 = vrot.slane %v911, 4
      %v914 = vshll.u32 %v618, 16
      %v916 = vrot.slane %v914, 5
      %v917 = vsel %vm623, %v912, %v916
      %v918 = vshrl.u32 %v618, 16
      %v920 = vrot.slane %v918, 4
      %v921 = vor.u32 %v920, %v916
      %v922 = vrot.slane %v921, 4
      %v924 = vshll.u32 %v619, 16
      %v926 = vrot.slane %v924, 5
      %v927 = vsel %vm623, %v922, %v926
      %v928 = vshrl.u32 %v619, 16
      %v930 = vrot.slane %v928, 4
      %v931 = vor.u32 %v930, %v926
      %v932 = vrot.slane %v931, 4
      %v934 = vshll.u32 %v620, 16
      %v936 = vrot.slane %v934, 5
      %v937 = vsel %vm623, %v932, %v936
      %v938 = vshrl.u32 %v620, 16
      %v940 = vrot.slane %v938, 4
      %v941 = vor.u32 %v940, %v936
      %v942 = vrot.slane %v941, 4
      %943 = vrot.lane.b32.xlu0 %v637, 32
      %v944 = vpop.permute.xlu0 %943
      %945 = vrot.lane.b32.xlu0 %v647, 32
      %v946 = vpop.permute.xlu0 %945
      %947 = vrot.lane.b32.xlu0 %v657, 32
      %v948 = vpop.permute.xlu0 %947
      %949 = vrot.lane.b32.xlu0 %v667, 32
      %v950 = vpop.permute.xlu0 %949
      %951 = vrot.lane.b32.xlu0 %v677, 32
      %v952 = vpop.permute.xlu0 %951
      %953 = vrot.lane.b32.xlu0 %v687, 32
      %v954 = vpop.permute.xlu0 %953
      %955 = vrot.lane.b32.xlu0 %v697, 32
      %v956 = vpop.permute.xlu0 %955
      %957 = vrot.lane.b32.xlu0 %v707, 32
      %v958 = vpop.permute.xlu0 %957
      %959 = vrot.lane.b32.xlu0 %v717, 32
      %v960 = vpop.permute.xlu0 %959
      %961 = vrot.lane.b32.xlu0 %v727, 32
      %v962 = vpop.permute.xlu0 %961
      %963 = vrot.lane.b32.xlu0 %v737, 32
      %v964 = vpop.permute.xlu0 %963
      %965 = vrot.lane.b32.xlu0 %v747, 32
      %v966 = vpop.permute.xlu0 %965
      %967 = vrot.lane.b32.xlu0 %v757, 32
      %v968 = vpop.permute.xlu0 %967
      %969 = vrot.lane.b32.xlu0 %v767, 32
      %v970 = vpop.permute.xlu0 %969
      %971 = vrot.lane.b32.xlu0 %v777, 32
      %v972 = vpop.permute.xlu0 %971
      %973 = vrot.lane.b32.xlu0 %v787, 32
      %v974 = vpop.permute.xlu0 %973
      %975 = vrot.lane.b32.xlu0 %v797, 32
      %v976 = vpop.permute.xlu0 %975
      %977 = vrot.lane.b32.xlu0 %v807, 32
      %v978 = vpop.permute.xlu0 %977
      %979 = vrot.lane.b32.xlu0 %v817, 32
      %v980 = vpop.permute.xlu0 %979
      %981 = vrot.lane.b32.xlu0 %v827, 32
      %v982 = vpop.permute.xlu0 %981
      %983 = vrot.lane.b32.xlu0 %v837, 32
      %v984 = vpop.permute.xlu0 %983
      %985 = vrot.lane.b32.xlu0 %v847, 32
      %v986 = vpop.permute.xlu0 %985
      %987 = vrot.lane.b32.xlu0 %v857, 32
      %v988 = vpop.permute.xlu0 %987
      %989 = vrot.lane.b32.xlu0 %v867, 32
      %v990 = vpop.permute.xlu0 %989
      %991 = vrot.lane.b32.xlu0 %v877, 32
      %v992 = vpop.permute.xlu0 %991
      %993 = vrot.lane.b32.xlu0 %v887, 32
      %v994 = vpop.permute.xlu0 %993
      %995 = vrot.lane.b32.xlu0 %v897, 32
      %v996 = vpop.permute.xlu0 %995
      %997 = vrot.lane.b32.xlu0 %v907, 32
      %v998 = vpop.permute.xlu0 %997
      %999 = vrot.lane.b32.xlu0 %v917, 32
      %v1000 = vpop.permute.xlu0 %999
      %1001 = vrot.lane.b32.xlu0 %v927, 32
      %v1002 = vpop.permute.xlu0 %1001
      %1003 = vrot.lane.b32.xlu0 %v937, 32
      %v1004 = vpop.permute.xlu0 %1003
      %1005 = vrot.lane.b32.xlu0 %v942, 32
      %v1006 = vpop.permute.xlu0 %1005
      %vm1039 = vcmask 519424
      %1040 = vst.msk [vmem:[#allocation2] sm:$0xf] %vm1039, %v944
      %1041 = vst.msk [vmem:[#allocation2 + $0x4] sm:$0xf] %vm1039, %v946
      %1042 = vst.msk [vmem:[#allocation2 + $0x8] sm:$0xf] %vm1039, %v948
      %1043 = vst.msk [vmem:[#allocation2 + $0xc] sm:$0xf] %vm1039, %v950
      %1044 = vst.msk [vmem:[#allocation2 + $0x10] sm:$0xf] %vm1039, %v952
      %1045 = vst.msk [vmem:[#allocation2 + $0x14] sm:$0xf] %vm1039, %v954
      %1046 = vst.msk [vmem:[#allocation2 + $0x18] sm:$0xf] %vm1039, %v956
      %1047 = vst.msk [vmem:[#allocation2 + $0x1c] sm:$0xf] %vm1039, %v958
      %1048 = vst.msk [vmem:[#allocation2 + $0x20] sm:$0xf] %vm1039, %v960
      %1049 = vst.msk [vmem:[#allocation2 + $0x24] sm:$0xf] %vm1039, %v962
      %1050 = vst.msk [vmem:[#allocation2 + $0x28] sm:$0xf] %vm1039, %v964
      %1051 = vst.msk [vmem:[#allocation2 + $0x2c] sm:$0xf] %vm1039, %v966
      %1052 = vst.msk [vmem:[#allocation2 + $0x30] sm:$0xf] %vm1039, %v968
      %1053 = vst.msk [vmem:[#allocation2 + $0x34] sm:$0xf] %vm1039, %v970
      %1054 = vst.msk [vmem:[#allocation2 + $0x38] sm:$0xf] %vm1039, %v972
      %1055 = vst.msk [vmem:[#allocation2 + $0x3c] sm:$0xf] %vm1039, %v974
      %1056 = vst.msk [vmem:[#allocation2 + $0x40] sm:$0xf] %vm1039, %v976
      %1057 = vst.msk [vmem:[#allocation2 + $0x44] sm:$0xf] %vm1039, %v978
      %1058 = vst.msk [vmem:[#allocation2 + $0x48] sm:$0xf] %vm1039, %v980
      %1059 = vst.msk [vmem:[#allocation2 + $0x4c] sm:$0xf] %vm1039, %v982
      %1060 = vst.msk [vmem:[#allocation2 + $0x50] sm:$0xf] %vm1039, %v984
      %1061 = vst.msk [vmem:[#allocation2 + $0x54] sm:$0xf] %vm1039, %v986
      %1062 = vst.msk [vmem:[#allocation2 + $0x58] sm:$0xf] %vm1039, %v988
      %1063 = vst.msk [vmem:[#allocation2 + $0x5c] sm:$0xf] %vm1039, %v990
      %1064 = vst.msk [vmem:[#allocation2 + $0x60] sm:$0xf] %vm1039, %v992
      %1065 = vst.msk [vmem:[#allocation2 + $0x64] sm:$0xf] %vm1039, %v994
      %1066 = vst.msk [vmem:[#allocation2 + $0x68] sm:$0xf] %vm1039, %v996
      %1067 = vst.msk [vmem:[#allocation2 + $0x6c] sm:$0xf] %vm1039, %v998
      %1068 = vst.msk [vmem:[#allocation2 + $0x70] sm:$0xf] %vm1039, %v1000
      %1069 = vst.msk [vmem:[#allocation2 + $0x74] sm:$0xf] %vm1039, %v1002
      %1070 = vst.msk [vmem:[#allocation2 + $0x78] sm:$0xf] %vm1039, %v1004
      %vm1071 = vcmask 517376
      %1072 = vst.msk [vmem:[#allocation2 + $0x7c] sm:$0x3] %vm1071, %v1006
      %v1073 = vld [vmem:[%s499] sm:$0xe]
      %v1074 = vld [vmem:[%s499 + $0x4] sm:$0xf]
      %v1075 = vld [vmem:[%s499 + $0x8] sm:$0xf]
      %v1076 = vld [vmem:[%s499 + $0xc] sm:$0xf]
      %v1077 = vld [vmem:[%s499 + $0x10] sm:$0xf]
      %v1078 = vld [vmem:[%s499 + $0x14] sm:$0xf]
      %v1079 = vld [vmem:[%s499 + $0x18] sm:$0xf]
      %v1080 = vld [vmem:[%s499 + $0x1c] sm:$0xf]
      %v1081 = vld [vmem:[%s499 + $0x20] sm:$0xf]
      %v1082 = vld [vmem:[%s499 + $0x24] sm:$0xf]
      %v1083 = vld [vmem:[%s499 + $0x28] sm:$0xf]
      %v1084 = vld [vmem:[%s499 + $0x2c] sm:$0xf]
      %v1085 = vld [vmem:[%s499 + $0x30] sm:$0xf]
      %v1086 = vld [vmem:[%s499 + $0x34] sm:$0xf]
      %v1087 = vld [vmem:[%s499 + $0x38] sm:$0xf]
      %v1088 = vld [vmem:[%s499 + $0x3c] sm:$0xf]
      %v1089 = vld [vmem:[%s499 + $0x40] sm:$0xf]
      %v1090 = vld [vmem:[%s499 + $0x44] sm:$0xf]
      %v1091 = vld [vmem:[%s499 + $0x48] sm:$0xf]
      %v1092 = vld [vmem:[%s499 + $0x4c] sm:$0xf]
      %v1093 = vld [vmem:[%s499 + $0x50] sm:$0xf]
      %v1094 = vld [vmem:[%s499 + $0x54] sm:$0xf]
      %v1095 = vld [vmem:[%s499 + $0x58] sm:$0xf]
      %v1096 = vld [vmem:[%s499 + $0x5c] sm:$0xf]
      %v1097 = vld [vmem:[%s499 + $0x60] sm:$0xf]
      %v1098 = vld [vmem:[%s499 + $0x64] sm:$0xf]
      %v1099 = vld [vmem:[%s499 + $0x68] sm:$0xf]
      %v1100 = vld [vmem:[%s499 + $0x6c] sm:$0xf]
      %v1101 = vld [vmem:[%s499 + $0x70] sm:$0xf]
      %v1102 = vld [vmem:[%s499 + $0x74] sm:$0xf]
      %v1103 = vld [vmem:[%s499 + $0x78] sm:$0xf]
      %v1104 = vld [vmem:[%s499 + $0x7c] sm:$0x7]
      %vm1137 = vcmask 1042432
      %vm1138 = vcmask 1046532
      %vm1139 = vmor %vm1137, %vm1138
      %v1140 = vrot.slane %v1073, 5
      %v1141 = vrot.slane %v1140, 4
      %v1142 = vrot.slane %v1074, 5
      %v1143 = vsel %vm1139, %v1141, %v1142
      %v1144 = vrot.slane %v1142, 4
      %v1145 = vrot.slane %v1075, 5
      %v1146 = vsel %vm1139, %v1144, %v1145
      %v1147 = vrot.slane %v1145, 4
      %v1148 = vrot.slane %v1076, 5
      %v1149 = vsel %vm1139, %v1147, %v1148
      %v1150 = vrot.slane %v1148, 4
      %v1151 = vrot.slane %v1077, 5
      %v1152 = vsel %vm1139, %v1150, %v1151
      %v1153 = vrot.slane %v1151, 4
      %v1154 = vrot.slane %v1078, 5
      %v1155 = vsel %vm1139, %v1153, %v1154
      %v1156 = vrot.slane %v1154, 4
      %v1157 = vrot.slane %v1079, 5
      %v1158 = vsel %vm1139, %v1156, %v1157
      %v1159 = vrot.slane %v1157, 4
      %v1160 = vrot.slane %v1080, 5
      %v1161 = vsel %vm1139, %v1159, %v1160
      %v1162 = vrot.slane %v1160, 4
      %v1163 = vrot.slane %v1081, 5
      %v1164 = vsel %vm1139, %v1162, %v1163
      %v1165 = vrot.slane %v1163, 4
      %v1166 = vrot.slane %v1082, 5
      %v1167 = vsel %vm1139, %v1165, %v1166
      %v1168 = vrot.slane %v1166, 4
      %v1169 = vrot.slane %v1083, 5
      %v1170 = vsel %vm1139, %v1168, %v1169
      %v1171 = vrot.slane %v1169, 4
      %v1172 = vrot.slane %v1084, 5
      %v1173 = vsel %vm1139, %v1171, %v1172
      %v1174 = vrot.slane %v1172, 4
      %v1175 = vrot.slane %v1085, 5
      %v1176 = vsel %vm1139, %v1174, %v1175
      %v1177 = vrot.slane %v1175, 4
      %v1178 = vrot.slane %v1086, 5
      %v1179 = vsel %vm1139, %v1177, %v1178
      %v1180 = vrot.slane %v1178, 4
      %v1181 = vrot.slane %v1087, 5
      %v1182 = vsel %vm1139, %v1180, %v1181
      %v1183 = vrot.slane %v1181, 4
      %v1184 = vrot.slane %v1088, 5
      %v1185 = vsel %vm1139, %v1183, %v1184
      %v1186 = vrot.slane %v1184, 4
      %v1187 = vrot.slane %v1089, 5
      %v1188 = vsel %vm1139, %v1186, %v1187
      %v1189 = vrot.slane %v1187, 4
      %v1190 = vrot.slane %v1090, 5
      %v1191 = vsel %vm1139, %v1189, %v1190
      %v1192 = vrot.slane %v1190, 4
      %v1193 = vrot.slane %v1091, 5
      %v1194 = vsel %vm1139, %v1192, %v1193
      %v1195 = vrot.slane %v1193, 4
      %v1196 = vrot.slane %v1092, 5
      %v1197 = vsel %vm1139, %v1195, %v1196
      %v1198 = vrot.slane %v1196, 4
      %v1199 = vrot.slane %v1093, 5
      %v1200 = vsel %vm1139, %v1198, %v1199
      %v1201 = vrot.slane %v1199, 4
      %v1202 = vrot.slane %v1094, 5
      %v1203 = vsel %vm1139, %v1201, %v1202
      %v1204 = vrot.slane %v1202, 4
      %v1205 = vrot.slane %v1095, 5
      %v1206 = vsel %vm1139, %v1204, %v1205
      %v1207 = vrot.slane %v1205, 4
      %v1208 = vrot.slane %v1096, 5
      %v1209 = vsel %vm1139, %v1207, %v1208
      %v1210 = vrot.slane %v1208, 4
      %v1211 = vrot.slane %v1097, 5
      %v1212 = vsel %vm1139, %v1210, %v1211
      %v1213 = vrot.slane %v1211, 4
      %v1214 = vrot.slane %v1098, 5
      %v1215 = vsel %vm1139, %v1213, %v1214
      %v1216 = vrot.slane %v1214, 4
      %v1217 = vrot.slane %v1099, 5
      %v1218 = vsel %vm1139, %v1216, %v1217
      %v1219 = vrot.slane %v1217, 4
      %v1220 = vrot.slane %v1100, 5
      %v1221 = vsel %vm1139, %v1219, %v1220
      %v1222 = vrot.slane %v1220, 4
      %v1223 = vrot.slane %v1101, 5
      %v1224 = vsel %vm1139, %v1222, %v1223
      %v1225 = vrot.slane %v1223, 4
      %v1226 = vrot.slane %v1102, 5
      %v1227 = vsel %vm1139, %v1225, %v1226
      %v1228 = vrot.slane %v1226, 4
      %v1229 = vrot.slane %v1103, 5
      %v1230 = vsel %vm1139, %v1228, %v1229
      %v1231 = vrot.slane %v1229, 4
      %v1232 = vrot.slane %v1104, 5
      %v1233 = vsel %vm1139, %v1231, %v1232
      %v1234 = vrot.slane %v1232, 4
      %1235 = vrot.lane.b32.xlu0 %v1143, 64
      %v1236 = vpop.permute.xlu0 %1235
      %1237 = vrot.lane.b32.xlu0 %v1146, 64
      %v1238 = vpop.permute.xlu0 %1237
      %1239 = vrot.lane.b32.xlu0 %v1149, 64
      %v1240 = vpop.permute.xlu0 %1239
      %1241 = vrot.lane.b32.xlu0 %v1152, 64
      %v1242 = vpop.permute.xlu0 %1241
      %1243 = vrot.lane.b32.xlu0 %v1155, 64
      %v1244 = vpop.permute.xlu0 %1243
      %1245 = vrot.lane.b32.xlu0 %v1158, 64
      %v1246 = vpop.permute.xlu0 %1245
      %1247 = vrot.lane.b32.xlu0 %v1161, 64
      %v1248 = vpop.permute.xlu0 %1247
      %1249 = vrot.lane.b32.xlu0 %v1164, 64
      %v1250 = vpop.permute.xlu0 %1249
      %1251 = vrot.lane.b32.xlu0 %v1167, 64
      %v1252 = vpop.permute.xlu0 %1251
      %1253 = vrot.lane.b32.xlu0 %v1170, 64
      %v1254 = vpop.permute.xlu0 %1253
      %1255 = vrot.lane.b32.xlu0 %v1173, 64
      %v1256 = vpop.permute.xlu0 %1255
      %1257 = vrot.lane.b32.xlu0 %v1176, 64
      %v1258 = vpop.permute.xlu0 %1257
      %1259 = vrot.lane.b32.xlu0 %v1179, 64
      %v1260 = vpop.permute.xlu0 %1259
      %1261 = vrot.lane.b32.xlu0 %v1182, 64
      %v1262 = vpop.permute.xlu0 %1261
      %1263 = vrot.lane.b32.xlu0 %v1185, 64
      %v1264 = vpop.permute.xlu0 %1263
      %1265 = vrot.lane.b32.xlu0 %v1188, 64
      %v1266 = vpop.permute.xlu0 %1265
      %1267 = vrot.lane.b32.xlu0 %v1191, 64
      %v1268 = vpop.permute.xlu0 %1267
      %1269 = vrot.lane.b32.xlu0 %v1194, 64
      %v1270 = vpop.permute.xlu0 %1269
      %1271 = vrot.lane.b32.xlu0 %v1197, 64
      %v1272 = vpop.permute.xlu0 %1271
      %1273 = vrot.lane.b32.xlu0 %v1200, 64
      %v1274 = vpop.permute.xlu0 %1273
      %1275 = vrot.lane.b32.xlu0 %v1203, 64
      %v1276 = vpop.permute.xlu0 %1275
      %1277 = vrot.lane.b32.xlu0 %v1206, 64
      %v1278 = vpop.permute.xlu0 %1277
      %1279 = vrot.lane.b32.xlu0 %v1209, 64
      %v1280 = vpop.permute.xlu0 %1279
      %1281 = vrot.lane.b32.xlu0 %v1212, 64
      %v1282 = vpop.permute.xlu0 %1281
      %1283 = vrot.lane.b32.xlu0 %v1215, 64
      %v1284 = vpop.permute.xlu0 %1283
      %1285 = vrot.lane.b32.xlu0 %v1218, 64
      %v1286 = vpop.permute.xlu0 %1285
      %1287 = vrot.lane.b32.xlu0 %v1221, 64
      %v1288 = vpop.permute.xlu0 %1287
      %1289 = vrot.lane.b32.xlu0 %v1224, 64
      %v1290 = vpop.permute.xlu0 %1289
      %1291 = vrot.lane.b32.xlu0 %v1227, 64
      %v1292 = vpop.permute.xlu0 %1291
      %1293 = vrot.lane.b32.xlu0 %v1230, 64
      %v1294 = vpop.permute.xlu0 %1293
      %1295 = vrot.lane.b32.xlu0 %v1233, 64
      %v1296 = vpop.permute.xlu0 %1295
      %1297 = vrot.lane.b32.xlu0 %v1234, 64
      %v1298 = vpop.permute.xlu0 %1297
      %vm1331 = vcmask 781824
      %1332 = vst.msk [vmem:[#allocation2] sm:$0xf] %vm1331, %v1236
      %1333 = vst.msk [vmem:[#allocation2 + $0x4] sm:$0xf] %vm1331, %v1238
      %1334 = vst.msk [vmem:[#allocation2 + $0x8] sm:$0xf] %vm1331, %v1240
      %1335 = vst.msk [vmem:[#allocation2 + $0xc] sm:$0xf] %vm1331, %v1242
      %1336 = vst.msk [vmem:[#allocation2 + $0x10] sm:$0xf] %vm1331, %v1244
      %1337 = vst.msk [vmem:[#allocation2 + $0x14] sm:$0xf] %vm1331, %v1246
      %1338 = vst.msk [vmem:[#allocation2 + $0x18] sm:$0xf] %vm1331, %v1248
      %1339 = vst.msk [vmem:[#allocation2 + $0x1c] sm:$0xf] %vm1331, %v1250
      %1340 = vst.msk [vmem:[#allocation2 + $0x20] sm:$0xf] %vm1331, %v1252
      %1341 = vst.msk [vmem:[#allocation2 + $0x24] sm:$0xf] %vm1331, %v1254
      %1342 = vst.msk [vmem:[#allocation2 + $0x28] sm:$0xf] %vm1331, %v1256
      %1343 = vst.msk [vmem:[#allocation2 + $0x2c] sm:$0xf] %vm1331, %v1258
      %1344 = vst.msk [vmem:[#allocation2 + $0x30] sm:$0xf] %vm1331, %v1260
      %1345 = vst.msk [vmem:[#allocation2 + $0x34] sm:$0xf] %vm1331, %v1262
      %1346 = vst.msk [vmem:[#allocation2 + $0x38] sm:$0xf] %vm1331, %v1264
      %1347 = vst.msk [vmem:[#allocation2 + $0x3c] sm:$0xf] %vm1331, %v1266
      %1348 = vst.msk [vmem:[#allocation2 + $0x40] sm:$0xf] %vm1331, %v1268
      %1349 = vst.msk [vmem:[#allocation2 + $0x44] sm:$0xf] %vm1331, %v1270
      %1350 = vst.msk [vmem:[#allocation2 + $0x48] sm:$0xf] %vm1331, %v1272
      %1351 = vst.msk [vmem:[#allocation2 + $0x4c] sm:$0xf] %vm1331, %v1274
      %1352 = vst.msk [vmem:[#allocation2 + $0x50] sm:$0xf] %vm1331, %v1276
      %1353 = vst.msk [vmem:[#allocation2 + $0x54] sm:$0xf] %vm1331, %v1278
      %1354 = vst.msk [vmem:[#allocation2 + $0x58] sm:$0xf] %vm1331, %v1280
      %1355 = vst.msk [vmem:[#allocation2 + $0x5c] sm:$0xf] %vm1331, %v1282
      %1356 = vst.msk [vmem:[#allocation2 + $0x60] sm:$0xf] %vm1331, %v1284
      %1357 = vst.msk [vmem:[#allocation2 + $0x64] sm:$0xf] %vm1331, %v1286
      %1358 = vst.msk [vmem:[#allocation2 + $0x68] sm:$0xf] %vm1331, %v1288
      %1359 = vst.msk [vmem:[#allocation2 + $0x6c] sm:$0xf] %vm1331, %v1290
      %1360 = vst.msk [vmem:[#allocation2 + $0x70] sm:$0xf] %vm1331, %v1292
      %1361 = vst.msk [vmem:[#allocation2 + $0x74] sm:$0xf] %vm1331, %v1294
      %1362 = vst.msk [vmem:[#allocation2 + $0x78] sm:$0xf] %vm1331, %v1296
      %vm1363 = vcmask 779776
      %1364 = vst.msk [vmem:[#allocation2 + $0x7c] sm:$0x3] %vm1363, %v1298
      %v1365 = vld [vmem:[%s504] sm:$0xff]
      %v1366 = vld [vmem:[%s504 + $0x8] sm:$0xff]
      %v1367 = vld [vmem:[%s504 + $0x10] sm:$0xff]
      %v1368 = vld [vmem:[%s504 + $0x18] sm:$0xff]
      %v1369 = vld [vmem:[%s504 + $0x20] sm:$0xff]
      %v1370 = vld [vmem:[%s504 + $0x28] sm:$0xff]
      %v1371 = vld [vmem:[%s504 + $0x30] sm:$0xff]
      %v1372 = vld [vmem:[%s504 + $0x38] sm:$0xff]
      %v1373 = vld [vmem:[%s504 + $0x40] sm:$0xff]
      %v1374 = vld [vmem:[%s504 + $0x48] sm:$0xff]
      %v1375 = vld [vmem:[%s504 + $0x50] sm:$0xff]
      %v1376 = vld [vmem:[%s504 + $0x58] sm:$0xff]
      %v1377 = vld [vmem:[%s504 + $0x60] sm:$0xff]
      %v1378 = vld [vmem:[%s504 + $0x68] sm:$0xff]
      %v1379 = vld [vmem:[%s504 + $0x70] sm:$0xff]
      %v1380 = vld [vmem:[%s504 + $0x78] sm:$0xff]
      %v1381 = vld [vmem:[%s504 + $0x80] sm:$0xff]
      %v1382 = vld [vmem:[%s504 + $0x88] sm:$0xff]
      %v1383 = vld [vmem:[%s504 + $0x90] sm:$0xff]
      %v1384 = vld [vmem:[%s504 + $0x98] sm:$0xff]
      %v1385 = vld [vmem:[%s504 + $0xa0] sm:$0xff]
      %v1386 = vld [vmem:[%s504 + $0xa8] sm:$0xff]
      %v1387 = vld [vmem:[%s504 + $0xb0] sm:$0xff]
      %v1388 = vld [vmem:[%s504 + $0xb8] sm:$0xff]
      %v1389 = vld [vmem:[%s504 + $0xc0] sm:$0xff]
      %v1390 = vld [vmem:[%s504 + $0xc8] sm:$0xff]
      %v1391 = vld [vmem:[%s504 + $0xd0] sm:$0xff]
      %v1392 = vld [vmem:[#allocation2] sm:$0xf]
      %v1393 = vld [vmem:[#allocation2 + $0x4] sm:$0xf]
      %v1394 = vld [vmem:[#allocation2 + $0x8] sm:$0xf]
      %v1395 = vld [vmem:[#allocation2 + $0xc] sm:$0xf]
      %v1396 = vld [vmem:[#allocation2 + $0x10] sm:$0xf]
      %v1397 = vld [vmem:[#allocation2 + $0x14] sm:$0xf]
      %v1398 = vld [vmem:[#allocation2 + $0x18] sm:$0xf]
      %v1399 = vld [vmem:[#allocation2 + $0x1c] sm:$0xf]
      %v1400 = vld [vmem:[#allocation2 + $0x20] sm:$0xf]
      %v1401 = vld [vmem:[#allocation2 + $0x24] sm:$0xf]
      %v1402 = vld [vmem:[#allocation2 + $0x28] sm:$0xf]
      %v1403 = vld [vmem:[#allocation2 + $0x2c] sm:$0xf]
      %v1404 = vld [vmem:[#allocation2 + $0x30] sm:$0xf]
      %v1405 = vld [vmem:[#allocation2 + $0x34] sm:$0xf]
      %v1406 = vld [vmem:[#allocation2 + $0x38] sm:$0xf]
      %v1407 = vld [vmem:[#allocation2 + $0x3c] sm:$0xf]
      %v1408 = vld [vmem:[#allocation2 + $0x40] sm:$0xf]
      %v1409 = vld [vmem:[#allocation2 + $0x44] sm:$0xf]
      %v1410 = vld [vmem:[#allocation2 + $0x48] sm:$0xf]
      %v1411 = vld [vmem:[#allocation2 + $0x4c] sm:$0xf]
      %v1412 = vld [vmem:[#allocation2 + $0x50] sm:$0xf]
      %v1413 = vld [vmem:[#allocation2 + $0x54] sm:$0xf]
      %v1414 = vld [vmem:[#allocation2 + $0x58] sm:$0xf]
      %v1415 = vld [vmem:[#allocation2 + $0x5c] sm:$0xf]
      %v1416 = vld [vmem:[#allocation2 + $0x60] sm:$0xf]
      %v1417 = vld [vmem:[#allocation2 + $0x64] sm:$0xf]
      %v1418 = vld [vmem:[#allocation2 + $0x68] sm:$0xf]
      %v1419 = vld [vmem:[%s3] sm:$0xf]
      %v1420 = vld [vmem:[%s3 + $0x4] sm:$0xf]
      %v1421 = vld [vmem:[%s3 + $0x8] sm:$0xf]
      %v1422 = vld [vmem:[%s3 + $0xc] sm:$0xf]
      %v1423 = vld [vmem:[%s3 + $0x10] sm:$0xf]
      %v1424 = vld [vmem:[%s3 + $0x14] sm:$0xf]
      %v1425 = vld [vmem:[%s3 + $0x18] sm:$0xf]
      %v1426 = vld [vmem:[%s3 + $0x1c] sm:$0xf]
      %v1427 = vld [vmem:[%s3 + $0x20] sm:$0xf]
      %v1428 = vld [vmem:[%s3 + $0x24] sm:$0xf]
      %v1429 = vld [vmem:[%s3 + $0x28] sm:$0xf]
      %v1430 = vld [vmem:[%s3 + $0x2c] sm:$0xf]
      %v1431 = vld [vmem:[#allocation2 + $0x8] sm:$0xe]
      %v1432 = vld [vmem:[#allocation2 + $0x6c] sm:$0xf]
      %v1433 = vld [vmem:[#allocation2 + $0x70] sm:$0xf]
      %v1434 = vld [vmem:[#allocation2 + $0x74] sm:$0x1]
      %s1435 = scalar_lea.vmem %s3, 48
      %v1436 = vld [vmem:[%s1435] sm:$0xf]
      %v1437 = vld [vmem:[%s1435 + $0x4] sm:$0xf]
      %v1438 = vld [vmem:[%s1435 + $0x8] sm:$0xf]
      %v1439 = vld [vmem:[%s1435 + $0xc] sm:$0xf]
      %v1440 = vld [vmem:[%s1435 + $0x10] sm:$0xf]
      %v1441 = vld [vmem:[%s1435 + $0x14] sm:$0xf]
      %v1442 = vld [vmem:[%s1435 + $0x18] sm:$0xf]
      %v1443 = vld [vmem:[%s1435 + $0x1c] sm:$0xf]
      %v1444 = vld [vmem:[%s1435 + $0x20] sm:$0xf]
      %v1445 = vld [vmem:[%s1435 + $0x24] sm:$0xf]
      %v1446 = vld [vmem:[%s1435 + $0x28] sm:$0xf]
      %v1447 = vld [vmem:[%s1435 + $0x2c] sm:$0xf]
      %v1476 = vunpack.c.l.b16 %v1431
      %v1477 = vunpack.c.l.b16 %v1395
      %v1478 = vunpack.c.l.b16 %v1396
      %v1479 = vunpack.c.l.b16 %v1397
      %v1480 = vunpack.c.l.b16 %v1398
      %v1481 = vunpack.c.l.b16 %v1399
      %v1482 = vunpack.c.l.b16 %v1400
      %v1483 = vunpack.c.l.b16 %v1401
      %v1484 = vunpack.c.l.b16 %v1402
      %v1485 = vunpack.c.l.b16 %v1403
      %v1486 = vunpack.c.l.b16 %v1404
      %v1487 = vunpack.c.l.b16 %v1405
      %v1488 = vunpack.c.l.b16 %v1406
      %v1489 = vunpack.c.l.b16 %v1407
      %v1490 = vunpack.c.l.b16 %v1408
      %v1491 = vunpack.c.l.b16 %v1409
      %v1492 = vunpack.c.l.b16 %v1410
      %v1493 = vunpack.c.l.b16 %v1411
      %v1494 = vunpack.c.l.b16 %v1412
      %v1495 = vunpack.c.l.b16 %v1413
      %v1496 = vunpack.c.l.b16 %v1414
      %v1497 = vunpack.c.l.b16 %v1415
      %v1498 = vunpack.c.l.b16 %v1416
      %v1499 = vunpack.c.l.b16 %v1417
      %v1500 = vunpack.c.l.b16 %v1418
      %v1501 = vunpack.c.l.b16 %v1432
      %v1502 = vunpack.c.l.b16 %v1433
      %v1503 = vunpack.c.l.b16 %v1434
      %v1504 = vpack.c.b16 %v1477, %v1476
      %v1505 = vpack.c.b16 %v1479, %v1478
      %v1506 = vpack.c.b16 %v1481, %v1480
      %v1507 = vpack.c.b16 %v1483, %v1482
      %v1508 = vpack.c.b16 %v1485, %v1484
      %v1509 = vpack.c.b16 %v1487, %v1486
      %v1510 = vpack.c.b16 %v1489, %v1488
      %v1511 = vpack.c.b16 %v1491, %v1490
      %v1512 = vpack.c.b16 %v1493, %v1492
      %v1513 = vpack.c.b16 %v1495, %v1494
      %v1514 = vpack.c.b16 %v1497, %v1496
      %v1515 = vpack.c.b16 %v1499, %v1498
      %v1516 = vpack.c.b16 %v1501, %v1500
      %v1517 = vpack.c.b16 %v1503, %v1502
      %vm1518 = vcmask 1046528
      %v1519 = vrot.slane %v1504, 1
      %v1520 = vrot.slane %v1505, 1
      %v1521 = vsel %vm1518, %v1519, %v1520
      %v1522 = vrot.slane %v1506, 1
      %v1523 = vsel %vm1518, %v1520, %v1522
      %v1524 = vrot.slane %v1507, 1
      %v1525 = vsel %vm1518, %v1522, %v1524
      %v1526 = vrot.slane %v1508, 1
      %v1527 = vsel %vm1518, %v1524, %v1526
      %v1528 = vrot.slane %v1509, 1
      %v1529 = vsel %vm1518, %v1526, %v1528
      %v1530 = vrot.slane %v1510, 1
      %v1531 = vsel %vm1518, %v1528, %v1530
      %v1532 = vrot.slane %v1511, 1
      %v1533 = vsel %vm1518, %v1530, %v1532
      %v1534 = vrot.slane %v1512, 1
      %v1535 = vsel %vm1518, %v1532, %v1534
      %v1536 = vrot.slane %v1513, 1
      %v1537 = vsel %vm1518, %v1534, %v1536
      %v1538 = vrot.slane %v1514, 1
      %v1539 = vsel %vm1518, %v1536, %v1538
      %v1540 = vrot.slane %v1515, 1
      %v1541 = vsel %vm1518, %v1538, %v1540
      %v1542 = vrot.slane %v1516, 1
      %v1543 = vsel %vm1518, %v1540, %v1542
      %v1544 = vrot.slane %v1517, 1
      %v1545 = vsel %vm1518, %v1542, %v1544
      %v1558 = vunpack.c.l.b16 %v1436
      %v1559 = vunpack.c.l.b16 %v1437
      %v1560 = vunpack.c.l.b16 %v1438
      %v1561 = vunpack.c.l.b16 %v1439
      %v1562 = vunpack.c.l.b16 %v1440
      %v1563 = vunpack.c.l.b16 %v1441
      %v1564 = vunpack.c.l.b16 %v1442
      %v1565 = vunpack.c.l.b16 %v1443
      %v1566 = vunpack.c.l.b16 %v1444
      %v1567 = vunpack.c.l.b16 %v1445
      %v1568 = vunpack.c.l.b16 %v1446
      %v1569 = vunpack.c.l.b16 %v1447
      %v1570 = vpack.c.b16 %v1559, %v1558
      %v1571 = vpack.c.b16 %v1561, %v1560
      %v1572 = vpack.c.b16 %v1563, %v1562
      %v1573 = vpack.c.b16 %v1565, %v1564
      %v1574 = vpack.c.b16 %v1567, %v1566
      %v1575 = vpack.c.b16 %v1569, %v1568
      %vm1582 = vcmask 785408
      %v1584 = vsel %vm1582, %v1521, 0
      %v1587 = vsel %vm1582, %v1523, 0
      %v1590 = vsel %vm1582, %v1525, 0
      %v1593 = vsel %vm1582, %v1527, 0
      %v1596 = vsel %vm1582, %v1529, 0
      %v1599 = vsel %vm1582, %v1531, 0
      %v1602 = vsel %vm1582, %v1533, 0
      %v1605 = vsel %vm1582, %v1535, 0
      %v1608 = vsel %vm1582, %v1537, 0
      %v1611 = vsel %vm1582, %v1539, 0
      %v1614 = vsel %vm1582, %v1541, 0
      %v1617 = vsel %vm1582, %v1543, 0
      %v1620 = vsel %vm1582, %v1545, 0
      %v1623 = vsel %vm1582, %v1544, 0
      %1625 = vmatpush.bf16.msra.mxu0 0
      %1626 = vmatpush.bf16.msra.mxu0 0
      %1627 = vmatpush.bf16.msra.mxu0 %v1575
      %1628 = vmatpush.bf16.msra.mxu0 %v1574
      %1629 = vmatpush.bf16.msra.mxu0 %v1573
      %1630 = vmatpush.bf16.msra.mxu0 %v1572
      %1631 = vmatpush.bf16.msra.mxu0 %v1571
      %1632 = vmatpush.bf16.msra.mxu0 %v1570
      %1633 = vmatmul.bf16.gmra.mxu0 %v1584
      %v1634 = vpop.f32.mrf.mxu0
      %v1635 = vadd.f32 0.0, %v1634
      %v1636 = vpop.f32.mrf.mxu0
      %v1637 = vadd.f32 0.0, %v1636
      %1638 = vmatmul.bf16.gmra.mxu0 %v1587
      %v1639 = vpop.f32.mrf.mxu0
      %v1640 = vadd.f32 0.0, %v1639
      %v1641 = vpop.f32.mrf.mxu0
      %v1642 = vadd.f32 0.0, %v1641
      %1643 = vmatmul.bf16.gmra.mxu0 %v1590
      %v1644 = vpop.f32.mrf.mxu0
      %v1645 = vadd.f32 0.0, %v1644
      %v1646 = vpop.f32.mrf.mxu0
      %v1647 = vadd.f32 0.0, %v1646
      %1648 = vmatmul.bf16.gmra.mxu0 %v1593
      %v1649 = vpop.f32.mrf.mxu0
      %v1650 = vadd.f32 0.0, %v1649
      %v1651 = vpop.f32.mrf.mxu0
      %v1652 = vadd.f32 0.0, %v1651
      %1653 = vmatmul.bf16.gmra.mxu0 %v1596
      %v1654 = vpop.f32.mrf.mxu0
      %v1655 = vadd.f32 0.0, %v1654
      %v1656 = vpop.f32.mrf.mxu0
      %v1657 = vadd.f32 0.0, %v1656
      %1658 = vmatmul.bf16.gmra.mxu0 %v1599
      %v1659 = vpop.f32.mrf.mxu0
      %v1660 = vadd.f32 0.0, %v1659
      %v1661 = vpop.f32.mrf.mxu0
      %v1662 = vadd.f32 0.0, %v1661
      %1663 = vmatmul.bf16.gmra.mxu0 %v1602
      %v1664 = vpop.f32.mrf.mxu0
      %v1665 = vadd.f32 0.0, %v1664
      %v1666 = vpop.f32.mrf.mxu0
      %v1667 = vadd.f32 0.0, %v1666
      %1668 = vmatmul.bf16.gmra.mxu0 %v1605
      %v1669 = vpop.f32.mrf.mxu0
      %v1670 = vadd.f32 0.0, %v1669
      %v1671 = vpop.f32.mrf.mxu0
      %v1672 = vadd.f32 0.0, %v1671
      %1673 = vmatmul.bf16.gmra.mxu0 %v1608
      %v1674 = vpop.f32.mrf.mxu0
      %v1675 = vadd.f32 0.0, %v1674
      %v1676 = vpop.f32.mrf.mxu0
      %v1677 = vadd.f32 0.0, %v1676
      %1678 = vmatmul.bf16.gmra.mxu0 %v1611
      %v1679 = vpop.f32.mrf.mxu0
      %v1680 = vadd.f32 0.0, %v1679
      %v1681 = vpop.f32.mrf.mxu0
      %v1682 = vadd.f32 0.0, %v1681
      %1683 = vmatmul.bf16.gmra.mxu0 %v1614
      %v1684 = vpop.f32.mrf.mxu0
      %v1685 = vadd.f32 0.0, %v1684
      %v1686 = vpop.f32.mrf.mxu0
      %v1687 = vadd.f32 0.0, %v1686
      %1688 = vmatmul.bf16.gmra.mxu0 %v1617
      %v1689 = vpop.f32.mrf.mxu0
      %v1690 = vadd.f32 0.0, %v1689
      %v1691 = vpop.f32.mrf.mxu0
      %v1692 = vadd.f32 0.0, %v1691
      %1693 = vmatmul.bf16.gmra.mxu0 %v1620
      %v1694 = vpop.f32.mrf.mxu0
      %v1695 = vadd.f32 0.0, %v1694
      %v1696 = vpop.f32.mrf.mxu0
      %v1697 = vadd.f32 0.0, %v1696
      %1698 = vmatmul.bf16.gmra.mxu0 %v1623
      %v1699 = vpop.f32.mrf.mxu0
      %v1700 = vadd.f32 0.0, %v1699
      %v1701 = vpop.f32.mrf.mxu0
      %1702 = vdwg.mxu0
      %v1706 = vunpack.c.l.b16 %v1392
      %v1707 = vunpack.c.l.b16 %v1393
      %v1708 = vunpack.c.l.b16 %v1394
      %v1709 = vpack.c.b16 %v1707, %v1706
      %v1710 = vpack.c.b16 %v1477, %v1708
      %v1711 = vpack.c.b16 %v1500, %v1500
      %v1724 = vunpack.c.l.b16 %v1419
      %v1725 = vunpack.c.l.b16 %v1420
      %v1726 = vunpack.c.l.b16 %v1421
      %v1727 = vunpack.c.l.b16 %v1422
      %v1728 = vunpack.c.l.b16 %v1423
      %v1729 = vunpack.c.l.b16 %v1424
      %v1730 = vunpack.c.l.b16 %v1425
      %v1731 = vunpack.c.l.b16 %v1426
      %v1732 = vunpack.c.l.b16 %v1427
      %v1733 = vunpack.c.l.b16 %v1428
      %v1734 = vunpack.c.l.b16 %v1429
      %v1735 = vunpack.c.l.b16 %v1430
      %v1736 = vpack.c.b16 %v1725, %v1724
      %v1737 = vpack.c.b16 %v1727, %v1726
      %v1738 = vpack.c.b16 %v1729, %v1728
      %v1739 = vpack.c.b16 %v1731, %v1730
      %v1740 = vpack.c.b16 %v1733, %v1732
      %v1741 = vpack.c.b16 %v1735, %v1734
      %v1749 = vsel %vm1582, %v1709, 0
      %v1752 = vsel %vm1582, %v1710, 0
      %v1755 = vsel %vm1582, %v1505, 0
      %v1758 = vsel %vm1582, %v1506, 0
      %v1761 = vsel %vm1582, %v1507, 0
      %v1764 = vsel %vm1582, %v1508, 0
      %v1767 = vsel %vm1582, %v1509, 0
      %v1770 = vsel %vm1582, %v1510, 0
      %v1773 = vsel %vm1582, %v1511, 0
      %v1776 = vsel %vm1582, %v1512, 0
      %v1779 = vsel %vm1582, %v1513, 0
      %v1782 = vsel %vm1582, %v1514, 0
      %v1785 = vsel %vm1582, %v1515, 0
      %v1788 = vsel %vm1582, %v1711, 0
      %1790 = vmatpush.bf16.msra.mxu0 0
      %1791 = vmatpush.bf16.msra.mxu0 0
      %1792 = vmatpush.bf16.msra.mxu0 %v1741
      %1793 = vmatpush.bf16.msra.mxu0 %v1740
      %1794 = vmatpush.bf16.msra.mxu0 %v1739
      %1795 = vmatpush.bf16.msra.mxu0 %v1738
      %1796 = vmatpush.bf16.msra.mxu0 %v1737
      %1797 = vmatpush.bf16.msra.mxu0 %v1736
      %1798 = vmatmul.bf16.gmra.mxu0 %v1749
      %v1799 = vpop.f32.mrf.mxu0
      %v1800 = vadd.f32 %v1635, %v1799
      %v1801 = vpop.f32.mrf.mxu0
      %v1802 = vadd.f32 %v1637, %v1801
      %1803 = vmatmul.bf16.gmra.mxu0 %v1752
      %v1804 = vpop.f32.mrf.mxu0
      %v1805 = vadd.f32 %v1640, %v1804
      %v1806 = vpop.f32.mrf.mxu0
      %v1807 = vadd.f32 %v1642, %v1806
      %1808 = vmatmul.bf16.gmra.mxu0 %v1755
      %v1809 = vpop.f32.mrf.mxu0
      %v1810 = vadd.f32 %v1645, %v1809
      %v1811 = vpop.f32.mrf.mxu0
      %v1812 = vadd.f32 %v1647, %v1811
      %1813 = vmatmul.bf16.gmra.mxu0 %v1758
      %v1814 = vpop.f32.mrf.mxu0
      %v1815 = vadd.f32 %v1650, %v1814
      %v1816 = vpop.f32.mrf.mxu0
      %v1817 = vadd.f32 %v1652, %v1816
      %1818 = vmatmul.bf16.gmra.mxu0 %v1761
      %v1819 = vpop.f32.mrf.mxu0
      %v1820 = vadd.f32 %v1655, %v1819
      %v1821 = vpop.f32.mrf.mxu0
      %v1822 = vadd.f32 %v1657, %v1821
      %1823 = vmatmul.bf16.gmra.mxu0 %v1764
      %v1824 = vpop.f32.mrf.mxu0
      %v1825 = vadd.f32 %v1660, %v1824
      %v1826 = vpop.f32.mrf.mxu0
      %v1827 = vadd.f32 %v1662, %v1826
      %1828 = vmatmul.bf16.gmra.mxu0 %v1767
      %v1829 = vpop.f32.mrf.mxu0
      %v1830 = vadd.f32 %v1665, %v1829
      %v1831 = vpop.f32.mrf.mxu0
      %v1832 = vadd.f32 %v1667, %v1831
      %1833 = vmatmul.bf16.gmra.mxu0 %v1770
      %v1834 = vpop.f32.mrf.mxu0
      %v1835 = vadd.f32 %v1670, %v1834
      %v1836 = vpop.f32.mrf.mxu0
      %v1837 = vadd.f32 %v1672, %v1836
      %1838 = vmatmul.bf16.gmra.mxu0 %v1773
      %v1839 = vpop.f32.mrf.mxu0
      %v1840 = vadd.f32 %v1675, %v1839
      %v1841 = vpop.f32.mrf.mxu0
      %v1842 = vadd.f32 %v1677, %v1841
      %1843 = vmatmul.bf16.gmra.mxu0 %v1776
      %v1844 = vpop.f32.mrf.mxu0
      %v1845 = vadd.f32 %v1680, %v1844
      %v1846 = vpop.f32.mrf.mxu0
      %v1847 = vadd.f32 %v1682, %v1846
      %1848 = vmatmul.bf16.gmra.mxu0 %v1779
      %v1849 = vpop.f32.mrf.mxu0
      %v1850 = vadd.f32 %v1685, %v1849
      %v1851 = vpop.f32.mrf.mxu0
      %v1852 = vadd.f32 %v1687, %v1851
      %1853 = vmatmul.bf16.gmra.mxu0 %v1782
      %v1854 = vpop.f32.mrf.mxu0
      %v1855 = vadd.f32 %v1690, %v1854
      %v1856 = vpop.f32.mrf.mxu0
      %v1857 = vadd.f32 %v1692, %v1856
      %1858 = vmatmul.bf16.gmra.mxu0 %v1785
      %v1859 = vpop.f32.mrf.mxu0
      %v1860 = vadd.f32 %v1695, %v1859
      %v1861 = vpop.f32.mrf.mxu0
      %v1862 = vadd.f32 %v1697, %v1861
      %1863 = vmatmul.bf16.gmra.mxu0 %v1788
      %v1864 = vpop.f32.mrf.mxu0
      %v1865 = vadd.f32 %v1700, %v1864
      %v1866 = vpop.f32.mrf.mxu0
      %1867 = vdwg.mxu0
      %v1868 = vld [vmem:[#allocation2 + $0x10] sm:$0xc]
      %v1869 = vld [vmem:[#allocation2 + $0x14] sm:$0xf]
      %v1870 = vld [vmem:[#allocation2 + $0x18] sm:$0xf]
      %v1871 = vld [vmem:[#allocation2 + $0x1c] sm:$0xf]
      %v1872 = vld [vmem:[#allocation2 + $0x20] sm:$0xf]
      %v1873 = vld [vmem:[#allocation2 + $0x24] sm:$0xf]
      %v1874 = vld [vmem:[#allocation2 + $0x28] sm:$0xf]
      %v1875 = vld [vmem:[#allocation2 + $0x2c] sm:$0xf]
      %v1876 = vld [vmem:[#allocation2 + $0x30] sm:$0xf]
      %v1877 = vld [vmem:[#allocation2 + $0x34] sm:$0xf]
      %v1878 = vld [vmem:[#allocation2 + $0x38] sm:$0xf]
      %v1879 = vld [vmem:[#allocation2 + $0x3c] sm:$0xf]
      %v1880 = vld [vmem:[#allocation2 + $0x40] sm:$0xf]
      %v1881 = vld [vmem:[#allocation2 + $0x44] sm:$0xf]
      %v1882 = vld [vmem:[#allocation2 + $0x48] sm:$0xf]
      %v1883 = vld [vmem:[#allocation2 + $0x4c] sm:$0xf]
      %v1884 = vld [vmem:[#allocation2 + $0x50] sm:$0xf]
      %v1885 = vld [vmem:[#allocation2 + $0x54] sm:$0xf]
      %v1886 = vld [vmem:[#allocation2 + $0x58] sm:$0xf]
      %v1887 = vld [vmem:[#allocation2 + $0x5c] sm:$0xf]
      %v1888 = vld [vmem:[#allocation2 + $0x60] sm:$0xf]
      %v1889 = vld [vmem:[#allocation2 + $0x64] sm:$0xf]
      %v1890 = vld [vmem:[#allocation2 + $0x68] sm:$0xf]
      %v1891 = vld [vmem:[#allocation2 + $0x6c] sm:$0xf]
      %v1892 = vld [vmem:[#allocation2 + $0x70] sm:$0xf]
      %v1893 = vld [vmem:[#allocation2 + $0x74] sm:$0xf]
      %v1894 = vld [vmem:[#allocation2 + $0x78] sm:$0xf]
      %v1895 = vld [vmem:[#allocation2 + $0x7c] sm:$0x3]
      %s1896 = scalar_lea.vmem %s3, 96
      %v1897 = vld [vmem:[%s1896] sm:$0xf]
      %v1898 = vld [vmem:[%s1896 + $0x4] sm:$0xf]
      %v1899 = vld [vmem:[%s1896 + $0x8] sm:$0xf]
      %v1900 = vld [vmem:[%s1896 + $0xc] sm:$0xf]
      %v1901 = vld [vmem:[%s1896 + $0x10] sm:$0xf]
      %v1902 = vld [vmem:[%s1896 + $0x14] sm:$0xf]
      %v1903 = vld [vmem:[%s1896 + $0x18] sm:$0xf]
      %v1904 = vld [vmem:[%s1896 + $0x1c] sm:$0xf]
      %v1905 = vld [vmem:[%s1896 + $0x20] sm:$0xf]
      %v1906 = vld [vmem:[%s1896 + $0x24] sm:$0xf]
      %v1907 = vld [vmem:[%s1896 + $0x28] sm:$0xf]
      %v1908 = vld [vmem:[%s1896 + $0x2c] sm:$0xf]
      %v1937 = vunpack.c.l.b16 %v1868
      %v1938 = vunpack.c.l.b16 %v1869
      %v1939 = vunpack.c.l.b16 %v1870
      %v1940 = vunpack.c.l.b16 %v1871
      %v1941 = vunpack.c.l.b16 %v1872
      %v1942 = vunpack.c.l.b16 %v1873
      %v1943 = vunpack.c.l.b16 %v1874
      %v1944 = vunpack.c.l.b16 %v1875
      %v1945 = vunpack.c.l.b16 %v1876
      %v1946 = vunpack.c.l.b16 %v1877
      %v1947 = vunpack.c.l.b16 %v1878
      %v1948 = vunpack.c.l.b16 %v1879
      %v1949 = vunpack.c.l.b16 %v1880
      %v1950 = vunpack.c.l.b16 %v1881
      %v1951 = vunpack.c.l.b16 %v1882
      %v1952 = vunpack.c.l.b16 %v1883
      %v1953 = vunpack.c.l.b16 %v1884
      %v1954 = vunpack.c.l.b16 %v1885
      %v1955 = vunpack.c.l.b16 %v1886
      %v1956 = vunpack.c.l.b16 %v1887
      %v1957 = vunpack.c.l.b16 %v1888
      %v1958 = vunpack.c.l.b16 %v1889
      %v1959 = vunpack.c.l.b16 %v1890
      %v1960 = vunpack.c.l.b16 %v1891
      %v1961 = vunpack.c.l.b16 %v1892
      %v1962 = vunpack.c.l.b16 %v1893
      %v1963 = vunpack.c.l.b16 %v1894
      %v1964 = vunpack.c.l.b16 %v1895
      %v1965 = vpack.c.b16 %v1938, %v1937
      %v1966 = vpack.c.b16 %v1940, %v1939
      %v1967 = vpack.c.b16 %v1942, %v1941
      %v1968 = vpack.c.b16 %v1944, %v1943
      %v1969 = vpack.c.b16 %v1946, %v1945
      %v1970 = vpack.c.b16 %v1948, %v1947
      %v1971 = vpack.c.b16 %v1950, %v1949
      %v1972 = vpack.c.b16 %v1952, %v1951
      %v1973 = vpack.c.b16 %v1954, %v1953
      %v1974 = vpack.c.b16 %v1956, %v1955
      %v1975 = vpack.c.b16 %v1958, %v1957
      %v1976 = vpack.c.b16 %v1960, %v1959
      %v1977 = vpack.c.b16 %v1962, %v1961
      %v1978 = vpack.c.b16 %v1964, %v1963
      %vm1979 = vcmask 1045504
      %v1980 = vrot.slane %v1965, 2
      %v1981 = vrot.slane %v1966, 2
      %v1982 = vsel %vm1979, %v1980, %v1981
      %v1983 = vrot.slane %v1967, 2
      %v1984 = vsel %vm1979, %v1981, %v1983
      %v1985 = vrot.slane %v1968, 2
      %v1986 = vsel %vm1979, %v1983, %v1985
      %v1987 = vrot.slane %v1969, 2
      %v1988 = vsel %vm1979, %v1985, %v1987
      %v1989 = vrot.slane %v1970, 2
      %v1990 = vsel %vm1979, %v1987, %v1989
      %v1991 = vrot.slane %v1971, 2
      %v1992 = vsel %vm1979, %v1989, %v1991
      %v1993 = vrot.slane %v1972, 2
      %v1994 = vsel %vm1979, %v1991, %v1993
      %v1995 = vrot.slane %v1973, 2
      %v1996 = vsel %vm1979, %v1993, %v1995
      %v1997 = vrot.slane %v1974, 2
      %v1998 = vsel %vm1979, %v1995, %v1997
      %v1999 = vrot.slane %v1975, 2
      %v2000 = vsel %vm1979, %v1997, %v1999
      %v2001 = vrot.slane %v1976, 2
      %v2002 = vsel %vm1979, %v1999, %v2001
      %v2003 = vrot.slane %v1977, 2
      %v2004 = vsel %vm1979, %v2001, %v2003
      %v2005 = vrot.slane %v1978, 2
      %v2006 = vsel %vm1979, %v2003, %v2005
      %v2019 = vunpack.c.l.b16 %v1897
      %v2020 = vunpack.c.l.b16 %v1898
      %v2021 = vunpack.c.l.b16 %v1899
      %v2022 = vunpack.c.l.b16 %v1900
      %v2023 = vunpack.c.l.b16 %v1901
      %v2024 = vunpack.c.l.b16 %v1902
      %v2025 = vunpack.c.l.b16 %v1903
      %v2026 = vunpack.c.l.b16 %v1904
      %v2027 = vunpack.c.l.b16 %v1905
      %v2028 = vunpack.c.l.b16 %v1906
      %v2029 = vunpack.c.l.b16 %v1907
      %v2030 = vunpack.c.l.b16 %v1908
      %v2031 = vpack.c.b16 %v2020, %v2019
      %v2032 = vpack.c.b16 %v2022, %v2021
      %v2033 = vpack.c.b16 %v2024, %v2023
      %v2034 = vpack.c.b16 %v2026, %v2025
      %v2035 = vpack.c.b16 %v2028, %v2027
      %v2036 = vpack.c.b16 %v2030, %v2029
      %v2044 = vsel %vm1582, %v1982, 0
      %v2047 = vsel %vm1582, %v1984, 0
      %v2050 = vsel %vm1582, %v1986, 0
      %v2053 = vsel %vm1582, %v1988, 0
      %v2056 = vsel %vm1582, %v1990, 0
      %v2059 = vsel %vm1582, %v1992, 0
      %v2062 = vsel %vm1582, %v1994, 0
      %v2065 = vsel %vm1582, %v1996, 0
      %v2068 = vsel %vm1582, %v1998, 0
      %v2071 = vsel %vm1582, %v2000, 0
      %v2074 = vsel %vm1582, %v2002, 0
      %v2077 = vsel %vm1582, %v2004, 0
      %v2080 = vsel %vm1582, %v2006, 0
      %v2083 = vsel %vm1582, %v2005, 0
      %2085 = vmatpush.bf16.msra.mxu0 0
      %2086 = vmatpush.bf16.msra.mxu0 0
      %2087 = vmatpush.bf16.msra.mxu0 %v2036
      %2088 = vmatpush.bf16.msra.mxu0 %v2035
      %2089 = vmatpush.bf16.msra.mxu0 %v2034
      %2090 = vmatpush.bf16.msra.mxu0 %v2033
      %2091 = vmatpush.bf16.msra.mxu0 %v2032
      %2092 = vmatpush.bf16.msra.mxu0 %v2031
      %2093 = vmatmul.bf16.gmra.mxu0 %v2044
      %v2094 = vpop.f32.mrf.mxu0
      %v2095 = vadd.f32 0.0, %v2094
      %v2096 = vpop.f32.mrf.mxu0
      %v2097 = vadd.f32 0.0, %v2096
      %2098 = vmatmul.bf16.gmra.mxu0 %v2047
      %v2099 = vpop.f32.mrf.mxu0
      %v2100 = vadd.f32 0.0, %v2099
      %v2101 = vpop.f32.mrf.mxu0
      %v2102 = vadd.f32 0.0, %v2101
      %2103 = vmatmul.bf16.gmra.mxu0 %v2050
      %v2104 = vpop.f32.mrf.mxu0
      %v2105 = vadd.f32 0.0, %v2104
      %v2106 = vpop.f32.mrf.mxu0
      %v2107 = vadd.f32 0.0, %v2106
      %2108 = vmatmul.bf16.gmra.mxu0 %v2053
      %v2109 = vpop.f32.mrf.mxu0
      %v2110 = vadd.f32 0.0, %v2109
      %v2111 = vpop.f32.mrf.mxu0
      %v2112 = vadd.f32 0.0, %v2111
      %2113 = vmatmul.bf16.gmra.mxu0 %v2056
      %v2114 = vpop.f32.mrf.mxu0
      %v2115 = vadd.f32 0.0, %v2114
      %v2116 = vpop.f32.mrf.mxu0
      %v2117 = vadd.f32 0.0, %v2116
      %2118 = vmatmul.bf16.gmra.mxu0 %v2059
      %v2119 = vpop.f32.mrf.mxu0
      %v2120 = vadd.f32 0.0, %v2119
      %v2121 = vpop.f32.mrf.mxu0
      %v2122 = vadd.f32 0.0, %v2121
      %2123 = vmatmul.bf16.gmra.mxu0 %v2062
      %v2124 = vpop.f32.mrf.mxu0
      %v2125 = vadd.f32 0.0, %v2124
      %v2126 = vpop.f32.mrf.mxu0
      %v2127 = vadd.f32 0.0, %v2126
      %2128 = vmatmul.bf16.gmra.mxu0 %v2065
      %v2129 = vpop.f32.mrf.mxu0
      %v2130 = vadd.f32 0.0, %v2129
      %v2131 = vpop.f32.mrf.mxu0
      %v2132 = vadd.f32 0.0, %v2131
      %2133 = vmatmul.bf16.gmra.mxu0 %v2068
      %v2134 = vpop.f32.mrf.mxu0
      %v2135 = vadd.f32 0.0, %v2134
      %v2136 = vpop.f32.mrf.mxu0
      %v2137 = vadd.f32 0.0, %v2136
      %2138 = vmatmul.bf16.gmra.mxu0 %v2071
      %v2139 = vpop.f32.mrf.mxu0
      %v2140 = vadd.f32 0.0, %v2139
      %v2141 = vpop.f32.mrf.mxu0
      %v2142 = vadd.f32 0.0, %v2141
      %2143 = vmatmul.bf16.gmra.mxu0 %v2074
      %v2144 = vpop.f32.mrf.mxu0
      %v2145 = vadd.f32 0.0, %v2144
      %v2146 = vpop.f32.mrf.mxu0
      %v2147 = vadd.f32 0.0, %v2146
      %2148 = vmatmul.bf16.gmra.mxu0 %v2077
      %v2149 = vpop.f32.mrf.mxu0
      %v2150 = vadd.f32 0.0, %v2149
      %v2151 = vpop.f32.mrf.mxu0
      %v2152 = vadd.f32 0.0, %v2151
      %2153 = vmatmul.bf16.gmra.mxu0 %v2080
      %v2154 = vpop.f32.mrf.mxu0
      %v2155 = vadd.f32 0.0, %v2154
      %v2156 = vpop.f32.mrf.mxu0
      %v2157 = vadd.f32 0.0, %v2156
      %2158 = vmatmul.bf16.gmra.mxu0 %v2083
      %v2159 = vpop.f32.mrf.mxu0
      %v2160 = vadd.f32 0.0, %v2159
      %v2161 = vpop.f32.mrf.mxu0
      %2162 = vdwg.mxu0
      %v2163 = vadd.f32 %v1800, %v2095
      %v2164 = vadd.f32 %v1802, %v2097
      %v2165 = vadd.f32 %v1805, %v2100
      %v2166 = vadd.f32 %v1807, %v2102
      %v2167 = vadd.f32 %v1810, %v2105
      %v2168 = vadd.f32 %v1812, %v2107
      %v2169 = vadd.f32 %v1815, %v2110
      %v2170 = vadd.f32 %v1817, %v2112
      %v2171 = vadd.f32 %v1820, %v2115
      %v2172 = vadd.f32 %v1822, %v2117
      %v2173 = vadd.f32 %v1825, %v2120
      %v2174 = vadd.f32 %v1827, %v2122
      %v2175 = vadd.f32 %v1830, %v2125
      %v2176 = vadd.f32 %v1832, %v2127
      %v2177 = vadd.f32 %v1835, %v2130
      %v2178 = vadd.f32 %v1837, %v2132
      %v2179 = vadd.f32 %v1840, %v2135
      %v2180 = vadd.f32 %v1842, %v2137
      %v2181 = vadd.f32 %v1845, %v2140
      %v2182 = vadd.f32 %v1847, %v2142
      %v2183 = vadd.f32 %v1850, %v2145
      %v2184 = vadd.f32 %v1852, %v2147
      %v2185 = vadd.f32 %v1855, %v2150
      %v2186 = vadd.f32 %v1857, %v2152
      %v2187 = vadd.f32 %v1860, %v2155
      %v2188 = vadd.f32 %v1862, %v2157
      %v2189 = vadd.f32 %v1865, %v2160
      %v2190 = vld [vmem:[%s4] sm:$0x1]
      %v2192 = vperm.slane %v2190, 0
      %v2194 = vadd.f32 %v2163, %v2192
      %v2195 = vadd.f32 %v2164, %v2192
      %v2196 = vadd.f32 %v2165, %v2192
      %v2197 = vadd.f32 %v2166, %v2192
      %v2198 = vadd.f32 %v2167, %v2192
      %v2199 = vadd.f32 %v2168, %v2192
      %v2200 = vadd.f32 %v2169, %v2192
      %v2201 = vadd.f32 %v2170, %v2192
      %v2202 = vadd.f32 %v2171, %v2192
      %v2203 = vadd.f32 %v2172, %v2192
      %v2204 = vadd.f32 %v2173, %v2192
      %v2205 = vadd.f32 %v2174, %v2192
      %v2206 = vadd.f32 %v2175, %v2192
      %v2207 = vadd.f32 %v2176, %v2192
      %v2208 = vadd.f32 %v2177, %v2192
      %v2209 = vadd.f32 %v2178, %v2192
      %v2210 = vadd.f32 %v2179, %v2192
      %v2211 = vadd.f32 %v2180, %v2192
      %v2212 = vadd.f32 %v2181, %v2192
      %v2213 = vadd.f32 %v2182, %v2192
      %v2214 = vadd.f32 %v2183, %v2192
      %v2215 = vadd.f32 %v2184, %v2192
      %v2216 = vadd.f32 %v2185, %v2192
      %v2217 = vadd.f32 %v2186, %v2192
      %v2218 = vadd.f32 %v2187, %v2192
      %v2219 = vadd.f32 %v2188, %v2192
      %v2220 = vadd.f32 %v2189, %v2192
      %v2221 = vmax.f32 %v2194, 0.0
      %v2222 = vmax.f32 %v2195, 0.0
      %v2223 = vmax.f32 %v2196, 0.0
      %v2224 = vmax.f32 %v2197, 0.0
      %v2225 = vmax.f32 %v2198, 0.0
      %v2226 = vmax.f32 %v2199, 0.0
      %v2227 = vmax.f32 %v2200, 0.0
      %v2228 = vmax.f32 %v2201, 0.0
      %v2229 = vmax.f32 %v2202, 0.0
      %v2230 = vmax.f32 %v2203, 0.0
      %v2231 = vmax.f32 %v2204, 0.0
      %v2232 = vmax.f32 %v2205, 0.0
      %v2233 = vmax.f32 %v2206, 0.0
      %v2234 = vmax.f32 %v2207, 0.0
      %v2235 = vmax.f32 %v2208, 0.0
      %v2236 = vmax.f32 %v2209, 0.0
      %v2237 = vmax.f32 %v2210, 0.0
      %v2238 = vmax.f32 %v2211, 0.0
      %v2239 = vmax.f32 %v2212, 0.0
      %v2240 = vmax.f32 %v2213, 0.0
      %v2241 = vmax.f32 %v2214, 0.0
      %v2242 = vmax.f32 %v2215, 0.0
      %v2243 = vmax.f32 %v2216, 0.0
      %v2244 = vmax.f32 %v2217, 0.0
      %v2245 = vmax.f32 %v2218, 0.0
      %v2246 = vmax.f32 %v2219, 0.0
      %v2247 = vmax.f32 %v2220, 0.0
      %vm2248 = vcmp.gt.f32.partialorder %v1365, 0.0
      %vm2249 = vcmp.gt.f32.partialorder %v1366, 0.0
      %vm2250 = vcmp.gt.f32.partialorder %v1367, 0.0
      %vm2251 = vcmp.gt.f32.partialorder %v1368, 0.0
      %vm2252 = vcmp.gt.f32.partialorder %v1369, 0.0
      %vm2253 = vcmp.gt.f32.partialorder %v1370, 0.0
      %vm2254 = vcmp.gt.f32.partialorder %v1371, 0.0
      %vm2255 = vcmp.gt.f32.partialorder %v1372, 0.0
      %vm2256 = vcmp.gt.f32.partialorder %v1373, 0.0
      %vm2257 = vcmp.gt.f32.partialorder %v1374, 0.0
      %vm2258 = vcmp.gt.f32.partialorder %v1375, 0.0
      %vm2259 = vcmp.gt.f32.partialorder %v1376, 0.0
      %vm2260 = vcmp.gt.f32.partialorder %v1377, 0.0
      %vm2261 = vcmp.gt.f32.partialorder %v1378, 0.0
      %vm2262 = vcmp.gt.f32.partialorder %v1379, 0.0
      %vm2263 = vcmp.gt.f32.partialorder %v1380, 0.0
      %vm2264 = vcmp.gt.f32.partialorder %v1381, 0.0
      %vm2265 = vcmp.gt.f32.partialorder %v1382, 0.0
      %vm2266 = vcmp.gt.f32.partialorder %v1383, 0.0
      %vm2267 = vcmp.gt.f32.partialorder %v1384, 0.0
      %vm2268 = vcmp.gt.f32.partialorder %v1385, 0.0
      %vm2269 = vcmp.gt.f32.partialorder %v1386, 0.0
      %vm2270 = vcmp.gt.f32.partialorder %v1387, 0.0
      %vm2271 = vcmp.gt.f32.partialorder %v1388, 0.0
      %vm2272 = vcmp.gt.f32.partialorder %v1389, 0.0
      %vm2273 = vcmp.gt.f32.partialorder %v1390, 0.0
      %vm2274 = vcmp.gt.f32.partialorder %v1391, 0.0
      %v2275 = vsel %vm2248, 1, 0
      %v2276 = vsel %vm2249, 1, 0
      %v2277 = vsel %vm2250, 1, 0
      %v2278 = vsel %vm2251, 1, 0
      %v2279 = vsel %vm2252, 1, 0
      %v2280 = vsel %vm2253, 1, 0
      %v2281 = vsel %vm2254, 1, 0
      %v2282 = vsel %vm2255, 1, 0
      %v2283 = vsel %vm2256, 1, 0
      %v2284 = vsel %vm2257, 1, 0
      %v2285 = vsel %vm2258, 1, 0
      %v2286 = vsel %vm2259, 1, 0
      %v2287 = vsel %vm2260, 1, 0
      %v2288 = vsel %vm2261, 1, 0
      %v2289 = vsel %vm2262, 1, 0
      %v2290 = vsel %vm2263, 1, 0
      %v2291 = vsel %vm2264, 1, 0
      %v2292 = vsel %vm2265, 1, 0
      %v2293 = vsel %vm2266, 1, 0
      %v2294 = vsel %vm2267, 1, 0
      %v2295 = vsel %vm2268, 1, 0
      %v2296 = vsel %vm2269, 1, 0
      %v2297 = vsel %vm2270, 1, 0
      %v2298 = vsel %vm2271, 1, 0
      %v2299 = vsel %vm2272, 1, 0
      %v2300 = vsel %vm2273, 1, 0
      %v2301 = vsel %vm2274, 1, 0
      %2302 = vset.pattern.permute.xlu0 0
      %2303 = vperm.xlu0 %2302, %v2275
      %v2304 = vpop.permute.xlu0 %2303
      %2305 = vset.pattern.permute.xlu0 0
      %2306 = vperm.xlu0 %2305, %v2276
      %v2307 = vpop.permute.xlu0 %2306
      %2308 = vset.pattern.permute.xlu0 0
      %2309 = vperm.xlu0 %2308, %v2277
      %v2310 = vpop.permute.xlu0 %2309
      %2311 = vset.pattern.permute.xlu0 0
      %2312 = vperm.xlu0 %2311, %v2278
      %v2313 = vpop.permute.xlu0 %2312
      %2314 = vset.pattern.permute.xlu0 0
      %2315 = vperm.xlu0 %2314, %v2279
      %v2316 = vpop.permute.xlu0 %2315
      %2317 = vset.pattern.permute.xlu0 0
      %2318 = vperm.xlu0 %2317, %v2280
      %v2319 = vpop.permute.xlu0 %2318
      %2320 = vset.pattern.permute.xlu0 0
      %2321 = vperm.xlu0 %2320, %v2281
      %v2322 = vpop.permute.xlu0 %2321
      %2323 = vset.pattern.permute.xlu0 0
      %2324 = vperm.xlu0 %2323, %v2282
      %v2325 = vpop.permute.xlu0 %2324
      %2326 = vset.pattern.permute.xlu0 0
      %2327 = vperm.xlu0 %2326, %v2283
      %v2328 = vpop.permute.xlu0 %2327
      %2329 = vset.pattern.permute.xlu0 0
      %2330 = vperm.xlu0 %2329, %v2284
      %v2331 = vpop.permute.xlu0 %2330
      %2332 = vset.pattern.permute.xlu0 0
      %2333 = vperm.xlu0 %2332, %v2285
      %v2334 = vpop.permute.xlu0 %2333
      %2335 = vset.pattern.permute.xlu0 0
      %2336 = vperm.xlu0 %2335, %v2286
      %v2337 = vpop.permute.xlu0 %2336
      %2338 = vset.pattern.permute.xlu0 0
      %2339 = vperm.xlu0 %2338, %v2287
      %v2340 = vpop.permute.xlu0 %2339
      %2341 = vset.pattern.permute.xlu0 0
      %2342 = vperm.xlu0 %2341, %v2288
      %v2343 = vpop.permute.xlu0 %2342
      %2344 = vset.pattern.permute.xlu0 0
      %2345 = vperm.xlu0 %2344, %v2289
      %v2346 = vpop.permute.xlu0 %2345
      %2347 = vset.pattern.permute.xlu0 0
      %2348 = vperm.xlu0 %2347, %v2290
      %v2349 = vpop.permute.xlu0 %2348
      %2350 = vset.pattern.permute.xlu0 0
      %2351 = vperm.xlu0 %2350, %v2291
      %v2352 = vpop.permute.xlu0 %2351
      %2353 = vset.pattern.permute.xlu0 0
      %2354 = vperm.xlu0 %2353, %v2292
      %v2355 = vpop.permute.xlu0 %2354
      %2356 = vset.pattern.permute.xlu0 0
      %2357 = vperm.xlu0 %2356, %v2293
      %v2358 = vpop.permute.xlu0 %2357
      %2359 = vset.pattern.permute.xlu0 0
      %2360 = vperm.xlu0 %2359, %v2294
      %v2361 = vpop.permute.xlu0 %2360
      %2362 = vset.pattern.permute.xlu0 0
      %2363 = vperm.xlu0 %2362, %v2295
      %v2364 = vpop.permute.xlu0 %2363
      %2365 = vset.pattern.permute.xlu0 0
      %2366 = vperm.xlu0 %2365, %v2296
      %v2367 = vpop.permute.xlu0 %2366
      %2368 = vset.pattern.permute.xlu0 0
      %2369 = vperm.xlu0 %2368, %v2297
      %v2370 = vpop.permute.xlu0 %2369
      %2371 = vset.pattern.permute.xlu0 0
      %2372 = vperm.xlu0 %2371, %v2298
      %v2373 = vpop.permute.xlu0 %2372
      %2374 = vset.pattern.permute.xlu0 0
      %2375 = vperm.xlu0 %2374, %v2299
      %v2376 = vpop.permute.xlu0 %2375
      %2377 = vset.pattern.permute.xlu0 0
      %2378 = vperm.xlu0 %2377, %v2300
      %v2379 = vpop.permute.xlu0 %2378
      %2380 = vset.pattern.permute.xlu0 0
      %2381 = vperm.xlu0 %2380, %v2301
      %v2382 = vpop.permute.xlu0 %2381
      %vm2383 = vcmp.eq.s32.totalorder %v2304, 1
      %vm2384 = vcmp.eq.s32.totalorder %v2307, 1
      %vm2385 = vcmp.eq.s32.totalorder %v2310, 1
      %vm2386 = vcmp.eq.s32.totalorder %v2313, 1
      %vm2387 = vcmp.eq.s32.totalorder %v2316, 1
      %vm2388 = vcmp.eq.s32.totalorder %v2319, 1
      %vm2389 = vcmp.eq.s32.totalorder %v2322, 1
      %vm2390 = vcmp.eq.s32.totalorder %v2325, 1
      %vm2391 = vcmp.eq.s32.totalorder %v2328, 1
      %vm2392 = vcmp.eq.s32.totalorder %v2331, 1
      %vm2393 = vcmp.eq.s32.totalorder %v2334, 1
      %vm2394 = vcmp.eq.s32.totalorder %v2337, 1
      %vm2395 = vcmp.eq.s32.totalorder %v2340, 1
      %vm2396 = vcmp.eq.s32.totalorder %v2343, 1
      %vm2397 = vcmp.eq.s32.totalorder %v2346, 1
      %vm2398 = vcmp.eq.s32.totalorder %v2349, 1
      %vm2399 = vcmp.eq.s32.totalorder %v2352, 1
      %vm2400 = vcmp.eq.s32.totalorder %v2355, 1
      %vm2401 = vcmp.eq.s32.totalorder %v2358, 1
      %vm2402 = vcmp.eq.s32.totalorder %v2361, 1
      %vm2403 = vcmp.eq.s32.totalorder %v2364, 1
      %vm2404 = vcmp.eq.s32.totalorder %v2367, 1
      %vm2405 = vcmp.eq.s32.totalorder %v2370, 1
      %vm2406 = vcmp.eq.s32.totalorder %v2373, 1
      %vm2407 = vcmp.eq.s32.totalorder %v2376, 1
      %vm2408 = vcmp.eq.s32.totalorder %v2379, 1
      %vm2409 = vcmp.eq.s32.totalorder %v2382, 1
      %v2410 = vsel %vm2383, %v2221, 0.0
      %v2411 = vsel %vm2384, %v2222, 0.0
      %v2412 = vsel %vm2385, %v2223, 0.0
      %v2413 = vsel %vm2386, %v2224, 0.0
      %v2414 = vsel %vm2387, %v2225, 0.0
      %v2415 = vsel %vm2388, %v2226, 0.0
      %v2416 = vsel %vm2389, %v2227, 0.0
      %v2417 = vsel %vm2390, %v2228, 0.0
      %v2418 = vsel %vm2391, %v2229, 0.0
      %v2419 = vsel %vm2392, %v2230, 0.0
      %v2420 = vsel %vm2393, %v2231, 0.0
      %v2421 = vsel %vm2394, %v2232, 0.0
      %v2422 = vsel %vm2395, %v2233, 0.0
      %v2423 = vsel %vm2396, %v2234, 0.0
      %v2424 = vsel %vm2397, %v2235, 0.0
      %v2425 = vsel %vm2398, %v2236, 0.0
      %v2426 = vsel %vm2399, %v2237, 0.0
      %v2427 = vsel %vm2400, %v2238, 0.0
      %v2428 = vsel %vm2401, %v2239, 0.0
      %v2429 = vsel %vm2402, %v2240, 0.0
      %v2430 = vsel %vm2403, %v2241, 0.0
      %v2431 = vsel %vm2404, %v2242, 0.0
      %v2432 = vsel %vm2405, %v2243, 0.0
      %v2433 = vsel %vm2406, %v2244, 0.0
      %v2434 = vsel %vm2407, %v2245, 0.0
      %v2435 = vsel %vm2408, %v2246, 0.0
      %v2436 = vsel %vm2409, %v2247, 0.0
      %v2437 = vpack.c.bf16 %v2410, %v2410
      %v2438 = vpack.c.bf16 %v2411, %v2411
      %v2439 = vpack.c.bf16 %v2412, %v2412
      %v2440 = vpack.c.bf16 %v2413, %v2413
      %v2441 = vpack.c.bf16 %v2414, %v2414
      %v2442 = vpack.c.bf16 %v2415, %v2415
      %v2443 = vpack.c.bf16 %v2416, %v2416
      %v2444 = vpack.c.bf16 %v2417, %v2417
      %v2445 = vpack.c.bf16 %v2418, %v2418
      %v2446 = vpack.c.bf16 %v2419, %v2419
      %v2447 = vpack.c.bf16 %v2420, %v2420
      %v2448 = vpack.c.bf16 %v2421, %v2421
      %v2449 = vpack.c.bf16 %v2422, %v2422
      %v2450 = vpack.c.bf16 %v2423, %v2423
      %v2451 = vpack.c.bf16 %v2424, %v2424
      %v2452 = vpack.c.bf16 %v2425, %v2425
      %v2453 = vpack.c.bf16 %v2426, %v2426
      %v2454 = vpack.c.bf16 %v2427, %v2427
      %v2455 = vpack.c.bf16 %v2428, %v2428
      %v2456 = vpack.c.bf16 %v2429, %v2429
      %v2457 = vpack.c.bf16 %v2430, %v2430
      %v2458 = vpack.c.bf16 %v2431, %v2431
      %v2459 = vpack.c.bf16 %v2432, %v2432
      %v2460 = vpack.c.bf16 %v2433, %v2433
      %v2461 = vpack.c.bf16 %v2434, %v2434
      %v2462 = vpack.c.bf16 %v2435, %v2435
      %v2463 = vpack.c.bf16 %v2436, %v2436
      %vm2464 = vcmask 254977
      %vm2465 = vsmask.f32 1280
      %vm2466 = vmand %vm2464, %vm2465
      %v2467 = vld [vmem:[#allocation3 + $0x8] sm:$0x2]
      %v2468 = vsel %vm2466, 0, %v2467
      %2469 = vst [vmem:[#allocation3 + $0x8] sm:$0x2] %v2468
      %vm2470 = vcmask 778752
      %vm2471 = vsmask.f32 7938
      %vm2472 = vmand %vm2470, %vm2471
      %v2473 = vld [vmem:[#allocation3 + $0x74] sm:$0x1]
      %v2474 = vsel %vm2472, 0, %v2473
      %2475 = vst [vmem:[#allocation3 + $0x74] sm:$0x1] %v2474
      %vm2476 = vsmask.f32 5392
      %vm2477 = vmor %vm2465, %vm2476
      %v2479 = vshrl.u32 %v2437, 16
      %v2481 = vrot.slane %v2479, 6
      %v2482 = vshll.u32 %v2437, 16
      %v2484 = vrot.slane %v2482, 7
      %v2485 = vor.u32 %v2481, %v2484
      %v2486 = vrot.slane %v2485, 4
      %v2488 = vshrl.u32 %v2438, 16
      %v2490 = vrot.slane %v2488, 6
      %v2491 = vshll.u32 %v2438, 16
      %v2493 = vrot.slane %v2491, 7
      %v2494 = vor.u32 %v2490, %v2493
      %v2495 = vsel %vm2477, %v2486, %v2494
      %v2496 = vrot.slane %v2494, 4
      %v2498 = vshrl.u32 %v2439, 16
      %v2500 = vrot.slane %v2498, 6
      %v2501 = vshll.u32 %v2439, 16
      %v2503 = vrot.slane %v2501, 7
      %v2504 = vor.u32 %v2500, %v2503
      %v2505 = vsel %vm2477, %v2496, %v2504
      %v2506 = vrot.slane %v2504, 4
      %v2508 = vshrl.u32 %v2440, 16
      %v2510 = vrot.slane %v2508, 6
      %v2511 = vshll.u32 %v2440, 16
      %v2513 = vrot.slane %v2511, 7
      %v2514 = vor.u32 %v2510, %v2513
      %v2515 = vsel %vm2477, %v2506, %v2514
      %v2516 = vrot.slane %v2514, 4
      %v2518 = vshrl.u32 %v2441, 16
      %v2520 = vrot.slane %v2518, 6
      %v2521 = vshll.u32 %v2441, 16
      %v2523 = vrot.slane %v2521, 7
      %v2524 = vor.u32 %v2520, %v2523
      %v2525 = vsel %vm2477, %v2516, %v2524
      %v2526 = vrot.slane %v2524, 4
      %v2528 = vshrl.u32 %v2442, 16
      %v2530 = vrot.slane %v2528, 6
      %v2531 = vshll.u32 %v2442, 16
      %v2533 = vrot.slane %v2531, 7
      %v2534 = vor.u32 %v2530, %v2533
      %v2535 = vsel %vm2477, %v2526, %v2534
      %v2536 = vrot.slane %v2534, 4
      %v2538 = vshrl.u32 %v2443, 16
      %v2540 = vrot.slane %v2538, 6
      %v2541 = vshll.u32 %v2443, 16
      %v2543 = vrot.slane %v2541, 7
      %v2544 = vor.u32 %v2540, %v2543
      %v2545 = vsel %vm2477, %v2536, %v2544
      %v2546 = vrot.slane %v2544, 4
      %v2548 = vshrl.u32 %v2444, 16
      %v2550 = vrot.slane %v2548, 6
      %v2551 = vshll.u32 %v2444, 16
      %v2553 = vrot.slane %v2551, 7
      %v2554 = vor.u32 %v2550, %v2553
      %v2555 = vsel %vm2477, %v2546, %v2554
      %v2556 = vrot.slane %v2554, 4
      %v2558 = vshrl.u32 %v2445, 16
      %v2560 = vrot.slane %v2558, 6
      %v2561 = vshll.u32 %v2445, 16
      %v2563 = vrot.slane %v2561, 7
      %v2564 = vor.u32 %v2560, %v2563
      %v2565 = vsel %vm2477, %v2556, %v2564
      %v2566 = vrot.slane %v2564, 4
      %v2568 = vshrl.u32 %v2446, 16
      %v2570 = vrot.slane %v2568, 6
      %v2571 = vshll.u32 %v2446, 16
      %v2573 = vrot.slane %v2571, 7
      %v2574 = vor.u32 %v2570, %v2573
      %v2575 = vsel %vm2477, %v2566, %v2574
      %v2576 = vrot.slane %v2574, 4
      %v2578 = vshrl.u32 %v2447, 16
      %v2580 = vrot.slane %v2578, 6
      %v2581 = vshll.u32 %v2447, 16
      %v2583 = vrot.slane %v2581, 7
      %v2584 = vor.u32 %v2580, %v2583
      %v2585 = vsel %vm2477, %v2576, %v2584
      %v2586 = vrot.slane %v2584, 4
      %v2588 = vshrl.u32 %v2448, 16
      %v2590 = vrot.slane %v2588, 6
      %v2591 = vshll.u32 %v2448, 16
      %v2593 = vrot.slane %v2591, 7
      %v2594 = vor.u32 %v2590, %v2593
      %v2595 = vsel %vm2477, %v2586, %v2594
      %v2596 = vrot.slane %v2594, 4
      %v2598 = vshrl.u32 %v2449, 16
      %v2600 = vrot.slane %v2598, 6
      %v2601 = vshll.u32 %v2449, 16
      %v2603 = vrot.slane %v2601, 7
      %v2604 = vor.u32 %v2600, %v2603
      %v2605 = vsel %vm2477, %v2596, %v2604
      %v2606 = vrot.slane %v2604, 4
      %v2608 = vshrl.u32 %v2450, 16
      %v2610 = vrot.slane %v2608, 6
      %v2611 = vshll.u32 %v2450, 16
      %v2613 = vrot.slane %v2611, 7
      %v2614 = vor.u32 %v2610, %v2613
      %v2615 = vsel %vm2477, %v2606, %v2614
      %v2616 = vrot.slane %v2614, 4
      %v2618 = vshrl.u32 %v2451, 16
      %v2620 = vrot.slane %v2618, 6
      %v2621 = vshll.u32 %v2451, 16
      %v2623 = vrot.slane %v2621, 7
      %v2624 = vor.u32 %v2620, %v2623
      %v2625 = vsel %vm2477, %v2616, %v2624
      %v2626 = vrot.slane %v2624, 4
      %v2628 = vshrl.u32 %v2452, 16
      %v2630 = vrot.slane %v2628, 6
      %v2631 = vshll.u32 %v2452, 16
      %v2633 = vrot.slane %v2631, 7
      %v2634 = vor.u32 %v2630, %v2633
      %v2635 = vsel %vm2477, %v2626, %v2634
      %v2636 = vrot.slane %v2634, 4
      %v2638 = vshrl.u32 %v2453, 16
      %v2640 = vrot.slane %v2638, 6
      %v2641 = vshll.u32 %v2453, 16
      %v2643 = vrot.slane %v2641, 7
      %v2644 = vor.u32 %v2640, %v2643
      %v2645 = vsel %vm2477, %v2636, %v2644
      %v2646 = vrot.slane %v2644, 4
      %v2648 = vshrl.u32 %v2454, 16
      %v2650 = vrot.slane %v2648, 6
      %v2651 = vshll.u32 %v2454, 16
      %v2653 = vrot.slane %v2651, 7
      %v2654 = vor.u32 %v2650, %v2653
      %v2655 = vsel %vm2477, %v2646, %v2654
      %v2656 = vrot.slane %v2654, 4
      %v2658 = vshrl.u32 %v2455, 16
      %v2660 = vrot.slane %v2658, 6
      %v2661 = vshll.u32 %v2455, 16
      %v2663 = vrot.slane %v2661, 7
      %v2664 = vor.u32 %v2660, %v2663
      %v2665 = vsel %vm2477, %v2656, %v2664
      %v2666 = vrot.slane %v2664, 4
      %v2668 = vshrl.u32 %v2456, 16
      %v2670 = vrot.slane %v2668, 6
      %v2671 = vshll.u32 %v2456, 16
      %v2673 = vrot.slane %v2671, 7
      %v2674 = vor.u32 %v2670, %v2673
      %v2675 = vsel %vm2477, %v2666, %v2674
      %v2676 = vrot.slane %v2674, 4
      %v2678 = vshrl.u32 %v2457, 16
      %v2680 = vrot.slane %v2678, 6
      %v2681 = vshll.u32 %v2457, 16
      %v2683 = vrot.slane %v2681, 7
      %v2684 = vor.u32 %v2680, %v2683
      %v2685 = vsel %vm2477, %v2676, %v2684
      %v2686 = vrot.slane %v2684, 4
      %v2688 = vshrl.u32 %v2458, 16
      %v2690 = vrot.slane %v2688, 6
      %v2691 = vshll.u32 %v2458, 16
      %v2693 = vrot.slane %v2691, 7
      %v2694 = vor.u32 %v2690, %v2693
      %v2695 = vsel %vm2477, %v2686, %v2694
      %v2696 = vrot.slane %v2694, 4
      %v2698 = vshrl.u32 %v2459, 16
      %v2700 = vrot.slane %v2698, 6
      %v2701 = vshll.u32 %v2459, 16
      %v2703 = vrot.slane %v2701, 7
      %v2704 = vor.u32 %v2700, %v2703
      %v2705 = vsel %vm2477, %v2696, %v2704
      %v2706 = vrot.slane %v2704, 4
      %v2708 = vshrl.u32 %v2460, 16
      %v2710 = vrot.slane %v2708, 6
      %v2711 = vshll.u32 %v2460, 16
      %v2713 = vrot.slane %v2711, 7
      %v2714 = vor.u32 %v2710, %v2713
      %v2715 = vsel %vm2477, %v2706, %v2714
      %v2716 = vrot.slane %v2714, 4
      %v2718 = vshrl.u32 %v2461, 16
      %v2720 = vrot.slane %v2718, 6
      %v2721 = vshll.u32 %v2461, 16
      %v2723 = vrot.slane %v2721, 7
      %v2724 = vor.u32 %v2720, %v2723
      %v2725 = vsel %vm2477, %v2716, %v2724
      %v2726 = vrot.slane %v2724, 4
      %v2728 = vshrl.u32 %v2462, 16
      %v2730 = vrot.slane %v2728, 6
      %v2731 = vshll.u32 %v2462, 16
      %v2733 = vrot.slane %v2731, 7
      %v2734 = vor.u32 %v2730, %v2733
      %v2735 = vsel %vm2477, %v2726, %v2734
      %v2736 = vrot.slane %v2734, 4
      %v2738 = vshrl.u32 %v2463, 16
      %v2740 = vrot.slane %v2738, 6
      %v2741 = vshll.u32 %v2463, 16
      %v2743 = vrot.slane %v2741, 7
      %v2744 = vor.u32 %v2740, %v2743
      %v2745 = vsel %vm2477, %v2736, %v2744
      %v2746 = vrot.slane %v2744, 4
      %vm2775 = vcmask 257025
      %vm2776 = vsmask.f32 7942
      %vm2777 = vmand %vm2775, %vm2776
      %v2778 = vld [vmem:[#allocation3 + $0x8] sm:$0xe]
      %v2779 = vsel %vm2777, %v2485, %v2778
      %2780 = vst [vmem:[#allocation3 + $0x8] sm:$0xe] %v2779
      %2781 = vst.msk [vmem:[#allocation3 + $0xc] sm:$0xf] %vm555, %v2495
      %2782 = vst.msk [vmem:[#allocation3 + $0x10] sm:$0xf] %vm555, %v2505
      %2783 = vst.msk [vmem:[#allocation3 + $0x14] sm:$0xf] %vm555, %v2515
      %2784 = vst.msk [vmem:[#allocation3 + $0x18] sm:$0xf] %vm555, %v2525
      %2785 = vst.msk [vmem:[#allocation3 + $0x1c] sm:$0xf] %vm555, %v2535
      %2786 = vst.msk [vmem:[#allocation3 + $0x20] sm:$0xf] %vm555, %v2545
      %2787 = vst.msk [vmem:[#allocation3 + $0x24] sm:$0xf] %vm555, %v2555
      %2788 = vst.msk [vmem:[#allocation3 + $0x28] sm:$0xf] %vm555, %v2565
      %2789 = vst.msk [vmem:[#allocation3 + $0x2c] sm:$0xf] %vm555, %v2575
      %2790 = vst.msk [vmem:[#allocation3 + $0x30] sm:$0xf] %vm555, %v2585
      %2791 = vst.msk [vmem:[#allocation3 + $0x34] sm:$0xf] %vm555, %v2595
      %2792 = vst.msk [vmem:[#allocation3 + $0x38] sm:$0xf] %vm555, %v2605
      %2793 = vst.msk [vmem:[#allocation3 + $0x3c] sm:$0xf] %vm555, %v2615
      %2794 = vst.msk [vmem:[#allocation3 + $0x40] sm:$0xf] %vm555, %v2625
      %2795 = vst.msk [vmem:[#allocation3 + $0x44] sm:$0xf] %vm555, %v2635
      %2796 = vst.msk [vmem:[#allocation3 + $0x48] sm:$0xf] %vm555, %v2645
      %2797 = vst.msk [vmem:[#allocation3 + $0x4c] sm:$0xf] %vm555, %v2655
      %2798 = vst.msk [vmem:[#allocation3 + $0x50] sm:$0xf] %vm555, %v2665
      %2799 = vst.msk [vmem:[#allocation3 + $0x54] sm:$0xf] %vm555, %v2675
      %2800 = vst.msk [vmem:[#allocation3 + $0x58] sm:$0xf] %vm555, %v2685
      %2801 = vst.msk [vmem:[#allocation3 + $0x5c] sm:$0xf] %vm555, %v2695
      %2802 = vst.msk [vmem:[#allocation3 + $0x60] sm:$0xf] %vm555, %v2705
      %2803 = vst.msk [vmem:[#allocation3 + $0x64] sm:$0xf] %vm555, %v2715
      %2804 = vst.msk [vmem:[#allocation3 + $0x68] sm:$0xf] %vm555, %v2725
      %2805 = vst.msk [vmem:[#allocation3 + $0x6c] sm:$0xf] %vm555, %v2735
      %2806 = vst.msk [vmem:[#allocation3 + $0x70] sm:$0xf] %vm555, %v2745
      %vm2807 = vcmask 254976
      %vm2808 = vmand %vm2807, %vm2465
      %v2809 = vld [vmem:[#allocation3 + $0x74] sm:$0x3]
      %v2810 = vsel %vm2808, %v2746, %v2809
      %2811 = vst [vmem:[#allocation3 + $0x74] sm:$0x3] %v2810
      %vm2839 = vcmask 1040384
      %vm2840 = vcmask 1044484
      %vm2841 = vmor %vm2839, %vm2840
      %v2842 = vrot.slane %v2437, 7
      %v2843 = vrot.slane %v2842, 4
      %v2844 = vrot.slane %v2438, 7
      %v2845 = vsel %vm2841, %v2843, %v2844
      %v2846 = vrot.slane %v2844, 4
      %v2847 = vrot.slane %v2439, 7
      %v2848 = vsel %vm2841, %v2846, %v2847
      %v2849 = vrot.slane %v2847, 4
      %v2850 = vrot.slane %v2440, 7
      %v2851 = vsel %vm2841, %v2849, %v2850
      %v2852 = vrot.slane %v2850, 4
      %v2853 = vrot.slane %v2441, 7
      %v2854 = vsel %vm2841, %v2852, %v2853
      %v2855 = vrot.slane %v2853, 4
      %v2856 = vrot.slane %v2442, 7
      %v2857 = vsel %vm2841, %v2855, %v2856
      %v2858 = vrot.slane %v2856, 4
      %v2859 = vrot.slane %v2443, 7
      %v2860 = vsel %vm2841, %v2858, %v2859
      %v2861 = vrot.slane %v2859, 4
      %v2862 = vrot.slane %v2444, 7
      %v2863 = vsel %vm2841, %v2861, %v2862
      %v2864 = vrot.slane %v2862, 4
      %v2865 = vrot.slane %v2445, 7
      %v2866 = vsel %vm2841, %v2864, %v2865
      %v2867 = vrot.slane %v2865, 4
      %v2868 = vrot.slane %v2446, 7
      %v2869 = vsel %vm2841, %v2867, %v2868
      %v2870 = vrot.slane %v2868, 4
      %v2871 = vrot.slane %v2447, 7
      %v2872 = vsel %vm2841, %v2870, %v2871
      %v2873 = vrot.slane %v2871, 4
      %v2874 = vrot.slane %v2448, 7
      %v2875 = vsel %vm2841, %v2873, %v2874
      %v2876 = vrot.slane %v2874, 4
      %v2877 = vrot.slane %v2449, 7
      %v2878 = vsel %vm2841, %v2876, %v2877
      %v2879 = vrot.slane %v2877, 4
      %v2880 = vrot.slane %v2450, 7
      %v2881 = vsel %vm2841, %v2879, %v2880
      %v2882 = vrot.slane %v2880, 4
      %v2883 = vrot.slane %v2451, 7
      %v2884 = vsel %vm2841, %v2882, %v2883
      %v2885 = vrot.slane %v2883, 4
      %v2886 = vrot.slane %v2452, 7
      %v2887 = vsel %vm2841, %v2885, %v2886
      %v2888 = vrot.slane %v2886, 4
      %v2889 = vrot.slane %v2453, 7
      %v2890 = vsel %vm2841, %v2888, %v2889
      %v2891 = vrot.slane %v2889, 4
      %v2892 = vrot.slane %v2454, 7
      %v2893 = vsel %vm2841, %v2891, %v2892
      %v2894 = vrot.slane %v2892, 4
      %v2895 = vrot.slane %v2455, 7
      %v2896 = vsel %vm2841, %v2894, %v2895
      %v2897 = vrot.slane %v2895, 4
      %v2898 = vrot.slane %v2456, 7
      %v2899 = vsel %vm2841, %v2897, %v2898
      %v2900 = vrot.slane %v2898, 4
      %v2901 = vrot.slane %v2457, 7
      %v2902 = vsel %vm2841, %v2900, %v2901
      %v2903 = vrot.slane %v2901, 4
      %v2904 = vrot.slane %v2458, 7
      %v2905 = vsel %vm2841, %v2903, %v2904
      %v2906 = vrot.slane %v2904, 4
      %v2907 = vrot.slane %v2459, 7
      %v2908 = vsel %vm2841, %v2906, %v2907
      %v2909 = vrot.slane %v2907, 4
      %v2910 = vrot.slane %v2460, 7
      %v2911 = vsel %vm2841, %v2909, %v2910
      %v2912 = vrot.slane %v2910, 4
      %v2913 = vrot.slane %v2461, 7
      %v2914 = vsel %vm2841, %v2912, %v2913
      %v2915 = vrot.slane %v2913, 4
      %v2916 = vrot.slane %v2462, 7
      %v2917 = vsel %vm2841, %v2915, %v2916
      %v2918 = vrot.slane %v2916, 4
      %v2919 = vrot.slane %v2463, 7
      %v2920 = vsel %vm2841, %v2918, %v2919
      %v2921 = vrot.slane %v2919, 4
      %2922 = vrot.lane.b32.xlu0 %v2842, 32
      %v2923 = vpop.permute.xlu0 %2922
      %2924 = vrot.lane.b32.xlu0 %v2845, 32
      %v2925 = vpop.permute.xlu0 %2924
      %2926 = vrot.lane.b32.xlu0 %v2848, 32
      %v2927 = vpop.permute.xlu0 %2926
      %2928 = vrot.lane.b32.xlu0 %v2851, 32
      %v2929 = vpop.permute.xlu0 %2928
      %2930 = vrot.lane.b32.xlu0 %v2854, 32
      %v2931 = vpop.permute.xlu0 %2930
      %2932 = vrot.lane.b32.xlu0 %v2857, 32
      %v2933 = vpop.permute.xlu0 %2932
      %2934 = vrot.lane.b32.xlu0 %v2860, 32
      %v2935 = vpop.permute.xlu0 %2934
      %2936 = vrot.lane.b32.xlu0 %v2863, 32
      %v2937 = vpop.permute.xlu0 %2936
      %2938 = vrot.lane.b32.xlu0 %v2866, 32
      %v2939 = vpop.permute.xlu0 %2938
      %2940 = vrot.lane.b32.xlu0 %v2869, 32
      %v2941 = vpop.permute.xlu0 %2940
      %2942 = vrot.lane.b32.xlu0 %v2872, 32
      %v2943 = vpop.permute.xlu0 %2942
      %2944 = vrot.lane.b32.xlu0 %v2875, 32
      %v2945 = vpop.permute.xlu0 %2944
      %2946 = vrot.lane.b32.xlu0 %v2878, 32
      %v2947 = vpop.permute.xlu0 %2946
      %2948 = vrot.lane.b32.xlu0 %v2881, 32
      %v2949 = vpop.permute.xlu0 %2948
      %2950 = vrot.lane.b32.xlu0 %v2884, 32
      %v2951 = vpop.permute.xlu0 %2950
      %2952 = vrot.lane.b32.xlu0 %v2887, 32
      %v2953 = vpop.permute.xlu0 %2952
      %2954 = vrot.lane.b32.xlu0 %v2890, 32
      %v2955 = vpop.permute.xlu0 %2954
      %2956 = vrot.lane.b32.xlu0 %v2893, 32
      %v2957 = vpop.permute.xlu0 %2956
      %2958 = vrot.lane.b32.xlu0 %v2896, 32
      %v2959 = vpop.permute.xlu0 %2958
      %2960 = vrot.lane.b32.xlu0 %v2899, 32
      %v2961 = vpop.permute.xlu0 %2960
      %2962 = vrot.lane.b32.xlu0 %v2902, 32
      %v2963 = vpop.permute.xlu0 %2962
      %2964 = vrot.lane.b32.xlu0 %v2905, 32
      %v2965 = vpop.permute.xlu0 %2964
      %2966 = vrot.lane.b32.xlu0 %v2908, 32
      %v2967 = vpop.permute.xlu0 %2966
      %2968 = vrot.lane.b32.xlu0 %v2911, 32
      %v2969 = vpop.permute.xlu0 %2968
      %2970 = vrot.lane.b32.xlu0 %v2914, 32
      %v2971 = vpop.permute.xlu0 %2970
      %2972 = vrot.lane.b32.xlu0 %v2917, 32
      %v2973 = vpop.permute.xlu0 %2972
      %2974 = vrot.lane.b32.xlu0 %v2920, 32
      %v2975 = vpop.permute.xlu0 %2974
      %2976 = vrot.lane.b32.xlu0 %v2921, 32
      %v2977 = vpop.permute.xlu0 %2976
      %vm3006 = vcmask 519425
      %3007 = vst.msk [vmem:[#allocation3 + $0x8] sm:$0xe] %vm3006, %v2923
      %3008 = vst.msk [vmem:[#allocation3 + $0xc] sm:$0xf] %vm1039, %v2925
      %3009 = vst.msk [vmem:[#allocation3 + $0x10] sm:$0xf] %vm1039, %v2927
      %3010 = vst.msk [vmem:[#allocation3 + $0x14] sm:$0xf] %vm1039, %v2929
      %3011 = vst.msk [vmem:[#allocation3 + $0x18] sm:$0xf] %vm1039, %v2931
      %3012 = vst.msk [vmem:[#allocation3 + $0x1c] sm:$0xf] %vm1039, %v2933
      %3013 = vst.msk [vmem:[#allocation3 + $0x20] sm:$0xf] %vm1039, %v2935
      %3014 = vst.msk [vmem:[#allocation3 + $0x24] sm:$0xf] %vm1039, %v2937
      %3015 = vst.msk [vmem:[#allocation3 + $0x28] sm:$0xf] %vm1039, %v2939
      %3016 = vst.msk [vmem:[#allocation3 + $0x2c] sm:$0xf] %vm1039, %v2941
      %3017 = vst.msk [vmem:[#allocation3 + $0x30] sm:$0xf] %vm1039, %v2943
      %3018 = vst.msk [vmem:[#allocation3 + $0x34] sm:$0xf] %vm1039, %v2945
      %3019 = vst.msk [vmem:[#allocation3 + $0x38] sm:$0xf] %vm1039, %v2947
      %3020 = vst.msk [vmem:[#allocation3 + $0x3c] sm:$0xf] %vm1039, %v2949
      %3021 = vst.msk [vmem:[#allocation3 + $0x40] sm:$0xf] %vm1039, %v2951
      %3022 = vst.msk [vmem:[#allocation3 + $0x44] sm:$0xf] %vm1039, %v2953
      %3023 = vst.msk [vmem:[#allocation3 + $0x48] sm:$0xf] %vm1039, %v2955
      %3024 = vst.msk [vmem:[#allocation3 + $0x4c] sm:$0xf] %vm1039, %v2957
      %3025 = vst.msk [vmem:[#allocation3 + $0x50] sm:$0xf] %vm1039, %v2959
      %3026 = vst.msk [vmem:[#allocation3 + $0x54] sm:$0xf] %vm1039, %v2961
      %3027 = vst.msk [vmem:[#allocation3 + $0x58] sm:$0xf] %vm1039, %v2963
      %3028 = vst.msk [vmem:[#allocation3 + $0x5c] sm:$0xf] %vm1039, %v2965
      %3029 = vst.msk [vmem:[#allocation3 + $0x60] sm:$0xf] %vm1039, %v2967
      %3030 = vst.msk [vmem:[#allocation3 + $0x64] sm:$0xf] %vm1039, %v2969
      %3031 = vst.msk [vmem:[#allocation3 + $0x68] sm:$0xf] %vm1039, %v2971
      %3032 = vst.msk [vmem:[#allocation3 + $0x6c] sm:$0xf] %vm1039, %v2973
      %3033 = vst.msk [vmem:[#allocation3 + $0x70] sm:$0xf] %vm1039, %v2975
      %vm3034 = vcmask 516352
      %3035 = vst.msk [vmem:[#allocation3 + $0x74] sm:$0x1] %vm3034, %v2977
      %vm3036 = vsmask.f32 256
      %vm3037 = vsmask.f32 4368
      %vm3038 = vmor %vm3036, %vm3037
      %v3039 = vrot.slane %v2479, 7
      %v3040 = vor.u32 %v3039, %v2482
      %v3041 = vrot.slane %v3039, 4
      %v3042 = vrot.slane %v2488, 7
      %v3043 = vor.u32 %v3042, %v2491
      %v3044 = vsel %vm3038, %v3041, %v3043
      %v3045 = vrot.slane %v3042, 4
      %v3046 = vrot.slane %v2498, 7
      %v3047 = vor.u32 %v3046, %v2501
      %v3048 = vsel %vm3038, %v3045, %v3047
      %v3049 = vrot.slane %v3046, 4
      %v3050 = vrot.slane %v2508, 7
      %v3051 = vor.u32 %v3050, %v2511
      %v3052 = vsel %vm3038, %v3049, %v3051
      %v3053 = vrot.slane %v3050, 4
      %v3054 = vrot.slane %v2518, 7
      %v3055 = vor.u32 %v3054, %v2521
      %v3056 = vsel %vm3038, %v3053, %v3055
      %v3057 = vrot.slane %v3054, 4
      %v3058 = vrot.slane %v2528, 7
      %v3059 = vor.u32 %v3058, %v2531
      %v3060 = vsel %vm3038, %v3057, %v3059
      %v3061 = vrot.slane %v3058, 4
      %v3062 = vrot.slane %v2538, 7
      %v3063 = vor.u32 %v3062, %v2541
      %v3064 = vsel %vm3038, %v3061, %v3063
      %v3065 = vrot.slane %v3062, 4
      %v3066 = vrot.slane %v2548, 7
      %v3067 = vor.u32 %v3066, %v2551
      %v3068 = vsel %vm3038, %v3065, %v3067
      %v3069 = vrot.slane %v3066, 4
      %v3070 = vrot.slane %v2558, 7
      %v3071 = vor.u32 %v3070, %v2561
      %v3072 = vsel %vm3038, %v3069, %v3071
      %v3073 = vrot.slane %v3070, 4
      %v3074 = vrot.slane %v2568, 7
      %v3075 = vor.u32 %v3074, %v2571
      %v3076 = vsel %vm3038, %v3073, %v3075
      %v3077 = vrot.slane %v3074, 4
      %v3078 = vrot.slane %v2578, 7
      %v3079 = vor.u32 %v3078, %v2581
      %v3080 = vsel %vm3038, %v3077, %v3079
      %v3081 = vrot.slane %v3078, 4
      %v3082 = vrot.slane %v2588, 7
      %v3083 = vor.u32 %v3082, %v2591
      %v3084 = vsel %vm3038, %v3081, %v3083
      %v3085 = vrot.slane %v3082, 4
      %v3086 = vrot.slane %v2598, 7
      %v3087 = vor.u32 %v3086, %v2601
      %v3088 = vsel %vm3038, %v3085, %v3087
      %v3089 = vrot.slane %v3086, 4
      %v3090 = vrot.slane %v2608, 7
      %v3091 = vor.u32 %v3090, %v2611
      %v3092 = vsel %vm3038, %v3089, %v3091
      %v3093 = vrot.slane %v3090, 4
      %v3094 = vrot.slane %v2618, 7
      %v3095 = vor.u32 %v3094, %v2621
      %v3096 = vsel %vm3038, %v3093, %v3095
      %v3097 = vrot.slane %v3094, 4
      %v3098 = vrot.slane %v2628, 7
      %v3099 = vor.u32 %v3098, %v2631
      %v3100 = vsel %vm3038, %v3097, %v3099
      %v3101 = vrot.slane %v3098, 4
      %v3102 = vrot.slane %v2638, 7
      %v3103 = vor.u32 %v3102, %v2641
      %v3104 = vsel %vm3038, %v3101, %v3103
      %v3105 = vrot.slane %v3102, 4
      %v3106 = vrot.slane %v2648, 7
      %v3107 = vor.u32 %v3106, %v2651
      %v3108 = vsel %vm3038, %v3105, %v3107
      %v3109 = vrot.slane %v3106, 4
      %v3110 = vrot.slane %v2658, 7
      %v3111 = vor.u32 %v3110, %v2661
      %v3112 = vsel %vm3038, %v3109, %v3111
      %v3113 = vrot.slane %v3110, 4
      %v3114 = vrot.slane %v2668, 7
      %v3115 = vor.u32 %v3114, %v2671
      %v3116 = vsel %vm3038, %v3113, %v3115
      %v3117 = vrot.slane %v3114, 4
      %v3118 = vrot.slane %v2678, 7
      %v3119 = vor.u32 %v3118, %v2681
      %v3120 = vsel %vm3038, %v3117, %v3119
      %v3121 = vrot.slane %v3118, 4
      %v3122 = vrot.slane %v2688, 7
      %v3123 = vor.u32 %v3122, %v2691
      %v3124 = vsel %vm3038, %v3121, %v3123
      %v3125 = vrot.slane %v3122, 4
      %v3126 = vrot.slane %v2698, 7
      %v3127 = vor.u32 %v3126, %v2701
      %v3128 = vsel %vm3038, %v3125, %v3127
      %v3129 = vrot.slane %v3126, 4
      %v3130 = vrot.slane %v2708, 7
      %v3131 = vor.u32 %v3130, %v2711
      %v3132 = vsel %vm3038, %v3129, %v3131
      %v3133 = vrot.slane %v3130, 4
      %v3134 = vrot.slane %v2718, 7
      %v3135 = vor.u32 %v3134, %v2721
      %v3136 = vsel %vm3038, %v3133, %v3135
      %v3137 = vrot.slane %v3134, 4
      %v3138 = vrot.slane %v2728, 7
      %v3139 = vor.u32 %v3138, %v2731
      %v3140 = vsel %vm3038, %v3137, %v3139
      %v3141 = vrot.slane %v3138, 4
      %v3142 = vrot.slane %v2738, 7
      %v3143 = vor.u32 %v3142, %v2741
      %v3144 = vsel %vm3038, %v3141, %v3143
      %v3145 = vrot.slane %v3142, 4
      %3146 = vrot.lane.b32.xlu0 %v3040, 64
      %v3147 = vpop.permute.xlu0 %3146
      %3148 = vrot.lane.b32.xlu0 %v3044, 64
      %v3149 = vpop.permute.xlu0 %3148
      %3150 = vrot.lane.b32.xlu0 %v3048, 64
      %v3151 = vpop.permute.xlu0 %3150
      %3152 = vrot.lane.b32.xlu0 %v3052, 64
      %v3153 = vpop.permute.xlu0 %3152
      %3154 = vrot.lane.b32.xlu0 %v3056, 64
      %v3155 = vpop.permute.xlu0 %3154
      %3156 = vrot.lane.b32.xlu0 %v3060, 64
      %v3157 = vpop.permute.xlu0 %3156
      %3158 = vrot.lane.b32.xlu0 %v3064, 64
      %v3159 = vpop.permute.xlu0 %3158
      %3160 = vrot.lane.b32.xlu0 %v3068, 64
      %v3161 = vpop.permute.xlu0 %3160
      %3162 = vrot.lane.b32.xlu0 %v3072, 64
      %v3163 = vpop.permute.xlu0 %3162
      %3164 = vrot.lane.b32.xlu0 %v3076, 64
      %v3165 = vpop.permute.xlu0 %3164
      %3166 = vrot.lane.b32.xlu0 %v3080, 64
      %v3167 = vpop.permute.xlu0 %3166
      %3168 = vrot.lane.b32.xlu0 %v3084, 64
      %v3169 = vpop.permute.xlu0 %3168
      %3170 = vrot.lane.b32.xlu0 %v3088, 64
      %v3171 = vpop.permute.xlu0 %3170
      %3172 = vrot.lane.b32.xlu0 %v3092, 64
      %v3173 = vpop.permute.xlu0 %3172
      %3174 = vrot.lane.b32.xlu0 %v3096, 64
      %v3175 = vpop.permute.xlu0 %3174
      %3176 = vrot.lane.b32.xlu0 %v3100, 64
      %v3177 = vpop.permute.xlu0 %3176
      %3178 = vrot.lane.b32.xlu0 %v3104, 64
      %v3179 = vpop.permute.xlu0 %3178
      %3180 = vrot.lane.b32.xlu0 %v3108, 64
      %v3181 = vpop.permute.xlu0 %3180
      %3182 = vrot.lane.b32.xlu0 %v3112, 64
      %v3183 = vpop.permute.xlu0 %3182
      %3184 = vrot.lane.b32.xlu0 %v3116, 64
      %v3185 = vpop.permute.xlu0 %3184
      %3186 = vrot.lane.b32.xlu0 %v3120, 64
      %v3187 = vpop.permute.xlu0 %3186
      %3188 = vrot.lane.b32.xlu0 %v3124, 64
      %v3189 = vpop.permute.xlu0 %3188
      %3190 = vrot.lane.b32.xlu0 %v3128, 64
      %v3191 = vpop.permute.xlu0 %3190
      %3192 = vrot.lane.b32.xlu0 %v3132, 64
      %v3193 = vpop.permute.xlu0 %3192
      %3194 = vrot.lane.b32.xlu0 %v3136, 64
      %v3195 = vpop.permute.xlu0 %3194
      %3196 = vrot.lane.b32.xlu0 %v3140, 64
      %v3197 = vpop.permute.xlu0 %3196
      %3198 = vrot.lane.b32.xlu0 %v3144, 64
      %v3199 = vpop.permute.xlu0 %3198
      %3200 = vrot.lane.b32.xlu0 %v3145, 64
      %v3201 = vpop.permute.xlu0 %3200
      %vm3230 = vcmask 781824
      %vm3231 = vmand %vm3230, %vm2471
      %v3232 = vld [vmem:[#allocation3 + $0x8] sm:$0xf]
      %v3233 = vsel %vm3231, %v3147, %v3232
      %3234 = vst [vmem:[#allocation3 + $0x8] sm:$0xf] %v3233
      %3235 = vst.msk [vmem:[#allocation3 + $0xc] sm:$0xf] %vm1331, %v3149
      %3236 = vst.msk [vmem:[#allocation3 + $0x10] sm:$0xf] %vm1331, %v3151
      %3237 = vst.msk [vmem:[#allocation3 + $0x14] sm:$0xf] %vm1331, %v3153
      %3238 = vst.msk [vmem:[#allocation3 + $0x18] sm:$0xf] %vm1331, %v3155
      %3239 = vst.msk [vmem:[#allocation3 + $0x1c] sm:$0xf] %vm1331, %v3157
      %3240 = vst.msk [vmem:[#allocation3 + $0x20] sm:$0xf] %vm1331, %v3159
      %3241 = vst.msk [vmem:[#allocation3 + $0x24] sm:$0xf] %vm1331, %v3161
      %3242 = vst.msk [vmem:[#allocation3 + $0x28] sm:$0xf] %vm1331, %v3163
      %3243 = vst.msk [vmem:[#allocation3 + $0x2c] sm:$0xf] %vm1331, %v3165
      %3244 = vst.msk [vmem:[#allocation3 + $0x30] sm:$0xf] %vm1331, %v3167
      %3245 = vst.msk [vmem:[#allocation3 + $0x34] sm:$0xf] %vm1331, %v3169
      %3246 = vst.msk [vmem:[#allocation3 + $0x38] sm:$0xf] %vm1331, %v3171
      %3247 = vst.msk [vmem:[#allocation3 + $0x3c] sm:$0xf] %vm1331, %v3173
      %3248 = vst.msk [vmem:[#allocation3 + $0x40] sm:$0xf] %vm1331, %v3175
      %3249 = vst.msk [vmem:[#allocation3 + $0x44] sm:$0xf] %vm1331, %v3177
      %3250 = vst.msk [vmem:[#allocation3 + $0x48] sm:$0xf] %vm1331, %v3179
      %3251 = vst.msk [vmem:[#allocation3 + $0x4c] sm:$0xf] %vm1331, %v3181
      %3252 = vst.msk [vmem:[#allocation3 + $0x50] sm:$0xf] %vm1331, %v3183
      %3253 = vst.msk [vmem:[#allocation3 + $0x54] sm:$0xf] %vm1331, %v3185
      %3254 = vst.msk [vmem:[#allocation3 + $0x58] sm:$0xf] %vm1331, %v3187
      %3255 = vst.msk [vmem:[#allocation3 + $0x5c] sm:$0xf] %vm1331, %v3189
      %3256 = vst.msk [vmem:[#allocation3 + $0x60] sm:$0xf] %vm1331, %v3191
      %3257 = vst.msk [vmem:[#allocation3 + $0x64] sm:$0xf] %vm1331, %v3193
      %3258 = vst.msk [vmem:[#allocation3 + $0x68] sm:$0xf] %vm1331, %v3195
      %3259 = vst.msk [vmem:[#allocation3 + $0x6c] sm:$0xf] %vm1331, %v3197
      %3260 = vst.msk [vmem:[#allocation3 + $0x70] sm:$0xf] %vm1331, %v3199
      %vm3261 = vmand %vm2470, %vm3036
      %v3262 = vld [vmem:[#allocation3 + $0x74] sm:$0x1]
      %v3263 = vsel %vm3261, %v3201, %v3262
      %3264 = vst [vmem:[#allocation3 + $0x74] sm:$0x1] %v3263
      %v3265 = vld [vmem:[#allocation3 + $0x10] sm:$0xc]
      %v3266 = vld [vmem:[#allocation3 + $0x14] sm:$0xf]
      %v3267 = vld [vmem:[#allocation3 + $0x18] sm:$0xf]
      %v3268 = vld [vmem:[#allocation3 + $0x1c] sm:$0xf]
      %v3269 = vld [vmem:[#allocation3 + $0x20] sm:$0xf]
      %v3270 = vld [vmem:[#allocation3 + $0x24] sm:$0xf]
      %v3271 = vld [vmem:[#allocation3 + $0x28] sm:$0xf]
      %v3272 = vld [vmem:[#allocation3 + $0x2c] sm:$0xf]
      %v3273 = vld [vmem:[#allocation3 + $0x30] sm:$0xf]
      %v3274 = vld [vmem:[#allocation3 + $0x34] sm:$0xf]
      %v3275 = vld [vmem:[#allocation3 + $0x38] sm:$0xf]
      %v3276 = vld [vmem:[#allocation3 + $0x3c] sm:$0xf]
      %v3277 = vld [vmem:[#allocation3 + $0x40] sm:$0xf]
      %v3278 = vld [vmem:[#allocation3 + $0x44] sm:$0xf]
      %v3279 = vld [vmem:[#allocation3 + $0x48] sm:$0xf]
      %v3280 = vld [vmem:[#allocation3 + $0x4c] sm:$0xf]
      %v3281 = vld [vmem:[#allocation3 + $0x50] sm:$0xf]
      %v3282 = vld [vmem:[#allocation3 + $0x54] sm:$0xf]
      %v3283 = vld [vmem:[#allocation3 + $0x58] sm:$0x3]
      %v3284 = vld [vmem:[%s11] sm:$0xf]
      %v3285 = vld [vmem:[%s11 + $0x4] sm:$0xf]
      %v3286 = vld [vmem:[%s11 + $0x8] sm:$0xf]
      %v3287 = vld [vmem:[%s11 + $0xc] sm:$0xf]
      %v3288 = vld [vmem:[%s11 + $0x10] sm:$0xf]
      %v3289 = vld [vmem:[%s11 + $0x14] sm:$0xf]
      %v3290 = vld [vmem:[%s11 + $0x18] sm:$0xf]
      %v3291 = vld [vmem:[%s11 + $0x1c] sm:$0xf]
      %v3292 = vld [vmem:[%s11 + $0x20] sm:$0xf]
      %v3293 = vld [vmem:[%s11 + $0x24] sm:$0xf]
      %v3294 = vld [vmem:[%s11 + $0x28] sm:$0xf]
      %v3295 = vld [vmem:[%s11 + $0x2c] sm:$0xf]
      %v3296 = vld [vmem:[#allocation3 + $0x18] sm:$0x8]
      %v3297 = vld [vmem:[#allocation3 + $0x58] sm:$0xf]
      %v3298 = vld [vmem:[#allocation3 + $0x5c] sm:$0xf]
      %v3299 = vld [vmem:[#allocation3 + $0x60] sm:$0x7]
      %s3300 = scalar_lea.vmem %s11, 48
      %v3301 = vld [vmem:[%s3300] sm:$0xf]
      %v3302 = vld [vmem:[%s3300 + $0x4] sm:$0xf]
      %v3303 = vld [vmem:[%s3300 + $0x8] sm:$0xf]
      %v3304 = vld [vmem:[%s3300 + $0xc] sm:$0xf]
      %v3305 = vld [vmem:[%s3300 + $0x10] sm:$0xf]
      %v3306 = vld [vmem:[%s3300 + $0x14] sm:$0xf]
      %v3307 = vld [vmem:[%s3300 + $0x18] sm:$0xf]
      %v3308 = vld [vmem:[%s3300 + $0x1c] sm:$0xf]
      %v3309 = vld [vmem:[%s3300 + $0x20] sm:$0xf]
      %v3310 = vld [vmem:[%s3300 + $0x24] sm:$0xf]
      %v3311 = vld [vmem:[%s3300 + $0x28] sm:$0xf]
      %v3312 = vld [vmem:[%s3300 + $0x2c] sm:$0xf]
      %v3332 = vunpack.c.l.b16 %v3296
      %v3333 = vunpack.c.l.b16 %v3268
      %v3334 = vunpack.c.l.b16 %v3269
      %v3335 = vunpack.c.l.b16 %v3270
      %v3336 = vunpack.c.l.b16 %v3271
      %v3337 = vunpack.c.l.b16 %v3272
      %v3338 = vunpack.c.l.b16 %v3273
      %v3339 = vunpack.c.l.b16 %v3274
      %v3340 = vunpack.c.l.b16 %v3275
      %v3341 = vunpack.c.l.b16 %v3276
      %v3342 = vunpack.c.l.b16 %v3277
      %v3343 = vunpack.c.l.b16 %v3278
      %v3344 = vunpack.c.l.b16 %v3279
      %v3345 = vunpack.c.l.b16 %v3280
      %v3346 = vunpack.c.l.b16 %v3281
      %v3347 = vunpack.c.l.b16 %v3282
      %v3348 = vunpack.c.l.b16 %v3297
      %v3349 = vunpack.c.l.b16 %v3298
      %v3350 = vunpack.c.l.b16 %v3299
      %v3351 = vpack.c.b16 %v3333, %v3332
      %v3352 = vpack.c.b16 %v3335, %v3334
      %v3353 = vpack.c.b16 %v3337, %v3336
      %v3354 = vpack.c.b16 %v3339, %v3338
      %v3355 = vpack.c.b16 %v3341, %v3340
      %v3356 = vpack.c.b16 %v3343, %v3342
      %v3357 = vpack.c.b16 %v3345, %v3344
      %v3358 = vpack.c.b16 %v3347, %v3346
      %v3359 = vpack.c.b16 %v3349, %v3348
      %v3360 = vpack.c.b16 %v3350, %v3350
      %vm3361 = vcmask 1044480
      %v3362 = vrot.slane %v3351, 3
      %v3363 = vrot.slane %v3352, 3
      %v3364 = vsel %vm3361, %v3362, %v3363
      %v3365 = vrot.slane %v3353, 3
      %v3366 = vsel %vm3361, %v3363, %v3365
      %v3367 = vrot.slane %v3354, 3
      %v3368 = vsel %vm3361, %v3365, %v3367
      %v3369 = vrot.slane %v3355, 3
      %v3370 = vsel %vm3361, %v3367, %v3369
      %v3371 = vrot.slane %v3356, 3
      %v3372 = vsel %vm3361, %v3369, %v3371
      %v3373 = vrot.slane %v3357, 3
      %v3374 = vsel %vm3361, %v3371, %v3373
      %v3375 = vrot.slane %v3358, 3
      %v3376 = vsel %vm3361, %v3373, %v3375
      %v3377 = vrot.slane %v3359, 3
      %v3378 = vsel %vm3361, %v3375, %v3377
      %v3379 = vrot.slane %v3360, 3
      %v3380 = vsel %vm3361, %v3377, %v3379
      %v3393 = vunpack.c.l.b16 %v3301
      %v3394 = vunpack.c.l.b16 %v3302
      %v3395 = vunpack.c.l.b16 %v3303
      %v3396 = vunpack.c.l.b16 %v3304
      %v3397 = vunpack.c.l.b16 %v3305
      %v3398 = vunpack.c.l.b16 %v3306
      %v3399 = vunpack.c.l.b16 %v3307
      %v3400 = vunpack.c.l.b16 %v3308
      %v3401 = vunpack.c.l.b16 %v3309
      %v3402 = vunpack.c.l.b16 %v3310
      %v3403 = vunpack.c.l.b16 %v3311
      %v3404 = vunpack.c.l.b16 %v3312
      %v3405 = vpack.c.b16 %v3394, %v3393
      %v3406 = vpack.c.b16 %v3396, %v3395
      %v3407 = vpack.c.b16 %v3398, %v3397
      %v3408 = vpack.c.b16 %v3400, %v3399
      %v3409 = vpack.c.b16 %v3402, %v3401
      %v3410 = vpack.c.b16 %v3404, %v3403
      %v3418 = vsel %vm1582, %v3364, 0
      %v3421 = vsel %vm1582, %v3366, 0
      %v3424 = vsel %vm1582, %v3368, 0
      %v3427 = vsel %vm1582, %v3370, 0
      %v3430 = vsel %vm1582, %v3372, 0
      %v3433 = vsel %vm1582, %v3374, 0
      %v3436 = vsel %vm1582, %v3376, 0
      %v3439 = vsel %vm1582, %v3378, 0
      %v3442 = vsel %vm1582, %v3380, 0
      %3444 = vmatpush.bf16.msra.mxu0 0
      %3445 = vmatpush.bf16.msra.mxu0 0
      %3446 = vmatpush.bf16.msra.mxu0 %v3410
      %3447 = vmatpush.bf16.msra.mxu0 %v3409
      %3448 = vmatpush.bf16.msra.mxu0 %v3408
      %3449 = vmatpush.bf16.msra.mxu0 %v3407
      %3450 = vmatpush.bf16.msra.mxu0 %v3406
      %3451 = vmatpush.bf16.msra.mxu0 %v3405
      %3452 = vmatmul.bf16.gmra.mxu0 %v3418
      %v3453 = vpop.f32.mrf.mxu0
      %v3454 = vadd.f32 0.0, %v3453
      %v3455 = vpop.f32.mrf.mxu0
      %v3456 = vadd.f32 0.0, %v3455
      %3457 = vmatmul.bf16.gmra.mxu0 %v3421
      %v3458 = vpop.f32.mrf.mxu0
      %v3459 = vadd.f32 0.0, %v3458
      %v3460 = vpop.f32.mrf.mxu0
      %v3461 = vadd.f32 0.0, %v3460
      %3462 = vmatmul.bf16.gmra.mxu0 %v3424
      %v3463 = vpop.f32.mrf.mxu0
      %v3464 = vadd.f32 0.0, %v3463
      %v3465 = vpop.f32.mrf.mxu0
      %v3466 = vadd.f32 0.0, %v3465
      %3467 = vmatmul.bf16.gmra.mxu0 %v3427
      %v3468 = vpop.f32.mrf.mxu0
      %v3469 = vadd.f32 0.0, %v3468
      %v3470 = vpop.f32.mrf.mxu0
      %v3471 = vadd.f32 0.0, %v3470
      %3472 = vmatmul.bf16.gmra.mxu0 %v3430
      %v3473 = vpop.f32.mrf.mxu0
      %v3474 = vadd.f32 0.0, %v3473
      %v3475 = vpop.f32.mrf.mxu0
      %v3476 = vadd.f32 0.0, %v3475
      %3477 = vmatmul.bf16.gmra.mxu0 %v3433
      %v3478 = vpop.f32.mrf.mxu0
      %v3479 = vadd.f32 0.0, %v3478
      %v3480 = vpop.f32.mrf.mxu0
      %v3481 = vadd.f32 0.0, %v3480
      %3482 = vmatmul.bf16.gmra.mxu0 %v3436
      %v3483 = vpop.f32.mrf.mxu0
      %v3484 = vadd.f32 0.0, %v3483
      %v3485 = vpop.f32.mrf.mxu0
      %v3486 = vadd.f32 0.0, %v3485
      %3487 = vmatmul.bf16.gmra.mxu0 %v3439
      %v3488 = vpop.f32.mrf.mxu0
      %v3489 = vadd.f32 0.0, %v3488
      %v3490 = vpop.f32.mrf.mxu0
      %v3491 = vadd.f32 0.0, %v3490
      %3492 = vmatmul.bf16.gmra.mxu0 %v3442
      %v3493 = vpop.f32.mrf.mxu0
      %v3494 = vadd.f32 0.0, %v3493
      %v3495 = vpop.f32.mrf.mxu0
      %v3496 = vadd.f32 0.0, %v3495
      %3497 = vdwg.mxu0
      %v3502 = vunpack.c.l.b16 %v3265
      %v3503 = vunpack.c.l.b16 %v3266
      %v3504 = vunpack.c.l.b16 %v3267
      %v3505 = vunpack.c.l.b16 %v3283
      %v3506 = vpack.c.b16 %v3503, %v3502
      %v3507 = vpack.c.b16 %v3333, %v3504
      %v3508 = vpack.c.b16 %v3505, %v3505
      %v3509 = vrot.slane %v3506, 2
      %v3510 = vrot.slane %v3507, 2
      %v3511 = vsel %vm1979, %v3509, %v3510
      %v3512 = vrot.slane %v3352, 2
      %v3513 = vsel %vm1979, %v3510, %v3512
      %v3514 = vrot.slane %v3353, 2
      %v3515 = vsel %vm1979, %v3512, %v3514
      %v3516 = vrot.slane %v3354, 2
      %v3517 = vsel %vm1979, %v3514, %v3516
      %v3518 = vrot.slane %v3355, 2
      %v3519 = vsel %vm1979, %v3516, %v3518
      %v3520 = vrot.slane %v3356, 2
      %v3521 = vsel %vm1979, %v3518, %v3520
      %v3522 = vrot.slane %v3357, 2
      %v3523 = vsel %vm1979, %v3520, %v3522
      %v3524 = vrot.slane %v3358, 2
      %v3525 = vsel %vm1979, %v3522, %v3524
      %v3526 = vrot.slane %v3508, 2
      %v3527 = vsel %vm1979, %v3524, %v3526
      %v3540 = vunpack.c.l.b16 %v3284
      %v3541 = vunpack.c.l.b16 %v3285
      %v3542 = vunpack.c.l.b16 %v3286
      %v3543 = vunpack.c.l.b16 %v3287
      %v3544 = vunpack.c.l.b16 %v3288
      %v3545 = vunpack.c.l.b16 %v3289
      %v3546 = vunpack.c.l.b16 %v3290
      %v3547 = vunpack.c.l.b16 %v3291
      %v3548 = vunpack.c.l.b16 %v3292
      %v3549 = vunpack.c.l.b16 %v3293
      %v3550 = vunpack.c.l.b16 %v3294
      %v3551 = vunpack.c.l.b16 %v3295
      %v3552 = vpack.c.b16 %v3541, %v3540
      %v3553 = vpack.c.b16 %v3543, %v3542
      %v3554 = vpack.c.b16 %v3545, %v3544
      %v3555 = vpack.c.b16 %v3547, %v3546
      %v3556 = vpack.c.b16 %v3549, %v3548
      %v3557 = vpack.c.b16 %v3551, %v3550
      %v3565 = vsel %vm1582, %v3511, 0
      %v3568 = vsel %vm1582, %v3513, 0
      %v3571 = vsel %vm1582, %v3515, 0
      %v3574 = vsel %vm1582, %v3517, 0
      %v3577 = vsel %vm1582, %v3519, 0
      %v3580 = vsel %vm1582, %v3521, 0
      %v3583 = vsel %vm1582, %v3523, 0
      %v3586 = vsel %vm1582, %v3525, 0
      %v3589 = vsel %vm1582, %v3527, 0
      %3591 = vmatpush.bf16.msra.mxu0 0
      %3592 = vmatpush.bf16.msra.mxu0 0
      %3593 = vmatpush.bf16.msra.mxu0 %v3557
      %3594 = vmatpush.bf16.msra.mxu0 %v3556
      %3595 = vmatpush.bf16.msra.mxu0 %v3555
      %3596 = vmatpush.bf16.msra.mxu0 %v3554
      %3597 = vmatpush.bf16.msra.mxu0 %v3553
      %3598 = vmatpush.bf16.msra.mxu0 %v3552
      %3599 = vmatmul.bf16.gmra.mxu0 %v3565
      %v3600 = vpop.f32.mrf.mxu0
      %v3601 = vadd.f32 %v3454, %v3600
      %v3602 = vpop.f32.mrf.mxu0
      %v3603 = vadd.f32 %v3456, %v3602
      %3604 = vmatmul.bf16.gmra.mxu0 %v3568
      %v3605 = vpop.f32.mrf.mxu0
      %v3606 = vadd.f32 %v3459, %v3605
      %v3607 = vpop.f32.mrf.mxu0
      %v3608 = vadd.f32 %v3461, %v3607
      %3609 = vmatmul.bf16.gmra.mxu0 %v3571
      %v3610 = vpop.f32.mrf.mxu0
      %v3611 = vadd.f32 %v3464, %v3610
      %v3612 = vpop.f32.mrf.mxu0
      %v3613 = vadd.f32 %v3466, %v3612
      %3614 = vmatmul.bf16.gmra.mxu0 %v3574
      %v3615 = vpop.f32.mrf.mxu0
      %v3616 = vadd.f32 %v3469, %v3615
      %v3617 = vpop.f32.mrf.mxu0
      %v3618 = vadd.f32 %v3471, %v3617
      %3619 = vmatmul.bf16.gmra.mxu0 %v3577
      %v3620 = vpop.f32.mrf.mxu0
      %v3621 = vadd.f32 %v3474, %v3620
      %v3622 = vpop.f32.mrf.mxu0
      %v3623 = vadd.f32 %v3476, %v3622
      %3624 = vmatmul.bf16.gmra.mxu0 %v3580
      %v3625 = vpop.f32.mrf.mxu0
      %v3626 = vadd.f32 %v3479, %v3625
      %v3627 = vpop.f32.mrf.mxu0
      %v3628 = vadd.f32 %v3481, %v3627
      %3629 = vmatmul.bf16.gmra.mxu0 %v3583
      %v3630 = vpop.f32.mrf.mxu0
      %v3631 = vadd.f32 %v3484, %v3630
      %v3632 = vpop.f32.mrf.mxu0
      %v3633 = vadd.f32 %v3486, %v3632
      %3634 = vmatmul.bf16.gmra.mxu0 %v3586
      %v3635 = vpop.f32.mrf.mxu0
      %v3636 = vadd.f32 %v3489, %v3635
      %v3637 = vpop.f32.mrf.mxu0
      %v3638 = vadd.f32 %v3491, %v3637
      %3639 = vmatmul.bf16.gmra.mxu0 %v3589
      %v3640 = vpop.f32.mrf.mxu0
      %v3641 = vadd.f32 %v3494, %v3640
      %v3642 = vpop.f32.mrf.mxu0
      %v3643 = vadd.f32 %v3496, %v3642
      %3644 = vdwg.mxu0
      %v3645 = vld [vmem:[#allocation3 + $0x24] sm:$0xf]
      %v3646 = vld [vmem:[#allocation3 + $0x28] sm:$0xf]
      %v3647 = vld [vmem:[#allocation3 + $0x2c] sm:$0xf]
      %v3648 = vld [vmem:[#allocation3 + $0x30] sm:$0xf]
      %v3649 = vld [vmem:[#allocation3 + $0x34] sm:$0xf]
      %v3650 = vld [vmem:[#allocation3 + $0x38] sm:$0xf]
      %v3651 = vld [vmem:[#allocation3 + $0x3c] sm:$0xf]
      %v3652 = vld [vmem:[#allocation3 + $0x40] sm:$0xf]
      %v3653 = vld [vmem:[#allocation3 + $0x44] sm:$0xf]
      %v3654 = vld [vmem:[#allocation3 + $0x48] sm:$0xf]
      %v3655 = vld [vmem:[#allocation3 + $0x4c] sm:$0xf]
      %v3656 = vld [vmem:[#allocation3 + $0x50] sm:$0xf]
      %v3657 = vld [vmem:[#allocation3 + $0x54] sm:$0xf]
      %v3658 = vld [vmem:[#allocation3 + $0x58] sm:$0xf]
      %v3659 = vld [vmem:[#allocation3 + $0x5c] sm:$0xf]
      %v3660 = vld [vmem:[#allocation3 + $0x60] sm:$0xf]
      %v3661 = vld [vmem:[#allocation3 + $0x64] sm:$0xf]
      %v3662 = vld [vmem:[#allocation3 + $0x68] sm:$0xf]
      %s3663 = scalar_lea.vmem %s11, 96
      %v3664 = vld [vmem:[%s3663] sm:$0xf]
      %v3665 = vld [vmem:[%s3663 + $0x4] sm:$0xf]
      %v3666 = vld [vmem:[%s3663 + $0x8] sm:$0xf]
      %v3667 = vld [vmem:[%s3663 + $0xc] sm:$0xf]
      %v3668 = vld [vmem:[%s3663 + $0x10] sm:$0xf]
      %v3669 = vld [vmem:[%s3663 + $0x14] sm:$0xf]
      %v3670 = vld [vmem:[%s3663 + $0x18] sm:$0xf]
      %v3671 = vld [vmem:[%s3663 + $0x1c] sm:$0xf]
      %v3672 = vld [vmem:[%s3663 + $0x20] sm:$0xf]
      %v3673 = vld [vmem:[%s3663 + $0x24] sm:$0xf]
      %v3674 = vld [vmem:[%s3663 + $0x28] sm:$0xf]
      %v3675 = vld [vmem:[%s3663 + $0x2c] sm:$0xf]
      %v3694 = vunpack.c.l.b16 %v3645
      %v3695 = vunpack.c.l.b16 %v3646
      %v3696 = vunpack.c.l.b16 %v3647
      %v3697 = vunpack.c.l.b16 %v3648
      %v3698 = vunpack.c.l.b16 %v3649
      %v3699 = vunpack.c.l.b16 %v3650
      %v3700 = vunpack.c.l.b16 %v3651
      %v3701 = vunpack.c.l.b16 %v3652
      %v3702 = vunpack.c.l.b16 %v3653
      %v3703 = vunpack.c.l.b16 %v3654
      %v3704 = vunpack.c.l.b16 %v3655
      %v3705 = vunpack.c.l.b16 %v3656
      %v3706 = vunpack.c.l.b16 %v3657
      %v3707 = vunpack.c.l.b16 %v3658
      %v3708 = vunpack.c.l.b16 %v3659
      %v3709 = vunpack.c.l.b16 %v3660
      %v3710 = vunpack.c.l.b16 %v3661
      %v3711 = vunpack.c.l.b16 %v3662
      %v3712 = vpack.c.b16 %v3695, %v3694
      %v3713 = vpack.c.b16 %v3697, %v3696
      %v3714 = vpack.c.b16 %v3699, %v3698
      %v3715 = vpack.c.b16 %v3701, %v3700
      %v3716 = vpack.c.b16 %v3703, %v3702
      %v3717 = vpack.c.b16 %v3705, %v3704
      %v3718 = vpack.c.b16 %v3707, %v3706
      %v3719 = vpack.c.b16 %v3709, %v3708
      %v3720 = vpack.c.b16 %v3711, %v3710
      %v3733 = vunpack.c.l.b16 %v3664
      %v3734 = vunpack.c.l.b16 %v3665
      %v3735 = vunpack.c.l.b16 %v3666
      %v3736 = vunpack.c.l.b16 %v3667
      %v3737 = vunpack.c.l.b16 %v3668
      %v3738 = vunpack.c.l.b16 %v3669
      %v3739 = vunpack.c.l.b16 %v3670
      %v3740 = vunpack.c.l.b16 %v3671
      %v3741 = vunpack.c.l.b16 %v3672
      %v3742 = vunpack.c.l.b16 %v3673
      %v3743 = vunpack.c.l.b16 %v3674
      %v3744 = vunpack.c.l.b16 %v3675
      %v3745 = vpack.c.b16 %v3734, %v3733
      %v3746 = vpack.c.b16 %v3736, %v3735
      %v3747 = vpack.c.b16 %v3738, %v3737
      %v3748 = vpack.c.b16 %v3740, %v3739
      %v3749 = vpack.c.b16 %v3742, %v3741
      %v3750 = vpack.c.b16 %v3744, %v3743
      %v3758 = vsel %vm1582, %v3712, 0
      %v3761 = vsel %vm1582, %v3713, 0
      %v3764 = vsel %vm1582, %v3714, 0
      %v3767 = vsel %vm1582, %v3715, 0
      %v3770 = vsel %vm1582, %v3716, 0
      %v3773 = vsel %vm1582, %v3717, 0
      %v3776 = vsel %vm1582, %v3718, 0
      %v3779 = vsel %vm1582, %v3719, 0
      %v3782 = vsel %vm1582, %v3720, 0
      %3784 = vmatpush.bf16.msra.mxu0 0
      %3785 = vmatpush.bf16.msra.mxu0 0
      %3786 = vmatpush.bf16.msra.mxu0 %v3750
      %3787 = vmatpush.bf16.msra.mxu0 %v3749
      %3788 = vmatpush.bf16.msra.mxu0 %v3748
      %3789 = vmatpush.bf16.msra.mxu0 %v3747
      %3790 = vmatpush.bf16.msra.mxu0 %v3746
      %3791 = vmatpush.bf16.msra.mxu0 %v3745
      %3792 = vmatmul.bf16.gmra.mxu0 %v3758
      %v3793 = vpop.f32.mrf.mxu0
      %v3794 = vadd.f32 0.0, %v3793
      %v3795 = vpop.f32.mrf.mxu0
      %v3796 = vadd.f32 0.0, %v3795
      %3797 = vmatmul.bf16.gmra.mxu0 %v3761
      %v3798 = vpop.f32.mrf.mxu0
      %v3799 = vadd.f32 0.0, %v3798
      %v3800 = vpop.f32.mrf.mxu0
      %v3801 = vadd.f32 0.0, %v3800
      %3802 = vmatmul.bf16.gmra.mxu0 %v3764
      %v3803 = vpop.f32.mrf.mxu0
      %v3804 = vadd.f32 0.0, %v3803
      %v3805 = vpop.f32.mrf.mxu0
      %v3806 = vadd.f32 0.0, %v3805
      %3807 = vmatmul.bf16.gmra.mxu0 %v3767
      %v3808 = vpop.f32.mrf.mxu0
      %v3809 = vadd.f32 0.0, %v3808
      %v3810 = vpop.f32.mrf.mxu0
      %v3811 = vadd.f32 0.0, %v3810
      %3812 = vmatmul.bf16.gmra.mxu0 %v3770
      %v3813 = vpop.f32.mrf.mxu0
      %v3814 = vadd.f32 0.0, %v3813
      %v3815 = vpop.f32.mrf.mxu0
      %v3816 = vadd.f32 0.0, %v3815
      %3817 = vmatmul.bf16.gmra.mxu0 %v3773
      %v3818 = vpop.f32.mrf.mxu0
      %v3819 = vadd.f32 0.0, %v3818
      %v3820 = vpop.f32.mrf.mxu0
      %v3821 = vadd.f32 0.0, %v3820
      %3822 = vmatmul.bf16.gmra.mxu0 %v3776
      %v3823 = vpop.f32.mrf.mxu0
      %v3824 = vadd.f32 0.0, %v3823
      %v3825 = vpop.f32.mrf.mxu0
      %v3826 = vadd.f32 0.0, %v3825
      %3827 = vmatmul.bf16.gmra.mxu0 %v3779
      %v3828 = vpop.f32.mrf.mxu0
      %v3829 = vadd.f32 0.0, %v3828
      %v3830 = vpop.f32.mrf.mxu0
      %v3831 = vadd.f32 0.0, %v3830
      %3832 = vmatmul.bf16.gmra.mxu0 %v3782
      %v3833 = vpop.f32.mrf.mxu0
      %v3834 = vadd.f32 0.0, %v3833
      %v3835 = vpop.f32.mrf.mxu0
      %v3836 = vadd.f32 0.0, %v3835
      %3837 = vdwg.mxu0
      %v3838 = vadd.f32 %v3601, %v3794
      %v3839 = vadd.f32 %v3603, %v3796
      %v3840 = vadd.f32 %v3606, %v3799
      %v3841 = vadd.f32 %v3608, %v3801
      %v3842 = vadd.f32 %v3611, %v3804
      %v3843 = vadd.f32 %v3613, %v3806
      %v3844 = vadd.f32 %v3616, %v3809
      %v3845 = vadd.f32 %v3618, %v3811
      %v3846 = vadd.f32 %v3621, %v3814
      %v3847 = vadd.f32 %v3623, %v3816
      %v3848 = vadd.f32 %v3626, %v3819
      %v3849 = vadd.f32 %v3628, %v3821
      %v3850 = vadd.f32 %v3631, %v3824
      %v3851 = vadd.f32 %v3633, %v3826
      %v3852 = vadd.f32 %v3636, %v3829
      %v3853 = vadd.f32 %v3638, %v3831
      %v3854 = vadd.f32 %v3641, %v3834
      %v3855 = vadd.f32 %v3643, %v3836
      %v3856 = vld [vmem:[%s12] sm:$0x1]
      %v3858 = vperm.slane %v3856, 0
      %v3860 = vadd.f32 %v3838, %v3858
      %v3861 = vadd.f32 %v3839, %v3858
      %v3862 = vadd.f32 %v3840, %v3858
      %v3863 = vadd.f32 %v3841, %v3858
      %v3864 = vadd.f32 %v3842, %v3858
      %v3865 = vadd.f32 %v3843, %v3858
      %v3866 = vadd.f32 %v3844, %v3858
      %v3867 = vadd.f32 %v3845, %v3858
      %v3868 = vadd.f32 %v3846, %v3858
      %v3869 = vadd.f32 %v3847, %v3858
      %v3870 = vadd.f32 %v3848, %v3858
      %v3871 = vadd.f32 %v3849, %v3858
      %v3872 = vadd.f32 %v3850, %v3858
      %v3873 = vadd.f32 %v3851, %v3858
      %v3874 = vadd.f32 %v3852, %v3858
      %v3875 = vadd.f32 %v3853, %v3858
      %v3876 = vadd.f32 %v3854, %v3858
      %v3877 = vadd.f32 %v3855, %v3858
      %v3878 = vld [vmem:[%s509] sm:$0xff]
      %v3879 = vld [vmem:[%s509 + $0x8] sm:$0xff]
      %v3880 = vld [vmem:[%s509 + $0x10] sm:$0xff]
      %v3881 = vld [vmem:[%s509 + $0x18] sm:$0xff]
      %v3882 = vld [vmem:[%s509 + $0x20] sm:$0xff]
      %v3883 = vld [vmem:[%s509 + $0x28] sm:$0xff]
      %v3884 = vld [vmem:[%s509 + $0x30] sm:$0xff]
      %v3885 = vld [vmem:[%s509 + $0x38] sm:$0xff]
      %v3886 = vld [vmem:[%s509 + $0x40] sm:$0xff]
      %v3887 = vld [vmem:[%s509 + $0x48] sm:$0xff]
      %v3888 = vld [vmem:[%s509 + $0x50] sm:$0xff]
      %v3889 = vld [vmem:[%s509 + $0x58] sm:$0xff]
      %v3890 = vld [vmem:[%s509 + $0x60] sm:$0xff]
      %v3891 = vld [vmem:[%s509 + $0x68] sm:$0xff]
      %v3892 = vld [vmem:[%s509 + $0x70] sm:$0xff]
      %v3893 = vld [vmem:[%s509 + $0x78] sm:$0xff]
      %v3894 = vld [vmem:[%s509 + $0x80] sm:$0xff]
      %v3895 = vld [vmem:[%s509 + $0x88] sm:$0xff]
      %v3896 = vadd.f32 %v3860, 0.0
      %v3897 = vadd.f32 %v3861, 0.0
      %v3898 = vadd.f32 %v3862, 0.0
      %v3899 = vadd.f32 %v3863, 0.0
      %v3900 = vadd.f32 %v3864, 0.0
      %v3901 = vadd.f32 %v3865, 0.0
      %v3902 = vadd.f32 %v3866, 0.0
      %v3903 = vadd.f32 %v3867, 0.0
      %v3904 = vadd.f32 %v3868, 0.0
      %v3905 = vadd.f32 %v3869, 0.0
      %v3906 = vadd.f32 %v3870, 0.0
      %v3907 = vadd.f32 %v3871, 0.0
      %v3908 = vadd.f32 %v3872, 0.0
      %v3909 = vadd.f32 %v3873, 0.0
      %v3910 = vadd.f32 %v3874, 0.0
      %v3911 = vadd.f32 %v3875, 0.0
      %v3912 = vadd.f32 %v3876, 0.0
      %v3913 = vadd.f32 %v3877, 0.0
      %v3914 = vmax.f32 %v3896, -13.815511
      %v3915 = vmax.f32 %v3897, -13.815511
      %v3916 = vmax.f32 %v3898, -13.815511
      %v3917 = vmax.f32 %v3899, -13.815511
      %v3918 = vmax.f32 %v3900, -13.815511
      %v3919 = vmax.f32 %v3901, -13.815511
      %v3920 = vmax.f32 %v3902, -13.815511
      %v3921 = vmax.f32 %v3903, -13.815511
      %v3922 = vmax.f32 %v3904, -13.815511
      %v3923 = vmax.f32 %v3905, -13.815511
      %v3924 = vmax.f32 %v3906, -13.815511
      %v3925 = vmax.f32 %v3907, -13.815511
      %v3926 = vmax.f32 %v3908, -13.815511
      %v3927 = vmax.f32 %v3909, -13.815511
      %v3928 = vmax.f32 %v3910, -13.815511
      %v3929 = vmax.f32 %v3911, -13.815511
      %v3930 = vmax.f32 %v3912, -13.815511
      %v3931 = vmax.f32 %v3913, -13.815511
      %v3932 = vmin.f32 %v3914, 13.815511
      %v3933 = vmin.f32 %v3915, 13.815511
      %v3934 = vmin.f32 %v3916, 13.815511
      %v3935 = vmin.f32 %v3917, 13.815511
      %v3936 = vmin.f32 %v3918, 13.815511
      %v3937 = vmin.f32 %v3919, 13.815511
      %v3938 = vmin.f32 %v3920, 13.815511
      %v3939 = vmin.f32 %v3921, 13.815511
      %v3940 = vmin.f32 %v3922, 13.815511
      %v3941 = vmin.f32 %v3923, 13.815511
      %v3942 = vmin.f32 %v3924, 13.815511
      %v3943 = vmin.f32 %v3925, 13.815511
      %v3944 = vmin.f32 %v3926, 13.815511
      %v3945 = vmin.f32 %v3927, 13.815511
      %v3946 = vmin.f32 %v3928, 13.815511
      %v3947 = vmin.f32 %v3929, 13.815511
      %v3948 = vmin.f32 %v3930, 13.815511
      %v3949 = vmin.f32 %v3931, 13.815511
      %3968 = vrot.lane.b32.xlu0 %v3878, 110
      %v3969 = vpop.permute.xlu0 %3968
      %3970 = vrot.lane.b32.xlu0 %v3879, 110
      %v3971 = vpop.permute.xlu0 %3970
      %3972 = vrot.lane.b32.xlu0 %v3880, 110
      %v3973 = vpop.permute.xlu0 %3972
      %3974 = vrot.lane.b32.xlu0 %v3881, 110
      %v3975 = vpop.permute.xlu0 %3974
      %3976 = vrot.lane.b32.xlu0 %v3882, 110
      %v3977 = vpop.permute.xlu0 %3976
      %3978 = vrot.lane.b32.xlu0 %v3883, 110
      %v3979 = vpop.permute.xlu0 %3978
      %3980 = vrot.lane.b32.xlu0 %v3884, 110
      %v3981 = vpop.permute.xlu0 %3980
      %3982 = vrot.lane.b32.xlu0 %v3885, 110
      %v3983 = vpop.permute.xlu0 %3982
      %3984 = vrot.lane.b32.xlu0 %v3886, 110
      %v3985 = vpop.permute.xlu0 %3984
      %3986 = vrot.lane.b32.xlu0 %v3887, 110
      %v3987 = vpop.permute.xlu0 %3986
      %3988 = vrot.lane.b32.xlu0 %v3888, 110
      %v3989 = vpop.permute.xlu0 %3988
      %3990 = vrot.lane.b32.xlu0 %v3889, 110
      %v3991 = vpop.permute.xlu0 %3990
      %3992 = vrot.lane.b32.xlu0 %v3890, 110
      %v3993 = vpop.permute.xlu0 %3992
      %3994 = vrot.lane.b32.xlu0 %v3891, 110
      %v3995 = vpop.permute.xlu0 %3994
      %3996 = vrot.lane.b32.xlu0 %v3892, 110
      %v3997 = vpop.permute.xlu0 %3996
      %3998 = vrot.lane.b32.xlu0 %v3893, 110
      %v3999 = vpop.permute.xlu0 %3998
      %4000 = vrot.lane.b32.xlu0 %v3894, 110
      %v4001 = vpop.permute.xlu0 %4000
      %4002 = vrot.lane.b32.xlu0 %v3895, 110
      %v4003 = vpop.permute.xlu0 %4002
      %v4022 = vmul.f32 %v3896, %v3969
      %v4023 = vmul.f32 %v3897, %v3971
      %v4024 = vmul.f32 %v3898, %v3973
      %v4025 = vmul.f32 %v3899, %v3975
      %v4026 = vmul.f32 %v3900, %v3977
      %v4027 = vmul.f32 %v3901, %v3979
      %v4028 = vmul.f32 %v3902, %v3981
      %v4029 = vmul.f32 %v3903, %v3983
      %v4030 = vmul.f32 %v3904, %v3985
      %v4031 = vmul.f32 %v3905, %v3987
      %v4032 = vmul.f32 %v3906, %v3989
      %v4033 = vmul.f32 %v3907, %v3991
      %v4034 = vmul.f32 %v3908, %v3993
      %v4035 = vmul.f32 %v3909, %v3995
      %v4036 = vmul.f32 %v3910, %v3997
      %v4037 = vmul.f32 %v3911, %v3999
      %v4038 = vmul.f32 %v3912, %v4001
      %v4039 = vmul.f32 %v3913, %v4003
      %4040 = vrot.lane.b32.xlu0 %v3878, 83
      %v4041 = vpop.permute.xlu0 %4040
      %4042 = vrot.lane.b32.xlu0 %v3879, 83
      %v4043 = vpop.permute.xlu0 %4042
      %4044 = vrot.lane.b32.xlu0 %v3880, 83
      %v4045 = vpop.permute.xlu0 %4044
      %4046 = vrot.lane.b32.xlu0 %v3881, 83
      %v4047 = vpop.permute.xlu0 %4046
      %4048 = vrot.lane.b32.xlu0 %v3882, 83
      %v4049 = vpop.permute.xlu0 %4048
      %4050 = vrot.lane.b32.xlu0 %v3883, 83
      %v4051 = vpop.permute.xlu0 %4050
      %4052 = vrot.lane.b32.xlu0 %v3884, 83
      %v4053 = vpop.permute.xlu0 %4052
      %4054 = vrot.lane.b32.xlu0 %v3885, 83
      %v4055 = vpop.permute.xlu0 %4054
      %4056 = vrot.lane.b32.xlu0 %v3886, 83
      %v4057 = vpop.permute.xlu0 %4056
      %4058 = vrot.lane.b32.xlu0 %v3887, 83
      %v4059 = vpop.permute.xlu0 %4058
      %4060 = vrot.lane.b32.xlu0 %v3888, 83
      %v4061 = vpop.permute.xlu0 %4060
      %4062 = vrot.lane.b32.xlu0 %v3889, 83
      %v4063 = vpop.permute.xlu0 %4062
      %4064 = vrot.lane.b32.xlu0 %v3890, 83
      %v4065 = vpop.permute.xlu0 %4064
      %4066 = vrot.lane.b32.xlu0 %v3891, 83
      %v4067 = vpop.permute.xlu0 %4066
      %4068 = vrot.lane.b32.xlu0 %v3892, 83
      %v4069 = vpop.permute.xlu0 %4068
      %4070 = vrot.lane.b32.xlu0 %v3893, 83
      %v4071 = vpop.permute.xlu0 %4070
      %4072 = vrot.lane.b32.xlu0 %v3894, 83
      %v4073 = vpop.permute.xlu0 %4072
      %4074 = vrot.lane.b32.xlu0 %v3895, 83
      %v4075 = vpop.permute.xlu0 %4074
      %v4094 = vmul.f32 %v4022, %v4041
      %v4095 = vmul.f32 %v4023, %v4043
      %v4096 = vmul.f32 %v4024, %v4045
      %v4097 = vmul.f32 %v4025, %v4047
      %v4098 = vmul.f32 %v4026, %v4049
      %v4099 = vmul.f32 %v4027, %v4051
      %v4100 = vmul.f32 %v4028, %v4053
      %v4101 = vmul.f32 %v4029, %v4055
      %v4102 = vmul.f32 %v4030, %v4057
      %v4103 = vmul.f32 %v4031, %v4059
      %v4104 = vmul.f32 %v4032, %v4061
      %v4105 = vmul.f32 %v4033, %v4063
      %v4106 = vmul.f32 %v4034, %v4065
      %v4107 = vmul.f32 %v4035, %v4067
      %v4108 = vmul.f32 %v4036, %v4069
      %v4109 = vmul.f32 %v4037, %v4071
      %v4110 = vmul.f32 %v4038, %v4073
      %v4111 = vmul.f32 %v4039, %v4075
      %4130 = vrot.lane.b32.xlu0 %v4094, 119
      %v4131 = vpop.permute.xlu0 %4130
      %4132 = vrot.lane.b32.xlu0 %v4095, 119
      %v4133 = vpop.permute.xlu0 %4132
      %4134 = vrot.lane.b32.xlu0 %v4096, 119
      %v4135 = vpop.permute.xlu0 %4134
      %4136 = vrot.lane.b32.xlu0 %v4097, 119
      %v4137 = vpop.permute.xlu0 %4136
      %4138 = vrot.lane.b32.xlu0 %v4098, 119
      %v4139 = vpop.permute.xlu0 %4138
      %4140 = vrot.lane.b32.xlu0 %v4099, 119
      %v4141 = vpop.permute.xlu0 %4140
      %4142 = vrot.lane.b32.xlu0 %v4100, 119
      %v4143 = vpop.permute.xlu0 %4142
      %4144 = vrot.lane.b32.xlu0 %v4101, 119
      %v4145 = vpop.permute.xlu0 %4144
      %4146 = vrot.lane.b32.xlu0 %v4102, 119
      %v4147 = vpop.permute.xlu0 %4146
      %4148 = vrot.lane.b32.xlu0 %v4103, 119
      %v4149 = vpop.permute.xlu0 %4148
      %4150 = vrot.lane.b32.xlu0 %v4104, 119
      %v4151 = vpop.permute.xlu0 %4150
      %4152 = vrot.lane.b32.xlu0 %v4105, 119
      %v4153 = vpop.permute.xlu0 %4152
      %4154 = vrot.lane.b32.xlu0 %v4106, 119
      %v4155 = vpop.permute.xlu0 %4154
      %4156 = vrot.lane.b32.xlu0 %v4107, 119
      %v4157 = vpop.permute.xlu0 %4156
      %4158 = vrot.lane.b32.xlu0 %v4108, 119
      %v4159 = vpop.permute.xlu0 %4158
      %4160 = vrot.lane.b32.xlu0 %v4109, 119
      %v4161 = vpop.permute.xlu0 %4160
      %4162 = vrot.lane.b32.xlu0 %v4110, 119
      %v4163 = vpop.permute.xlu0 %4162
      %4164 = vrot.lane.b32.xlu0 %v4111, 119
      %v4165 = vpop.permute.xlu0 %4164
      %v4184 = vsub.f32 %v4094, %v4131
      %v4185 = vsub.f32 %v4095, %v4133
      %v4186 = vsub.f32 %v4096, %v4135
      %v4187 = vsub.f32 %v4097, %v4137
      %v4188 = vsub.f32 %v4098, %v4139
      %v4189 = vsub.f32 %v4099, %v4141
      %v4190 = vsub.f32 %v4100, %v4143
      %v4191 = vsub.f32 %v4101, %v4145
      %v4192 = vsub.f32 %v4102, %v4147
      %v4193 = vsub.f32 %v4103, %v4149
      %v4194 = vsub.f32 %v4104, %v4151
      %v4195 = vsub.f32 %v4105, %v4153
      %v4196 = vsub.f32 %v4106, %v4155
      %v4197 = vsub.f32 %v4107, %v4157
      %v4198 = vsub.f32 %v4108, %v4159
      %v4199 = vsub.f32 %v4109, %v4161
      %v4200 = vsub.f32 %v4110, %v4163
      %v4201 = vsub.f32 %v4111, %v4165
      %v4202 = vadd.f32 %v4184, %v3878
      %v4203 = vadd.f32 %v4185, %v3879
      %v4204 = vadd.f32 %v4186, %v3880
      %v4205 = vadd.f32 %v4187, %v3881
      %v4206 = vadd.f32 %v4188, %v3882
      %v4207 = vadd.f32 %v4189, %v3883
      %v4208 = vadd.f32 %v4190, %v3884
      %v4209 = vadd.f32 %v4191, %v3885
      %v4210 = vadd.f32 %v4192, %v3886
      %v4211 = vadd.f32 %v4193, %v3887
      %v4212 = vadd.f32 %v4194, %v3888
      %v4213 = vadd.f32 %v4195, %v3889
      %v4214 = vadd.f32 %v4196, %v3890
      %v4215 = vadd.f32 %v4197, %v3891
      %v4216 = vadd.f32 %v4198, %v3892
      %v4217 = vadd.f32 %v4199, %v3893
      %v4218 = vadd.f32 %v4200, %v3894
      %v4219 = vadd.f32 %v4201, %v3895
      %4220 = vrot.lane.b32.xlu0 %v3878, 74
      %v4221 = vpop.permute.xlu0 %4220
      %4222 = vrot.lane.b32.xlu0 %v3879, 74
      %v4223 = vpop.permute.xlu0 %4222
      %4224 = vrot.lane.b32.xlu0 %v3880, 74
      %v4225 = vpop.permute.xlu0 %4224
      %4226 = vrot.lane.b32.xlu0 %v3881, 74
      %v4227 = vpop.permute.xlu0 %4226
      %4228 = vrot.lane.b32.xlu0 %v3882, 74
      %v4229 = vpop.permute.xlu0 %4228
      %4230 = vrot.lane.b32.xlu0 %v3883, 74
      %v4231 = vpop.permute.xlu0 %4230
      %4232 = vrot.lane.b32.xlu0 %v3884, 74
      %v4233 = vpop.permute.xlu0 %4232
      %4234 = vrot.lane.b32.xlu0 %v3885, 74
      %v4235 = vpop.permute.xlu0 %4234
      %4236 = vrot.lane.b32.xlu0 %v3886, 74
      %v4237 = vpop.permute.xlu0 %4236
      %4238 = vrot.lane.b32.xlu0 %v3887, 74
      %v4239 = vpop.permute.xlu0 %4238
      %4240 = vrot.lane.b32.xlu0 %v3888, 74
      %v4241 = vpop.permute.xlu0 %4240
      %4242 = vrot.lane.b32.xlu0 %v3889, 74
      %v4243 = vpop.permute.xlu0 %4242
      %4244 = vrot.lane.b32.xlu0 %v3890, 74
      %v4245 = vpop.permute.xlu0 %4244
      %4246 = vrot.lane.b32.xlu0 %v3891, 74
      %v4247 = vpop.permute.xlu0 %4246
      %4248 = vrot.lane.b32.xlu0 %v3892, 74
      %v4249 = vpop.permute.xlu0 %4248
      %4250 = vrot.lane.b32.xlu0 %v3893, 74
      %v4251 = vpop.permute.xlu0 %4250
      %4252 = vrot.lane.b32.xlu0 %v3894, 74
      %v4253 = vpop.permute.xlu0 %4252
      %4254 = vrot.lane.b32.xlu0 %v3895, 74
      %v4255 = vpop.permute.xlu0 %4254
      %v4274 = vmul.f32 %v4022, %v4221
      %v4275 = vmul.f32 %v4023, %v4223
      %v4276 = vmul.f32 %v4024, %v4225
      %v4277 = vmul.f32 %v4025, %v4227
      %v4278 = vmul.f32 %v4026, %v4229
      %v4279 = vmul.f32 %v4027, %v4231
      %v4280 = vmul.f32 %v4028, %v4233
      %v4281 = vmul.f32 %v4029, %v4235
      %v4282 = vmul.f32 %v4030, %v4237
      %v4283 = vmul.f32 %v4031, %v4239
      %v4284 = vmul.f32 %v4032, %v4241
      %v4285 = vmul.f32 %v4033, %v4243
      %v4286 = vmul.f32 %v4034, %v4245
      %v4287 = vmul.f32 %v4035, %v4247
      %v4288 = vmul.f32 %v4036, %v4249
      %v4289 = vmul.f32 %v4037, %v4251
      %v4290 = vmul.f32 %v4038, %v4253
      %v4291 = vmul.f32 %v4039, %v4255
      %4292 = vrot.lane.b32.xlu0 %v3878, 92
      %v4293 = vpop.permute.xlu0 %4292
      %4294 = vrot.lane.b32.xlu0 %v3879, 92
      %v4295 = vpop.permute.xlu0 %4294
      %4296 = vrot.lane.b32.xlu0 %v3880, 92
      %v4297 = vpop.permute.xlu0 %4296
      %4298 = vrot.lane.b32.xlu0 %v3881, 92
      %v4299 = vpop.permute.xlu0 %4298
      %4300 = vrot.lane.b32.xlu0 %v3882, 92
      %v4301 = vpop.permute.xlu0 %4300
      %4302 = vrot.lane.b32.xlu0 %v3883, 92
      %v4303 = vpop.permute.xlu0 %4302
      %4304 = vrot.lane.b32.xlu0 %v3884, 92
      %v4305 = vpop.permute.xlu0 %4304
      %4306 = vrot.lane.b32.xlu0 %v3885, 92
      %v4307 = vpop.permute.xlu0 %4306
      %4308 = vrot.lane.b32.xlu0 %v3886, 92
      %v4309 = vpop.permute.xlu0 %4308
      %4310 = vrot.lane.b32.xlu0 %v3887, 92
      %v4311 = vpop.permute.xlu0 %4310
      %4312 = vrot.lane.b32.xlu0 %v3888, 92
      %v4313 = vpop.permute.xlu0 %4312
      %4314 = vrot.lane.b32.xlu0 %v3889, 92
      %v4315 = vpop.permute.xlu0 %4314
      %4316 = vrot.lane.b32.xlu0 %v3890, 92
      %v4317 = vpop.permute.xlu0 %4316
      %4318 = vrot.lane.b32.xlu0 %v3891, 92
      %v4319 = vpop.permute.xlu0 %4318
      %4320 = vrot.lane.b32.xlu0 %v3892, 92
      %v4321 = vpop.permute.xlu0 %4320
      %4322 = vrot.lane.b32.xlu0 %v3893, 92
      %v4323 = vpop.permute.xlu0 %4322
      %4324 = vrot.lane.b32.xlu0 %v3894, 92
      %v4325 = vpop.permute.xlu0 %4324
      %4326 = vrot.lane.b32.xlu0 %v3895, 92
      %v4327 = vpop.permute.xlu0 %4326
      %v4346 = vmul.f32 %v4022, %v4293
      %v4347 = vmul.f32 %v4023, %v4295
      %v4348 = vmul.f32 %v4024, %v4297
      %v4349 = vmul.f32 %v4025, %v4299
      %v4350 = vmul.f32 %v4026, %v4301
      %v4351 = vmul.f32 %v4027, %v4303
      %v4352 = vmul.f32 %v4028, %v4305
      %v4353 = vmul.f32 %v4029, %v4307
      %v4354 = vmul.f32 %v4030, %v4309
      %v4355 = vmul.f32 %v4031, %v4311
      %v4356 = vmul.f32 %v4032, %v4313
      %v4357 = vmul.f32 %v4033, %v4315
      %v4358 = vmul.f32 %v4034, %v4317
      %v4359 = vmul.f32 %v4035, %v4319
      %v4360 = vmul.f32 %v4036, %v4321
      %v4361 = vmul.f32 %v4037, %v4323
      %v4362 = vmul.f32 %v4038, %v4325
      %v4363 = vmul.f32 %v4039, %v4327
      %4382 = vrot.lane.b32.xlu0 %v4346, 119
      %v4383 = vpop.permute.xlu0 %4382
      %4384 = vrot.lane.b32.xlu0 %v4347, 119
      %v4385 = vpop.permute.xlu0 %4384
      %4386 = vrot.lane.b32.xlu0 %v4348, 119
      %v4387 = vpop.permute.xlu0 %4386
      %4388 = vrot.lane.b32.xlu0 %v4349, 119
      %v4389 = vpop.permute.xlu0 %4388
      %4390 = vrot.lane.b32.xlu0 %v4350, 119
      %v4391 = vpop.permute.xlu0 %4390
      %4392 = vrot.lane.b32.xlu0 %v4351, 119
      %v4393 = vpop.permute.xlu0 %4392
      %4394 = vrot.lane.b32.xlu0 %v4352, 119
      %v4395 = vpop.permute.xlu0 %4394
      %4396 = vrot.lane.b32.xlu0 %v4353, 119
      %v4397 = vpop.permute.xlu0 %4396
      %4398 = vrot.lane.b32.xlu0 %v4354, 119
      %v4399 = vpop.permute.xlu0 %4398
      %4400 = vrot.lane.b32.xlu0 %v4355, 119
      %v4401 = vpop.permute.xlu0 %4400
      %4402 = vrot.lane.b32.xlu0 %v4356, 119
      %v4403 = vpop.permute.xlu0 %4402
      %4404 = vrot.lane.b32.xlu0 %v4357, 119
      %v4405 = vpop.permute.xlu0 %4404
      %4406 = vrot.lane.b32.xlu0 %v4358, 119
      %v4407 = vpop.permute.xlu0 %4406
      %4408 = vrot.lane.b32.xlu0 %v4359, 119
      %v4409 = vpop.permute.xlu0 %4408
      %4410 = vrot.lane.b32.xlu0 %v4360, 119
      %v4411 = vpop.permute.xlu0 %4410
      %4412 = vrot.lane.b32.xlu0 %v4361, 119
      %v4413 = vpop.permute.xlu0 %4412
      %4414 = vrot.lane.b32.xlu0 %v4362, 119
      %v4415 = vpop.permute.xlu0 %4414
      %4416 = vrot.lane.b32.xlu0 %v4363, 119
      %v4417 = vpop.permute.xlu0 %4416
      %v4436 = vadd.f32 %v4274, %v4383
      %v4437 = vadd.f32 %v4275, %v4385
      %v4438 = vadd.f32 %v4276, %v4387
      %v4439 = vadd.f32 %v4277, %v4389
      %v4440 = vadd.f32 %v4278, %v4391
      %v4441 = vadd.f32 %v4279, %v4393
      %v4442 = vadd.f32 %v4280, %v4395
      %v4443 = vadd.f32 %v4281, %v4397
      %v4444 = vadd.f32 %v4282, %v4399
      %v4445 = vadd.f32 %v4283, %v4401
      %v4446 = vadd.f32 %v4284, %v4403
      %v4447 = vadd.f32 %v4285, %v4405
      %v4448 = vadd.f32 %v4286, %v4407
      %v4449 = vadd.f32 %v4287, %v4409
      %v4450 = vadd.f32 %v4288, %v4411
      %v4451 = vadd.f32 %v4289, %v4413
      %v4452 = vadd.f32 %v4290, %v4415
      %v4453 = vadd.f32 %v4291, %v4417
      %4454 = vrot.lane.b32.xlu0 %v3878, 119
      %v4455 = vpop.permute.xlu0 %4454
      %4456 = vrot.lane.b32.xlu0 %v3879, 119
      %v4457 = vpop.permute.xlu0 %4456
      %4458 = vrot.lane.b32.xlu0 %v3880, 119
      %v4459 = vpop.permute.xlu0 %4458
      %4460 = vrot.lane.b32.xlu0 %v3881, 119
      %v4461 = vpop.permute.xlu0 %4460
      %4462 = vrot.lane.b32.xlu0 %v3882, 119
      %v4463 = vpop.permute.xlu0 %4462
      %4464 = vrot.lane.b32.xlu0 %v3883, 119
      %v4465 = vpop.permute.xlu0 %4464
      %4466 = vrot.lane.b32.xlu0 %v3884, 119
      %v4467 = vpop.permute.xlu0 %4466
      %4468 = vrot.lane.b32.xlu0 %v3885, 119
      %v4469 = vpop.permute.xlu0 %4468
      %4470 = vrot.lane.b32.xlu0 %v3886, 119
      %v4471 = vpop.permute.xlu0 %4470
      %4472 = vrot.lane.b32.xlu0 %v3887, 119
      %v4473 = vpop.permute.xlu0 %4472
      %4474 = vrot.lane.b32.xlu0 %v3888, 119
      %v4475 = vpop.permute.xlu0 %4474
      %4476 = vrot.lane.b32.xlu0 %v3889, 119
      %v4477 = vpop.permute.xlu0 %4476
      %4478 = vrot.lane.b32.xlu0 %v3890, 119
      %v4479 = vpop.permute.xlu0 %4478
      %4480 = vrot.lane.b32.xlu0 %v3891, 119
      %v4481 = vpop.permute.xlu0 %4480
      %4482 = vrot.lane.b32.xlu0 %v3892, 119
      %v4483 = vpop.permute.xlu0 %4482
      %4484 = vrot.lane.b32.xlu0 %v3893, 119
      %v4485 = vpop.permute.xlu0 %4484
      %4486 = vrot.lane.b32.xlu0 %v3894, 119
      %v4487 = vpop.permute.xlu0 %4486
      %4488 = vrot.lane.b32.xlu0 %v3895, 119
      %v4489 = vpop.permute.xlu0 %4488
      %v4508 = vadd.f32 %v4436, %v4455
      %v4509 = vadd.f32 %v4437, %v4457
      %v4510 = vadd.f32 %v4438, %v4459
      %v4511 = vadd.f32 %v4439, %v4461
      %v4512 = vadd.f32 %v4440, %v4463
      %v4513 = vadd.f32 %v4441, %v4465
      %v4514 = vadd.f32 %v4442, %v4467
      %v4515 = vadd.f32 %v4443, %v4469
      %v4516 = vadd.f32 %v4444, %v4471
      %v4517 = vadd.f32 %v4445, %v4473
      %v4518 = vadd.f32 %v4446, %v4475
      %v4519 = vadd.f32 %v4447, %v4477
      %v4520 = vadd.f32 %v4448, %v4479
      %v4521 = vadd.f32 %v4449, %v4481
      %v4522 = vadd.f32 %v4450, %v4483
      %v4523 = vadd.f32 %v4451, %v4485
      %v4524 = vadd.f32 %v4452, %v4487
      %v4525 = vadd.f32 %v4453, %v4489
      %v4526 = vmul.f32 %v3932, 1.442695
      %v4527 = vpow.pop %v4526
      %v4528 = vmul.f32 %v3933, 1.442695
      %v4529 = vpow.pop %v4528
      %v4530 = vmul.f32 %v3934, 1.442695
      %v4531 = vpow.pop %v4530
      %v4532 = vmul.f32 %v3935, 1.442695
      %v4533 = vpow.pop %v4532
      %v4534 = vmul.f32 %v3936, 1.442695
      %v4535 = vpow.pop %v4534
      %v4536 = vmul.f32 %v3937, 1.442695
      %v4537 = vpow.pop %v4536
      %v4538 = vmul.f32 %v3938, 1.442695
      %v4539 = vpow.pop %v4538
      %v4540 = vmul.f32 %v3939, 1.442695
      %v4541 = vpow.pop %v4540
      %v4542 = vmul.f32 %v3940, 1.442695
      %v4543 = vpow.pop %v4542
      %v4544 = vmul.f32 %v3941, 1.442695
      %v4545 = vpow.pop %v4544
      %v4546 = vmul.f32 %v3942, 1.442695
      %v4547 = vpow.pop %v4546
      %v4548 = vmul.f32 %v3943, 1.442695
      %v4549 = vpow.pop %v4548
      %v4550 = vmul.f32 %v3944, 1.442695
      %v4551 = vpow.pop %v4550
      %v4552 = vmul.f32 %v3945, 1.442695
      %v4553 = vpow.pop %v4552
      %v4554 = vmul.f32 %v3946, 1.442695
      %v4555 = vpow.pop %v4554
      %v4556 = vmul.f32 %v3947, 1.442695
      %v4557 = vpow.pop %v4556
      %v4558 = vmul.f32 %v3948, 1.442695
      %v4559 = vpow.pop %v4558
      %v4560 = vmul.f32 %v3949, 1.442695
      %v4561 = vpow.pop %v4560
      %v4562 = vmul.f32 %v3878, %v4527
      %v4563 = vmul.f32 %v3879, %v4529
      %v4564 = vmul.f32 %v3880, %v4531
      %v4565 = vmul.f32 %v3881, %v4533
      %v4566 = vmul.f32 %v3882, %v4535
      %v4567 = vmul.f32 %v3883, %v4537
      %v4568 = vmul.f32 %v3884, %v4539
      %v4569 = vmul.f32 %v3885, %v4541
      %v4570 = vmul.f32 %v3886, %v4543
      %v4571 = vmul.f32 %v3887, %v4545
      %v4572 = vmul.f32 %v3888, %v4547
      %v4573 = vmul.f32 %v3889, %v4549
      %v4574 = vmul.f32 %v3890, %v4551
      %v4575 = vmul.f32 %v3891, %v4553
      %v4576 = vmul.f32 %v3892, %v4555
      %v4577 = vmul.f32 %v3893, %v4557
      %v4578 = vmul.f32 %v3894, %v4559
      %v4579 = vmul.f32 %v3895, %v4561
      %v4580 = vadd.f32 %v3896, %v3878
      %v4581 = vadd.f32 %v3897, %v3879
      %v4582 = vadd.f32 %v3898, %v3880
      %v4583 = vadd.f32 %v3899, %v3881
      %v4584 = vadd.f32 %v3900, %v3882
      %v4585 = vadd.f32 %v3901, %v3883
      %v4586 = vadd.f32 %v3902, %v3884
      %v4587 = vadd.f32 %v3903, %v3885
      %v4588 = vadd.f32 %v3904, %v3886
      %v4589 = vadd.f32 %v3905, %v3887
      %v4590 = vadd.f32 %v3906, %v3888
      %v4591 = vadd.f32 %v3907, %v3889
      %v4592 = vadd.f32 %v3908, %v3890
      %v4593 = vadd.f32 %v3909, %v3891
      %v4594 = vadd.f32 %v3910, %v3892
      %v4595 = vadd.f32 %v3911, %v3893
      %v4596 = vadd.f32 %v3912, %v3894
      %v4597 = vadd.f32 %v3913, %v3895
      %4616 = vrot.lane.b32.xlu0 %v4508, 9
      %v4617 = vpop.permute.xlu0 %4616
      %4618 = vrot.lane.b32.xlu0 %v4509, 9
      %v4619 = vpop.permute.xlu0 %4618
      %4620 = vrot.lane.b32.xlu0 %v4510, 9
      %v4621 = vpop.permute.xlu0 %4620
      %4622 = vrot.lane.b32.xlu0 %v4511, 9
      %v4623 = vpop.permute.xlu0 %4622
      %4624 = vrot.lane.b32.xlu0 %v4512, 9
      %v4625 = vpop.permute.xlu0 %4624
      %4626 = vrot.lane.b32.xlu0 %v4513, 9
      %v4627 = vpop.permute.xlu0 %4626
      %4628 = vrot.lane.b32.xlu0 %v4514, 9
      %v4629 = vpop.permute.xlu0 %4628
      %4630 = vrot.lane.b32.xlu0 %v4515, 9
      %v4631 = vpop.permute.xlu0 %4630
      %4632 = vrot.lane.b32.xlu0 %v4516, 9
      %v4633 = vpop.permute.xlu0 %4632
      %4634 = vrot.lane.b32.xlu0 %v4517, 9
      %v4635 = vpop.permute.xlu0 %4634
      %4636 = vrot.lane.b32.xlu0 %v4518, 9
      %v4637 = vpop.permute.xlu0 %4636
      %4638 = vrot.lane.b32.xlu0 %v4519, 9
      %v4639 = vpop.permute.xlu0 %4638
      %4640 = vrot.lane.b32.xlu0 %v4520, 9
      %v4641 = vpop.permute.xlu0 %4640
      %4642 = vrot.lane.b32.xlu0 %v4521, 9
      %v4643 = vpop.permute.xlu0 %4642
      %4644 = vrot.lane.b32.xlu0 %v4522, 9
      %v4645 = vpop.permute.xlu0 %4644
      %4646 = vrot.lane.b32.xlu0 %v4523, 9
      %v4647 = vpop.permute.xlu0 %4646
      %4648 = vrot.lane.b32.xlu0 %v4524, 9
      %v4649 = vpop.permute.xlu0 %4648
      %4650 = vrot.lane.b32.xlu0 %v4525, 9
      %v4651 = vpop.permute.xlu0 %4650
      %vm4670 = vcmask 72704
      %v4671 = vsel %vm4670, %v4202, %v4617
      %v4672 = vsel %vm4670, %v4203, %v4619
      %v4673 = vsel %vm4670, %v4204, %v4621
      %v4674 = vsel %vm4670, %v4205, %v4623
      %v4675 = vsel %vm4670, %v4206, %v4625
      %v4676 = vsel %vm4670, %v4207, %v4627
      %v4677 = vsel %vm4670, %v4208, %v4629
      %v4678 = vsel %vm4670, %v4209, %v4631
      %v4679 = vsel %vm4670, %v4210, %v4633
      %v4680 = vsel %vm4670, %v4211, %v4635
      %v4681 = vsel %vm4670, %v4212, %v4637
      %v4682 = vsel %vm4670, %v4213, %v4639
      %v4683 = vsel %vm4670, %v4214, %v4641
      %v4684 = vsel %vm4670, %v4215, %v4643
      %v4685 = vsel %vm4670, %v4216, %v4645
      %v4686 = vsel %vm4670, %v4217, %v4647
      %v4687 = vsel %vm4670, %v4218, %v4649
      %v4688 = vsel %vm4670, %v4219, %v4651
      %vm4689 = vcmask 146432
      %v4690 = vsel %vm4689, %v4671, %v4562
      %v4691 = vsel %vm4689, %v4672, %v4563
      %v4692 = vsel %vm4689, %v4673, %v4564
      %v4693 = vsel %vm4689, %v4674, %v4565
      %v4694 = vsel %vm4689, %v4675, %v4566
      %v4695 = vsel %vm4689, %v4676, %v4567
      %v4696 = vsel %vm4689, %v4677, %v4568
      %v4697 = vsel %vm4689, %v4678, %v4569
      %v4698 = vsel %vm4689, %v4679, %v4570
      %v4699 = vsel %vm4689, %v4680, %v4571
      %v4700 = vsel %vm4689, %v4681, %v4572
      %v4701 = vsel %vm4689, %v4682, %v4573
      %v4702 = vsel %vm4689, %v4683, %v4574
      %v4703 = vsel %vm4689, %v4684, %v4575
      %v4704 = vsel %vm4689, %v4685, %v4576
      %v4705 = vsel %vm4689, %v4686, %v4577
      %v4706 = vsel %vm4689, %v4687, %v4578
      %v4707 = vsel %vm4689, %v4688, %v4579
      %vm4708 = vcmask 220160
      %v4709 = vsel %vm4708, %v4690, %v4562
      %v4710 = vsel %vm4708, %v4691, %v4563
      %v4711 = vsel %vm4708, %v4692, %v4564
      %v4712 = vsel %vm4708, %v4693, %v4565
      %v4713 = vsel %vm4708, %v4694, %v4566
      %v4714 = vsel %vm4708, %v4695, %v4567
      %v4715 = vsel %vm4708, %v4696, %v4568
      %v4716 = vsel %vm4708, %v4697, %v4569
      %v4717 = vsel %vm4708, %v4698, %v4570
      %v4718 = vsel %vm4708, %v4699, %v4571
      %v4719 = vsel %vm4708, %v4700, %v4572
      %v4720 = vsel %vm4708, %v4701, %v4573
      %v4721 = vsel %vm4708, %v4702, %v4574
      %v4722 = vsel %vm4708, %v4703, %v4575
      %v4723 = vsel %vm4708, %v4704, %v4576
      %v4724 = vsel %vm4708, %v4705, %v4577
      %v4725 = vsel %vm4708, %v4706, %v4578
      %v4726 = vsel %vm4708, %v4707, %v4579
      %vm4727 = vcmask 293888
      %v4728 = vsel %vm4727, %v4709, %v4580
      %v4729 = vsel %vm4727, %v4710, %v4581
      %v4730 = vsel %vm4727, %v4711, %v4582
      %v4731 = vsel %vm4727, %v4712, %v4583
      %v4732 = vsel %vm4727, %v4713, %v4584
      %v4733 = vsel %vm4727, %v4714, %v4585
      %v4734 = vsel %vm4727, %v4715, %v4586
      %v4735 = vsel %vm4727, %v4716, %v4587
      %v4736 = vsel %vm4727, %v4717, %v4588
      %v4737 = vsel %vm4727, %v4718, %v4589
      %v4738 = vsel %vm4727, %v4719, %v4590
      %v4739 = vsel %vm4727, %v4720, %v4591
      %v4740 = vsel %vm4727, %v4721, %v4592
      %v4741 = vsel %vm4727, %v4722, %v4593
      %v4742 = vsel %vm4727, %v4723, %v4594
      %v4743 = vsel %vm4727, %v4724, %v4595
      %v4744 = vsel %vm4727, %v4725, %v4596
      %v4745 = vsel %vm4727, %v4726, %v4597
      %v4746 = vld [vmem:[#allocation3 + $0x8] sm:$0xe]
      %v4747 = vld [vmem:[#allocation3 + $0xc] sm:$0xf]
      %v4748 = vld [vmem:[#allocation3 + $0x10] sm:$0xf]
      %v4749 = vld [vmem:[#allocation3 + $0x14] sm:$0xf]
      %v4750 = vld [vmem:[#allocation3 + $0x18] sm:$0xf]
      %v4751 = vld [vmem:[%s5] sm:$0xf]
      %v4752 = vld [vmem:[%s5 + $0x4] sm:$0xf]
      %v4753 = vld [vmem:[%s5 + $0x8] sm:$0xf]
      %v4754 = vld [vmem:[%s5 + $0xc] sm:$0xf]
      %v4755 = vld [vmem:[%s5 + $0x10] sm:$0xf]
      %v4756 = vld [vmem:[%s5 + $0x14] sm:$0xf]
      %v4757 = vld [vmem:[%s5 + $0x18] sm:$0xf]
      %v4758 = vld [vmem:[%s5 + $0x1c] sm:$0xf]
      %v4759 = vld [vmem:[%s5 + $0x20] sm:$0xf]
      %v4760 = vld [vmem:[%s5 + $0x24] sm:$0xf]
      %v4761 = vld [vmem:[%s5 + $0x28] sm:$0xf]
      %v4762 = vld [vmem:[%s5 + $0x2c] sm:$0xf]
      %v4763 = vld [vmem:[#allocation3 + $0x10] sm:$0xc]
      %v4764 = vld [vmem:[#allocation3 + $0x1c] sm:$0xf]
      %v4765 = vld [vmem:[#allocation3 + $0x20] sm:$0xf]
      %s4766 = scalar_lea.vmem %s5, 48
      %v4767 = vld [vmem:[%s4766] sm:$0xf]
      %v4768 = vld [vmem:[%s4766 + $0x4] sm:$0xf]
      %v4769 = vld [vmem:[%s4766 + $0x8] sm:$0xf]
      %v4770 = vld [vmem:[%s4766 + $0xc] sm:$0xf]
      %v4771 = vld [vmem:[%s4766 + $0x10] sm:$0xf]
      %v4772 = vld [vmem:[%s4766 + $0x14] sm:$0xf]
      %v4773 = vld [vmem:[%s4766 + $0x18] sm:$0xf]
      %v4774 = vld [vmem:[%s4766 + $0x1c] sm:$0xf]
      %v4775 = vld [vmem:[%s4766 + $0x20] sm:$0xf]
      %v4776 = vld [vmem:[%s4766 + $0x24] sm:$0xf]
      %v4777 = vld [vmem:[%s4766 + $0x28] sm:$0xf]
      %v4778 = vld [vmem:[%s4766 + $0x2c] sm:$0xf]
      %v4784 = vunpack.c.l.b16 %v4763
      %v4785 = vunpack.c.l.b16 %v4749
      %v4786 = vunpack.c.l.b16 %v4750
      %v4787 = vunpack.c.l.b16 %v4764
      %v4788 = vunpack.c.l.b16 %v4765
      %v4789 = vpack.c.b16 %v4785, %v4784
      %v4790 = vpack.c.b16 %v4787, %v4786
      %v4791 = vpack.c.b16 %v3694, %v4788
      %v4792 = vpack.c.b16 %v3696, %v3695
      %v4793 = vpack.c.b16 %v3698, %v3697
      %v4794 = vpack.c.b16 %v3700, %v3699
      %v4795 = vpack.c.b16 %v3702, %v3701
      %v4796 = vpack.c.b16 %v3704, %v3703
      %v4797 = vpack.c.b16 %v3706, %v3705
      %v4798 = vpack.c.b16 %v3708, %v3707
      %v4799 = vpack.c.b16 %v3710, %v3709
      %v4800 = vpack.c.b16 %v3711, %v3711
      %v4801 = vrot.slane %v4789, 2
      %v4802 = vrot.slane %v4790, 2
      %v4803 = vsel %vm1979, %v4801, %v4802
      %v4804 = vrot.slane %v4791, 2
      %v4805 = vsel %vm1979, %v4802, %v4804
      %v4806 = vrot.slane %v4792, 2
      %v4807 = vsel %vm1979, %v4804, %v4806
      %v4808 = vrot.slane %v4793, 2
      %v4809 = vsel %vm1979, %v4806, %v4808
      %v4810 = vrot.slane %v4794, 2
      %v4811 = vsel %vm1979, %v4808, %v4810
      %v4812 = vrot.slane %v4795, 2
      %v4813 = vsel %vm1979, %v4810, %v4812
      %v4814 = vrot.slane %v4796, 2
      %v4815 = vsel %vm1979, %v4812, %v4814
      %v4816 = vrot.slane %v4797, 2
      %v4817 = vsel %vm1979, %v4814, %v4816
      %v4818 = vrot.slane %v4798, 2
      %v4819 = vsel %vm1979, %v4816, %v4818
      %v4820 = vrot.slane %v4799, 2
      %v4821 = vsel %vm1979, %v4818, %v4820
      %v4822 = vrot.slane %v4800, 2
      %v4823 = vsel %vm1979, %v4820, %v4822
      %v4836 = vunpack.c.l.b16 %v4767
      %v4837 = vunpack.c.l.b16 %v4768
      %v4838 = vunpack.c.l.b16 %v4769
      %v4839 = vunpack.c.l.b16 %v4770
      %v4840 = vunpack.c.l.b16 %v4771
      %v4841 = vunpack.c.l.b16 %v4772
      %v4842 = vunpack.c.l.b16 %v4773
      %v4843 = vunpack.c.l.b16 %v4774
      %v4844 = vunpack.c.l.b16 %v4775
      %v4845 = vunpack.c.l.b16 %v4776
      %v4846 = vunpack.c.l.b16 %v4777
      %v4847 = vunpack.c.l.b16 %v4778
      %v4848 = vpack.c.b16 %v4837, %v4836
      %v4849 = vpack.c.b16 %v4839, %v4838
      %v4850 = vpack.c.b16 %v4841, %v4840
      %v4851 = vpack.c.b16 %v4843, %v4842
      %v4852 = vpack.c.b16 %v4845, %v4844
      %v4853 = vpack.c.b16 %v4847, %v4846
      %v4861 = vsel %vm1582, %v4803, 0
      %v4864 = vsel %vm1582, %v4805, 0
      %v4867 = vsel %vm1582, %v4807, 0
      %v4870 = vsel %vm1582, %v4809, 0
      %v4873 = vsel %vm1582, %v4811, 0
      %v4876 = vsel %vm1582, %v4813, 0
      %v4879 = vsel %vm1582, %v4815, 0
      %v4882 = vsel %vm1582, %v4817, 0
      %v4885 = vsel %vm1582, %v4819, 0
      %v4888 = vsel %vm1582, %v4821, 0
      %v4891 = vsel %vm1582, %v4823, 0
      %v4894 = vsel %vm1582, %v4822, 0
      %4896 = vmatpush.bf16.msra.mxu0 0
      %4897 = vmatpush.bf16.msra.mxu0 0
      %4898 = vmatpush.bf16.msra.mxu0 %v4853
      %4899 = vmatpush.bf16.msra.mxu0 %v4852
      %4900 = vmatpush.bf16.msra.mxu0 %v4851
      %4901 = vmatpush.bf16.msra.mxu0 %v4850
      %4902 = vmatpush.bf16.msra.mxu0 %v4849
      %4903 = vmatpush.bf16.msra.mxu0 %v4848
      %4904 = vmatmul.bf16.gmra.mxu0 %v4861
      %v4905 = vpop.f32.mrf.mxu0
      %v4906 = vadd.f32 0.0, %v4905
      %v4907 = vpop.f32.mrf.mxu0
      %v4908 = vadd.f32 0.0, %v4907
      %4909 = vmatmul.bf16.gmra.mxu0 %v4864
      %v4910 = vpop.f32.mrf.mxu0
      %v4911 = vadd.f32 0.0, %v4910
      %v4912 = vpop.f32.mrf.mxu0
      %v4913 = vadd.f32 0.0, %v4912
      %4914 = vmatmul.bf16.gmra.mxu0 %v4867
      %v4915 = vpop.f32.mrf.mxu0
      %v4916 = vadd.f32 0.0, %v4915
      %v4917 = vpop.f32.mrf.mxu0
      %v4918 = vadd.f32 0.0, %v4917
      %4919 = vmatmul.bf16.gmra.mxu0 %v4870
      %v4920 = vpop.f32.mrf.mxu0
      %v4921 = vadd.f32 0.0, %v4920
      %v4922 = vpop.f32.mrf.mxu0
      %v4923 = vadd.f32 0.0, %v4922
      %4924 = vmatmul.bf16.gmra.mxu0 %v4873
      %v4925 = vpop.f32.mrf.mxu0
      %v4926 = vadd.f32 0.0, %v4925
      %v4927 = vpop.f32.mrf.mxu0
      %v4928 = vadd.f32 0.0, %v4927
      %4929 = vmatmul.bf16.gmra.mxu0 %v4876
      %v4930 = vpop.f32.mrf.mxu0
      %v4931 = vadd.f32 0.0, %v4930
      %v4932 = vpop.f32.mrf.mxu0
      %v4933 = vadd.f32 0.0, %v4932
      %4934 = vmatmul.bf16.gmra.mxu0 %v4879
      %v4935 = vpop.f32.mrf.mxu0
      %v4936 = vadd.f32 0.0, %v4935
      %v4937 = vpop.f32.mrf.mxu0
      %v4938 = vadd.f32 0.0, %v4937
      %4939 = vmatmul.bf16.gmra.mxu0 %v4882
      %v4940 = vpop.f32.mrf.mxu0
      %v4941 = vadd.f32 0.0, %v4940
      %v4942 = vpop.f32.mrf.mxu0
      %v4943 = vadd.f32 0.0, %v4942
      %4944 = vmatmul.bf16.gmra.mxu0 %v4885
      %v4945 = vpop.f32.mrf.mxu0
      %v4946 = vadd.f32 0.0, %v4945
      %v4947 = vpop.f32.mrf.mxu0
      %v4948 = vadd.f32 0.0, %v4947
      %4949 = vmatmul.bf16.gmra.mxu0 %v4888
      %v4950 = vpop.f32.mrf.mxu0
      %v4951 = vadd.f32 0.0, %v4950
      %v4952 = vpop.f32.mrf.mxu0
      %v4953 = vadd.f32 0.0, %v4952
      %4954 = vmatmul.bf16.gmra.mxu0 %v4891
      %v4955 = vpop.f32.mrf.mxu0
      %v4956 = vadd.f32 0.0, %v4955
      %v4957 = vpop.f32.mrf.mxu0
      %v4958 = vadd.f32 0.0, %v4957
      %4959 = vmatmul.bf16.gmra.mxu0 %v4894
      %v4960 = vpop.f32.mrf.mxu0
      %v4961 = vadd.f32 0.0, %v4960
      %v4962 = vpop.f32.mrf.mxu0
      %4963 = vdwg.mxu0
      %v4967 = vunpack.c.l.b16 %v4746
      %v4968 = vunpack.c.l.b16 %v4747
      %v4969 = vunpack.c.l.b16 %v4748
      %v4970 = vpack.c.b16 %v4968, %v4967
      %v4971 = vpack.c.b16 %v4785, %v4969
      %v4972 = vpack.c.b16 %v3333, %v4786
      %v4973 = vrot.slane %v4970, 1
      %v4974 = vrot.slane %v4971, 1
      %v4975 = vsel %vm1518, %v4973, %v4974
      %v4976 = vrot.slane %v4972, 1
      %v4977 = vsel %vm1518, %v4974, %v4976
      %v4978 = vrot.slane %v3352, 1
      %v4979 = vsel %vm1518, %v4976, %v4978
      %v4980 = vrot.slane %v3353, 1
      %v4981 = vsel %vm1518, %v4978, %v4980
      %v4982 = vrot.slane %v3354, 1
      %v4983 = vsel %vm1518, %v4980, %v4982
      %v4984 = vrot.slane %v3355, 1
      %v4985 = vsel %vm1518, %v4982, %v4984
      %v4986 = vrot.slane %v3356, 1
      %v4987 = vsel %vm1518, %v4984, %v4986
      %v4988 = vrot.slane %v3357, 1
      %v4989 = vsel %vm1518, %v4986, %v4988
      %v4990 = vrot.slane %v3358, 1
      %v4991 = vsel %vm1518, %v4988, %v4990
      %v4992 = vrot.slane %v3359, 1
      %v4993 = vsel %vm1518, %v4990, %v4992
      %v4994 = vrot.slane %v3360, 1
      %v4995 = vsel %vm1518, %v4992, %v4994
      %v5008 = vunpack.c.l.b16 %v4751
      %v5009 = vunpack.c.l.b16 %v4752
      %v5010 = vunpack.c.l.b16 %v4753
      %v5011 = vunpack.c.l.b16 %v4754
      %v5012 = vunpack.c.l.b16 %v4755
      %v5013 = vunpack.c.l.b16 %v4756
      %v5014 = vunpack.c.l.b16 %v4757
      %v5015 = vunpack.c.l.b16 %v4758
      %v5016 = vunpack.c.l.b16 %v4759
      %v5017 = vunpack.c.l.b16 %v4760
      %v5018 = vunpack.c.l.b16 %v4761
      %v5019 = vunpack.c.l.b16 %v4762
      %v5020 = vpack.c.b16 %v5009, %v5008
      %v5021 = vpack.c.b16 %v5011, %v5010
      %v5022 = vpack.c.b16 %v5013, %v5012
      %v5023 = vpack.c.b16 %v5015, %v5014
      %v5024 = vpack.c.b16 %v5017, %v5016
      %v5025 = vpack.c.b16 %v5019, %v5018
      %v5033 = vsel %vm1582, %v4975, 0
      %v5036 = vsel %vm1582, %v4977, 0
      %v5039 = vsel %vm1582, %v4979, 0
      %v5042 = vsel %vm1582, %v4981, 0
      %v5045 = vsel %vm1582, %v4983, 0
      %v5048 = vsel %vm1582, %v4985, 0
      %v5051 = vsel %vm1582, %v4987, 0
      %v5054 = vsel %vm1582, %v4989, 0
      %v5057 = vsel %vm1582, %v4991, 0
      %v5060 = vsel %vm1582, %v4993, 0
      %v5063 = vsel %vm1582, %v4995, 0
      %v5066 = vsel %vm1582, %v4994, 0
      %5068 = vmatpush.bf16.msra.mxu0 0
      %5069 = vmatpush.bf16.msra.mxu0 0
      %5070 = vmatpush.bf16.msra.mxu0 %v5025
      %5071 = vmatpush.bf16.msra.mxu0 %v5024
      %5072 = vmatpush.bf16.msra.mxu0 %v5023
      %5073 = vmatpush.bf16.msra.mxu0 %v5022
      %5074 = vmatpush.bf16.msra.mxu0 %v5021
      %5075 = vmatpush.bf16.msra.mxu0 %v5020
      %5076 = vmatmul.bf16.gmra.mxu0 %v5033
      %v5077 = vpop.f32.mrf.mxu0
      %v5078 = vadd.f32 %v4906, %v5077
      %v5079 = vpop.f32.mrf.mxu0
      %v5080 = vadd.f32 %v4908, %v5079
      %5081 = vmatmul.bf16.gmra.mxu0 %v5036
      %v5082 = vpop.f32.mrf.mxu0
      %v5083 = vadd.f32 %v4911, %v5082
      %v5084 = vpop.f32.mrf.mxu0
      %v5085 = vadd.f32 %v4913, %v5084
      %5086 = vmatmul.bf16.gmra.mxu0 %v5039
      %v5087 = vpop.f32.mrf.mxu0
      %v5088 = vadd.f32 %v4916, %v5087
      %v5089 = vpop.f32.mrf.mxu0
      %v5090 = vadd.f32 %v4918, %v5089
      %5091 = vmatmul.bf16.gmra.mxu0 %v5042
      %v5092 = vpop.f32.mrf.mxu0
      %v5093 = vadd.f32 %v4921, %v5092
      %v5094 = vpop.f32.mrf.mxu0
      %v5095 = vadd.f32 %v4923, %v5094
      %5096 = vmatmul.bf16.gmra.mxu0 %v5045
      %v5097 = vpop.f32.mrf.mxu0
      %v5098 = vadd.f32 %v4926, %v5097
      %v5099 = vpop.f32.mrf.mxu0
      %v5100 = vadd.f32 %v4928, %v5099
      %5101 = vmatmul.bf16.gmra.mxu0 %v5048
      %v5102 = vpop.f32.mrf.mxu0
      %v5103 = vadd.f32 %v4931, %v5102
      %v5104 = vpop.f32.mrf.mxu0
      %v5105 = vadd.f32 %v4933, %v5104
      %5106 = vmatmul.bf16.gmra.mxu0 %v5051
      %v5107 = vpop.f32.mrf.mxu0
      %v5108 = vadd.f32 %v4936, %v5107
      %v5109 = vpop.f32.mrf.mxu0
      %v5110 = vadd.f32 %v4938, %v5109
      %5111 = vmatmul.bf16.gmra.mxu0 %v5054
      %v5112 = vpop.f32.mrf.mxu0
      %v5113 = vadd.f32 %v4941, %v5112
      %v5114 = vpop.f32.mrf.mxu0
      %v5115 = vadd.f32 %v4943, %v5114
      %5116 = vmatmul.bf16.gmra.mxu0 %v5057
      %v5117 = vpop.f32.mrf.mxu0
      %v5118 = vadd.f32 %v4946, %v5117
      %v5119 = vpop.f32.mrf.mxu0
      %v5120 = vadd.f32 %v4948, %v5119
      %5121 = vmatmul.bf16.gmra.mxu0 %v5060
      %v5122 = vpop.f32.mrf.mxu0
      %v5123 = vadd.f32 %v4951, %v5122
      %v5124 = vpop.f32.mrf.mxu0
      %v5125 = vadd.f32 %v4953, %v5124
      %5126 = vmatmul.bf16.gmra.mxu0 %v5063
      %v5127 = vpop.f32.mrf.mxu0
      %v5128 = vadd.f32 %v4956, %v5127
      %v5129 = vpop.f32.mrf.mxu0
      %v5130 = vadd.f32 %v4958, %v5129
      %5131 = vmatmul.bf16.gmra.mxu0 %v5066
      %v5132 = vpop.f32.mrf.mxu0
      %v5133 = vadd.f32 %v4961, %v5132
      %v5134 = vpop.f32.mrf.mxu0
      %5135 = vdwg.mxu0
      %v5136 = vld [vmem:[#allocation3 + $0x18] sm:$0x8]
      %v5137 = vld [vmem:[#allocation3 + $0x1c] sm:$0xf]
      %v5138 = vld [vmem:[#allocation3 + $0x20] sm:$0xf]
      %v5139 = vld [vmem:[#allocation3 + $0x24] sm:$0xf]
      %v5140 = vld [vmem:[#allocation3 + $0x28] sm:$0xf]
      %v5141 = vld [vmem:[#allocation3 + $0x2c] sm:$0xf]
      %v5142 = vld [vmem:[#allocation3 + $0x30] sm:$0xf]
      %v5143 = vld [vmem:[#allocation3 + $0x34] sm:$0xf]
      %v5144 = vld [vmem:[#allocation3 + $0x38] sm:$0xf]
      %v5145 = vld [vmem:[#allocation3 + $0x3c] sm:$0xf]
      %v5146 = vld [vmem:[#allocation3 + $0x40] sm:$0xf]
      %v5147 = vld [vmem:[#allocation3 + $0x44] sm:$0xf]
      %v5148 = vld [vmem:[#allocation3 + $0x48] sm:$0xf]
      %v5149 = vld [vmem:[#allocation3 + $0x4c] sm:$0xf]
      %v5150 = vld [vmem:[#allocation3 + $0x50] sm:$0xf]
      %v5151 = vld [vmem:[#allocation3 + $0x54] sm:$0xf]
      %v5152 = vld [vmem:[#allocation3 + $0x58] sm:$0xf]
      %v5153 = vld [vmem:[#allocation3 + $0x5c] sm:$0xf]
      %v5154 = vld [vmem:[#allocation3 + $0x60] sm:$0xf]
      %v5155 = vld [vmem:[#allocation3 + $0x64] sm:$0xf]
      %v5156 = vld [vmem:[#allocation3 + $0x68] sm:$0xf]
      %v5157 = vld [vmem:[#allocation3 + $0x6c] sm:$0xf]
      %v5158 = vld [vmem:[#allocation3 + $0x70] sm:$0xf]
      %v5159 = vld [vmem:[#allocation3 + $0x74] sm:$0x1]
      %s5160 = scalar_lea.vmem %s5, 96
      %v5161 = vld [vmem:[%s5160] sm:$0xf]
      %v5162 = vld [vmem:[%s5160 + $0x4] sm:$0xf]
      %v5163 = vld [vmem:[%s5160 + $0x8] sm:$0xf]
      %v5164 = vld [vmem:[%s5160 + $0xc] sm:$0xf]
      %v5165 = vld [vmem:[%s5160 + $0x10] sm:$0xf]
      %v5166 = vld [vmem:[%s5160 + $0x14] sm:$0xf]
      %v5167 = vld [vmem:[%s5160 + $0x18] sm:$0xf]
      %v5168 = vld [vmem:[%s5160 + $0x1c] sm:$0xf]
      %v5169 = vld [vmem:[%s5160 + $0x20] sm:$0xf]
      %v5170 = vld [vmem:[%s5160 + $0x24] sm:$0xf]
      %v5171 = vld [vmem:[%s5160 + $0x28] sm:$0xf]
      %v5172 = vld [vmem:[%s5160 + $0x2c] sm:$0xf]
      %v5197 = vunpack.c.l.b16 %v5136
      %v5198 = vunpack.c.l.b16 %v5137
      %v5199 = vunpack.c.l.b16 %v5138
      %v5200 = vunpack.c.l.b16 %v5139
      %v5201 = vunpack.c.l.b16 %v5140
      %v5202 = vunpack.c.l.b16 %v5141
      %v5203 = vunpack.c.l.b16 %v5142
      %v5204 = vunpack.c.l.b16 %v5143
      %v5205 = vunpack.c.l.b16 %v5144
      %v5206 = vunpack.c.l.b16 %v5145
      %v5207 = vunpack.c.l.b16 %v5146
      %v5208 = vunpack.c.l.b16 %v5147
      %v5209 = vunpack.c.l.b16 %v5148
      %v5210 = vunpack.c.l.b16 %v5149
      %v5211 = vunpack.c.l.b16 %v5150
      %v5212 = vunpack.c.l.b16 %v5151
      %v5213 = vunpack.c.l.b16 %v5152
      %v5214 = vunpack.c.l.b16 %v5153
      %v5215 = vunpack.c.l.b16 %v5154
      %v5216 = vunpack.c.l.b16 %v5155
      %v5217 = vunpack.c.l.b16 %v5156
      %v5218 = vunpack.c.l.b16 %v5157
      %v5219 = vunpack.c.l.b16 %v5158
      %v5220 = vunpack.c.l.b16 %v5159
      %v5221 = vpack.c.b16 %v5198, %v5197
      %v5222 = vpack.c.b16 %v5200, %v5199
      %v5223 = vpack.c.b16 %v5202, %v5201
      %v5224 = vpack.c.b16 %v5204, %v5203
      %v5225 = vpack.c.b16 %v5206, %v5205
      %v5226 = vpack.c.b16 %v5208, %v5207
      %v5227 = vpack.c.b16 %v5210, %v5209
      %v5228 = vpack.c.b16 %v5212, %v5211
      %v5229 = vpack.c.b16 %v5214, %v5213
      %v5230 = vpack.c.b16 %v5216, %v5215
      %v5231 = vpack.c.b16 %v5218, %v5217
      %v5232 = vpack.c.b16 %v5220, %v5219
      %v5233 = vrot.slane %v5221, 3
      %v5234 = vrot.slane %v5222, 3
      %v5235 = vsel %vm3361, %v5233, %v5234
      %v5236 = vrot.slane %v5223, 3
      %v5237 = vsel %vm3361, %v5234, %v5236
      %v5238 = vrot.slane %v5224, 3
      %v5239 = vsel %vm3361, %v5236, %v5238
      %v5240 = vrot.slane %v5225, 3
      %v5241 = vsel %vm3361, %v5238, %v5240
      %v5242 = vrot.slane %v5226, 3
      %v5243 = vsel %vm3361, %v5240, %v5242
      %v5244 = vrot.slane %v5227, 3
      %v5245 = vsel %vm3361, %v5242, %v5244
      %v5246 = vrot.slane %v5228, 3
      %v5247 = vsel %vm3361, %v5244, %v5246
      %v5248 = vrot.slane %v5229, 3
      %v5249 = vsel %vm3361, %v5246, %v5248
      %v5250 = vrot.slane %v5230, 3
      %v5251 = vsel %vm3361, %v5248, %v5250
      %v5252 = vrot.slane %v5231, 3
      %v5253 = vsel %vm3361, %v5250, %v5252
      %v5254 = vrot.slane %v5232, 3
      %v5255 = vsel %vm3361, %v5252, %v5254
      %v5268 = vunpack.c.l.b16 %v5161
      %v5269 = vunpack.c.l.b16 %v5162
      %v5270 = vunpack.c.l.b16 %v5163
      %v5271 = vunpack.c.l.b16 %v5164
      %v5272 = vunpack.c.l.b16 %v5165
      %v5273 = vunpack.c.l.b16 %v5166
      %v5274 = vunpack.c.l.b16 %v5167
      %v5275 = vunpack.c.l.b16 %v5168
      %v5276 = vunpack.c.l.b16 %v5169
      %v5277 = vunpack.c.l.b16 %v5170
      %v5278 = vunpack.c.l.b16 %v5171
      %v5279 = vunpack.c.l.b16 %v5172
      %v5280 = vpack.c.b16 %v5269, %v5268
      %v5281 = vpack.c.b16 %v5271, %v5270
      %v5282 = vpack.c.b16 %v5273, %v5272
      %v5283 = vpack.c.b16 %v5275, %v5274
      %v5284 = vpack.c.b16 %v5277, %v5276
      %v5285 = vpack.c.b16 %v5279, %v5278
      %v5293 = vsel %vm1582, %v5235, 0
      %v5296 = vsel %vm1582, %v5237, 0
      %v5299 = vsel %vm1582, %v5239, 0
      %v5302 = vsel %vm1582, %v5241, 0
      %v5305 = vsel %vm1582, %v5243, 0
      %v5308 = vsel %vm1582, %v5245, 0
      %v5311 = vsel %vm1582, %v5247, 0
      %v5314 = vsel %vm1582, %v5249, 0
      %v5317 = vsel %vm1582, %v5251, 0
      %v5320 = vsel %vm1582, %v5253, 0
      %v5323 = vsel %vm1582, %v5255, 0
      %v5326 = vsel %vm1582, %v5254, 0
      %5328 = vmatpush.bf16.msra.mxu0 0
      %5329 = vmatpush.bf16.msra.mxu0 0
      %5330 = vmatpush.bf16.msra.mxu0 %v5285
      %5331 = vmatpush.bf16.msra.mxu0 %v5284
      %5332 = vmatpush.bf16.msra.mxu0 %v5283
      %5333 = vmatpush.bf16.msra.mxu0 %v5282
      %5334 = vmatpush.bf16.msra.mxu0 %v5281
      %5335 = vmatpush.bf16.msra.mxu0 %v5280
      %5336 = vmatmul.bf16.gmra.mxu0 %v5293
      %v5337 = vpop.f32.mrf.mxu0
      %v5338 = vadd.f32 0.0, %v5337
      %v5339 = vpop.f32.mrf.mxu0
      %v5340 = vadd.f32 0.0, %v5339
      %5341 = vmatmul.bf16.gmra.mxu0 %v5296
      %v5342 = vpop.f32.mrf.mxu0
      %v5343 = vadd.f32 0.0, %v5342
      %v5344 = vpop.f32.mrf.mxu0
      %v5345 = vadd.f32 0.0, %v5344
      %5346 = vmatmul.bf16.gmra.mxu0 %v5299
      %v5347 = vpop.f32.mrf.mxu0
      %v5348 = vadd.f32 0.0, %v5347
      %v5349 = vpop.f32.mrf.mxu0
      %v5350 = vadd.f32 0.0, %v5349
      %5351 = vmatmul.bf16.gmra.mxu0 %v5302
      %v5352 = vpop.f32.mrf.mxu0
      %v5353 = vadd.f32 0.0, %v5352
      %v5354 = vpop.f32.mrf.mxu0
      %v5355 = vadd.f32 0.0, %v5354
      %5356 = vmatmul.bf16.gmra.mxu0 %v5305
      %v5357 = vpop.f32.mrf.mxu0
      %v5358 = vadd.f32 0.0, %v5357
      %v5359 = vpop.f32.mrf.mxu0
      %v5360 = vadd.f32 0.0, %v5359
      %5361 = vmatmul.bf16.gmra.mxu0 %v5308
      %v5362 = vpop.f32.mrf.mxu0
      %v5363 = vadd.f32 0.0, %v5362
      %v5364 = vpop.f32.mrf.mxu0
      %v5365 = vadd.f32 0.0, %v5364
      %5366 = vmatmul.bf16.gmra.mxu0 %v5311
      %v5367 = vpop.f32.mrf.mxu0
      %v5368 = vadd.f32 0.0, %v5367
      %v5369 = vpop.f32.mrf.mxu0
      %v5370 = vadd.f32 0.0, %v5369
      %5371 = vmatmul.bf16.gmra.mxu0 %v5314
      %v5372 = vpop.f32.mrf.mxu0
      %v5373 = vadd.f32 0.0, %v5372
      %v5374 = vpop.f32.mrf.mxu0
      %v5375 = vadd.f32 0.0, %v5374
      %5376 = vmatmul.bf16.gmra.mxu0 %v5317
      %v5377 = vpop.f32.mrf.mxu0
      %v5378 = vadd.f32 0.0, %v5377
      %v5379 = vpop.f32.mrf.mxu0
      %v5380 = vadd.f32 0.0, %v5379
      %5381 = vmatmul.bf16.gmra.mxu0 %v5320
      %v5382 = vpop.f32.mrf.mxu0
      %v5383 = vadd.f32 0.0, %v5382
      %v5384 = vpop.f32.mrf.mxu0
      %v5385 = vadd.f32 0.0, %v5384
      %5386 = vmatmul.bf16.gmra.mxu0 %v5323
      %v5387 = vpop.f32.mrf.mxu0
      %v5388 = vadd.f32 0.0, %v5387
      %v5389 = vpop.f32.mrf.mxu0
      %v5390 = vadd.f32 0.0, %v5389
      %5391 = vmatmul.bf16.gmra.mxu0 %v5326
      %v5392 = vpop.f32.mrf.mxu0
      %v5393 = vadd.f32 0.0, %v5392
      %v5394 = vpop.f32.mrf.mxu0
      %5395 = vdwg.mxu0
      %v5396 = vadd.f32 %v5078, %v5338
      %v5397 = vadd.f32 %v5080, %v5340
      %v5398 = vadd.f32 %v5083, %v5343
      %v5399 = vadd.f32 %v5085, %v5345
      %v5400 = vadd.f32 %v5088, %v5348
      %v5401 = vadd.f32 %v5090, %v5350
      %v5402 = vadd.f32 %v5093, %v5353
      %v5403 = vadd.f32 %v5095, %v5355
      %v5404 = vadd.f32 %v5098, %v5358
      %v5405 = vadd.f32 %v5100, %v5360
      %v5406 = vadd.f32 %v5103, %v5363
      %v5407 = vadd.f32 %v5105, %v5365
      %v5408 = vadd.f32 %v5108, %v5368
      %v5409 = vadd.f32 %v5110, %v5370
      %v5410 = vadd.f32 %v5113, %v5373
      %v5411 = vadd.f32 %v5115, %v5375
      %v5412 = vadd.f32 %v5118, %v5378
      %v5413 = vadd.f32 %v5120, %v5380
      %v5414 = vadd.f32 %v5123, %v5383
      %v5415 = vadd.f32 %v5125, %v5385
      %v5416 = vadd.f32 %v5128, %v5388
      %v5417 = vadd.f32 %v5130, %v5390
      %v5418 = vadd.f32 %v5133, %v5393
      %v5419 = vld [vmem:[%s6] sm:$0x1]
      %v5421 = vperm.slane %v5419, 0
      %v5423 = vadd.f32 %v5396, %v5421
      %v5424 = vadd.f32 %v5397, %v5421
      %v5425 = vadd.f32 %v5398, %v5421
      %v5426 = vadd.f32 %v5399, %v5421
      %v5427 = vadd.f32 %v5400, %v5421
      %v5428 = vadd.f32 %v5401, %v5421
      %v5429 = vadd.f32 %v5402, %v5421
      %v5430 = vadd.f32 %v5403, %v5421
      %v5431 = vadd.f32 %v5404, %v5421
      %v5432 = vadd.f32 %v5405, %v5421
      %v5433 = vadd.f32 %v5406, %v5421
      %v5434 = vadd.f32 %v5407, %v5421
      %v5435 = vadd.f32 %v5408, %v5421
      %v5436 = vadd.f32 %v5409, %v5421
      %v5437 = vadd.f32 %v5410, %v5421
      %v5438 = vadd.f32 %v5411, %v5421
      %v5439 = vadd.f32 %v5412, %v5421
      %v5440 = vadd.f32 %v5413, %v5421
      %v5441 = vadd.f32 %v5414, %v5421
      %v5442 = vadd.f32 %v5415, %v5421
      %v5443 = vadd.f32 %v5416, %v5421
      %v5444 = vadd.f32 %v5417, %v5421
      %v5445 = vadd.f32 %v5418, %v5421
      %v5446 = vmax.f32 %v5423, 0.0
      %v5447 = vmax.f32 %v5424, 0.0
      %v5448 = vmax.f32 %v5425, 0.0
      %v5449 = vmax.f32 %v5426, 0.0
      %v5450 = vmax.f32 %v5427, 0.0
      %v5451 = vmax.f32 %v5428, 0.0
      %v5452 = vmax.f32 %v5429, 0.0
      %v5453 = vmax.f32 %v5430, 0.0
      %v5454 = vmax.f32 %v5431, 0.0
      %v5455 = vmax.f32 %v5432, 0.0
      %v5456 = vmax.f32 %v5433, 0.0
      %v5457 = vmax.f32 %v5434, 0.0
      %v5458 = vmax.f32 %v5435, 0.0
      %v5459 = vmax.f32 %v5436, 0.0
      %v5460 = vmax.f32 %v5437, 0.0
      %v5461 = vmax.f32 %v5438, 0.0
      %v5462 = vmax.f32 %v5439, 0.0
      %v5463 = vmax.f32 %v5440, 0.0
      %v5464 = vmax.f32 %v5441, 0.0
      %v5465 = vmax.f32 %v5442, 0.0
      %v5466 = vmax.f32 %v5443, 0.0
      %v5467 = vmax.f32 %v5444, 0.0
      %v5468 = vmax.f32 %v5445, 0.0
      %v5469 = vld [vmem:[%s504 + $0x12] sm:$0xff]
      %v5470 = vld [vmem:[%s504 + $0x1a] sm:$0xff]
      %v5471 = vld [vmem:[%s504 + $0x22] sm:$0xff]
      %v5472 = vld [vmem:[%s504 + $0x2a] sm:$0xff]
      %v5473 = vld [vmem:[%s504 + $0x32] sm:$0xff]
      %v5474 = vld [vmem:[%s504 + $0x3a] sm:$0xff]
      %v5475 = vld [vmem:[%s504 + $0x42] sm:$0xff]
      %v5476 = vld [vmem:[%s504 + $0x4a] sm:$0xff]
      %v5477 = vld [vmem:[%s504 + $0x52] sm:$0xff]
      %v5478 = vld [vmem:[%s504 + $0x5a] sm:$0xff]
      %v5479 = vld [vmem:[%s504 + $0x62] sm:$0xff]
      %v5480 = vld [vmem:[%s504 + $0x6a] sm:$0xff]
      %v5481 = vld [vmem:[%s504 + $0x72] sm:$0xff]
      %v5482 = vld [vmem:[%s504 + $0x7a] sm:$0xff]
      %v5483 = vld [vmem:[%s504 + $0x82] sm:$0xff]
      %v5484 = vld [vmem:[%s504 + $0x8a] sm:$0xff]
      %v5485 = vld [vmem:[%s504 + $0x92] sm:$0xff]
      %v5486 = vld [vmem:[%s504 + $0x9a] sm:$0xff]
      %v5487 = vld [vmem:[%s504 + $0xa2] sm:$0xff]
      %v5488 = vld [vmem:[%s504 + $0xaa] sm:$0xff]
      %v5489 = vld [vmem:[%s504 + $0xb2] sm:$0xff]
      %v5490 = vld [vmem:[%s504 + $0xba] sm:$0xff]
      %v5491 = vld [vmem:[%s504 + $0xc2] sm:$0xf]
      %vm5492 = vcmp.gt.f32.partialorder %v5469, 0.0
      %vm5493 = vcmp.gt.f32.partialorder %v5470, 0.0
      %vm5494 = vcmp.gt.f32.partialorder %v5471, 0.0
      %vm5495 = vcmp.gt.f32.partialorder %v5472, 0.0
      %vm5496 = vcmp.gt.f32.partialorder %v5473, 0.0
      %vm5497 = vcmp.gt.f32.partialorder %v5474, 0.0
      %vm5498 = vcmp.gt.f32.partialorder %v5475, 0.0
      %vm5499 = vcmp.gt.f32.partialorder %v5476, 0.0
      %vm5500 = vcmp.gt.f32.partialorder %v5477, 0.0
      %vm5501 = vcmp.gt.f32.partialorder %v5478, 0.0
      %vm5502 = vcmp.gt.f32.partialorder %v5479, 0.0
      %vm5503 = vcmp.gt.f32.partialorder %v5480, 0.0
      %vm5504 = vcmp.gt.f32.partialorder %v5481, 0.0
      %vm5505 = vcmp.gt.f32.partialorder %v5482, 0.0
      %vm5506 = vcmp.gt.f32.partialorder %v5483, 0.0
      %vm5507 = vcmp.gt.f32.partialorder %v5484, 0.0
      %vm5508 = vcmp.gt.f32.partialorder %v5485, 0.0
      %vm5509 = vcmp.gt.f32.partialorder %v5486, 0.0
      %vm5510 = vcmp.gt.f32.partialorder %v5487, 0.0
      %vm5511 = vcmp.gt.f32.partialorder %v5488, 0.0
      %vm5512 = vcmp.gt.f32.partialorder %v5489, 0.0
      %vm5513 = vcmp.gt.f32.partialorder %v5490, 0.0
      %vm5514 = vcmp.gt.f32.partialorder %v5491, 0.0
      %v5515 = vsel %vm5492, 1, 0
      %v5516 = vsel %vm5493, 1, 0
      %v5517 = vsel %vm5494, 1, 0
      %v5518 = vsel %vm5495, 1, 0
      %v5519 = vsel %vm5496, 1, 0
      %v5520 = vsel %vm5497, 1, 0
      %v5521 = vsel %vm5498, 1, 0
      %v5522 = vsel %vm5499, 1, 0
      %v5523 = vsel %vm5500, 1, 0
      %v5524 = vsel %vm5501, 1, 0
      %v5525 = vsel %vm5502, 1, 0
      %v5526 = vsel %vm5503, 1, 0
      %v5527 = vsel %vm5504, 1, 0
      %v5528 = vsel %vm5505, 1, 0
      %v5529 = vsel %vm5506, 1, 0
      %v5530 = vsel %vm5507, 1, 0
      %v5531 = vsel %vm5508, 1, 0
      %v5532 = vsel %vm5509, 1, 0
      %v5533 = vsel %vm5510, 1, 0
      %v5534 = vsel %vm5511, 1, 0
      %v5535 = vsel %vm5512, 1, 0
      %v5536 = vsel %vm5513, 1, 0
      %v5537 = vsel %vm5514, 1, 0
      %5538 = vset.pattern.permute.xlu0 0
      %5539 = vperm.xlu0 %5538, %v5515
      %v5540 = vpop.permute.xlu0 %5539
      %5541 = vset.pattern.permute.xlu0 0
      %5542 = vperm.xlu0 %5541, %v5516
      %v5543 = vpop.permute.xlu0 %5542
      %5544 = vset.pattern.permute.xlu0 0
      %5545 = vperm.xlu0 %5544, %v5517
      %v5546 = vpop.permute.xlu0 %5545
      %5547 = vset.pattern.permute.xlu0 0
      %5548 = vperm.xlu0 %5547, %v5518
      %v5549 = vpop.permute.xlu0 %5548
      %5550 = vset.pattern.permute.xlu0 0
      %5551 = vperm.xlu0 %5550, %v5519
      %v5552 = vpop.permute.xlu0 %5551
      %5553 = vset.pattern.permute.xlu0 0
      %5554 = vperm.xlu0 %5553, %v5520
      %v5555 = vpop.permute.xlu0 %5554
      %5556 = vset.pattern.permute.xlu0 0
      %5557 = vperm.xlu0 %5556, %v5521
      %v5558 = vpop.permute.xlu0 %5557
      %5559 = vset.pattern.permute.xlu0 0
      %5560 = vperm.xlu0 %5559, %v5522
      %v5561 = vpop.permute.xlu0 %5560
      %5562 = vset.pattern.permute.xlu0 0
      %5563 = vperm.xlu0 %5562, %v5523
      %v5564 = vpop.permute.xlu0 %5563
      %5565 = vset.pattern.permute.xlu0 0
      %5566 = vperm.xlu0 %5565, %v5524
      %v5567 = vpop.permute.xlu0 %5566
      %5568 = vset.pattern.permute.xlu0 0
      %5569 = vperm.xlu0 %5568, %v5525
      %v5570 = vpop.permute.xlu0 %5569
      %5571 = vset.pattern.permute.xlu0 0
      %5572 = vperm.xlu0 %5571, %v5526
      %v5573 = vpop.permute.xlu0 %5572
      %5574 = vset.pattern.permute.xlu0 0
      %5575 = vperm.xlu0 %5574, %v5527
      %v5576 = vpop.permute.xlu0 %5575
      %5577 = vset.pattern.permute.xlu0 0
      %5578 = vperm.xlu0 %5577, %v5528
      %v5579 = vpop.permute.xlu0 %5578
      %5580 = vset.pattern.permute.xlu0 0
      %5581 = vperm.xlu0 %5580, %v5529
      %v5582 = vpop.permute.xlu0 %5581
      %5583 = vset.pattern.permute.xlu0 0
      %5584 = vperm.xlu0 %5583, %v5530
      %v5585 = vpop.permute.xlu0 %5584
      %5586 = vset.pattern.permute.xlu0 0
      %5587 = vperm.xlu0 %5586, %v5531
      %v5588 = vpop.permute.xlu0 %5587
      %5589 = vset.pattern.permute.xlu0 0
      %5590 = vperm.xlu0 %5589, %v5532
      %v5591 = vpop.permute.xlu0 %5590
      %5592 = vset.pattern.permute.xlu0 0
      %5593 = vperm.xlu0 %5592, %v5533
      %v5594 = vpop.permute.xlu0 %5593
      %5595 = vset.pattern.permute.xlu0 0
      %5596 = vperm.xlu0 %5595, %v5534
      %v5597 = vpop.permute.xlu0 %5596
      %5598 = vset.pattern.permute.xlu0 0
      %5599 = vperm.xlu0 %5598, %v5535
      %v5600 = vpop.permute.xlu0 %5599
      %5601 = vset.pattern.permute.xlu0 0
      %5602 = vperm.xlu0 %5601, %v5536
      %v5603 = vpop.permute.xlu0 %5602
      %5604 = vset.pattern.permute.xlu0 0
      %5605 = vperm.xlu0 %5604, %v5537
      %v5606 = vpop.permute.xlu0 %5605
      %vm5607 = vcmp.eq.s32.totalorder %v5540, 1
      %vm5608 = vcmp.eq.s32.totalorder %v5543, 1
      %vm5609 = vcmp.eq.s32.totalorder %v5546, 1
      %vm5610 = vcmp.eq.s32.totalorder %v5549, 1
      %vm5611 = vcmp.eq.s32.totalorder %v5552, 1
      %vm5612 = vcmp.eq.s32.totalorder %v5555, 1
      %vm5613 = vcmp.eq.s32.totalorder %v5558, 1
      %vm5614 = vcmp.eq.s32.totalorder %v5561, 1
      %vm5615 = vcmp.eq.s32.totalorder %v5564, 1
      %vm5616 = vcmp.eq.s32.totalorder %v5567, 1
      %vm5617 = vcmp.eq.s32.totalorder %v5570, 1
      %vm5618 = vcmp.eq.s32.totalorder %v5573, 1
      %vm5619 = vcmp.eq.s32.totalorder %v5576, 1
      %vm5620 = vcmp.eq.s32.totalorder %v5579, 1
      %vm5621 = vcmp.eq.s32.totalorder %v5582, 1
      %vm5622 = vcmp.eq.s32.totalorder %v5585, 1
      %vm5623 = vcmp.eq.s32.totalorder %v5588, 1
      %vm5624 = vcmp.eq.s32.totalorder %v5591, 1
      %vm5625 = vcmp.eq.s32.totalorder %v5594, 1
      %vm5626 = vcmp.eq.s32.totalorder %v5597, 1
      %vm5627 = vcmp.eq.s32.totalorder %v5600, 1
      %vm5628 = vcmp.eq.s32.totalorder %v5603, 1
      %vm5629 = vcmp.eq.s32.totalorder %v5606, 1
      %v5630 = vsel %vm5607, %v5446, 0.0
      %v5631 = vsel %vm5608, %v5447, 0.0
      %v5632 = vsel %vm5609, %v5448, 0.0
      %v5633 = vsel %vm5610, %v5449, 0.0
      %v5634 = vsel %vm5611, %v5450, 0.0
      %v5635 = vsel %vm5612, %v5451, 0.0
      %v5636 = vsel %vm5613, %v5452, 0.0
      %v5637 = vsel %vm5614, %v5453, 0.0
      %v5638 = vsel %vm5615, %v5454, 0.0
      %v5639 = vsel %vm5616, %v5455, 0.0
      %v5640 = vsel %vm5617, %v5456, 0.0
      %v5641 = vsel %vm5618, %v5457, 0.0
      %v5642 = vsel %vm5619, %v5458, 0.0
      %v5643 = vsel %vm5620, %v5459, 0.0
      %v5644 = vsel %vm5621, %v5460, 0.0
      %v5645 = vsel %vm5622, %v5461, 0.0
      %v5646 = vsel %vm5623, %v5462, 0.0
      %v5647 = vsel %vm5624, %v5463, 0.0
      %v5648 = vsel %vm5625, %v5464, 0.0
      %v5649 = vsel %vm5626, %v5465, 0.0
      %v5650 = vsel %vm5627, %v5466, 0.0
      %v5651 = vsel %vm5628, %v5467, 0.0
      %v5652 = vsel %vm5629, %v5468, 0.0
      %v5653 = vpack.c.bf16 %v5630, %v5630
      %v5654 = vpack.c.bf16 %v5631, %v5631
      %v5655 = vpack.c.bf16 %v5632, %v5632
      %v5656 = vpack.c.bf16 %v5633, %v5633
      %v5657 = vpack.c.bf16 %v5634, %v5634
      %v5658 = vpack.c.bf16 %v5635, %v5635
      %v5659 = vpack.c.bf16 %v5636, %v5636
      %v5660 = vpack.c.bf16 %v5637, %v5637
      %v5661 = vpack.c.bf16 %v5638, %v5638
      %v5662 = vpack.c.bf16 %v5639, %v5639
      %v5663 = vpack.c.bf16 %v5640, %v5640
      %v5664 = vpack.c.bf16 %v5641, %v5641
      %v5665 = vpack.c.bf16 %v5642, %v5642
      %v5666 = vpack.c.bf16 %v5643, %v5643
      %v5667 = vpack.c.bf16 %v5644, %v5644
      %v5668 = vpack.c.bf16 %v5645, %v5645
      %v5669 = vpack.c.bf16 %v5646, %v5646
      %v5670 = vpack.c.bf16 %v5647, %v5647
      %v5671 = vpack.c.bf16 %v5648, %v5648
      %v5672 = vpack.c.bf16 %v5649, %v5649
      %v5673 = vpack.c.bf16 %v5650, %v5650
      %v5674 = vpack.c.bf16 %v5651, %v5651
      %v5675 = vpack.c.bf16 %v5652, %v5652
      %v5676 = vld [vmem:[#allocation4 + $0x8] sm:$0x2]
      %v5677 = vsel %vm2466, 0, %v5676
      %5678 = vst [vmem:[#allocation4 + $0x8] sm:$0x2] %v5677
      %vm5679 = vcmask 780802
      %vm5680 = vsmask.f32 7946
      %vm5681 = vmand %vm5679, %vm5680
      %v5682 = vld [vmem:[#allocation4 + $0x60] sm:$0x4]
      %v5683 = vsel %vm5681, 0, %v5682
      %5684 = vst [vmem:[#allocation4 + $0x60] sm:$0x4] %v5683
      %v5686 = vshrl.u32 %v5653, 16
      %v5688 = vrot.slane %v5686, 6
      %v5689 = vshll.u32 %v5653, 16
      %v5691 = vrot.slane %v5689, 7
      %v5692 = vor.u32 %v5688, %v5691
      %v5693 = vrot.slane %v5692, 4
      %v5695 = vshrl.u32 %v5654, 16
      %v5697 = vrot.slane %v5695, 6
      %v5698 = vshll.u32 %v5654, 16
      %v5700 = vrot.slane %v5698, 7
      %v5701 = vor.u32 %v5697, %v5700
      %v5702 = vsel %vm2477, %v5693, %v5701
      %v5703 = vrot.slane %v5701, 4
      %v5705 = vshrl.u32 %v5655, 16
      %v5707 = vrot.slane %v5705, 6
      %v5708 = vshll.u32 %v5655, 16
      %v5710 = vrot.slane %v5708, 7
      %v5711 = vor.u32 %v5707, %v5710
      %v5712 = vsel %vm2477, %v5703, %v5711
      %v5713 = vrot.slane %v5711, 4
      %v5715 = vshrl.u32 %v5656, 16
      %v5717 = vrot.slane %v5715, 6
      %v5718 = vshll.u32 %v5656, 16
      %v5720 = vrot.slane %v5718, 7
      %v5721 = vor.u32 %v5717, %v5720
      %v5722 = vsel %vm2477, %v5713, %v5721
      %v5723 = vrot.slane %v5721, 4
      %v5725 = vshrl.u32 %v5657, 16
      %v5727 = vrot.slane %v5725, 6
      %v5728 = vshll.u32 %v5657, 16
      %v5730 = vrot.slane %v5728, 7
      %v5731 = vor.u32 %v5727, %v5730
      %v5732 = vsel %vm2477, %v5723, %v5731
      %v5733 = vrot.slane %v5731, 4
      %v5735 = vshrl.u32 %v5658, 16
      %v5737 = vrot.slane %v5735, 6
      %v5738 = vshll.u32 %v5658, 16
      %v5740 = vrot.slane %v5738, 7
      %v5741 = vor.u32 %v5737, %v5740
      %v5742 = vsel %vm2477, %v5733, %v5741
      %v5743 = vrot.slane %v5741, 4
      %v5745 = vshrl.u32 %v5659, 16
      %v5747 = vrot.slane %v5745, 6
      %v5748 = vshll.u32 %v5659, 16
      %v5750 = vrot.slane %v5748, 7
      %v5751 = vor.u32 %v5747, %v5750
      %v5752 = vsel %vm2477, %v5743, %v5751
      %v5753 = vrot.slane %v5751, 4
      %v5755 = vshrl.u32 %v5660, 16
      %v5757 = vrot.slane %v5755, 6
      %v5758 = vshll.u32 %v5660, 16
      %v5760 = vrot.slane %v5758, 7
      %v5761 = vor.u32 %v5757, %v5760
      %v5762 = vsel %vm2477, %v5753, %v5761
      %v5763 = vrot.slane %v5761, 4
      %v5765 = vshrl.u32 %v5661, 16
      %v5767 = vrot.slane %v5765, 6
      %v5768 = vshll.u32 %v5661, 16
      %v5770 = vrot.slane %v5768, 7
      %v5771 = vor.u32 %v5767, %v5770
      %v5772 = vsel %vm2477, %v5763, %v5771
      %v5773 = vrot.slane %v5771, 4
      %v5775 = vshrl.u32 %v5662, 16
      %v5777 = vrot.slane %v5775, 6
      %v5778 = vshll.u32 %v5662, 16
      %v5780 = vrot.slane %v5778, 7
      %v5781 = vor.u32 %v5777, %v5780
      %v5782 = vsel %vm2477, %v5773, %v5781
      %v5783 = vrot.slane %v5781, 4
      %v5785 = vshrl.u32 %v5663, 16
      %v5787 = vrot.slane %v5785, 6
      %v5788 = vshll.u32 %v5663, 16
      %v5790 = vrot.slane %v5788, 7
      %v5791 = vor.u32 %v5787, %v5790
      %v5792 = vsel %vm2477, %v5783, %v5791
      %v5793 = vrot.slane %v5791, 4
      %v5795 = vshrl.u32 %v5664, 16
      %v5797 = vrot.slane %v5795, 6
      %v5798 = vshll.u32 %v5664, 16
      %v5800 = vrot.slane %v5798, 7
      %v5801 = vor.u32 %v5797, %v5800
      %v5802 = vsel %vm2477, %v5793, %v5801
      %v5803 = vrot.slane %v5801, 4
      %v5805 = vshrl.u32 %v5665, 16
      %v5807 = vrot.slane %v5805, 6
      %v5808 = vshll.u32 %v5665, 16
      %v5810 = vrot.slane %v5808, 7
      %v5811 = vor.u32 %v5807, %v5810
      %v5812 = vsel %vm2477, %v5803, %v5811
      %v5813 = vrot.slane %v5811, 4
      %v5815 = vshrl.u32 %v5666, 16
      %v5817 = vrot.slane %v5815, 6
      %v5818 = vshll.u32 %v5666, 16
      %v5820 = vrot.slane %v5818, 7
      %v5821 = vor.u32 %v5817, %v5820
      %v5822 = vsel %vm2477, %v5813, %v5821
      %v5823 = vrot.slane %v5821, 4
      %v5825 = vshrl.u32 %v5667, 16
      %v5827 = vrot.slane %v5825, 6
      %v5828 = vshll.u32 %v5667, 16
      %v5830 = vrot.slane %v5828, 7
      %v5831 = vor.u32 %v5827, %v5830
      %v5832 = vsel %vm2477, %v5823, %v5831
      %v5833 = vrot.slane %v5831, 4
      %v5835 = vshrl.u32 %v5668, 16
      %v5837 = vrot.slane %v5835, 6
      %v5838 = vshll.u32 %v5668, 16
      %v5840 = vrot.slane %v5838, 7
      %v5841 = vor.u32 %v5837, %v5840
      %v5842 = vsel %vm2477, %v5833, %v5841
      %v5843 = vrot.slane %v5841, 4
      %v5845 = vshrl.u32 %v5669, 16
      %v5847 = vrot.slane %v5845, 6
      %v5848 = vshll.u32 %v5669, 16
      %v5850 = vrot.slane %v5848, 7
      %v5851 = vor.u32 %v5847, %v5850
      %v5852 = vsel %vm2477, %v5843, %v5851
      %v5853 = vrot.slane %v5851, 4
      %v5855 = vshrl.u32 %v5670, 16
      %v5857 = vrot.slane %v5855, 6
      %v5858 = vshll.u32 %v5670, 16
      %v5860 = vrot.slane %v5858, 7
      %v5861 = vor.u32 %v5857, %v5860
      %v5862 = vsel %vm2477, %v5853, %v5861
      %v5863 = vrot.slane %v5861, 4
      %v5865 = vshrl.u32 %v5671, 16
      %v5867 = vrot.slane %v5865, 6
      %v5868 = vshll.u32 %v5671, 16
      %v5870 = vrot.slane %v5868, 7
      %v5871 = vor.u32 %v5867, %v5870
      %v5872 = vsel %vm2477, %v5863, %v5871
      %v5873 = vrot.slane %v5871, 4
      %v5875 = vshrl.u32 %v5672, 16
      %v5877 = vrot.slane %v5875, 6
      %v5878 = vshll.u32 %v5672, 16
      %v5880 = vrot.slane %v5878, 7
      %v5881 = vor.u32 %v5877, %v5880
      %v5882 = vsel %vm2477, %v5873, %v5881
      %v5883 = vrot.slane %v5881, 4
      %v5885 = vshrl.u32 %v5673, 16
      %v5887 = vrot.slane %v5885, 6
      %v5888 = vshll.u32 %v5673, 16
      %v5890 = vrot.slane %v5888, 7
      %v5891 = vor.u32 %v5887, %v5890
      %v5892 = vsel %vm2477, %v5883, %v5891
      %v5893 = vrot.slane %v5891, 4
      %v5895 = vshrl.u32 %v5674, 16
      %v5897 = vrot.slane %v5895, 6
      %v5898 = vshll.u32 %v5674, 16
      %v5900 = vrot.slane %v5898, 7
      %v5901 = vor.u32 %v5897, %v5900
      %v5902 = vsel %vm2477, %v5893, %v5901
      %v5903 = vrot.slane %v5901, 4
      %v5905 = vshrl.u32 %v5675, 16
      %v5907 = vrot.slane %v5905, 6
      %v5908 = vshll.u32 %v5675, 16
      %v5910 = vrot.slane %v5908, 7
      %v5911 = vor.u32 %v5907, %v5910
      %v5912 = vsel %vm2477, %v5903, %v5911
      %v5936 = vld [vmem:[#allocation4 + $0x8] sm:$0xe]
      %v5937 = vsel %vm2777, %v5692, %v5936
      %5938 = vst [vmem:[#allocation4 + $0x8] sm:$0xe] %v5937
      %5939 = vst.msk [vmem:[#allocation4 + $0xc] sm:$0xf] %vm555, %v5702
      %5940 = vst.msk [vmem:[#allocation4 + $0x10] sm:$0xf] %vm555, %v5712
      %5941 = vst.msk [vmem:[#allocation4 + $0x14] sm:$0xf] %vm555, %v5722
      %5942 = vst.msk [vmem:[#allocation4 + $0x18] sm:$0xf] %vm555, %v5732
      %5943 = vst.msk [vmem:[#allocation4 + $0x1c] sm:$0xf] %vm555, %v5742
      %5944 = vst.msk [vmem:[#allocation4 + $0x20] sm:$0xf] %vm555, %v5752
      %5945 = vst.msk [vmem:[#allocation4 + $0x24] sm:$0xf] %vm555, %v5762
      %5946 = vst.msk [vmem:[#allocation4 + $0x28] sm:$0xf] %vm555, %v5772
      %5947 = vst.msk [vmem:[#allocation4 + $0x2c] sm:$0xf] %vm555, %v5782
      %5948 = vst.msk [vmem:[#allocation4 + $0x30] sm:$0xf] %vm555, %v5792
      %5949 = vst.msk [vmem:[#allocation4 + $0x34] sm:$0xf] %vm555, %v5802
      %5950 = vst.msk [vmem:[#allocation4 + $0x38] sm:$0xf] %vm555, %v5812
      %5951 = vst.msk [vmem:[#allocation4 + $0x3c] sm:$0xf] %vm555, %v5822
      %5952 = vst.msk [vmem:[#allocation4 + $0x40] sm:$0xf] %vm555, %v5832
      %5953 = vst.msk [vmem:[#allocation4 + $0x44] sm:$0xf] %vm555, %v5842
      %5954 = vst.msk [vmem:[#allocation4 + $0x48] sm:$0xf] %vm555, %v5852
      %5955 = vst.msk [vmem:[#allocation4 + $0x4c] sm:$0xf] %vm555, %v5862
      %5956 = vst.msk [vmem:[#allocation4 + $0x50] sm:$0xf] %vm555, %v5872
      %5957 = vst.msk [vmem:[#allocation4 + $0x54] sm:$0xf] %vm555, %v5882
      %5958 = vst.msk [vmem:[#allocation4 + $0x58] sm:$0xf] %vm555, %v5892
      %5959 = vst.msk [vmem:[#allocation4 + $0x5c] sm:$0xf] %vm555, %v5902
      %vm5960 = vcmask 257024
      %vm5961 = vmand %vm5960, %vm621
      %v5962 = vld [vmem:[#allocation4 + $0x60] sm:$0xf]
      %v5963 = vsel %vm5961, %v5912, %v5962
      %5964 = vst [vmem:[#allocation4 + $0x60] sm:$0xf] %v5963
      %v5988 = vrot.slane %v5653, 7
      %v5989 = vrot.slane %v5988, 4
      %v5990 = vrot.slane %v5654, 7
      %v5991 = vsel %vm2841, %v5989, %v5990
      %v5992 = vrot.slane %v5990, 4
      %v5993 = vrot.slane %v5655, 7
      %v5994 = vsel %vm2841, %v5992, %v5993
      %v5995 = vrot.slane %v5993, 4
      %v5996 = vrot.slane %v5656, 7
      %v5997 = vsel %vm2841, %v5995, %v5996
      %v5998 = vrot.slane %v5996, 4
      %v5999 = vrot.slane %v5657, 7
      %v6000 = vsel %vm2841, %v5998, %v5999
      %v6001 = vrot.slane %v5999, 4
      %v6002 = vrot.slane %v5658, 7
      %v6003 = vsel %vm2841, %v6001, %v6002
      %v6004 = vrot.slane %v6002, 4
      %v6005 = vrot.slane %v5659, 7
      %v6006 = vsel %vm2841, %v6004, %v6005
      %v6007 = vrot.slane %v6005, 4
      %v6008 = vrot.slane %v5660, 7
      %v6009 = vsel %vm2841, %v6007, %v6008
      %v6010 = vrot.slane %v6008, 4
      %v6011 = vrot.slane %v5661, 7
      %v6012 = vsel %vm2841, %v6010, %v6011
      %v6013 = vrot.slane %v6011, 4
      %v6014 = vrot.slane %v5662, 7
      %v6015 = vsel %vm2841, %v6013, %v6014
      %v6016 = vrot.slane %v6014, 4
      %v6017 = vrot.slane %v5663, 7
      %v6018 = vsel %vm2841, %v6016, %v6017
      %v6019 = vrot.slane %v6017, 4
      %v6020 = vrot.slane %v5664, 7
      %v6021 = vsel %vm2841, %v6019, %v6020
      %v6022 = vrot.slane %v6020, 4
      %v6023 = vrot.slane %v5665, 7
      %v6024 = vsel %vm2841, %v6022, %v6023
      %v6025 = vrot.slane %v6023, 4
      %v6026 = vrot.slane %v5666, 7
      %v6027 = vsel %vm2841, %v6025, %v6026
      %v6028 = vrot.slane %v6026, 4
      %v6029 = vrot.slane %v5667, 7
      %v6030 = vsel %vm2841, %v6028, %v6029
      %v6031 = vrot.slane %v6029, 4
      %v6032 = vrot.slane %v5668, 7
      %v6033 = vsel %vm2841, %v6031, %v6032
      %v6034 = vrot.slane %v6032, 4
      %v6035 = vrot.slane %v5669, 7
      %v6036 = vsel %vm2841, %v6034, %v6035
      %v6037 = vrot.slane %v6035, 4
      %v6038 = vrot.slane %v5670, 7
      %v6039 = vsel %vm2841, %v6037, %v6038
      %v6040 = vrot.slane %v6038, 4
      %v6041 = vrot.slane %v5671, 7
      %v6042 = vsel %vm2841, %v6040, %v6041
      %v6043 = vrot.slane %v6041, 4
      %v6044 = vrot.slane %v5672, 7
      %v6045 = vsel %vm2841, %v6043, %v6044
      %v6046 = vrot.slane %v6044, 4
      %v6047 = vrot.slane %v5673, 7
      %v6048 = vsel %vm2841, %v6046, %v6047
      %v6049 = vrot.slane %v6047, 4
      %v6050 = vrot.slane %v5674, 7
      %v6051 = vsel %vm2841, %v6049, %v6050
      %v6052 = vrot.slane %v6050, 4
      %v6053 = vrot.slane %v5675, 7
      %v6054 = vsel %vm2841, %v6052, %v6053
      %6055 = vrot.lane.b32.xlu0 %v5988, 32
      %v6056 = vpop.permute.xlu0 %6055
      %6057 = vrot.lane.b32.xlu0 %v5991, 32
      %v6058 = vpop.permute.xlu0 %6057
      %6059 = vrot.lane.b32.xlu0 %v5994, 32
      %v6060 = vpop.permute.xlu0 %6059
      %6061 = vrot.lane.b32.xlu0 %v5997, 32
      %v6062 = vpop.permute.xlu0 %6061
      %6063 = vrot.lane.b32.xlu0 %v6000, 32
      %v6064 = vpop.permute.xlu0 %6063
      %6065 = vrot.lane.b32.xlu0 %v6003, 32
      %v6066 = vpop.permute.xlu0 %6065
      %6067 = vrot.lane.b32.xlu0 %v6006, 32
      %v6068 = vpop.permute.xlu0 %6067
      %6069 = vrot.lane.b32.xlu0 %v6009, 32
      %v6070 = vpop.permute.xlu0 %6069
      %6071 = vrot.lane.b32.xlu0 %v6012, 32
      %v6072 = vpop.permute.xlu0 %6071
      %6073 = vrot.lane.b32.xlu0 %v6015, 32
      %v6074 = vpop.permute.xlu0 %6073
      %6075 = vrot.lane.b32.xlu0 %v6018, 32
      %v6076 = vpop.permute.xlu0 %6075
      %6077 = vrot.lane.b32.xlu0 %v6021, 32
      %v6078 = vpop.permute.xlu0 %6077
      %6079 = vrot.lane.b32.xlu0 %v6024, 32
      %v6080 = vpop.permute.xlu0 %6079
      %6081 = vrot.lane.b32.xlu0 %v6027, 32
      %v6082 = vpop.permute.xlu0 %6081
      %6083 = vrot.lane.b32.xlu0 %v6030, 32
      %v6084 = vpop.permute.xlu0 %6083
      %6085 = vrot.lane.b32.xlu0 %v6033, 32
      %v6086 = vpop.permute.xlu0 %6085
      %6087 = vrot.lane.b32.xlu0 %v6036, 32
      %v6088 = vpop.permute.xlu0 %6087
      %6089 = vrot.lane.b32.xlu0 %v6039, 32
      %v6090 = vpop.permute.xlu0 %6089
      %6091 = vrot.lane.b32.xlu0 %v6042, 32
      %v6092 = vpop.permute.xlu0 %6091
      %6093 = vrot.lane.b32.xlu0 %v6045, 32
      %v6094 = vpop.permute.xlu0 %6093
      %6095 = vrot.lane.b32.xlu0 %v6048, 32
      %v6096 = vpop.permute.xlu0 %6095
      %6097 = vrot.lane.b32.xlu0 %v6051, 32
      %v6098 = vpop.permute.xlu0 %6097
      %6099 = vrot.lane.b32.xlu0 %v6054, 32
      %v6100 = vpop.permute.xlu0 %6099
      %6124 = vst.msk [vmem:[#allocation4 + $0x8] sm:$0xe] %vm3006, %v6056
      %6125 = vst.msk [vmem:[#allocation4 + $0xc] sm:$0xf] %vm1039, %v6058
      %6126 = vst.msk [vmem:[#allocation4 + $0x10] sm:$0xf] %vm1039, %v6060
      %6127 = vst.msk [vmem:[#allocation4 + $0x14] sm:$0xf] %vm1039, %v6062
      %6128 = vst.msk [vmem:[#allocation4 + $0x18] sm:$0xf] %vm1039, %v6064
      %6129 = vst.msk [vmem:[#allocation4 + $0x1c] sm:$0xf] %vm1039, %v6066
      %6130 = vst.msk [vmem:[#allocation4 + $0x20] sm:$0xf] %vm1039, %v6068
      %6131 = vst.msk [vmem:[#allocation4 + $0x24] sm:$0xf] %vm1039, %v6070
      %6132 = vst.msk [vmem:[#allocation4 + $0x28] sm:$0xf] %vm1039, %v6072
      %6133 = vst.msk [vmem:[#allocation4 + $0x2c] sm:$0xf] %vm1039, %v6074
      %6134 = vst.msk [vmem:[#allocation4 + $0x30] sm:$0xf] %vm1039, %v6076
      %6135 = vst.msk [vmem:[#allocation4 + $0x34] sm:$0xf] %vm1039, %v6078
      %6136 = vst.msk [vmem:[#allocation4 + $0x38] sm:$0xf] %vm1039, %v6080
      %6137 = vst.msk [vmem:[#allocation4 + $0x3c] sm:$0xf] %vm1039, %v6082
      %6138 = vst.msk [vmem:[#allocation4 + $0x40] sm:$0xf] %vm1039, %v6084
      %6139 = vst.msk [vmem:[#allocation4 + $0x44] sm:$0xf] %vm1039, %v6086
      %6140 = vst.msk [vmem:[#allocation4 + $0x48] sm:$0xf] %vm1039, %v6088
      %6141 = vst.msk [vmem:[#allocation4 + $0x4c] sm:$0xf] %vm1039, %v6090
      %6142 = vst.msk [vmem:[#allocation4 + $0x50] sm:$0xf] %vm1039, %v6092
      %6143 = vst.msk [vmem:[#allocation4 + $0x54] sm:$0xf] %vm1039, %v6094
      %6144 = vst.msk [vmem:[#allocation4 + $0x58] sm:$0xf] %vm1039, %v6096
      %6145 = vst.msk [vmem:[#allocation4 + $0x5c] sm:$0xf] %vm1039, %v6098
      %vm6146 = vcmask 518400
      %6147 = vst.msk [vmem:[#allocation4 + $0x60] sm:$0x7] %vm6146, %v6100
      %v6148 = vrot.slane %v5686, 7
      %v6149 = vor.u32 %v6148, %v5689
      %v6150 = vrot.slane %v6148, 4
      %v6151 = vrot.slane %v5695, 7
      %v6152 = vor.u32 %v6151, %v5698
      %v6153 = vsel %vm3038, %v6150, %v6152
      %v6154 = vrot.slane %v6151, 4
      %v6155 = vrot.slane %v5705, 7
      %v6156 = vor.u32 %v6155, %v5708
      %v6157 = vsel %vm3038, %v6154, %v6156
      %v6158 = vrot.slane %v6155, 4
      %v6159 = vrot.slane %v5715, 7
      %v6160 = vor.u32 %v6159, %v5718
      %v6161 = vsel %vm3038, %v6158, %v6160
      %v6162 = vrot.slane %v6159, 4
      %v6163 = vrot.slane %v5725, 7
      %v6164 = vor.u32 %v6163, %v5728
      %v6165 = vsel %vm3038, %v6162, %v6164
      %v6166 = vrot.slane %v6163, 4
      %v6167 = vrot.slane %v5735, 7
      %v6168 = vor.u32 %v6167, %v5738
      %v6169 = vsel %vm3038, %v6166, %v6168
      %v6170 = vrot.slane %v6167, 4
      %v6171 = vrot.slane %v5745, 7
      %v6172 = vor.u32 %v6171, %v5748
      %v6173 = vsel %vm3038, %v6170, %v6172
      %v6174 = vrot.slane %v6171, 4
      %v6175 = vrot.slane %v5755, 7
      %v6176 = vor.u32 %v6175, %v5758
      %v6177 = vsel %vm3038, %v6174, %v6176
      %v6178 = vrot.slane %v6175, 4
      %v6179 = vrot.slane %v5765, 7
      %v6180 = vor.u32 %v6179, %v5768
      %v6181 = vsel %vm3038, %v6178, %v6180
      %v6182 = vrot.slane %v6179, 4
      %v6183 = vrot.slane %v5775, 7
      %v6184 = vor.u32 %v6183, %v5778
      %v6185 = vsel %vm3038, %v6182, %v6184
      %v6186 = vrot.slane %v6183, 4
      %v6187 = vrot.slane %v5785, 7
      %v6188 = vor.u32 %v6187, %v5788
      %v6189 = vsel %vm3038, %v6186, %v6188
      %v6190 = vrot.slane %v6187, 4
      %v6191 = vrot.slane %v5795, 7
      %v6192 = vor.u32 %v6191, %v5798
      %v6193 = vsel %vm3038, %v6190, %v6192
      %v6194 = vrot.slane %v6191, 4
      %v6195 = vrot.slane %v5805, 7
      %v6196 = vor.u32 %v6195, %v5808
      %v6197 = vsel %vm3038, %v6194, %v6196
      %v6198 = vrot.slane %v6195, 4
      %v6199 = vrot.slane %v5815, 7
      %v6200 = vor.u32 %v6199, %v5818
      %v6201 = vsel %vm3038, %v6198, %v6200
      %v6202 = vrot.slane %v6199, 4
      %v6203 = vrot.slane %v5825, 7
      %v6204 = vor.u32 %v6203, %v5828
      %v6205 = vsel %vm3038, %v6202, %v6204
      %v6206 = vrot.slane %v6203, 4
      %v6207 = vrot.slane %v5835, 7
      %v6208 = vor.u32 %v6207, %v5838
      %v6209 = vsel %vm3038, %v6206, %v6208
      %v6210 = vrot.slane %v6207, 4
      %v6211 = vrot.slane %v5845, 7
      %v6212 = vor.u32 %v6211, %v5848
      %v6213 = vsel %vm3038, %v6210, %v6212
      %v6214 = vrot.slane %v6211, 4
      %v6215 = vrot.slane %v5855, 7
      %v6216 = vor.u32 %v6215, %v5858
      %v6217 = vsel %vm3038, %v6214, %v6216
      %v6218 = vrot.slane %v6215, 4
      %v6219 = vrot.slane %v5865, 7
      %v6220 = vor.u32 %v6219, %v5868
      %v6221 = vsel %vm3038, %v6218, %v6220
      %v6222 = vrot.slane %v6219, 4
      %v6223 = vrot.slane %v5875, 7
      %v6224 = vor.u32 %v6223, %v5878
      %v6225 = vsel %vm3038, %v6222, %v6224
      %v6226 = vrot.slane %v6223, 4
      %v6227 = vrot.slane %v5885, 7
      %v6228 = vor.u32 %v6227, %v5888
      %v6229 = vsel %vm3038, %v6226, %v6228
      %v6230 = vrot.slane %v6227, 4
      %v6231 = vrot.slane %v5895, 7
      %v6232 = vor.u32 %v6231, %v5898
      %v6233 = vsel %vm3038, %v6230, %v6232
      %v6234 = vrot.slane %v6231, 4
      %v6235 = vrot.slane %v5905, 7
      %v6236 = vor.u32 %v6235, %v5908
      %v6237 = vsel %vm3038, %v6234, %v6236
      %6238 = vrot.lane.b32.xlu0 %v6149, 64
      %v6239 = vpop.permute.xlu0 %6238
      %6240 = vrot.lane.b32.xlu0 %v6153, 64
      %v6241 = vpop.permute.xlu0 %6240
      %6242 = vrot.lane.b32.xlu0 %v6157, 64
      %v6243 = vpop.permute.xlu0 %6242
      %6244 = vrot.lane.b32.xlu0 %v6161, 64
      %v6245 = vpop.permute.xlu0 %6244
      %6246 = vrot.lane.b32.xlu0 %v6165, 64
      %v6247 = vpop.permute.xlu0 %6246
      %6248 = vrot.lane.b32.xlu0 %v6169, 64
      %v6249 = vpop.permute.xlu0 %6248
      %6250 = vrot.lane.b32.xlu0 %v6173, 64
      %v6251 = vpop.permute.xlu0 %6250
      %6252 = vrot.lane.b32.xlu0 %v6177, 64
      %v6253 = vpop.permute.xlu0 %6252
      %6254 = vrot.lane.b32.xlu0 %v6181, 64
      %v6255 = vpop.permute.xlu0 %6254
      %6256 = vrot.lane.b32.xlu0 %v6185, 64
      %v6257 = vpop.permute.xlu0 %6256
      %6258 = vrot.lane.b32.xlu0 %v6189, 64
      %v6259 = vpop.permute.xlu0 %6258
      %6260 = vrot.lane.b32.xlu0 %v6193, 64
      %v6261 = vpop.permute.xlu0 %6260
      %6262 = vrot.lane.b32.xlu0 %v6197, 64
      %v6263 = vpop.permute.xlu0 %6262
      %6264 = vrot.lane.b32.xlu0 %v6201, 64
      %v6265 = vpop.permute.xlu0 %6264
      %6266 = vrot.lane.b32.xlu0 %v6205, 64
      %v6267 = vpop.permute.xlu0 %6266
      %6268 = vrot.lane.b32.xlu0 %v6209, 64
      %v6269 = vpop.permute.xlu0 %6268
      %6270 = vrot.lane.b32.xlu0 %v6213, 64
      %v6271 = vpop.permute.xlu0 %6270
      %6272 = vrot.lane.b32.xlu0 %v6217, 64
      %v6273 = vpop.permute.xlu0 %6272
      %6274 = vrot.lane.b32.xlu0 %v6221, 64
      %v6275 = vpop.permute.xlu0 %6274
      %6276 = vrot.lane.b32.xlu0 %v6225, 64
      %v6277 = vpop.permute.xlu0 %6276
      %6278 = vrot.lane.b32.xlu0 %v6229, 64
      %v6279 = vpop.permute.xlu0 %6278
      %6280 = vrot.lane.b32.xlu0 %v6233, 64
      %v6281 = vpop.permute.xlu0 %6280
      %6282 = vrot.lane.b32.xlu0 %v6237, 64
      %v6283 = vpop.permute.xlu0 %6282
      %v6307 = vld [vmem:[#allocation4 + $0x8] sm:$0xf]
      %v6308 = vsel %vm3231, %v6239, %v6307
      %6309 = vst [vmem:[#allocation4 + $0x8] sm:$0xf] %v6308
      %6310 = vst.msk [vmem:[#allocation4 + $0xc] sm:$0xf] %vm1331, %v6241
      %6311 = vst.msk [vmem:[#allocation4 + $0x10] sm:$0xf] %vm1331, %v6243
      %6312 = vst.msk [vmem:[#allocation4 + $0x14] sm:$0xf] %vm1331, %v6245
      %6313 = vst.msk [vmem:[#allocation4 + $0x18] sm:$0xf] %vm1331, %v6247
      %6314 = vst.msk [vmem:[#allocation4 + $0x1c] sm:$0xf] %vm1331, %v6249
      %6315 = vst.msk [vmem:[#allocation4 + $0x20] sm:$0xf] %vm1331, %v6251
      %6316 = vst.msk [vmem:[#allocation4 + $0x24] sm:$0xf] %vm1331, %v6253
      %6317 = vst.msk [vmem:[#allocation4 + $0x28] sm:$0xf] %vm1331, %v6255
      %6318 = vst.msk [vmem:[#allocation4 + $0x2c] sm:$0xf] %vm1331, %v6257
      %6319 = vst.msk [vmem:[#allocation4 + $0x30] sm:$0xf] %vm1331, %v6259
      %6320 = vst.msk [vmem:[#allocation4 + $0x34] sm:$0xf] %vm1331, %v6261
      %6321 = vst.msk [vmem:[#allocation4 + $0x38] sm:$0xf] %vm1331, %v6263
      %6322 = vst.msk [vmem:[#allocation4 + $0x3c] sm:$0xf] %vm1331, %v6265
      %6323 = vst.msk [vmem:[#allocation4 + $0x40] sm:$0xf] %vm1331, %v6267
      %6324 = vst.msk [vmem:[#allocation4 + $0x44] sm:$0xf] %vm1331, %v6269
      %6325 = vst.msk [vmem:[#allocation4 + $0x48] sm:$0xf] %vm1331, %v6271
      %6326 = vst.msk [vmem:[#allocation4 + $0x4c] sm:$0xf] %vm1331, %v6273
      %6327 = vst.msk [vmem:[#allocation4 + $0x50] sm:$0xf] %vm1331, %v6275
      %6328 = vst.msk [vmem:[#allocation4 + $0x54] sm:$0xf] %vm1331, %v6277
      %6329 = vst.msk [vmem:[#allocation4 + $0x58] sm:$0xf] %vm1331, %v6279
      %6330 = vst.msk [vmem:[#allocation4 + $0x5c] sm:$0xf] %vm1331, %v6281
      %vm6331 = vcmask 780800
      %vm6332 = vsmask.f32 2304
      %vm6333 = vmand %vm6331, %vm6332
      %v6334 = vld [vmem:[#allocation4 + $0x60] sm:$0x7]
      %v6335 = vsel %vm6333, %v6283, %v6334
      %6336 = vst [vmem:[#allocation4 + $0x60] sm:$0x7] %v6335
      %v6337 = vld [vmem:[#allocation4 + $0x8] sm:$0xe]
      %v6338 = vld [vmem:[#allocation4 + $0xc] sm:$0xf]
      %v6339 = vld [vmem:[#allocation4 + $0x10] sm:$0xf]
      %v6340 = vld [vmem:[#allocation4 + $0x14] sm:$0xf]
      %v6341 = vld [vmem:[#allocation4 + $0x18] sm:$0xf]
      %v6342 = vld [vmem:[#allocation4 + $0x1c] sm:$0xf]
      %v6343 = vld [vmem:[#allocation4 + $0x20] sm:$0xf]
      %v6344 = vld [vmem:[#allocation4 + $0x24] sm:$0xf]
      %v6345 = vld [vmem:[#allocation4 + $0x28] sm:$0xf]
      %v6346 = vld [vmem:[#allocation4 + $0x2c] sm:$0xf]
      %v6347 = vld [vmem:[#allocation4 + $0x30] sm:$0xf]
      %v6348 = vld [vmem:[#allocation4 + $0x34] sm:$0xf]
      %v6349 = vld [vmem:[#allocation4 + $0x38] sm:$0xf]
      %v6350 = vld [vmem:[#allocation4 + $0x3c] sm:$0xf]
      %v6351 = vld [vmem:[#allocation4 + $0x40] sm:$0xf]
      %v6352 = vld [vmem:[#allocation4 + $0x44] sm:$0xf]
      %v6353 = vld [vmem:[#allocation4 + $0x48] sm:$0xf]
      %v6354 = vld [vmem:[#allocation4 + $0x4c] sm:$0xf]
      %v6355 = vld [vmem:[#allocation4 + $0x50] sm:$0x1]
      %v6356 = vld [vmem:[%s7] sm:$0xf]
      %v6357 = vld [vmem:[%s7 + $0x4] sm:$0xf]
      %v6358 = vld [vmem:[%s7 + $0x8] sm:$0xf]
      %v6359 = vld [vmem:[%s7 + $0xc] sm:$0xf]
      %v6360 = vld [vmem:[%s7 + $0x10] sm:$0xf]
      %v6361 = vld [vmem:[%s7 + $0x14] sm:$0xf]
      %v6362 = vld [vmem:[%s7 + $0x18] sm:$0xf]
      %v6363 = vld [vmem:[%s7 + $0x1c] sm:$0xf]
      %v6364 = vld [vmem:[%s7 + $0x20] sm:$0xf]
      %v6365 = vld [vmem:[%s7 + $0x24] sm:$0xf]
      %v6366 = vld [vmem:[%s7 + $0x28] sm:$0xf]
      %v6367 = vld [vmem:[%s7 + $0x2c] sm:$0xf]
      %v6368 = vld [vmem:[#allocation4 + $0x10] sm:$0xc]
      %v6369 = vld [vmem:[#allocation4 + $0x50] sm:$0xf]
      %v6370 = vld [vmem:[#allocation4 + $0x54] sm:$0xf]
      %v6371 = vld [vmem:[#allocation4 + $0x58] sm:$0x3]
      %s6372 = scalar_lea.vmem %s7, 48
      %v6373 = vld [vmem:[%s6372] sm:$0xf]
      %v6374 = vld [vmem:[%s6372 + $0x4] sm:$0xf]
      %v6375 = vld [vmem:[%s6372 + $0x8] sm:$0xf]
      %v6376 = vld [vmem:[%s6372 + $0xc] sm:$0xf]
      %v6377 = vld [vmem:[%s6372 + $0x10] sm:$0xf]
      %v6378 = vld [vmem:[%s6372 + $0x14] sm:$0xf]
      %v6379 = vld [vmem:[%s6372 + $0x18] sm:$0xf]
      %v6380 = vld [vmem:[%s6372 + $0x1c] sm:$0xf]
      %v6381 = vld [vmem:[%s6372 + $0x20] sm:$0xf]
      %v6382 = vld [vmem:[%s6372 + $0x24] sm:$0xf]
      %v6383 = vld [vmem:[%s6372 + $0x28] sm:$0xf]
      %v6384 = vld [vmem:[%s6372 + $0x2c] sm:$0xf]
      %v6404 = vunpack.c.l.b16 %v6368
      %v6405 = vunpack.c.l.b16 %v6340
      %v6406 = vunpack.c.l.b16 %v6341
      %v6407 = vunpack.c.l.b16 %v6342
      %v6408 = vunpack.c.l.b16 %v6343
      %v6409 = vunpack.c.l.b16 %v6344
      %v6410 = vunpack.c.l.b16 %v6345
      %v6411 = vunpack.c.l.b16 %v6346
      %v6412 = vunpack.c.l.b16 %v6347
      %v6413 = vunpack.c.l.b16 %v6348
      %v6414 = vunpack.c.l.b16 %v6349
      %v6415 = vunpack.c.l.b16 %v6350
      %v6416 = vunpack.c.l.b16 %v6351
      %v6417 = vunpack.c.l.b16 %v6352
      %v6418 = vunpack.c.l.b16 %v6353
      %v6419 = vunpack.c.l.b16 %v6354
      %v6420 = vunpack.c.l.b16 %v6369
      %v6421 = vunpack.c.l.b16 %v6370
      %v6422 = vunpack.c.l.b16 %v6371
      %v6423 = vpack.c.b16 %v6405, %v6404
      %v6424 = vpack.c.b16 %v6407, %v6406
      %v6425 = vpack.c.b16 %v6409, %v6408
      %v6426 = vpack.c.b16 %v6411, %v6410
      %v6427 = vpack.c.b16 %v6413, %v6412
      %v6428 = vpack.c.b16 %v6415, %v6414
      %v6429 = vpack.c.b16 %v6417, %v6416
      %v6430 = vpack.c.b16 %v6419, %v6418
      %v6431 = vpack.c.b16 %v6421, %v6420
      %v6432 = vpack.c.b16 %v6422, %v6422
      %v6433 = vrot.slane %v6423, 2
      %v6434 = vrot.slane %v6424, 2
      %v6435 = vsel %vm1979, %v6433, %v6434
      %v6436 = vrot.slane %v6425, 2
      %v6437 = vsel %vm1979, %v6434, %v6436
      %v6438 = vrot.slane %v6426, 2
      %v6439 = vsel %vm1979, %v6436, %v6438
      %v6440 = vrot.slane %v6427, 2
      %v6441 = vsel %vm1979, %v6438, %v6440
      %v6442 = vrot.slane %v6428, 2
      %v6443 = vsel %vm1979, %v6440, %v6442
      %v6444 = vrot.slane %v6429, 2
      %v6445 = vsel %vm1979, %v6442, %v6444
      %v6446 = vrot.slane %v6430, 2
      %v6447 = vsel %vm1979, %v6444, %v6446
      %v6448 = vrot.slane %v6431, 2
      %v6449 = vsel %vm1979, %v6446, %v6448
      %v6450 = vrot.slane %v6432, 2
      %v6451 = vsel %vm1979, %v6448, %v6450
      %v6464 = vunpack.c.l.b16 %v6373
      %v6465 = vunpack.c.l.b16 %v6374
      %v6466 = vunpack.c.l.b16 %v6375
      %v6467 = vunpack.c.l.b16 %v6376
      %v6468 = vunpack.c.l.b16 %v6377
      %v6469 = vunpack.c.l.b16 %v6378
      %v6470 = vunpack.c.l.b16 %v6379
      %v6471 = vunpack.c.l.b16 %v6380
      %v6472 = vunpack.c.l.b16 %v6381
      %v6473 = vunpack.c.l.b16 %v6382
      %v6474 = vunpack.c.l.b16 %v6383
      %v6475 = vunpack.c.l.b16 %v6384
      %v6476 = vpack.c.b16 %v6465, %v6464
      %v6477 = vpack.c.b16 %v6467, %v6466
      %v6478 = vpack.c.b16 %v6469, %v6468
      %v6479 = vpack.c.b16 %v6471, %v6470
      %v6480 = vpack.c.b16 %v6473, %v6472
      %v6481 = vpack.c.b16 %v6475, %v6474
      %v6489 = vsel %vm1582, %v6435, 0
      %v6492 = vsel %vm1582, %v6437, 0
      %v6495 = vsel %vm1582, %v6439, 0
      %v6498 = vsel %vm1582, %v6441, 0
      %v6501 = vsel %vm1582, %v6443, 0
      %v6504 = vsel %vm1582, %v6445, 0
      %v6507 = vsel %vm1582, %v6447, 0
      %v6510 = vsel %vm1582, %v6449, 0
      %v6513 = vsel %vm1582, %v6451, 0
      %6515 = vmatpush.bf16.msra.mxu0 0
      %6516 = vmatpush.bf16.msra.mxu0 0
      %6517 = vmatpush.bf16.msra.mxu0 %v6481
      %6518 = vmatpush.bf16.msra.mxu0 %v6480
      %6519 = vmatpush.bf16.msra.mxu0 %v6479
      %6520 = vmatpush.bf16.msra.mxu0 %v6478
      %6521 = vmatpush.bf16.msra.mxu0 %v6477
      %6522 = vmatpush.bf16.msra.mxu0 %v6476
      %6523 = vmatmul.bf16.gmra.mxu0 %v6489
      %v6524 = vpop.f32.mrf.mxu0
      %v6525 = vadd.f32 0.0, %v6524
      %v6526 = vpop.f32.mrf.mxu0
      %v6527 = vadd.f32 0.0, %v6526
      %6528 = vmatmul.bf16.gmra.mxu0 %v6492
      %v6529 = vpop.f32.mrf.mxu0
      %v6530 = vadd.f32 0.0, %v6529
      %v6531 = vpop.f32.mrf.mxu0
      %v6532 = vadd.f32 0.0, %v6531
      %6533 = vmatmul.bf16.gmra.mxu0 %v6495
      %v6534 = vpop.f32.mrf.mxu0
      %v6535 = vadd.f32 0.0, %v6534
      %v6536 = vpop.f32.mrf.mxu0
      %v6537 = vadd.f32 0.0, %v6536
      %6538 = vmatmul.bf16.gmra.mxu0 %v6498
      %v6539 = vpop.f32.mrf.mxu0
      %v6540 = vadd.f32 0.0, %v6539
      %v6541 = vpop.f32.mrf.mxu0
      %v6542 = vadd.f32 0.0, %v6541
      %6543 = vmatmul.bf16.gmra.mxu0 %v6501
      %v6544 = vpop.f32.mrf.mxu0
      %v6545 = vadd.f32 0.0, %v6544
      %v6546 = vpop.f32.mrf.mxu0
      %v6547 = vadd.f32 0.0, %v6546
      %6548 = vmatmul.bf16.gmra.mxu0 %v6504
      %v6549 = vpop.f32.mrf.mxu0
      %v6550 = vadd.f32 0.0, %v6549
      %v6551 = vpop.f32.mrf.mxu0
      %v6552 = vadd.f32 0.0, %v6551
      %6553 = vmatmul.bf16.gmra.mxu0 %v6507
      %v6554 = vpop.f32.mrf.mxu0
      %v6555 = vadd.f32 0.0, %v6554
      %v6556 = vpop.f32.mrf.mxu0
      %v6557 = vadd.f32 0.0, %v6556
      %6558 = vmatmul.bf16.gmra.mxu0 %v6510
      %v6559 = vpop.f32.mrf.mxu0
      %v6560 = vadd.f32 0.0, %v6559
      %v6561 = vpop.f32.mrf.mxu0
      %v6562 = vadd.f32 0.0, %v6561
      %6563 = vmatmul.bf16.gmra.mxu0 %v6513
      %v6564 = vpop.f32.mrf.mxu0
      %v6565 = vadd.f32 0.0, %v6564
      %v6566 = vpop.f32.mrf.mxu0
      %v6567 = vadd.f32 0.0, %v6566
      %6568 = vdwg.mxu0
      %v6573 = vunpack.c.l.b16 %v6337
      %v6574 = vunpack.c.l.b16 %v6338
      %v6575 = vunpack.c.l.b16 %v6339
      %v6576 = vunpack.c.l.b16 %v6355
      %v6577 = vpack.c.b16 %v6574, %v6573
      %v6578 = vpack.c.b16 %v6405, %v6575
      %v6579 = vpack.c.b16 %v6576, %v6576
      %v6580 = vrot.slane %v6577, 1
      %v6581 = vrot.slane %v6578, 1
      %v6582 = vsel %vm1518, %v6580, %v6581
      %v6583 = vrot.slane %v6424, 1
      %v6584 = vsel %vm1518, %v6581, %v6583
      %v6585 = vrot.slane %v6425, 1
      %v6586 = vsel %vm1518, %v6583, %v6585
      %v6587 = vrot.slane %v6426, 1
      %v6588 = vsel %vm1518, %v6585, %v6587
      %v6589 = vrot.slane %v6427, 1
      %v6590 = vsel %vm1518, %v6587, %v6589
      %v6591 = vrot.slane %v6428, 1
      %v6592 = vsel %vm1518, %v6589, %v6591
      %v6593 = vrot.slane %v6429, 1
      %v6594 = vsel %vm1518, %v6591, %v6593
      %v6595 = vrot.slane %v6430, 1
      %v6596 = vsel %vm1518, %v6593, %v6595
      %v6597 = vrot.slane %v6579, 1
      %v6598 = vsel %vm1518, %v6595, %v6597
      %v6611 = vunpack.c.l.b16 %v6356
      %v6612 = vunpack.c.l.b16 %v6357
      %v6613 = vunpack.c.l.b16 %v6358
      %v6614 = vunpack.c.l.b16 %v6359
      %v6615 = vunpack.c.l.b16 %v6360
      %v6616 = vunpack.c.l.b16 %v6361
      %v6617 = vunpack.c.l.b16 %v6362
      %v6618 = vunpack.c.l.b16 %v6363
      %v6619 = vunpack.c.l.b16 %v6364
      %v6620 = vunpack.c.l.b16 %v6365
      %v6621 = vunpack.c.l.b16 %v6366
      %v6622 = vunpack.c.l.b16 %v6367
      %v6623 = vpack.c.b16 %v6612, %v6611
      %v6624 = vpack.c.b16 %v6614, %v6613
      %v6625 = vpack.c.b16 %v6616, %v6615
      %v6626 = vpack.c.b16 %v6618, %v6617
      %v6627 = vpack.c.b16 %v6620, %v6619
      %v6628 = vpack.c.b16 %v6622, %v6621
      %v6636 = vsel %vm1582, %v6582, 0
      %v6639 = vsel %vm1582, %v6584, 0
      %v6642 = vsel %vm1582, %v6586, 0
      %v6645 = vsel %vm1582, %v6588, 0
      %v6648 = vsel %vm1582, %v6590, 0
      %v6651 = vsel %vm1582, %v6592, 0
      %v6654 = vsel %vm1582, %v6594, 0
      %v6657 = vsel %vm1582, %v6596, 0
      %v6660 = vsel %vm1582, %v6598, 0
      %6662 = vmatpush.bf16.msra.mxu0 0
      %6663 = vmatpush.bf16.msra.mxu0 0
      %6664 = vmatpush.bf16.msra.mxu0 %v6628
      %6665 = vmatpush.bf16.msra.mxu0 %v6627
      %6666 = vmatpush.bf16.msra.mxu0 %v6626
      %6667 = vmatpush.bf16.msra.mxu0 %v6625
      %6668 = vmatpush.bf16.msra.mxu0 %v6624
      %6669 = vmatpush.bf16.msra.mxu0 %v6623
      %6670 = vmatmul.bf16.gmra.mxu0 %v6636
      %v6671 = vpop.f32.mrf.mxu0
      %v6672 = vadd.f32 %v6525, %v6671
      %v6673 = vpop.f32.mrf.mxu0
      %v6674 = vadd.f32 %v6527, %v6673
      %6675 = vmatmul.bf16.gmra.mxu0 %v6639
      %v6676 = vpop.f32.mrf.mxu0
      %v6677 = vadd.f32 %v6530, %v6676
      %v6678 = vpop.f32.mrf.mxu0
      %v6679 = vadd.f32 %v6532, %v6678
      %6680 = vmatmul.bf16.gmra.mxu0 %v6642
      %v6681 = vpop.f32.mrf.mxu0
      %v6682 = vadd.f32 %v6535, %v6681
      %v6683 = vpop.f32.mrf.mxu0
      %v6684 = vadd.f32 %v6537, %v6683
      %6685 = vmatmul.bf16.gmra.mxu0 %v6645
      %v6686 = vpop.f32.mrf.mxu0
      %v6687 = vadd.f32 %v6540, %v6686
      %v6688 = vpop.f32.mrf.mxu0
      %v6689 = vadd.f32 %v6542, %v6688
      %6690 = vmatmul.bf16.gmra.mxu0 %v6648
      %v6691 = vpop.f32.mrf.mxu0
      %v6692 = vadd.f32 %v6545, %v6691
      %v6693 = vpop.f32.mrf.mxu0
      %v6694 = vadd.f32 %v6547, %v6693
      %6695 = vmatmul.bf16.gmra.mxu0 %v6651
      %v6696 = vpop.f32.mrf.mxu0
      %v6697 = vadd.f32 %v6550, %v6696
      %v6698 = vpop.f32.mrf.mxu0
      %v6699 = vadd.f32 %v6552, %v6698
      %6700 = vmatmul.bf16.gmra.mxu0 %v6654
      %v6701 = vpop.f32.mrf.mxu0
      %v6702 = vadd.f32 %v6555, %v6701
      %v6703 = vpop.f32.mrf.mxu0
      %v6704 = vadd.f32 %v6557, %v6703
      %6705 = vmatmul.bf16.gmra.mxu0 %v6657
      %v6706 = vpop.f32.mrf.mxu0
      %v6707 = vadd.f32 %v6560, %v6706
      %v6708 = vpop.f32.mrf.mxu0
      %v6709 = vadd.f32 %v6562, %v6708
      %6710 = vmatmul.bf16.gmra.mxu0 %v6660
      %v6711 = vpop.f32.mrf.mxu0
      %v6712 = vadd.f32 %v6565, %v6711
      %v6713 = vpop.f32.mrf.mxu0
      %v6714 = vadd.f32 %v6567, %v6713
      %6715 = vdwg.mxu0
      %v6716 = vld [vmem:[#allocation4 + $0x18] sm:$0x8]
      %v6717 = vld [vmem:[#allocation4 + $0x1c] sm:$0xf]
      %v6718 = vld [vmem:[#allocation4 + $0x20] sm:$0xf]
      %v6719 = vld [vmem:[#allocation4 + $0x24] sm:$0xf]
      %v6720 = vld [vmem:[#allocation4 + $0x28] sm:$0xf]
      %v6721 = vld [vmem:[#allocation4 + $0x2c] sm:$0xf]
      %v6722 = vld [vmem:[#allocation4 + $0x30] sm:$0xf]
      %v6723 = vld [vmem:[#allocation4 + $0x34] sm:$0xf]
      %v6724 = vld [vmem:[#allocation4 + $0x38] sm:$0xf]
      %v6725 = vld [vmem:[#allocation4 + $0x3c] sm:$0xf]
      %v6726 = vld [vmem:[#allocation4 + $0x40] sm:$0xf]
      %v6727 = vld [vmem:[#allocation4 + $0x44] sm:$0xf]
      %v6728 = vld [vmem:[#allocation4 + $0x48] sm:$0xf]
      %v6729 = vld [vmem:[#allocation4 + $0x4c] sm:$0xf]
      %v6730 = vld [vmem:[#allocation4 + $0x50] sm:$0xf]
      %v6731 = vld [vmem:[#allocation4 + $0x54] sm:$0xf]
      %v6732 = vld [vmem:[#allocation4 + $0x58] sm:$0xf]
      %v6733 = vld [vmem:[#allocation4 + $0x5c] sm:$0xf]
      %v6734 = vld [vmem:[#allocation4 + $0x60] sm:$0x7]
      %s6735 = scalar_lea.vmem %s7, 96
      %v6736 = vld [vmem:[%s6735] sm:$0xf]
      %v6737 = vld [vmem:[%s6735 + $0x4] sm:$0xf]
      %v6738 = vld [vmem:[%s6735 + $0x8] sm:$0xf]
      %v6739 = vld [vmem:[%s6735 + $0xc] sm:$0xf]
      %v6740 = vld [vmem:[%s6735 + $0x10] sm:$0xf]
      %v6741 = vld [vmem:[%s6735 + $0x14] sm:$0xf]
      %v6742 = vld [vmem:[%s6735 + $0x18] sm:$0xf]
      %v6743 = vld [vmem:[%s6735 + $0x1c] sm:$0xf]
      %v6744 = vld [vmem:[%s6735 + $0x20] sm:$0xf]
      %v6745 = vld [vmem:[%s6735 + $0x24] sm:$0xf]
      %v6746 = vld [vmem:[%s6735 + $0x28] sm:$0xf]
      %v6747 = vld [vmem:[%s6735 + $0x2c] sm:$0xf]
      %v6767 = vunpack.c.l.b16 %v6716
      %v6768 = vunpack.c.l.b16 %v6717
      %v6769 = vunpack.c.l.b16 %v6718
      %v6770 = vunpack.c.l.b16 %v6719
      %v6771 = vunpack.c.l.b16 %v6720
      %v6772 = vunpack.c.l.b16 %v6721
      %v6773 = vunpack.c.l.b16 %v6722
      %v6774 = vunpack.c.l.b16 %v6723
      %v6775 = vunpack.c.l.b16 %v6724
      %v6776 = vunpack.c.l.b16 %v6725
      %v6777 = vunpack.c.l.b16 %v6726
      %v6778 = vunpack.c.l.b16 %v6727
      %v6779 = vunpack.c.l.b16 %v6728
      %v6780 = vunpack.c.l.b16 %v6729
      %v6781 = vunpack.c.l.b16 %v6730
      %v6782 = vunpack.c.l.b16 %v6731
      %v6783 = vunpack.c.l.b16 %v6732
      %v6784 = vunpack.c.l.b16 %v6733
      %v6785 = vunpack.c.l.b16 %v6734
      %v6786 = vpack.c.b16 %v6768, %v6767
      %v6787 = vpack.c.b16 %v6770, %v6769
      %v6788 = vpack.c.b16 %v6772, %v6771
      %v6789 = vpack.c.b16 %v6774, %v6773
      %v6790 = vpack.c.b16 %v6776, %v6775
      %v6791 = vpack.c.b16 %v6778, %v6777
      %v6792 = vpack.c.b16 %v6780, %v6779
      %v6793 = vpack.c.b16 %v6782, %v6781
      %v6794 = vpack.c.b16 %v6784, %v6783
      %v6795 = vpack.c.b16 %v6785, %v6785
      %v6796 = vrot.slane %v6786, 3
      %v6797 = vrot.slane %v6787, 3
      %v6798 = vsel %vm3361, %v6796, %v6797
      %v6799 = vrot.slane %v6788, 3
      %v6800 = vsel %vm3361, %v6797, %v6799
      %v6801 = vrot.slane %v6789, 3
      %v6802 = vsel %vm3361, %v6799, %v6801
      %v6803 = vrot.slane %v6790, 3
      %v6804 = vsel %vm3361, %v6801, %v6803
      %v6805 = vrot.slane %v6791, 3
      %v6806 = vsel %vm3361, %v6803, %v6805
      %v6807 = vrot.slane %v6792, 3
      %v6808 = vsel %vm3361, %v6805, %v6807
      %v6809 = vrot.slane %v6793, 3
      %v6810 = vsel %vm3361, %v6807, %v6809
      %v6811 = vrot.slane %v6794, 3
      %v6812 = vsel %vm3361, %v6809, %v6811
      %v6813 = vrot.slane %v6795, 3
      %v6814 = vsel %vm3361, %v6811, %v6813
      %v6827 = vunpack.c.l.b16 %v6736
      %v6828 = vunpack.c.l.b16 %v6737
      %v6829 = vunpack.c.l.b16 %v6738
      %v6830 = vunpack.c.l.b16 %v6739
      %v6831 = vunpack.c.l.b16 %v6740
      %v6832 = vunpack.c.l.b16 %v6741
      %v6833 = vunpack.c.l.b16 %v6742
      %v6834 = vunpack.c.l.b16 %v6743
      %v6835 = vunpack.c.l.b16 %v6744
      %v6836 = vunpack.c.l.b16 %v6745
      %v6837 = vunpack.c.l.b16 %v6746
      %v6838 = vunpack.c.l.b16 %v6747
      %v6839 = vpack.c.b16 %v6828, %v6827
      %v6840 = vpack.c.b16 %v6830, %v6829
      %v6841 = vpack.c.b16 %v6832, %v6831
      %v6842 = vpack.c.b16 %v6834, %v6833
      %v6843 = vpack.c.b16 %v6836, %v6835
      %v6844 = vpack.c.b16 %v6838, %v6837
      %v6852 = vsel %vm1582, %v6798, 0
      %v6855 = vsel %vm1582, %v6800, 0
      %v6858 = vsel %vm1582, %v6802, 0
      %v6861 = vsel %vm1582, %v6804, 0
      %v6864 = vsel %vm1582, %v6806, 0
      %v6867 = vsel %vm1582, %v6808, 0
      %v6870 = vsel %vm1582, %v6810, 0
      %v6873 = vsel %vm1582, %v6812, 0
      %v6876 = vsel %vm1582, %v6814, 0
      %6878 = vmatpush.bf16.msra.mxu0 0
      %6879 = vmatpush.bf16.msra.mxu0 0
      %6880 = vmatpush.bf16.msra.mxu0 %v6844
      %6881 = vmatpush.bf16.msra.mxu0 %v6843
      %6882 = vmatpush.bf16.msra.mxu0 %v6842
      %6883 = vmatpush.bf16.msra.mxu0 %v6841
      %6884 = vmatpush.bf16.msra.mxu0 %v6840
      %6885 = vmatpush.bf16.msra.mxu0 %v6839
      %6886 = vmatmul.bf16.gmra.mxu0 %v6852
      %v6887 = vpop.f32.mrf.mxu0
      %v6888 = vadd.f32 0.0, %v6887
      %v6889 = vpop.f32.mrf.mxu0
      %v6890 = vadd.f32 0.0, %v6889
      %6891 = vmatmul.bf16.gmra.mxu0 %v6855
      %v6892 = vpop.f32.mrf.mxu0
      %v6893 = vadd.f32 0.0, %v6892
      %v6894 = vpop.f32.mrf.mxu0
      %v6895 = vadd.f32 0.0, %v6894
      %6896 = vmatmul.bf16.gmra.mxu0 %v6858
      %v6897 = vpop.f32.mrf.mxu0
      %v6898 = vadd.f32 0.0, %v6897
      %v6899 = vpop.f32.mrf.mxu0
      %v6900 = vadd.f32 0.0, %v6899
      %6901 = vmatmul.bf16.gmra.mxu0 %v6861
      %v6902 = vpop.f32.mrf.mxu0
      %v6903 = vadd.f32 0.0, %v6902
      %v6904 = vpop.f32.mrf.mxu0
      %v6905 = vadd.f32 0.0, %v6904
      %6906 = vmatmul.bf16.gmra.mxu0 %v6864
      %v6907 = vpop.f32.mrf.mxu0
      %v6908 = vadd.f32 0.0, %v6907
      %v6909 = vpop.f32.mrf.mxu0
      %v6910 = vadd.f32 0.0, %v6909
      %6911 = vmatmul.bf16.gmra.mxu0 %v6867
      %v6912 = vpop.f32.mrf.mxu0
      %v6913 = vadd.f32 0.0, %v6912
      %v6914 = vpop.f32.mrf.mxu0
      %v6915 = vadd.f32 0.0, %v6914
      %6916 = vmatmul.bf16.gmra.mxu0 %v6870
      %v6917 = vpop.f32.mrf.mxu0
      %v6918 = vadd.f32 0.0, %v6917
      %v6919 = vpop.f32.mrf.mxu0
      %v6920 = vadd.f32 0.0, %v6919
      %6921 = vmatmul.bf16.gmra.mxu0 %v6873
      %v6922 = vpop.f32.mrf.mxu0
      %v6923 = vadd.f32 0.0, %v6922
      %v6924 = vpop.f32.mrf.mxu0
      %v6925 = vadd.f32 0.0, %v6924
      %6926 = vmatmul.bf16.gmra.mxu0 %v6876
      %v6927 = vpop.f32.mrf.mxu0
      %v6928 = vadd.f32 0.0, %v6927
      %v6929 = vpop.f32.mrf.mxu0
      %v6930 = vadd.f32 0.0, %v6929
      %6931 = vdwg.mxu0
      %v6932 = vadd.f32 %v6672, %v6888
      %v6933 = vadd.f32 %v6674, %v6890
      %v6934 = vadd.f32 %v6677, %v6893
      %v6935 = vadd.f32 %v6679, %v6895
      %v6936 = vadd.f32 %v6682, %v6898
      %v6937 = vadd.f32 %v6684, %v6900
      %v6938 = vadd.f32 %v6687, %v6903
      %v6939 = vadd.f32 %v6689, %v6905
      %v6940 = vadd.f32 %v6692, %v6908
      %v6941 = vadd.f32 %v6694, %v6910
      %v6942 = vadd.f32 %v6697, %v6913
      %v6943 = vadd.f32 %v6699, %v6915
      %v6944 = vadd.f32 %v6702, %v6918
      %v6945 = vadd.f32 %v6704, %v6920
      %v6946 = vadd.f32 %v6707, %v6923
      %v6947 = vadd.f32 %v6709, %v6925
      %v6948 = vadd.f32 %v6712, %v6928
      %v6949 = vadd.f32 %v6714, %v6930
      %v6950 = vld [vmem:[%s8] sm:$0x1]
      %v6952 = vperm.slane %v6950, 0
      %v6954 = vadd.f32 %v6932, %v6952
      %v6955 = vadd.f32 %v6933, %v6952
      %v6956 = vadd.f32 %v6934, %v6952
      %v6957 = vadd.f32 %v6935, %v6952
      %v6958 = vadd.f32 %v6936, %v6952
      %v6959 = vadd.f32 %v6937, %v6952
      %v6960 = vadd.f32 %v6938, %v6952
      %v6961 = vadd.f32 %v6939, %v6952
      %v6962 = vadd.f32 %v6940, %v6952
      %v6963 = vadd.f32 %v6941, %v6952
      %v6964 = vadd.f32 %v6942, %v6952
      %v6965 = vadd.f32 %v6943, %v6952
      %v6966 = vadd.f32 %v6944, %v6952
      %v6967 = vadd.f32 %v6945, %v6952
      %v6968 = vadd.f32 %v6946, %v6952
      %v6969 = vadd.f32 %v6947, %v6952
      %v6970 = vadd.f32 %v6948, %v6952
      %v6971 = vadd.f32 %v6949, %v6952
      %v6972 = vld [vmem:[#allocation4 + $0x8] sm:$0x2]
      %v6973 = vsel %vm2466, 0, %v6972
      %6974 = vst [vmem:[#allocation4 + $0x8] sm:$0x2] %v6973
      %v6975 = vld [vmem:[#allocation4 + $0x60] sm:$0x4]
      %v6976 = vsel %vm5681, 0, %v6975
      %6977 = vst [vmem:[#allocation4 + $0x60] sm:$0x4] %v6976
      %6978 = vrot.lane.b32.xlu0 %v5692, 96
      %v6979 = vpop.permute.xlu0 %6978
      %6980 = vrot.lane.b32.xlu0 %v5702, 96
      %v6981 = vpop.permute.xlu0 %6980
      %6982 = vrot.lane.b32.xlu0 %v5712, 96
      %v6983 = vpop.permute.xlu0 %6982
      %6984 = vrot.lane.b32.xlu0 %v5722, 96
      %v6985 = vpop.permute.xlu0 %6984
      %6986 = vrot.lane.b32.xlu0 %v5732, 96
      %v6987 = vpop.permute.xlu0 %6986
      %6988 = vrot.lane.b32.xlu0 %v5742, 96
      %v6989 = vpop.permute.xlu0 %6988
      %6990 = vrot.lane.b32.xlu0 %v5752, 96
      %v6991 = vpop.permute.xlu0 %6990
      %6992 = vrot.lane.b32.xlu0 %v5762, 96
      %v6993 = vpop.permute.xlu0 %6992
      %6994 = vrot.lane.b32.xlu0 %v5772, 96
      %v6995 = vpop.permute.xlu0 %6994
      %6996 = vrot.lane.b32.xlu0 %v5782, 96
      %v6997 = vpop.permute.xlu0 %6996
      %6998 = vrot.lane.b32.xlu0 %v5792, 96
      %v6999 = vpop.permute.xlu0 %6998
      %7000 = vrot.lane.b32.xlu0 %v5802, 96
      %v7001 = vpop.permute.xlu0 %7000
      %7002 = vrot.lane.b32.xlu0 %v5812, 96
      %v7003 = vpop.permute.xlu0 %7002
      %7004 = vrot.lane.b32.xlu0 %v5822, 96
      %v7005 = vpop.permute.xlu0 %7004
      %7006 = vrot.lane.b32.xlu0 %v5832, 96
      %v7007 = vpop.permute.xlu0 %7006
      %7008 = vrot.lane.b32.xlu0 %v5842, 96
      %v7009 = vpop.permute.xlu0 %7008
      %7010 = vrot.lane.b32.xlu0 %v5852, 96
      %v7011 = vpop.permute.xlu0 %7010
      %7012 = vrot.lane.b32.xlu0 %v5862, 96
      %v7013 = vpop.permute.xlu0 %7012
      %7014 = vrot.lane.b32.xlu0 %v5872, 96
      %v7015 = vpop.permute.xlu0 %7014
      %7016 = vrot.lane.b32.xlu0 %v5882, 96
      %v7017 = vpop.permute.xlu0 %7016
      %7018 = vrot.lane.b32.xlu0 %v5892, 96
      %v7019 = vpop.permute.xlu0 %7018
      %7020 = vrot.lane.b32.xlu0 %v5902, 96
      %v7021 = vpop.permute.xlu0 %7020
      %7022 = vrot.lane.b32.xlu0 %v5912, 96
      %v7023 = vpop.permute.xlu0 %7022
      %v7047 = vld [vmem:[#allocation4 + $0x8] sm:$0xe]
      %v7048 = vsel %vm2777, %v6979, %v7047
      %7049 = vst [vmem:[#allocation4 + $0x8] sm:$0xe] %v7048
      %7050 = vst.msk [vmem:[#allocation4 + $0xc] sm:$0xf] %vm555, %v6981
      %7051 = vst.msk [vmem:[#allocation4 + $0x10] sm:$0xf] %vm555, %v6983
      %7052 = vst.msk [vmem:[#allocation4 + $0x14] sm:$0xf] %vm555, %v6985
      %7053 = vst.msk [vmem:[#allocation4 + $0x18] sm:$0xf] %vm555, %v6987
      %7054 = vst.msk [vmem:[#allocation4 + $0x1c] sm:$0xf] %vm555, %v6989
      %7055 = vst.msk [vmem:[#allocation4 + $0x20] sm:$0xf] %vm555, %v6991
      %7056 = vst.msk [vmem:[#allocation4 + $0x24] sm:$0xf] %vm555, %v6993
      %7057 = vst.msk [vmem:[#allocation4 + $0x28] sm:$0xf] %vm555, %v6995
      %7058 = vst.msk [vmem:[#allocation4 + $0x2c] sm:$0xf] %vm555, %v6997
      %7059 = vst.msk [vmem:[#allocation4 + $0x30] sm:$0xf] %vm555, %v6999
      %7060 = vst.msk [vmem:[#allocation4 + $0x34] sm:$0xf] %vm555, %v7001
      %7061 = vst.msk [vmem:[#allocation4 + $0x38] sm:$0xf] %vm555, %v7003
      %7062 = vst.msk [vmem:[#allocation4 + $0x3c] sm:$0xf] %vm555, %v7005
      %7063 = vst.msk [vmem:[#allocation4 + $0x40] sm:$0xf] %vm555, %v7007
      %7064 = vst.msk [vmem:[#allocation4 + $0x44] sm:$0xf] %vm555, %v7009
      %7065 = vst.msk [vmem:[#allocation4 + $0x48] sm:$0xf] %vm555, %v7011
      %7066 = vst.msk [vmem:[#allocation4 + $0x4c] sm:$0xf] %vm555, %v7013
      %7067 = vst.msk [vmem:[#allocation4 + $0x50] sm:$0xf] %vm555, %v7015
      %7068 = vst.msk [vmem:[#allocation4 + $0x54] sm:$0xf] %vm555, %v7017
      %7069 = vst.msk [vmem:[#allocation4 + $0x58] sm:$0xf] %vm555, %v7019
      %7070 = vst.msk [vmem:[#allocation4 + $0x5c] sm:$0xf] %vm555, %v7021
      %v7071 = vld [vmem:[#allocation4 + $0x60] sm:$0xf]
      %v7072 = vsel %vm5961, %v7023, %v7071
      %7073 = vst [vmem:[#allocation4 + $0x60] sm:$0xf] %v7072
      %7097 = vst.msk [vmem:[#allocation4 + $0x8] sm:$0xe] %vm3006, %v5988
      %7098 = vst.msk [vmem:[#allocation4 + $0xc] sm:$0xf] %vm1039, %v5991
      %7099 = vst.msk [vmem:[#allocation4 + $0x10] sm:$0xf] %vm1039, %v5994
      %7100 = vst.msk [vmem:[#allocation4 + $0x14] sm:$0xf] %vm1039, %v5997
      %7101 = vst.msk [vmem:[#allocation4 + $0x18] sm:$0xf] %vm1039, %v6000
      %7102 = vst.msk [vmem:[#allocation4 + $0x1c] sm:$0xf] %vm1039, %v6003
      %7103 = vst.msk [vmem:[#allocation4 + $0x20] sm:$0xf] %vm1039, %v6006
      %7104 = vst.msk [vmem:[#allocation4 + $0x24] sm:$0xf] %vm1039, %v6009
      %7105 = vst.msk [vmem:[#allocation4 + $0x28] sm:$0xf] %vm1039, %v6012
      %7106 = vst.msk [vmem:[#allocation4 + $0x2c] sm:$0xf] %vm1039, %v6015
      %7107 = vst.msk [vmem:[#allocation4 + $0x30] sm:$0xf] %vm1039, %v6018
      %7108 = vst.msk [vmem:[#allocation4 + $0x34] sm:$0xf] %vm1039, %v6021
      %7109 = vst.msk [vmem:[#allocation4 + $0x38] sm:$0xf] %vm1039, %v6024
      %7110 = vst.msk [vmem:[#allocation4 + $0x3c] sm:$0xf] %vm1039, %v6027
      %7111 = vst.msk [vmem:[#allocation4 + $0x40] sm:$0xf] %vm1039, %v6030
      %7112 = vst.msk [vmem:[#allocation4 + $0x44] sm:$0xf] %vm1039, %v6033
      %7113 = vst.msk [vmem:[#allocation4 + $0x48] sm:$0xf] %vm1039, %v6036
      %7114 = vst.msk [vmem:[#allocation4 + $0x4c] sm:$0xf] %vm1039, %v6039
      %7115 = vst.msk [vmem:[#allocation4 + $0x50] sm:$0xf] %vm1039, %v6042
      %7116 = vst.msk [vmem:[#allocation4 + $0x54] sm:$0xf] %vm1039, %v6045
      %7117 = vst.msk [vmem:[#allocation4 + $0x58] sm:$0xf] %vm1039, %v6048
      %7118 = vst.msk [vmem:[#allocation4 + $0x5c] sm:$0xf] %vm1039, %v6051
      %7119 = vst.msk [vmem:[#allocation4 + $0x60] sm:$0x7] %vm6146, %v6054
      %7120 = vrot.lane.b32.xlu0 %v6149, 32
      %v7121 = vpop.permute.xlu0 %7120
      %7122 = vrot.lane.b32.xlu0 %v6153, 32
      %v7123 = vpop.permute.xlu0 %7122
      %7124 = vrot.lane.b32.xlu0 %v6157, 32
      %v7125 = vpop.permute.xlu0 %7124
      %7126 = vrot.lane.b32.xlu0 %v6161, 32
      %v7127 = vpop.permute.xlu0 %7126
      %7128 = vrot.lane.b32.xlu0 %v6165, 32
      %v7129 = vpop.permute.xlu0 %7128
      %7130 = vrot.lane.b32.xlu0 %v6169, 32
      %v7131 = vpop.permute.xlu0 %7130
      %7132 = vrot.lane.b32.xlu0 %v6173, 32
      %v7133 = vpop.permute.xlu0 %7132
      %7134 = vrot.lane.b32.xlu0 %v6177, 32
      %v7135 = vpop.permute.xlu0 %7134
      %7136 = vrot.lane.b32.xlu0 %v6181, 32
      %v7137 = vpop.permute.xlu0 %7136
      %7138 = vrot.lane.b32.xlu0 %v6185, 32
      %v7139 = vpop.permute.xlu0 %7138
      %7140 = vrot.lane.b32.xlu0 %v6189, 32
      %v7141 = vpop.permute.xlu0 %7140
      %7142 = vrot.lane.b32.xlu0 %v6193, 32
      %v7143 = vpop.permute.xlu0 %7142
      %7144 = vrot.lane.b32.xlu0 %v6197, 32
      %v7145 = vpop.permute.xlu0 %7144
      %7146 = vrot.lane.b32.xlu0 %v6201, 32
      %v7147 = vpop.permute.xlu0 %7146
      %7148 = vrot.lane.b32.xlu0 %v6205, 32
      %v7149 = vpop.permute.xlu0 %7148
      %7150 = vrot.lane.b32.xlu0 %v6209, 32
      %v7151 = vpop.permute.xlu0 %7150
      %7152 = vrot.lane.b32.xlu0 %v6213, 32
      %v7153 = vpop.permute.xlu0 %7152
      %7154 = vrot.lane.b32.xlu0 %v6217, 32
      %v7155 = vpop.permute.xlu0 %7154
      %7156 = vrot.lane.b32.xlu0 %v6221, 32
      %v7157 = vpop.permute.xlu0 %7156
      %7158 = vrot.lane.b32.xlu0 %v6225, 32
      %v7159 = vpop.permute.xlu0 %7158
      %7160 = vrot.lane.b32.xlu0 %v6229, 32
      %v7161 = vpop.permute.xlu0 %7160
      %7162 = vrot.lane.b32.xlu0 %v6233, 32
      %v7163 = vpop.permute.xlu0 %7162
      %7164 = vrot.lane.b32.xlu0 %v6237, 32
      %v7165 = vpop.permute.xlu0 %7164
      %v7189 = vld [vmem:[#allocation4 + $0x8] sm:$0xf]
      %v7190 = vsel %vm3231, %v7121, %v7189
      %7191 = vst [vmem:[#allocation4 + $0x8] sm:$0xf] %v7190
      %7192 = vst.msk [vmem:[#allocation4 + $0xc] sm:$0xf] %vm1331, %v7123
      %7193 = vst.msk [vmem:[#allocation4 + $0x10] sm:$0xf] %vm1331, %v7125
      %7194 = vst.msk [vmem:[#allocation4 + $0x14] sm:$0xf] %vm1331, %v7127
      %7195 = vst.msk [vmem:[#allocation4 + $0x18] sm:$0xf] %vm1331, %v7129
      %7196 = vst.msk [vmem:[#allocation4 + $0x1c] sm:$0xf] %vm1331, %v7131
      %7197 = vst.msk [vmem:[#allocation4 + $0x20] sm:$0xf] %vm1331, %v7133
      %7198 = vst.msk [vmem:[#allocation4 + $0x24] sm:$0xf] %vm1331, %v7135
      %7199 = vst.msk [vmem:[#allocation4 + $0x28] sm:$0xf] %vm1331, %v7137
      %7200 = vst.msk [vmem:[#allocation4 + $0x2c] sm:$0xf] %vm1331, %v7139
      %7201 = vst.msk [vmem:[#allocation4 + $0x30] sm:$0xf] %vm1331, %v7141
      %7202 = vst.msk [vmem:[#allocation4 + $0x34] sm:$0xf] %vm1331, %v7143
      %7203 = vst.msk [vmem:[#allocation4 + $0x38] sm:$0xf] %vm1331, %v7145
      %7204 = vst.msk [vmem:[#allocation4 + $0x3c] sm:$0xf] %vm1331, %v7147
      %7205 = vst.msk [vmem:[#allocation4 + $0x40] sm:$0xf] %vm1331, %v7149
      %7206 = vst.msk [vmem:[#allocation4 + $0x44] sm:$0xf] %vm1331, %v7151
      %7207 = vst.msk [vmem:[#allocation4 + $0x48] sm:$0xf] %vm1331, %v7153
      %7208 = vst.msk [vmem:[#allocation4 + $0x4c] sm:$0xf] %vm1331, %v7155
      %7209 = vst.msk [vmem:[#allocation4 + $0x50] sm:$0xf] %vm1331, %v7157
      %7210 = vst.msk [vmem:[#allocation4 + $0x54] sm:$0xf] %vm1331, %v7159
      %7211 = vst.msk [vmem:[#allocation4 + $0x58] sm:$0xf] %vm1331, %v7161
      %7212 = vst.msk [vmem:[#allocation4 + $0x5c] sm:$0xf] %vm1331, %v7163
      %v7213 = vld [vmem:[#allocation4 + $0x60] sm:$0x7]
      %v7214 = vsel %vm6333, %v7165, %v7213
      %7215 = vst [vmem:[#allocation4 + $0x60] sm:$0x7] %v7214
      %v7216 = vld [vmem:[#allocation4 + $0x8] sm:$0xe]
      %v7217 = vld [vmem:[#allocation4 + $0xc] sm:$0xf]
      %v7218 = vld [vmem:[#allocation4 + $0x10] sm:$0xf]
      %v7219 = vld [vmem:[#allocation4 + $0x14] sm:$0xf]
      %v7220 = vld [vmem:[#allocation4 + $0x18] sm:$0xf]
      %v7221 = vld [vmem:[#allocation4 + $0x1c] sm:$0xf]
      %v7222 = vld [vmem:[#allocation4 + $0x20] sm:$0xf]
      %v7223 = vld [vmem:[#allocation4 + $0x24] sm:$0xf]
      %v7224 = vld [vmem:[#allocation4 + $0x28] sm:$0xf]
      %v7225 = vld [vmem:[#allocation4 + $0x2c] sm:$0xf]
      %v7226 = vld [vmem:[#allocation4 + $0x30] sm:$0xf]
      %v7227 = vld [vmem:[#allocation4 + $0x34] sm:$0xf]
      %v7228 = vld [vmem:[#allocation4 + $0x38] sm:$0xf]
      %v7229 = vld [vmem:[#allocation4 + $0x3c] sm:$0xf]
      %v7230 = vld [vmem:[#allocation4 + $0x40] sm:$0xf]
      %v7231 = vld [vmem:[#allocation4 + $0x44] sm:$0xf]
      %v7232 = vld [vmem:[#allocation4 + $0x48] sm:$0xf]
      %v7233 = vld [vmem:[#allocation4 + $0x4c] sm:$0xf]
      %v7234 = vld [vmem:[#allocation4 + $0x50] sm:$0x1]
      %v7235 = vld [vmem:[%s9] sm:$0xf]
      %v7236 = vld [vmem:[%s9 + $0x4] sm:$0xf]
      %v7237 = vld [vmem:[%s9 + $0x8] sm:$0xf]
      %v7238 = vld [vmem:[%s9 + $0xc] sm:$0xf]
      %v7239 = vld [vmem:[%s9 + $0x10] sm:$0xf]
      %v7240 = vld [vmem:[%s9 + $0x14] sm:$0xf]
      %v7241 = vld [vmem:[%s9 + $0x18] sm:$0xf]
      %v7242 = vld [vmem:[%s9 + $0x1c] sm:$0xf]
      %v7243 = vld [vmem:[%s9 + $0x20] sm:$0xf]
      %v7244 = vld [vmem:[%s9 + $0x24] sm:$0xf]
      %v7245 = vld [vmem:[%s9 + $0x28] sm:$0xf]
      %v7246 = vld [vmem:[%s9 + $0x2c] sm:$0xf]
      %v7247 = vld [vmem:[#allocation4 + $0x10] sm:$0xc]
      %v7248 = vld [vmem:[#allocation4 + $0x50] sm:$0xf]
      %v7249 = vld [vmem:[#allocation4 + $0x54] sm:$0xf]
      %v7250 = vld [vmem:[#allocation4 + $0x58] sm:$0x3]
      %s7251 = scalar_lea.vmem %s9, 48
      %v7252 = vld [vmem:[%s7251] sm:$0xf]
      %v7253 = vld [vmem:[%s7251 + $0x4] sm:$0xf]
      %v7254 = vld [vmem:[%s7251 + $0x8] sm:$0xf]
      %v7255 = vld [vmem:[%s7251 + $0xc] sm:$0xf]
      %v7256 = vld [vmem:[%s7251 + $0x10] sm:$0xf]
      %v7257 = vld [vmem:[%s7251 + $0x14] sm:$0xf]
      %v7258 = vld [vmem:[%s7251 + $0x18] sm:$0xf]
      %v7259 = vld [vmem:[%s7251 + $0x1c] sm:$0xf]
      %v7260 = vld [vmem:[%s7251 + $0x20] sm:$0xf]
      %v7261 = vld [vmem:[%s7251 + $0x24] sm:$0xf]
      %v7262 = vld [vmem:[%s7251 + $0x28] sm:$0xf]
      %v7263 = vld [vmem:[%s7251 + $0x2c] sm:$0xf]
      %v7283 = vunpack.c.l.b16 %v7247
      %v7284 = vunpack.c.l.b16 %v7219
      %v7285 = vunpack.c.l.b16 %v7220
      %v7286 = vunpack.c.l.b16 %v7221
      %v7287 = vunpack.c.l.b16 %v7222
      %v7288 = vunpack.c.l.b16 %v7223
      %v7289 = vunpack.c.l.b16 %v7224
      %v7290 = vunpack.c.l.b16 %v7225
      %v7291 = vunpack.c.l.b16 %v7226
      %v7292 = vunpack.c.l.b16 %v7227
      %v7293 = vunpack.c.l.b16 %v7228
      %v7294 = vunpack.c.l.b16 %v7229
      %v7295 = vunpack.c.l.b16 %v7230
      %v7296 = vunpack.c.l.b16 %v7231
      %v7297 = vunpack.c.l.b16 %v7232
      %v7298 = vunpack.c.l.b16 %v7233
      %v7299 = vunpack.c.l.b16 %v7248
      %v7300 = vunpack.c.l.b16 %v7249
      %v7301 = vunpack.c.l.b16 %v7250
      %v7302 = vpack.c.b16 %v7284, %v7283
      %v7303 = vpack.c.b16 %v7286, %v7285
      %v7304 = vpack.c.b16 %v7288, %v7287
      %v7305 = vpack.c.b16 %v7290, %v7289
      %v7306 = vpack.c.b16 %v7292, %v7291
      %v7307 = vpack.c.b16 %v7294, %v7293
      %v7308 = vpack.c.b16 %v7296, %v7295
      %v7309 = vpack.c.b16 %v7298, %v7297
      %v7310 = vpack.c.b16 %v7300, %v7299
      %v7311 = vpack.c.b16 %v7301, %v7301
      %v7312 = vrot.slane %v7302, 2
      %v7313 = vrot.slane %v7303, 2
      %v7314 = vsel %vm1979, %v7312, %v7313
      %v7315 = vrot.slane %v7304, 2
      %v7316 = vsel %vm1979, %v7313, %v7315
      %v7317 = vrot.slane %v7305, 2
      %v7318 = vsel %vm1979, %v7315, %v7317
      %v7319 = vrot.slane %v7306, 2
      %v7320 = vsel %vm1979, %v7317, %v7319
      %v7321 = vrot.slane %v7307, 2
      %v7322 = vsel %vm1979, %v7319, %v7321
      %v7323 = vrot.slane %v7308, 2
      %v7324 = vsel %vm1979, %v7321, %v7323
      %v7325 = vrot.slane %v7309, 2
      %v7326 = vsel %vm1979, %v7323, %v7325
      %v7327 = vrot.slane %v7310, 2
      %v7328 = vsel %vm1979, %v7325, %v7327
      %v7329 = vrot.slane %v7311, 2
      %v7330 = vsel %vm1979, %v7327, %v7329
      %v7343 = vunpack.c.l.b16 %v7252
      %v7344 = vunpack.c.l.b16 %v7253
      %v7345 = vunpack.c.l.b16 %v7254
      %v7346 = vunpack.c.l.b16 %v7255
      %v7347 = vunpack.c.l.b16 %v7256
      %v7348 = vunpack.c.l.b16 %v7257
      %v7349 = vunpack.c.l.b16 %v7258
      %v7350 = vunpack.c.l.b16 %v7259
      %v7351 = vunpack.c.l.b16 %v7260
      %v7352 = vunpack.c.l.b16 %v7261
      %v7353 = vunpack.c.l.b16 %v7262
      %v7354 = vunpack.c.l.b16 %v7263
      %v7355 = vpack.c.b16 %v7344, %v7343
      %v7356 = vpack.c.b16 %v7346, %v7345
      %v7357 = vpack.c.b16 %v7348, %v7347
      %v7358 = vpack.c.b16 %v7350, %v7349
      %v7359 = vpack.c.b16 %v7352, %v7351
      %v7360 = vpack.c.b16 %v7354, %v7353
      %v7368 = vsel %vm1582, %v7314, 0
      %v7371 = vsel %vm1582, %v7316, 0
      %v7374 = vsel %vm1582, %v7318, 0
      %v7377 = vsel %vm1582, %v7320, 0
      %v7380 = vsel %vm1582, %v7322, 0
      %v7383 = vsel %vm1582, %v7324, 0
      %v7386 = vsel %vm1582, %v7326, 0
      %v7389 = vsel %vm1582, %v7328, 0
      %v7392 = vsel %vm1582, %v7330, 0
      %7394 = vmatpush.bf16.msra.mxu0 0
      %7395 = vmatpush.bf16.msra.mxu0 0
      %7396 = vmatpush.bf16.msra.mxu0 %v7360
      %7397 = vmatpush.bf16.msra.mxu0 %v7359
      %7398 = vmatpush.bf16.msra.mxu0 %v7358
      %7399 = vmatpush.bf16.msra.mxu0 %v7357
      %7400 = vmatpush.bf16.msra.mxu0 %v7356
      %7401 = vmatpush.bf16.msra.mxu0 %v7355
      %7402 = vmatmul.bf16.gmra.mxu0 %v7368
      %v7403 = vpop.f32.mrf.mxu0
      %v7404 = vadd.f32 0.0, %v7403
      %v7405 = vpop.f32.mrf.mxu0
      %v7406 = vadd.f32 0.0, %v7405
      %7407 = vmatmul.bf16.gmra.mxu0 %v7371
      %v7408 = vpop.f32.mrf.mxu0
      %v7409 = vadd.f32 0.0, %v7408
      %v7410 = vpop.f32.mrf.mxu0
      %v7411 = vadd.f32 0.0, %v7410
      %7412 = vmatmul.bf16.gmra.mxu0 %v7374
      %v7413 = vpop.f32.mrf.mxu0
      %v7414 = vadd.f32 0.0, %v7413
      %v7415 = vpop.f32.mrf.mxu0
      %v7416 = vadd.f32 0.0, %v7415
      %7417 = vmatmul.bf16.gmra.mxu0 %v7377
      %v7418 = vpop.f32.mrf.mxu0
      %v7419 = vadd.f32 0.0, %v7418
      %v7420 = vpop.f32.mrf.mxu0
      %v7421 = vadd.f32 0.0, %v7420
      %7422 = vmatmul.bf16.gmra.mxu0 %v7380
      %v7423 = vpop.f32.mrf.mxu0
      %v7424 = vadd.f32 0.0, %v7423
      %v7425 = vpop.f32.mrf.mxu0
      %v7426 = vadd.f32 0.0, %v7425
      %7427 = vmatmul.bf16.gmra.mxu0 %v7383
      %v7428 = vpop.f32.mrf.mxu0
      %v7429 = vadd.f32 0.0, %v7428
      %v7430 = vpop.f32.mrf.mxu0
      %v7431 = vadd.f32 0.0, %v7430
      %7432 = vmatmul.bf16.gmra.mxu0 %v7386
      %v7433 = vpop.f32.mrf.mxu0
      %v7434 = vadd.f32 0.0, %v7433
      %v7435 = vpop.f32.mrf.mxu0
      %v7436 = vadd.f32 0.0, %v7435
      %7437 = vmatmul.bf16.gmra.mxu0 %v7389
      %v7438 = vpop.f32.mrf.mxu0
      %v7439 = vadd.f32 0.0, %v7438
      %v7440 = vpop.f32.mrf.mxu0
      %v7441 = vadd.f32 0.0, %v7440
      %7442 = vmatmul.bf16.gmra.mxu0 %v7392
      %v7443 = vpop.f32.mrf.mxu0
      %v7444 = vadd.f32 0.0, %v7443
      %v7445 = vpop.f32.mrf.mxu0
      %v7446 = vadd.f32 0.0, %v7445
      %7447 = vdwg.mxu0
      %v7452 = vunpack.c.l.b16 %v7216
      %v7453 = vunpack.c.l.b16 %v7217
      %v7454 = vunpack.c.l.b16 %v7218
      %v7455 = vunpack.c.l.b16 %v7234
      %v7456 = vpack.c.b16 %v7453, %v7452
      %v7457 = vpack.c.b16 %v7284, %v7454
      %v7458 = vpack.c.b16 %v7455, %v7455
      %v7459 = vrot.slane %v7456, 1
      %v7460 = vrot.slane %v7457, 1
      %v7461 = vsel %vm1518, %v7459, %v7460
      %v7462 = vrot.slane %v7303, 1
      %v7463 = vsel %vm1518, %v7460, %v7462
      %v7464 = vrot.slane %v7304, 1
      %v7465 = vsel %vm1518, %v7462, %v7464
      %v7466 = vrot.slane %v7305, 1
      %v7467 = vsel %vm1518, %v7464, %v7466
      %v7468 = vrot.slane %v7306, 1
      %v7469 = vsel %vm1518, %v7466, %v7468
      %v7470 = vrot.slane %v7307, 1
      %v7471 = vsel %vm1518, %v7468, %v7470
      %v7472 = vrot.slane %v7308, 1
      %v7473 = vsel %vm1518, %v7470, %v7472
      %v7474 = vrot.slane %v7309, 1
      %v7475 = vsel %vm1518, %v7472, %v7474
      %v7476 = vrot.slane %v7458, 1
      %v7477 = vsel %vm1518, %v7474, %v7476
      %v7490 = vunpack.c.l.b16 %v7235
      %v7491 = vunpack.c.l.b16 %v7236
      %v7492 = vunpack.c.l.b16 %v7237
      %v7493 = vunpack.c.l.b16 %v7238
      %v7494 = vunpack.c.l.b16 %v7239
      %v7495 = vunpack.c.l.b16 %v7240
      %v7496 = vunpack.c.l.b16 %v7241
      %v7497 = vunpack.c.l.b16 %v7242
      %v7498 = vunpack.c.l.b16 %v7243
      %v7499 = vunpack.c.l.b16 %v7244
      %v7500 = vunpack.c.l.b16 %v7245
      %v7501 = vunpack.c.l.b16 %v7246
      %v7502 = vpack.c.b16 %v7491, %v7490
      %v7503 = vpack.c.b16 %v7493, %v7492
      %v7504 = vpack.c.b16 %v7495, %v7494
      %v7505 = vpack.c.b16 %v7497, %v7496
      %v7506 = vpack.c.b16 %v7499, %v7498
      %v7507 = vpack.c.b16 %v7501, %v7500
      %v7515 = vsel %vm1582, %v7461, 0
      %v7518 = vsel %vm1582, %v7463, 0
      %v7521 = vsel %vm1582, %v7465, 0
      %v7524 = vsel %vm1582, %v7467, 0
      %v7527 = vsel %vm1582, %v7469, 0
      %v7530 = vsel %vm1582, %v7471, 0
      %v7533 = vsel %vm1582, %v7473, 0
      %v7536 = vsel %vm1582, %v7475, 0
      %v7539 = vsel %vm1582, %v7477, 0
      %7541 = vmatpush.bf16.msra.mxu0 0
      %7542 = vmatpush.bf16.msra.mxu0 0
      %7543 = vmatpush.bf16.msra.mxu0 %v7507
      %7544 = vmatpush.bf16.msra.mxu0 %v7506
      %7545 = vmatpush.bf16.msra.mxu0 %v7505
      %7546 = vmatpush.bf16.msra.mxu0 %v7504
      %7547 = vmatpush.bf16.msra.mxu0 %v7503
      %7548 = vmatpush.bf16.msra.mxu0 %v7502
      %7549 = vmatmul.bf16.gmra.mxu0 %v7515
      %v7550 = vpop.f32.mrf.mxu0
      %v7551 = vadd.f32 %v7404, %v7550
      %v7552 = vpop.f32.mrf.mxu0
      %v7553 = vadd.f32 %v7406, %v7552
      %7554 = vmatmul.bf16.gmra.mxu0 %v7518
      %v7555 = vpop.f32.mrf.mxu0
      %v7556 = vadd.f32 %v7409, %v7555
      %v7557 = vpop.f32.mrf.mxu0
      %v7558 = vadd.f32 %v7411, %v7557
      %7559 = vmatmul.bf16.gmra.mxu0 %v7521
      %v7560 = vpop.f32.mrf.mxu0
      %v7561 = vadd.f32 %v7414, %v7560
      %v7562 = vpop.f32.mrf.mxu0
      %v7563 = vadd.f32 %v7416, %v7562
      %7564 = vmatmul.bf16.gmra.mxu0 %v7524
      %v7565 = vpop.f32.mrf.mxu0
      %v7566 = vadd.f32 %v7419, %v7565
      %v7567 = vpop.f32.mrf.mxu0
      %v7568 = vadd.f32 %v7421, %v7567
      %7569 = vmatmul.bf16.gmra.mxu0 %v7527
      %v7570 = vpop.f32.mrf.mxu0
      %v7571 = vadd.f32 %v7424, %v7570
      %v7572 = vpop.f32.mrf.mxu0
      %v7573 = vadd.f32 %v7426, %v7572
      %7574 = vmatmul.bf16.gmra.mxu0 %v7530
      %v7575 = vpop.f32.mrf.mxu0
      %v7576 = vadd.f32 %v7429, %v7575
      %v7577 = vpop.f32.mrf.mxu0
      %v7578 = vadd.f32 %v7431, %v7577
      %7579 = vmatmul.bf16.gmra.mxu0 %v7533
      %v7580 = vpop.f32.mrf.mxu0
      %v7581 = vadd.f32 %v7434, %v7580
      %v7582 = vpop.f32.mrf.mxu0
      %v7583 = vadd.f32 %v7436, %v7582
      %7584 = vmatmul.bf16.gmra.mxu0 %v7536
      %v7585 = vpop.f32.mrf.mxu0
      %v7586 = vadd.f32 %v7439, %v7585
      %v7587 = vpop.f32.mrf.mxu0
      %v7588 = vadd.f32 %v7441, %v7587
      %7589 = vmatmul.bf16.gmra.mxu0 %v7539
      %v7590 = vpop.f32.mrf.mxu0
      %v7591 = vadd.f32 %v7444, %v7590
      %v7592 = vpop.f32.mrf.mxu0
      %v7593 = vadd.f32 %v7446, %v7592
      %7594 = vdwg.mxu0
      %v7595 = vld [vmem:[#allocation4 + $0x18] sm:$0x8]
      %v7596 = vld [vmem:[#allocation4 + $0x1c] sm:$0xf]
      %v7597 = vld [vmem:[#allocation4 + $0x20] sm:$0xf]
      %v7598 = vld [vmem:[#allocation4 + $0x24] sm:$0xf]
      %v7599 = vld [vmem:[#allocation4 + $0x28] sm:$0xf]
      %v7600 = vld [vmem:[#allocation4 + $0x2c] sm:$0xf]
      %v7601 = vld [vmem:[#allocation4 + $0x30] sm:$0xf]
      %v7602 = vld [vmem:[#allocation4 + $0x34] sm:$0xf]
      %v7603 = vld [vmem:[#allocation4 + $0x38] sm:$0xf]
      %v7604 = vld [vmem:[#allocation4 + $0x3c] sm:$0xf]
      %v7605 = vld [vmem:[#allocation4 + $0x40] sm:$0xf]
      %v7606 = vld [vmem:[#allocation4 + $0x44] sm:$0xf]
      %v7607 = vld [vmem:[#allocation4 + $0x48] sm:$0xf]
      %v7608 = vld [vmem:[#allocation4 + $0x4c] sm:$0xf]
      %v7609 = vld [vmem:[#allocation4 + $0x50] sm:$0xf]
      %v7610 = vld [vmem:[#allocation4 + $0x54] sm:$0xf]
      %v7611 = vld [vmem:[#allocation4 + $0x58] sm:$0xf]
      %v7612 = vld [vmem:[#allocation4 + $0x5c] sm:$0xf]
      %v7613 = vld [vmem:[#allocation4 + $0x60] sm:$0x7]
      %s7614 = scalar_lea.vmem %s9, 96
      %v7615 = vld [vmem:[%s7614] sm:$0xf]
      %v7616 = vld [vmem:[%s7614 + $0x4] sm:$0xf]
      %v7617 = vld [vmem:[%s7614 + $0x8] sm:$0xf]
      %v7618 = vld [vmem:[%s7614 + $0xc] sm:$0xf]
      %v7619 = vld [vmem:[%s7614 + $0x10] sm:$0xf]
      %v7620 = vld [vmem:[%s7614 + $0x14] sm:$0xf]
      %v7621 = vld [vmem:[%s7614 + $0x18] sm:$0xf]
      %v7622 = vld [vmem:[%s7614 + $0x1c] sm:$0xf]
      %v7623 = vld [vmem:[%s7614 + $0x20] sm:$0xf]
      %v7624 = vld [vmem:[%s7614 + $0x24] sm:$0xf]
      %v7625 = vld [vmem:[%s7614 + $0x28] sm:$0xf]
      %v7626 = vld [vmem:[%s7614 + $0x2c] sm:$0xf]
      %v7646 = vunpack.c.l.b16 %v7595
      %v7647 = vunpack.c.l.b16 %v7596
      %v7648 = vunpack.c.l.b16 %v7597
      %v7649 = vunpack.c.l.b16 %v7598
      %v7650 = vunpack.c.l.b16 %v7599
      %v7651 = vunpack.c.l.b16 %v7600
      %v7652 = vunpack.c.l.b16 %v7601
      %v7653 = vunpack.c.l.b16 %v7602
      %v7654 = vunpack.c.l.b16 %v7603
      %v7655 = vunpack.c.l.b16 %v7604
      %v7656 = vunpack.c.l.b16 %v7605
      %v7657 = vunpack.c.l.b16 %v7606
      %v7658 = vunpack.c.l.b16 %v7607
      %v7659 = vunpack.c.l.b16 %v7608
      %v7660 = vunpack.c.l.b16 %v7609
      %v7661 = vunpack.c.l.b16 %v7610
      %v7662 = vunpack.c.l.b16 %v7611
      %v7663 = vunpack.c.l.b16 %v7612
      %v7664 = vunpack.c.l.b16 %v7613
      %v7665 = vpack.c.b16 %v7647, %v7646
      %v7666 = vpack.c.b16 %v7649, %v7648
      %v7667 = vpack.c.b16 %v7651, %v7650
      %v7668 = vpack.c.b16 %v7653, %v7652
      %v7669 = vpack.c.b16 %v7655, %v7654
      %v7670 = vpack.c.b16 %v7657, %v7656
      %v7671 = vpack.c.b16 %v7659, %v7658
      %v7672 = vpack.c.b16 %v7661, %v7660
      %v7673 = vpack.c.b16 %v7663, %v7662
      %v7674 = vpack.c.b16 %v7664, %v7664
      %v7675 = vrot.slane %v7665, 3
      %v7676 = vrot.slane %v7666, 3
      %v7677 = vsel %vm3361, %v7675, %v7676
      %v7678 = vrot.slane %v7667, 3
      %v7679 = vsel %vm3361, %v7676, %v7678
      %v7680 = vrot.slane %v7668, 3
      %v7681 = vsel %vm3361, %v7678, %v7680
      %v7682 = vrot.slane %v7669, 3
      %v7683 = vsel %vm3361, %v7680, %v7682
      %v7684 = vrot.slane %v7670, 3
      %v7685 = vsel %vm3361, %v7682, %v7684
      %v7686 = vrot.slane %v7671, 3
      %v7687 = vsel %vm3361, %v7684, %v7686
      %v7688 = vrot.slane %v7672, 3
      %v7689 = vsel %vm3361, %v7686, %v7688
      %v7690 = vrot.slane %v7673, 3
      %v7691 = vsel %vm3361, %v7688, %v7690
      %v7692 = vrot.slane %v7674, 3
      %v7693 = vsel %vm3361, %v7690, %v7692
      %v7706 = vunpack.c.l.b16 %v7615
      %v7707 = vunpack.c.l.b16 %v7616
      %v7708 = vunpack.c.l.b16 %v7617
      %v7709 = vunpack.c.l.b16 %v7618
      %v7710 = vunpack.c.l.b16 %v7619
      %v7711 = vunpack.c.l.b16 %v7620
      %v7712 = vunpack.c.l.b16 %v7621
      %v7713 = vunpack.c.l.b16 %v7622
      %v7714 = vunpack.c.l.b16 %v7623
      %v7715 = vunpack.c.l.b16 %v7624
      %v7716 = vunpack.c.l.b16 %v7625
      %v7717 = vunpack.c.l.b16 %v7626
      %v7718 = vpack.c.b16 %v7707, %v7706
      %v7719 = vpack.c.b16 %v7709, %v7708
      %v7720 = vpack.c.b16 %v7711, %v7710
      %v7721 = vpack.c.b16 %v7713, %v7712
      %v7722 = vpack.c.b16 %v7715, %v7714
      %v7723 = vpack.c.b16 %v7717, %v7716
      %v7731 = vsel %vm1582, %v7677, 0
      %v7734 = vsel %vm1582, %v7679, 0
      %v7737 = vsel %vm1582, %v7681, 0
      %v7740 = vsel %vm1582, %v7683, 0
      %v7743 = vsel %vm1582, %v7685, 0
      %v7746 = vsel %vm1582, %v7687, 0
      %v7749 = vsel %vm1582, %v7689, 0
      %v7752 = vsel %vm1582, %v7691, 0
      %v7755 = vsel %vm1582, %v7693, 0
      %7757 = vmatpush.bf16.msra.mxu0 0
      %7758 = vmatpush.bf16.msra.mxu0 0
      %7759 = vmatpush.bf16.msra.mxu0 %v7723
      %7760 = vmatpush.bf16.msra.mxu0 %v7722
      %7761 = vmatpush.bf16.msra.mxu0 %v7721
      %7762 = vmatpush.bf16.msra.mxu0 %v7720
      %7763 = vmatpush.bf16.msra.mxu0 %v7719
      %7764 = vmatpush.bf16.msra.mxu0 %v7718
      %7765 = vmatmul.bf16.gmra.mxu0 %v7731
      %v7766 = vpop.f32.mrf.mxu0
      %v7767 = vadd.f32 0.0, %v7766
      %v7768 = vpop.f32.mrf.mxu0
      %v7769 = vadd.f32 0.0, %v7768
      %7770 = vmatmul.bf16.gmra.mxu0 %v7734
      %v7771 = vpop.f32.mrf.mxu0
      %v7772 = vadd.f32 0.0, %v7771
      %v7773 = vpop.f32.mrf.mxu0
      %v7774 = vadd.f32 0.0, %v7773
      %7775 = vmatmul.bf16.gmra.mxu0 %v7737
      %v7776 = vpop.f32.mrf.mxu0
      %v7777 = vadd.f32 0.0, %v7776
      %v7778 = vpop.f32.mrf.mxu0
      %v7779 = vadd.f32 0.0, %v7778
      %7780 = vmatmul.bf16.gmra.mxu0 %v7740
      %v7781 = vpop.f32.mrf.mxu0
      %v7782 = vadd.f32 0.0, %v7781
      %v7783 = vpop.f32.mrf.mxu0
      %v7784 = vadd.f32 0.0, %v7783
      %7785 = vmatmul.bf16.gmra.mxu0 %v7743
      %v7786 = vpop.f32.mrf.mxu0
      %v7787 = vadd.f32 0.0, %v7786
      %v7788 = vpop.f32.mrf.mxu0
      %v7789 = vadd.f32 0.0, %v7788
      %7790 = vmatmul.bf16.gmra.mxu0 %v7746
      %v7791 = vpop.f32.mrf.mxu0
      %v7792 = vadd.f32 0.0, %v7791
      %v7793 = vpop.f32.mrf.mxu0
      %v7794 = vadd.f32 0.0, %v7793
      %7795 = vmatmul.bf16.gmra.mxu0 %v7749
      %v7796 = vpop.f32.mrf.mxu0
      %v7797 = vadd.f32 0.0, %v7796
      %v7798 = vpop.f32.mrf.mxu0
      %v7799 = vadd.f32 0.0, %v7798
      %7800 = vmatmul.bf16.gmra.mxu0 %v7752
      %v7801 = vpop.f32.mrf.mxu0
      %v7802 = vadd.f32 0.0, %v7801
      %v7803 = vpop.f32.mrf.mxu0
      %v7804 = vadd.f32 0.0, %v7803
      %7805 = vmatmul.bf16.gmra.mxu0 %v7755
      %v7806 = vpop.f32.mrf.mxu0
      %v7807 = vadd.f32 0.0, %v7806
      %v7808 = vpop.f32.mrf.mxu0
      %v7809 = vadd.f32 0.0, %v7808
      %7810 = vdwg.mxu0
      %v7811 = vadd.f32 %v7551, %v7767
      %v7812 = vadd.f32 %v7553, %v7769
      %v7813 = vadd.f32 %v7556, %v7772
      %v7814 = vadd.f32 %v7558, %v7774
      %v7815 = vadd.f32 %v7561, %v7777
      %v7816 = vadd.f32 %v7563, %v7779
      %v7817 = vadd.f32 %v7566, %v7782
      %v7818 = vadd.f32 %v7568, %v7784
      %v7819 = vadd.f32 %v7571, %v7787
      %v7820 = vadd.f32 %v7573, %v7789
      %v7821 = vadd.f32 %v7576, %v7792
      %v7822 = vadd.f32 %v7578, %v7794
      %v7823 = vadd.f32 %v7581, %v7797
      %v7824 = vadd.f32 %v7583, %v7799
      %v7825 = vadd.f32 %v7586, %v7802
      %v7826 = vadd.f32 %v7588, %v7804
      %v7827 = vadd.f32 %v7591, %v7807
      %v7828 = vadd.f32 %v7593, %v7809
      %v7829 = vld [vmem:[%s10] sm:$0x1]
      %v7831 = vperm.slane %v7829, 0
      %v7833 = vadd.f32 %v7811, %v7831
      %v7834 = vadd.f32 %v7812, %v7831
      %v7835 = vadd.f32 %v7813, %v7831
      %v7836 = vadd.f32 %v7814, %v7831
      %v7837 = vadd.f32 %v7815, %v7831
      %v7838 = vadd.f32 %v7816, %v7831
      %v7839 = vadd.f32 %v7817, %v7831
      %v7840 = vadd.f32 %v7818, %v7831
      %v7841 = vadd.f32 %v7819, %v7831
      %v7842 = vadd.f32 %v7820, %v7831
      %v7843 = vadd.f32 %v7821, %v7831
      %v7844 = vadd.f32 %v7822, %v7831
      %v7845 = vadd.f32 %v7823, %v7831
      %v7846 = vadd.f32 %v7824, %v7831
      %v7847 = vadd.f32 %v7825, %v7831
      %v7848 = vadd.f32 %v7826, %v7831
      %v7849 = vadd.f32 %v7827, %v7831
      %v7850 = vadd.f32 %v7828, %v7831
      %7869 = vrot.lane.b32.xlu0 %v7833, 18
      %v7870 = vpop.permute.xlu0 %7869
      %7871 = vrot.lane.b32.xlu0 %v7834, 18
      %v7872 = vpop.permute.xlu0 %7871
      %7873 = vrot.lane.b32.xlu0 %v7835, 18
      %v7874 = vpop.permute.xlu0 %7873
      %7875 = vrot.lane.b32.xlu0 %v7836, 18
      %v7876 = vpop.permute.xlu0 %7875
      %7877 = vrot.lane.b32.xlu0 %v7837, 18
      %v7878 = vpop.permute.xlu0 %7877
      %7879 = vrot.lane.b32.xlu0 %v7838, 18
      %v7880 = vpop.permute.xlu0 %7879
      %7881 = vrot.lane.b32.xlu0 %v7839, 18
      %v7882 = vpop.permute.xlu0 %7881
      %7883 = vrot.lane.b32.xlu0 %v7840, 18
      %v7884 = vpop.permute.xlu0 %7883
      %7885 = vrot.lane.b32.xlu0 %v7841, 18
      %v7886 = vpop.permute.xlu0 %7885
      %7887 = vrot.lane.b32.xlu0 %v7842, 18
      %v7888 = vpop.permute.xlu0 %7887
      %7889 = vrot.lane.b32.xlu0 %v7843, 18
      %v7890 = vpop.permute.xlu0 %7889
      %7891 = vrot.lane.b32.xlu0 %v7844, 18
      %v7892 = vpop.permute.xlu0 %7891
      %7893 = vrot.lane.b32.xlu0 %v7845, 18
      %v7894 = vpop.permute.xlu0 %7893
      %7895 = vrot.lane.b32.xlu0 %v7846, 18
      %v7896 = vpop.permute.xlu0 %7895
      %7897 = vrot.lane.b32.xlu0 %v7847, 18
      %v7898 = vpop.permute.xlu0 %7897
      %7899 = vrot.lane.b32.xlu0 %v7848, 18
      %v7900 = vpop.permute.xlu0 %7899
      %7901 = vrot.lane.b32.xlu0 %v7849, 18
      %v7902 = vpop.permute.xlu0 %7901
      %7903 = vrot.lane.b32.xlu0 %v7850, 18
      %v7904 = vpop.permute.xlu0 %7903
      %7941 = vrot.lane.b32.xlu0 %v3860, 63
      %v7942 = vpop.permute.xlu0 %7941
      %7943 = vrot.lane.b32.xlu0 %v3861, 63
      %v7944 = vpop.permute.xlu0 %7943
      %7945 = vrot.lane.b32.xlu0 %v3862, 63
      %v7946 = vpop.permute.xlu0 %7945
      %7947 = vrot.lane.b32.xlu0 %v3863, 63
      %v7948 = vpop.permute.xlu0 %7947
      %7949 = vrot.lane.b32.xlu0 %v3864, 63
      %v7950 = vpop.permute.xlu0 %7949
      %7951 = vrot.lane.b32.xlu0 %v3865, 63
      %v7952 = vpop.permute.xlu0 %7951
      %7953 = vrot.lane.b32.xlu0 %v3866, 63
      %v7954 = vpop.permute.xlu0 %7953
      %7955 = vrot.lane.b32.xlu0 %v3867, 63
      %v7956 = vpop.permute.xlu0 %7955
      %7957 = vrot.lane.b32.xlu0 %v3868, 63
      %v7958 = vpop.permute.xlu0 %7957
      %7959 = vrot.lane.b32.xlu0 %v3869, 63
      %v7960 = vpop.permute.xlu0 %7959
      %7961 = vrot.lane.b32.xlu0 %v3870, 63
      %v7962 = vpop.permute.xlu0 %7961
      %7963 = vrot.lane.b32.xlu0 %v3871, 63
      %v7964 = vpop.permute.xlu0 %7963
      %7965 = vrot.lane.b32.xlu0 %v3872, 63
      %v7966 = vpop.permute.xlu0 %7965
      %7967 = vrot.lane.b32.xlu0 %v3873, 63
      %v7968 = vpop.permute.xlu0 %7967
      %7969 = vrot.lane.b32.xlu0 %v3874, 63
      %v7970 = vpop.permute.xlu0 %7969
      %7971 = vrot.lane.b32.xlu0 %v3875, 63
      %v7972 = vpop.permute.xlu0 %7971
      %7973 = vrot.lane.b32.xlu0 %v3876, 63
      %v7974 = vpop.permute.xlu0 %7973
      %7975 = vrot.lane.b32.xlu0 %v3877, 63
      %v7976 = vpop.permute.xlu0 %7975
      %8013 = vrot.lane.b32.xlu0 %v4728, 108
      %v8014 = vpop.permute.xlu0 %8013
      %8015 = vrot.lane.b32.xlu0 %v4729, 108
      %v8016 = vpop.permute.xlu0 %8015
      %8017 = vrot.lane.b32.xlu0 %v4730, 108
      %v8018 = vpop.permute.xlu0 %8017
      %8019 = vrot.lane.b32.xlu0 %v4731, 108
      %v8020 = vpop.permute.xlu0 %8019
      %8021 = vrot.lane.b32.xlu0 %v4732, 108
      %v8022 = vpop.permute.xlu0 %8021
      %8023 = vrot.lane.b32.xlu0 %v4733, 108
      %v8024 = vpop.permute.xlu0 %8023
      %8025 = vrot.lane.b32.xlu0 %v4734, 108
      %v8026 = vpop.permute.xlu0 %8025
      %8027 = vrot.lane.b32.xlu0 %v4735, 108
      %v8028 = vpop.permute.xlu0 %8027
      %8029 = vrot.lane.b32.xlu0 %v4736, 108
      %v8030 = vpop.permute.xlu0 %8029
      %8031 = vrot.lane.b32.xlu0 %v4737, 108
      %v8032 = vpop.permute.xlu0 %8031
      %8033 = vrot.lane.b32.xlu0 %v4738, 108
      %v8034 = vpop.permute.xlu0 %8033
      %8035 = vrot.lane.b32.xlu0 %v4739, 108
      %v8036 = vpop.permute.xlu0 %8035
      %8037 = vrot.lane.b32.xlu0 %v4740, 108
      %v8038 = vpop.permute.xlu0 %8037
      %8039 = vrot.lane.b32.xlu0 %v4741, 108
      %v8040 = vpop.permute.xlu0 %8039
      %8041 = vrot.lane.b32.xlu0 %v4742, 108
      %v8042 = vpop.permute.xlu0 %8041
      %8043 = vrot.lane.b32.xlu0 %v4743, 108
      %v8044 = vpop.permute.xlu0 %8043
      %8045 = vrot.lane.b32.xlu0 %v4744, 108
      %v8046 = vpop.permute.xlu0 %8045
      %8047 = vrot.lane.b32.xlu0 %v4745, 108
      %v8048 = vpop.permute.xlu0 %8047
      %v8067 = vsel %vm4689, %v6954, %v7870
      %v8068 = vsel %vm4689, %v6955, %v7872
      %v8069 = vsel %vm4689, %v6956, %v7874
      %v8070 = vsel %vm4689, %v6957, %v7876
      %v8071 = vsel %vm4689, %v6958, %v7878
      %v8072 = vsel %vm4689, %v6959, %v7880
      %v8073 = vsel %vm4689, %v6960, %v7882
      %v8074 = vsel %vm4689, %v6961, %v7884
      %v8075 = vsel %vm4689, %v6962, %v7886
      %v8076 = vsel %vm4689, %v6963, %v7888
      %v8077 = vsel %vm4689, %v6964, %v7890
      %v8078 = vsel %vm4689, %v6965, %v7892
      %v8079 = vsel %vm4689, %v6966, %v7894
      %v8080 = vsel %vm4689, %v6967, %v7896
      %v8081 = vsel %vm4689, %v6968, %v7898
      %v8082 = vsel %vm4689, %v6969, %v7900
      %v8083 = vsel %vm4689, %v6970, %v7902
      %v8084 = vsel %vm4689, %v6971, %v7904
      %vm8085 = vcmask 515072
      %v8086 = vsel %vm8085, %v8067, %v7942
      %v8087 = vsel %vm8085, %v8068, %v7944
      %v8088 = vsel %vm8085, %v8069, %v7946
      %v8089 = vsel %vm8085, %v8070, %v7948
      %v8090 = vsel %vm8085, %v8071, %v7950
      %v8091 = vsel %vm8085, %v8072, %v7952
      %v8092 = vsel %vm8085, %v8073, %v7954
      %v8093 = vsel %vm8085, %v8074, %v7956
      %v8094 = vsel %vm8085, %v8075, %v7958
      %v8095 = vsel %vm8085, %v8076, %v7960
      %v8096 = vsel %vm8085, %v8077, %v7962
      %v8097 = vsel %vm8085, %v8078, %v7964
      %v8098 = vsel %vm8085, %v8079, %v7966
      %v8099 = vsel %vm8085, %v8080, %v7968
      %v8100 = vsel %vm8085, %v8081, %v7970
      %v8101 = vsel %vm8085, %v8082, %v7972
      %v8102 = vsel %vm8085, %v8083, %v7974
      %v8103 = vsel %vm8085, %v8084, %v7976
      %vm8104 = vcmask 883712
      %v8105 = vsel %vm8104, %v8086, %v8014
      %v8106 = vsel %vm8104, %v8087, %v8016
      %v8107 = vsel %vm8104, %v8088, %v8018
      %v8108 = vsel %vm8104, %v8089, %v8020
      %v8109 = vsel %vm8104, %v8090, %v8022
      %v8110 = vsel %vm8104, %v8091, %v8024
      %v8111 = vsel %vm8104, %v8092, %v8026
      %v8112 = vsel %vm8104, %v8093, %v8028
      %v8113 = vsel %vm8104, %v8094, %v8030
      %v8114 = vsel %vm8104, %v8095, %v8032
      %v8115 = vsel %vm8104, %v8096, %v8034
      %v8116 = vsel %vm8104, %v8097, %v8036
      %v8117 = vsel %vm8104, %v8098, %v8038
      %v8118 = vsel %vm8104, %v8099, %v8040
      %v8119 = vsel %vm8104, %v8100, %v8042
      %v8120 = vsel %vm8104, %v8101, %v8044
      %v8121 = vsel %vm8104, %v8102, %v8046
      %v8122 = vsel %vm8104, %v8103, %v8048
      %vm8123 = vcmask 203776
      %v8124 = vsel %vm8123, %v8014, 0.0
      %v8125 = vsel %vm8123, %v8016, 0.0
      %v8126 = vsel %vm8123, %v8018, 0.0
      %v8127 = vsel %vm8123, %v8020, 0.0
      %v8128 = vsel %vm8123, %v8022, 0.0
      %v8129 = vsel %vm8123, %v8024, 0.0
      %v8130 = vsel %vm8123, %v8026, 0.0
      %v8131 = vsel %vm8123, %v8028, 0.0
      %v8132 = vsel %vm8123, %v8030, 0.0
      %v8133 = vsel %vm8123, %v8032, 0.0
      %v8134 = vsel %vm8123, %v8034, 0.0
      %v8135 = vsel %vm8123, %v8036, 0.0
      %v8136 = vsel %vm8123, %v8038, 0.0
      %v8137 = vsel %vm8123, %v8040, 0.0
      %v8138 = vsel %vm8123, %v8042, 0.0
      %v8139 = vsel %vm8123, %v8044, 0.0
      %v8140 = vsel %vm8123, %v8046, 0.0
      %v8141 = vsel %vm8123, %v8048, 0.0
      %8142 = vst [vmem:[%s520] sm:$0xff] %v8105
      %8143 = vst [vmem:[%s520 + $0x8] sm:$0xff] %v8124
      %8144 = vst [vmem:[%s520 + $0x10] sm:$0xff] %v8106
      %8145 = vst [vmem:[%s520 + $0x18] sm:$0xff] %v8125
      %8146 = vst [vmem:[%s520 + $0x20] sm:$0xff] %v8107
      %8147 = vst [vmem:[%s520 + $0x28] sm:$0xff] %v8126
      %8148 = vst [vmem:[%s520 + $0x30] sm:$0xff] %v8108
      %8149 = vst [vmem:[%s520 + $0x38] sm:$0xff] %v8127
      %8150 = vst [vmem:[%s520 + $0x40] sm:$0xff] %v8109
      %8151 = vst [vmem:[%s520 + $0x48] sm:$0xff] %v8128
      %8152 = vst [vmem:[%s520 + $0x50] sm:$0xff] %v8110
      %8153 = vst [vmem:[%s520 + $0x58] sm:$0xff] %v8129
      %8154 = vst [vmem:[%s520 + $0x60] sm:$0xff] %v8111
      %8155 = vst [vmem:[%s520 + $0x68] sm:$0xff] %v8130
      %8156 = vst [vmem:[%s520 + $0x70] sm:$0xff] %v8112
      %8157 = vst [vmem:[%s520 + $0x78] sm:$0xff] %v8131
      %8158 = vst [vmem:[%s520 + $0x80] sm:$0xff] %v8113
      %8159 = vst [vmem:[%s520 + $0x88] sm:$0xff] %v8132
      %8160 = vst [vmem:[%s520 + $0x90] sm:$0xff] %v8114
      %8161 = vst [vmem:[%s520 + $0x98] sm:$0xff] %v8133
      %8162 = vst [vmem:[%s520 + $0xa0] sm:$0xff] %v8115
      %8163 = vst [vmem:[%s520 + $0xa8] sm:$0xff] %v8134
      %8164 = vst [vmem:[%s520 + $0xb0] sm:$0xff] %v8116
      %8165 = vst [vmem:[%s520 + $0xb8] sm:$0xff] %v8135
      %8166 = vst [vmem:[%s520 + $0xc0] sm:$0xff] %v8117
      %8167 = vst [vmem:[%s520 + $0xc8] sm:$0xff] %v8136
      %8168 = vst [vmem:[%s520 + $0xd0] sm:$0xff] %v8118
      %8169 = vst [vmem:[%s520 + $0xd8] sm:$0xff] %v8137
      %8170 = vst [vmem:[%s520 + $0xe0] sm:$0xff] %v8119
      %8171 = vst [vmem:[%s520 + $0xe8] sm:$0xff] %v8138
      %8172 = vst [vmem:[%s520 + $0xf0] sm:$0xff] %v8120
      %8173 = vst [vmem:[%s520 + $0xf8] sm:$0xff] %v8139
      %8174 = vst [vmem:[%s520 + $0x100] sm:$0xff] %v8121
      %8175 = vst [vmem:[%s520 + $0x108] sm:$0xff] %v8140
      %8176 = vst [vmem:[%s520 + $0x110] sm:$0xff] %v8122
      %8177 = vst [vmem:[%s520 + $0x118] sm:$0xff] %v8141
      %s8178 = smul.u32 18, %s29
      %p8179 = scmp.lt.s32.totalorder %s28, 1
      %s8180 = scalar_select %p8179, %s28, 1
      %p8181 = scmp.lt.s32.totalorder %s8178, 35
      %s8182 = scalar_select %p8181, %s8178, 35
      %s8183 = smul.addr %s8182, 2
      %s8184 = smul.addr %s8180, 72
      %s8185 = sadd.s32 %s8183, %s8184
      %s8186 = smul.addr %s8185, 8
      %s8187 = scalar_lea.vmem %s13, %s8186
      // Predicated region
      $region73: #{_forward_level.1} parent=71 // pred_check
        %p8188 = pneg %p346
      $region74: #{_forward_level.1} parent=71 // pred_check_branch
        %8190 = sbr.rel (%p8188) target = $region76
      $region75: #{_forward_level.1} parent=71 // pred_region
        %s8191 = smul.u32 18, %s29
      $region76: #{_forward_level.1} parent=71 // pred_fallthru
        _
    $region72: #{_forward_level.1} parent=5 // pred_fallthru
      _
    %p8192 = scmp.le.s32.totalorder 2, %s19
    // Predicated region
    $region77: #{_forward_level.1} parent=5 // pred_check
      %p8193 = pneg %p8192
    $region78: #{_forward_level.1} parent=5 // pred_check_branch
      %8195 = sbr.rel (%p8193) target = $region80
    $region79: #{_forward_level.1} parent=5 // pred_region
      %s8196 = ssub.s32 %s19, 2
      // Predicated region
      $region81: #{_forward_level.1} parent=79 // pred_check
        %p8197 = pneg %p352
      $region82: #{_forward_level.1} parent=79 // pred_check_branch
        %8199 = sbr.rel (%p8197) target = $region84
      $region83: #{_forward_level.1} parent=79 // pred_region
        %s8200 = smul.u32 18, %s31
        %p8201 = scmp.lt.s32.totalorder %s30, 1
        %s8202 = scalar_select %p8201, %s30, 1
        %p8203 = scmp.lt.s32.totalorder %s8200, 35
        %s8204 = scalar_select %p8203, %s8200, 35
        %s8205 = smul.addr %s8204, 2
        %s8206 = smul.addr %s8202, 72
        %s8207 = sadd.s32 %s8205, %s8206
        %s8208 = smul.addr %s8207, 8
        %s8209 = scalar_lea.vmem %s13, %s8208
      $region84: #{_forward_level.1} parent=79 // pred_fallthru
        _
    $region80: #{_forward_level.1} parent=5 // pred_fallthru
      _
  $region6: #{_forward_level.1} parent=0 // loop_footer
    %s23 = sadd.s32 1, %s19
  $region7: #{_forward_level.1} parent=0 // loop_footer_branch
    %18 = sbr.rel target = $region3
  $region8: #{_forward_level.1} parent=0 // loop_exit
    _

</llo_original>
